<compile_context>
chip_gen: v5e
topology: v5e:2x2
jax: 0.10.0
libtpu: 0.0.40
codegen_flags: <defaults>
</compile_context>

<pallas_src>
import functools

import jax
import jax.numpy as jnp
from jax.experimental import pallas as pl
from jax.experimental.pallas import tpu as pltpu


# ---------------------------------------------------------------------------
# Kernel 1: fused conv (im2col GEMM, flipped) + bias + ReLU + 2x2/2 max-pool.
# One grid step per batch element.
# ---------------------------------------------------------------------------
def _conv_relu_pool_kernel(p_ref, w_ref, b_ref, se_ref, so_ref, o_ref, *, ho):
    # p_ref : (1, oh, K, ow)   im2col patches (one conv-output row per slab)
    # w_ref : (Cout, K)        flattened conv weights (O, C*kh*kw)
    # b_ref : (Cout, 1)        bias column
    # se_ref: (ow, wo)         even-column selector  (se[2x', x'] = 1)
    # so_ref: (ow, wo)         odd-column selector   (so[2x'+1, x'] = 1)
    # o_ref : (1, Cout, ho, wo)
    w = w_ref[...]
    b = b_ref[...]
    se = se_ref[...]
    so = so_ref[...]
    for r in range(ho):                                    # static, unrolled
        p0 = p_ref[0, 2 * r, :, :]                         # (K, ow)
        p1 = p_ref[0, 2 * r + 1, :, :]                     # (K, ow)
        y0 = jnp.dot(w, p0, preferred_element_type=jnp.float32)  # (Cout, ow)
        y1 = jnp.dot(w, p1, preferred_element_type=jnp.float32)
        v = jnp.maximum(y0, y1)                            # vertical 2-max (pre-bias)
        ev = jnp.dot(v, se, preferred_element_type=jnp.float32)  # (Cout, wo)
        od = jnp.dot(v, so, preferred_element_type=jnp.float32)
        # pool(relu(y + b)) == relu(max_2x2(y) + b): relu monotone, bias constant
        # over the pooling window, so bias/ReLU run on the pooled (small) tile.
        pooled = jnp.maximum(jnp.maximum(ev, od) + b, 0.0)
        o_ref[0, :, r, :] = pooled.astype(o_ref.dtype)


def _im2col_rows(x, kh, kw):
    """x:(N,C,H,W) -> patches (N, oh, C*kh*kw, ow); K ordered (C, kh, kw)."""
    N, C, H, W = x.shape
    oh, ow = H - kh + 1, W - kw + 1
    cols = []
    for i in range(kh):
        for j in range(kw):
            cols.append(x[:, :, i:i + oh, j:j + ow])       # (N, C, oh, ow)
    p = jnp.stack(cols, axis=2)                            # (N, C, kh*kw, oh, ow)
    p = p.transpose(0, 3, 1, 2, 4)                         # (N, oh, C, kh*kw, ow)
    return p.reshape(N, oh, C * kh * kw, ow), oh, ow


def _pool_selectors(ow):
    """0/1 selection matrices for even / odd columns; exact under matmul."""
    wo = ow // 2
    rows = jnp.arange(ow)[:, None]
    cols = jnp.arange(wo)[None, :]
    s_even = (rows == 2 * cols).astype(jnp.float32)
    s_odd = (rows == 2 * cols + 1).astype(jnp.float32)
    return s_even, s_odd


def conv_relu_pool(x, w_flat, b_col, kh, kw):
    """x:(N,Cin,H,W), w_flat:(Cout,Cin*kh*kw), b_col:(Cout,1) -> (N,Cout,ho,wo)."""
    N, C, H, W = x.shape
    cout, K = w_flat.shape
    assert K == C * kh * kw
    # TODO(synk): im2col patches are still materialized by XLA in HBM; a fully
    # in-kernel patch extraction would need a manual gather/DMA loop.
    patches, oh, ow = _im2col_rows(x, kh, kw)
    ho, wo = oh // 2, ow // 2
    s_even, s_odd = _pool_selectors(ow)

    return pl.pallas_call(
        functools.partial(_conv_relu_pool_kernel, ho=ho),
        out_shape=jax.ShapeDtypeStruct((N, cout, ho, wo), jnp.float32),
        grid=(N,),
        in_specs=[
            pl.BlockSpec((1, oh, K, ow), lambda b: (b, 0, 0, 0)),
            pl.BlockSpec((cout, K), lambda b: (0, 0)),
            pl.BlockSpec((cout, 1), lambda b: (0, 0)),
            pl.BlockSpec((ow, wo), lambda b: (0, 0)),
            pl.BlockSpec((ow, wo), lambda b: (0, 0)),
        ],
        out_specs=pl.BlockSpec((1, cout, ho, wo), lambda b: (b, 0, 0, 0)),
        compiler_params=pltpu.CompilerParams(
            dimension_semantics=("parallel",)),   # batch axis -> both TCs on v7x
    )(patches, w_flat, b_col, s_even, s_odd)


# ---------------------------------------------------------------------------
# Kernel 2: fc1 + ReLU + fc2 + ReLU + fc3 fused; all weights stay in VMEM.
# ---------------------------------------------------------------------------
def _fc_fused_kernel(x_ref, w1_ref, b1_ref, w2_ref, b2_ref, w3_ref, b3_ref,
                     o_ref):
    h = jnp.dot(x_ref[...], w1_ref[...],
                preferred_element_type=jnp.float32) + b1_ref[...]
    h = jnp.maximum(h, 0.0)
    h = jnp.dot(h, w2_ref[...],
                preferred_element_type=jnp.float32) + b2_ref[...]
    h = jnp.maximum(h, 0.0)
    y = jnp.dot(h, w3_ref[...],
                preferred_element_type=jnp.float32) + b3_ref[...]
    o_ref[...] = y.astype(o_ref.dtype)


def fc_fused(x, w1, b1, w2, b2, w3, b3):
    N = x.shape[0]
    n_out = w3.shape[1]
    args = (x, w1, b1, w2, b2, w3, b3)
    return pl.pallas_call(
        _fc_fused_kernel,
        out_shape=jax.ShapeDtypeStruct((N, n_out), jnp.float32),
        grid=(1,),
        in_specs=[pl.BlockSpec(a.shape, lambda i: (0, 0)) for a in args],
        out_specs=pl.BlockSpec((N, n_out), lambda i: (0, 0)),
        compiler_params=pltpu.CompilerParams(
            dimension_semantics=("arbitrary",)),
    )(*args)


# ---------------------------------------------------------------------------
# Parameters (PyTorch layout) + one-time kernel-layout preparation.
# ---------------------------------------------------------------------------
def init_params(key):
    def uniform(k, shape, fan_in):
        bound = 1.0 / jnp.sqrt(float(fan_in))
        return jax.random.uniform(k, shape, jnp.float32, -bound, bound)

    ks = jax.random.split(key, 10)
    return {
        "conv1_w": uniform(ks[0], (6, 3, 5, 5), 3 * 5 * 5),
        "conv1_b": uniform(ks[1], (6,), 3 * 5 * 5),
        "conv2_w": uniform(ks[2], (16, 6, 5, 5), 6 * 5 * 5),
        "conv2_b": uniform(ks[3], (16,), 6 * 5 * 5),
        "fc1_w": uniform(ks[4], (120, 16 * 13 * 13), 16 * 13 * 13),
        "fc1_b": uniform(ks[5], (120,), 16 * 13 * 13),
        "fc2_w": uniform(ks[6], (84, 120), 120),
        "fc2_b": uniform(ks[7], (84,), 120),
        "fc3_w": uniform(ks[8], (10, 84), 84),
        "fc3_b": uniform(ks[9], (10,), 84),
    }


def prepare_params(p):
    """Hoist all weight reshapes/transposes out of the forward pass (run once)."""
    return {
        "conv1_wf": p["conv1_w"].reshape(6, 3 * 5 * 5),
        "conv1_b": p["conv1_b"].reshape(6, 1),
        "conv2_wf": p["conv2_w"].reshape(16, 6 * 5 * 5),
        "conv2_b": p["conv2_b"].reshape(16, 1),
        "fc1_w": p["fc1_w"].T,
        "fc1_b": p["fc1_b"].reshape(1, -1),
        "fc2_w": p["fc2_w"].T,
        "fc2_b": p["fc2_b"].reshape(1, -1),
        "fc3_w": p["fc3_w"].T,
        "fc3_b": p["fc3_b"].reshape(1, -1),
    }


def net_forward(kp, x):
    x = conv_relu_pool(x, kp["conv1_wf"], kp["conv1_b"], 5, 5)   # (N, 6, 30, 30)
    x = conv_relu_pool(x, kp["conv2_wf"], kp["conv2_b"], 5, 5)   # (N, 16, 13, 13)
    x = x.reshape(x.shape[0], 16 * 13 * 13)                      # == torch .view
    return fc_fused(x, kp["fc1_w"], kp["fc1_b"], kp["fc2_w"], kp["fc2_b"],
                    kp["fc3_w"], kp["fc3_b"])


# ---------------------------------------------------------------------------
# Pure-JAX reference (sanity check only)
# ---------------------------------------------------------------------------
def net_forward_ref(p, x):
    hp = jax.lax.Precision.HIGHEST

    def conv(x, w, b):
        y = jax.lax.conv_general_dilated(
            x, w, (1, 1), "VALID",
            dimension_numbers=("NCHW", "OIHW", "NCHW"), precision=hp)
        return jax.nn.relu(y + b[None, :, None, None])

    def pool(x):
        return jax.lax.reduce_window(x, -jnp.inf, jax.lax.max,
                                     (1, 1, 2, 2), (1, 1, 2, 2), "VALID")

    x = pool(conv(x, p["conv1_w"], p["conv1_b"]))
    x = pool(conv(x, p["conv2_w"], p["conv2_b"]))
    x = x.reshape(x.shape[0], 16 * 13 * 13)
    x = jax.nn.relu(jnp.dot(x, p["fc1_w"].T, precision=hp) + p["fc1_b"])
    x = jax.nn.relu(jnp.dot(x, p["fc2_w"].T, precision=hp) + p["fc2_b"])
    return jnp.dot(x, p["fc3_w"].T, precision=hp) + p["fc3_b"]


if __name__ == "__main__":
    # fc1 = Linear(16*13*13, 120) implies a 64x64 spatial input.
    key = jax.random.PRNGKey(0)
    x = jax.random.normal(key, (2, 3, 64, 64), dtype=jnp.float32)
    params = init_params(jax.random.PRNGKey(42))
    kparams = prepare_params(params)          # one-time layout prep, outside jit

    out = jax.jit(net_forward)(kparams, x)
    out = jax.block_until_ready(out)
    assert out.shape == (2, 10), out.shape

    ref = net_forward_ref(params, x)
    max_err = float(jnp.max(jnp.abs(out - ref)))
    assert jnp.allclose(out, ref, atol=1e-4, rtol=1e-4), max_err

    print("KERNEL_OK")
</pallas_src>

<mosaic_0001>
module attributes {stable_mosaic.version = 11 : i64} {
  func.func @_conv_relu_pool_kernel(%arg0: i32, %arg1: memref<1x60x75x60xf32, #tpu.memory_space<vmem>>, %arg2: memref<6x75xf32, #tpu.memory_space<vmem>>, %arg3: memref<6x1xf32, #tpu.memory_space<vmem>>, %arg4: memref<60x30xf32, #tpu.memory_space<vmem>>, %arg5: memref<60x30xf32, #tpu.memory_space<vmem>>, %arg6: memref<1x6x30x30xf32, #tpu.memory_space<vmem>>) attributes {dimension_semantics = [#tpu.dimension_semantics<parallel>], iteration_bounds = array<i64: 2>, scalar_prefetch = 0 : i64, scratch_operands = 0 : i64, tpu.core_type = #tpu.core_type<tc>, window_params = [{transform_indices = @transform_0, window_bounds = array<i64: 1, 60, 75, 60>}, {pipeline_mode = #tpu.pipeline_mode<synchronous>, transform_indices = @transform_1, window_bounds = array<i64: 6, 75>}, {pipeline_mode = #tpu.pipeline_mode<synchronous>, transform_indices = @transform_2, window_bounds = array<i64: 6, 1>}, {pipeline_mode = #tpu.pipeline_mode<synchronous>, transform_indices = @transform_3, window_bounds = array<i64: 60, 30>}, {pipeline_mode = #tpu.pipeline_mode<synchronous>, transform_indices = @transform_4, window_bounds = array<i64: 60, 30>}, {transform_indices = @transform_5, window_bounds = array<i64: 1, 6, 30, 30>}]} {
    %c0 = arith.constant 0 : index
    %c0_0 = arith.constant 0 : index
    %0 = vector.load %arg2[%c0, %c0_0] : memref<6x75xf32, #tpu.memory_space<vmem>>, vector<6x75xf32>
    %c0_1 = arith.constant 0 : index
    %c0_2 = arith.constant 0 : index
    %1 = vector.load %arg3[%c0_1, %c0_2] : memref<6x1xf32, #tpu.memory_space<vmem>>, vector<6x1xf32>
    %c0_3 = arith.constant 0 : index
    %c0_4 = arith.constant 0 : index
    %2 = vector.load %arg4[%c0_3, %c0_4] : memref<60x30xf32, #tpu.memory_space<vmem>>, vector<60x30xf32>
    %c0_5 = arith.constant 0 : index
    %c0_6 = arith.constant 0 : index
    %3 = vector.load %arg5[%c0_5, %c0_6] : memref<60x30xf32, #tpu.memory_space<vmem>>, vector<60x30xf32>
    %c0_7 = arith.constant 0 : index
    %c0_8 = arith.constant 0 : index
    %c0_9 = arith.constant 0 : index
    %c0_10 = arith.constant 0 : index
    %4 = vector.load %arg1[%c0_7, %c0_8, %c0_9, %c0_10] : memref<1x60x75x60xf32, #tpu.memory_space<vmem>>, vector<1x1x75x60xf32>
    %5 = vector.shape_cast %4 : vector<1x1x75x60xf32> to vector<75x60xf32>
    %c0_11 = arith.constant 0 : index
    %c1 = arith.constant 1 : index
    %c0_12 = arith.constant 0 : index
    %c0_13 = arith.constant 0 : index
    %6 = vector.load %arg1[%c0_11, %c1, %c0_12, %c0_13] : memref<1x60x75x60xf32, #tpu.memory_space<vmem>>, vector<1x1x75x60xf32>
    %7 = vector.shape_cast %6 : vector<1x1x75x60xf32> to vector<75x60xf32>
    %cst = arith.constant dense<0.000000e+00> : vector<6x60xf32>
    %8 = tpu.matmul %0, %5, %cst {dimension_numbers = #tpu.dot_dimension_numbers<[1], [0], [0], [1], [0, 0, 1, 1], [], []>} : vector<6x75xf32>, vector<75x60xf32>, vector<6x60xf32> -> vector<6x60xf32>
    %cst_14 = arith.constant dense<0.000000e+00> : vector<6x60xf32>
    %9 = tpu.matmul %0, %7, %cst_14 {dimension_numbers = #tpu.dot_dimension_numbers<[1], [0], [0], [1], [0, 0, 1, 1], [], []>} : vector<6x75xf32>, vector<75x60xf32>, vector<6x60xf32> -> vector<6x60xf32>
    %10 = arith.maximumf %8, %9 : vector<6x60xf32>
    %cst_15 = arith.constant dense<0.000000e+00> : vector<6x30xf32>
    %11 = tpu.matmul %10, %2, %cst_15 {dimension_numbers = #tpu.dot_dimension_numbers<[1], [0], [0], [1], [0, 0, 1, 1], [], []>} : vector<6x60xf32>, vector<60x30xf32>, vector<6x30xf32> -> vector<6x30xf32>
    %cst_16 = arith.constant dense<0.000000e+00> : vector<6x30xf32>
    %12 = tpu.matmul %10, %3, %cst_16 {dimension_numbers = #tpu.dot_dimension_numbers<[1], [0], [0], [1], [0, 0, 1, 1], [], []>} : vector<6x60xf32>, vector<60x30xf32>, vector<6x30xf32> -> vector<6x30xf32>
    %13 = arith.maximumf %11, %12 : vector<6x30xf32>
    %14 = vector.broadcast %1 : vector<6x1xf32> to vector<6x30xf32>
    %15 = arith.addf %13, %14 : vector<6x30xf32>
    %cst_17 = arith.constant 0.000000e+00 : f32
    %16 = vector.broadcast %cst_17 : f32 to vector<6x30xf32>
    %17 = arith.maximumf %15, %16 : vector<6x30xf32>
    %c0_18 = arith.constant 0 : index
    %c0_19 = arith.constant 0 : index
    %c0_20 = arith.constant 0 : index
    %c0_21 = arith.constant 0 : index
    %18 = vector.load %arg6[%c0_18, %c0_19, %c0_20, %c0_21] : memref<1x6x30x30xf32, #tpu.memory_space<vmem>>, vector<1x6x1x30xf32>
    %19 = vector.shape_cast %18 : vector<1x6x1x30xf32> to vector<6x30xf32>
    %20 = vector.shape_cast %17 : vector<6x30xf32> to vector<1x6x1x30xf32>
    tpu.vector_store %arg6[%c0_18, %c0_19, %c0_20, %c0_21], %20 {strides = array<i32>} : memref<1x6x30x30xf32, #tpu.memory_space<vmem>>, vector<1x6x1x30xf32>,
    %c0_22 = arith.constant 0 : index
    %c2 = arith.constant 2 : index
    %c0_23 = arith.constant 0 : index
    %c0_24 = arith.constant 0 : index
    %21 = vector.load %arg1[%c0_22, %c2, %c0_23, %c0_24] : memref<1x60x75x60xf32, #tpu.memory_space<vmem>>, vector<1x1x75x60xf32>
    %22 = vector.shape_cast %21 : vector<1x1x75x60xf32> to vector<75x60xf32>
    %c0_25 = arith.constant 0 : index
    %c3 = arith.constant 3 : index
    %c0_26 = arith.constant 0 : index
    %c0_27 = arith.constant 0 : index
    %23 = vector.load %arg1[%c0_25, %c3, %c0_26, %c0_27] : memref<1x60x75x60xf32, #tpu.memory_space<vmem>>, vector<1x1x75x60xf32>
    %24 = vector.shape_cast %23 : vector<1x1x75x60xf32> to vector<75x60xf32>
    %cst_28 = arith.constant dense<0.000000e+00> : vector<6x60xf32>
    %25 = tpu.matmul %0, %22, %cst_28 {dimension_numbers = #tpu.dot_dimension_numbers<[1], [0], [0], [1], [0, 0, 1, 1], [], []>} : vector<6x75xf32>, vector<75x60xf32>, vector<6x60xf32> -> vector<6x60xf32>
    %cst_29 = arith.constant dense<0.000000e+00> : vector<6x60xf32>
    %26 = tpu.matmul %0, %24, %cst_29 {dimension_numbers = #tpu.dot_dimension_numbers<[1], [0], [0], [1], [0, 0, 1, 1], [], []>} : vector<6x75xf32>, vector<75x60xf32>, vector<6x60xf32> -> vector<6x60xf32>
    %27 = arith.maximumf %25, %26 : vector<6x60xf32>
    %cst_30 = arith.constant dense<0.000000e+00> : vector<6x30xf32>
    %28 = tpu.matmul %27, %2, %cst_30 {dimension_numbers = #tpu.dot_dimension_numbers<[1], [0], [0], [1], [0, 0, 1, 1], [], []>} : vector<6x60xf32>, vector<60x30xf32>, vector<6x30xf32> -> vector<6x30xf32>
    %cst_31 = arith.constant dense<0.000000e+00> : vector<6x30xf32>
    %29 = tpu.matmul %27, %3, %cst_31 {dimension_numbers = #tpu.dot_dimension_numbers<[1], [0], [0], [1], [0, 0, 1, 1], [], []>} : vector<6x60xf32>, vector<60x30xf32>, vector<6x30xf32> -> vector<6x30xf32>
    %30 = arith.maximumf %28, %29 : vector<6x30xf32>
    %31 = vector.broadcast %1 : vector<6x1xf32> to vector<6x30xf32>
    %32 = arith.addf %30, %31 : vector<6x30xf32>
    %cst_32 = arith.constant 0.000000e+00 : f32
    %33 = vector.broadcast %cst_32 : f32 to vector<6x30xf32>
    %34 = arith.maximumf %32, %33 : vector<6x30xf32>
    %c0_33 = arith.constant 0 : index
    %c0_34 = arith.constant 0 : index
    %c1_35 = arith.constant 1 : index
    %c0_36 = arith.constant 0 : index
    %35 = vector.load %arg6[%c0_33, %c0_34, %c1_35, %c0_36] : memref<1x6x30x30xf32, #tpu.memory_space<vmem>>, vector<1x6x1x30xf32>
    %36 = vector.shape_cast %35 : vector<1x6x1x30xf32> to vector<6x30xf32>
    %37 = vector.shape_cast %34 : vector<6x30xf32> to vector<1x6x1x30xf32>
    tpu.vector_store %arg6[%c0_33, %c0_34, %c1_35, %c0_36], %37 {strides = array<i32>} : memref<1x6x30x30xf32, #tpu.memory_space<vmem>>, vector<1x6x1x30xf32>,
    %c0_37 = arith.constant 0 : index
    %c4 = arith.constant 4 : index
    %c0_38 = arith.constant 0 : index
    %c0_39 = arith.constant 0 : index
    %38 = vector.load %arg1[%c0_37, %c4, %c0_38, %c0_39] : memref<1x60x75x60xf32, #tpu.memory_space<vmem>>, vector<1x1x75x60xf32>
    %39 = vector.shape_cast %38 : vector<1x1x75x60xf32> to vector<75x60xf32>
    %c0_40 = arith.constant 0 : index
    %c5 = arith.constant 5 : index
    %c0_41 = arith.constant 0 : index
    %c0_42 = arith.constant 0 : index
    %40 = vector.load %arg1[%c0_40, %c5, %c0_41, %c0_42] : memref<1x60x75x60xf32, #tpu.memory_space<vmem>>, vector<1x1x75x60xf32>
    %41 = vector.shape_cast %40 : vector<1x1x75x60xf32> to vector<75x60xf32>
    %cst_43 = arith.constant dense<0.000000e+00> : vector<6x60xf32>
    %42 = tpu.matmul %0, %39, %cst_43 {dimension_numbers = #tpu.dot_dimension_numbers<[1], [0], [0], [1], [0, 0, 1, 1], [], []>} : vector<6x75xf32>, vector<75x60xf32>, vector<6x60xf32> -> vector<6x60xf32>
    %cst_44 = arith.constant dense<0.000000e+00> : vector<6x60xf32>
    %43 = tpu.matmul %0, %41, %cst_44 {dimension_numbers = #tpu.dot_dimension_numbers<[1], [0], [0], [1], [0, 0, 1, 1], [], []>} : vector<6x75xf32>, vector<75x60xf32>, vector<6x60xf32> -> vector<6x60xf32>
    %44 = arith.maximumf %42, %43 : vector<6x60xf32>
    %cst_45 = arith.constant dense<0.000000e+00> : vector<6x30xf32>
    %45 = tpu.matmul %44, %2, %cst_45 {dimension_numbers = #tpu.dot_dimension_numbers<[1], [0], [0], [1], [0, 0, 1, 1], [], []>} : vector<6x60xf32>, vector<60x30xf32>, vector<6x30xf32> -> vector<6x30xf32>
    %cst_46 = arith.constant dense<0.000000e+00> : vector<6x30xf32>
    %46 = tpu.matmul %44, %3, %cst_46 {dimension_numbers = #tpu.dot_dimension_numbers<[1], [0], [0], [1], [0, 0, 1, 1], [], []>} : vector<6x60xf32>, vector<60x30xf32>, vector<6x30xf32> -> vector<6x30xf32>
    %47 = arith.maximumf %45, %46 : vector<6x30xf32>
    %48 = vector.broadcast %1 : vector<6x1xf32> to vector<6x30xf32>
    %49 = arith.addf %47, %48 : vector<6x30xf32>
    %cst_47 = arith.constant 0.000000e+00 : f32
    %50 = vector.broadcast %cst_47 : f32 to vector<6x30xf32>
    %51 = arith.maximumf %49, %50 : vector<6x30xf32>
    %c0_48 = arith.constant 0 : index
    %c0_49 = arith.constant 0 : index
    %c2_50 = arith.constant 2 : index
    %c0_51 = arith.constant 0 : index
    %52 = vector.load %arg6[%c0_48, %c0_49, %c2_50, %c0_51] : memref<1x6x30x30xf32, #tpu.memory_space<vmem>>, vector<1x6x1x30xf32>
    %53 = vector.shape_cast %52 : vector<1x6x1x30xf32> to vector<6x30xf32>
    %54 = vector.shape_cast %51 : vector<6x30xf32> to vector<1x6x1x30xf32>
    tpu.vector_store %arg6[%c0_48, %c0_49, %c2_50, %c0_51], %54 {strides = array<i32>} : memref<1x6x30x30xf32, #tpu.memory_space<vmem>>, vector<1x6x1x30xf32>,
    %c0_52 = arith.constant 0 : index
    %c6 = arith.constant 6 : index
    %c0_53 = arith.constant 0 : index
    %c0_54 = arith.constant 0 : index
    %55 = vector.load %arg1[%c0_52, %c6, %c0_53, %c0_54] : memref<1x60x75x60xf32, #tpu.memory_space<vmem>>, vector<1x1x75x60xf32>
    %56 = vector.shape_cast %55 : vector<1x1x75x60xf32> to vector<75x60xf32>
    %c0_55 = arith.constant 0 : index
    %c7 = arith.constant 7 : index
    %c0_56 = arith.constant 0 : index
    %c0_57 = arith.constant 0 : index
    %57 = vector.load %arg1[%c0_55, %c7, %c0_56, %c0_57] : memref<1x60x75x60xf32, #tpu.memory_space<vmem>>, vector<1x1x75x60xf32>
    %58 = vector.shape_cast %57 : vector<1x1x75x60xf32> to vector<75x60xf32>
    %cst_58 = arith.constant dense<0.000000e+00> : vector<6x60xf32>
    %59 = tpu.matmul %0, %56, %cst_58 {dimension_numbers = #tpu.dot_dimension_numbers<[1], [0], [0], [1], [0, 0, 1, 1], [], []>} : vector<6x75xf32>, vector<75x60xf32>, vector<6x60xf32> -> vector<6x60xf32>
    %cst_59 = arith.constant dense<0.000000e+00> : vector<6x60xf32>
    %60 = tpu.matmul %0, %58, %cst_59 {dimension_numbers = #tpu.dot_dimension_numbers<[1], [0], [0], [1], [0, 0, 1, 1], [], []>} : vector<6x75xf32>, vector<75x60xf32>, vector<6x60xf32> -> vector<6x60xf32>
    %61 = arith.maximumf %59, %60 : vector<6x60xf32>
    %cst_60 = arith.constant dense<0.000000e+00> : vector<6x30xf32>
    %62 = tpu.matmul %61, %2, %cst_60 {dimension_numbers = #tpu.dot_dimension_numbers<[1], [0], [0], [1], [0, 0, 1, 1], [], []>} : vector<6x60xf32>, vector<60x30xf32>, vector<6x30xf32> -> vector<6x30xf32>
    %cst_61 = arith.constant dense<0.000000e+00> : vector<6x30xf32>
    %63 = tpu.matmul %61, %3, %cst_61 {dimension_numbers = #tpu.dot_dimension_numbers<[1], [0], [0], [1], [0, 0, 1, 1], [], []>} : vector<6x60xf32>, vector<60x30xf32>, vector<6x30xf32> -> vector<6x30xf32>
    %64 = arith.maximumf %62, %63 : vector<6x30xf32>
    %65 = vector.broadcast %1 : vector<6x1xf32> to vector<6x30xf32>
    %66 = arith.addf %64, %65 : vector<6x30xf32>
    %cst_62 = arith.constant 0.000000e+00 : f32
    %67 = vector.broadcast %cst_62 : f32 to vector<6x30xf32>
    %68 = arith.maximumf %66, %67 : vector<6x30xf32>
    %c0_63 = arith.constant 0 : index
    %c0_64 = arith.constant 0 : index
    %c3_65 = arith.constant 3 : index
    %c0_66 = arith.constant 0 : index
    %69 = vector.load %arg6[%c0_63, %c0_64, %c3_65, %c0_66] : memref<1x6x30x30xf32, #tpu.memory_space<vmem>>, vector<1x6x1x30xf32>
    %70 = vector.shape_cast %69 : vector<1x6x1x30xf32> to vector<6x30xf32>
    %71 = vector.shape_cast %68 : vector<6x30xf32> to vector<1x6x1x30xf32>
    tpu.vector_store %arg6[%c0_63, %c0_64, %c3_65, %c0_66], %71 {strides = array<i32>} : memref<1x6x30x30xf32, #tpu.memory_space<vmem>>, vector<1x6x1x30xf32>,
    %c0_67 = arith.constant 0 : index
    %c8 = arith.constant 8 : index
    %c0_68 = arith.constant 0 : index
    %c0_69 = arith.constant 0 : index
    %72 = vector.load %arg1[%c0_67, %c8, %c0_68, %c0_69] : memref<1x60x75x60xf32, #tpu.memory_space<vmem>>, vector<1x1x75x60xf32>
    %73 = vector.shape_cast %72 : vector<1x1x75x60xf32> to vector<75x60xf32>
    %c0_70 = arith.constant 0 : index
    %c9 = arith.constant 9 : index
    %c0_71 = arith.constant 0 : index
    %c0_72 = arith.constant 0 : index
    %74 = vector.load %arg1[%c0_70, %c9, %c0_71, %c0_72] : memref<1x60x75x60xf32, #tpu.memory_space<vmem>>, vector<1x1x75x60xf32>
    %75 = vector.shape_cast %74 : vector<1x1x75x60xf32> to vector<75x60xf32>
    %cst_73 = arith.constant dense<0.000000e+00> : vector<6x60xf32>
    %76 = tpu.matmul %0, %73, %cst_73 {dimension_numbers = #tpu.dot_dimension_numbers<[1], [0], [0], [1], [0, 0, 1, 1], [], []>} : vector<6x75xf32>, vector<75x60xf32>, vector<6x60xf32> -> vector<6x60xf32>
    %cst_74 = arith.constant dense<0.000000e+00> : vector<6x60xf32>
    %77 = tpu.matmul %0, %75, %cst_74 {dimension_numbers = #tpu.dot_dimension_numbers<[1], [0], [0], [1], [0, 0, 1, 1], [], []>} : vector<6x75xf32>, vector<75x60xf32>, vector<6x60xf32> -> vector<6x60xf32>
    %78 = arith.maximumf %76, %77 : vector<6x60xf32>
    %cst_75 = arith.constant dense<0.000000e+00> : vector<6x30xf32>
    %79 = tpu.matmul %78, %2, %cst_75 {dimension_numbers = #tpu.dot_dimension_numbers<[1], [0], [0], [1], [0, 0, 1, 1], [], []>} : vector<6x60xf32>, vector<60x30xf32>, vector<6x30xf32> -> vector<6x30xf32>
    %cst_76 = arith.constant dense<0.000000e+00> : vector<6x30xf32>
    %80 = tpu.matmul %78, %3, %cst_76 {dimension_numbers = #tpu.dot_dimension_numbers<[1], [0], [0], [1], [0, 0, 1, 1], [], []>} : vector<6x60xf32>, vector<60x30xf32>, vector<6x30xf32> -> vector<6x30xf32>
    %81 = arith.maximumf %79, %80 : vector<6x30xf32>
    %82 = vector.broadcast %1 : vector<6x1xf32> to vector<6x30xf32>
    %83 = arith.addf %81, %82 : vector<6x30xf32>
    %cst_77 = arith.constant 0.000000e+00 : f32
    %84 = vector.broadcast %cst_77 : f32 to vector<6x30xf32>
    %85 = arith.maximumf %83, %84 : vector<6x30xf32>
    %c0_78 = arith.constant 0 : index
    %c0_79 = arith.constant 0 : index
    %c4_80 = arith.constant 4 : index
    %c0_81 = arith.constant 0 : index
    %86 = vector.load %arg6[%c0_78, %c0_79, %c4_80, %c0_81] : memref<1x6x30x30xf32, #tpu.memory_space<vmem>>, vector<1x6x1x30xf32>
    %87 = vector.shape_cast %86 : vector<1x6x1x30xf32> to vector<6x30xf32>
    %88 = vector.shape_cast %85 : vector<6x30xf32> to vector<1x6x1x30xf32>
    tpu.vector_store %arg6[%c0_78, %c0_79, %c4_80, %c0_81], %88 {strides = array<i32>} : memref<1x6x30x30xf32, #tpu.memory_space<vmem>>, vector<1x6x1x30xf32>,
    %c0_82 = arith.constant 0 : index
    %c10 = arith.constant 10 : index
    %c0_83 = arith.constant 0 : index
    %c0_84 = arith.constant 0 : index
    %89 = vector.load %arg1[%c0_82, %c10, %c0_83, %c0_84] : memref<1x60x75x60xf32, #tpu.memory_space<vmem>>, vector<1x1x75x60xf32>
    %90 = vector.shape_cast %89 : vector<1x1x75x60xf32> to vector<75x60xf32>
    %c0_85 = arith.constant 0 : index
    %c11 = arith.constant 11 : index
    %c0_86 = arith.constant 0 : index
    %c0_87 = arith.constant 0 : index
    %91 = vector.load %arg1[%c0_85, %c11, %c0_86, %c0_87] : memref<1x60x75x60xf32, #tpu.memory_space<vmem>>, vector<1x1x75x60xf32>
    %92 = vector.shape_cast %91 : vector<1x1x75x60xf32> to vector<75x60xf32>
    %cst_88 = arith.constant dense<0.000000e+00> : vector<6x60xf32>
    %93 = tpu.matmul %0, %90, %cst_88 {dimension_numbers = #tpu.dot_dimension_numbers<[1], [0], [0], [1], [0, 0, 1, 1], [], []>} : vector<6x75xf32>, vector<75x60xf32>, vector<6x60xf32> -> vector<6x60xf32>
    %cst_89 = arith.constant dense<0.000000e+00> : vector<6x60xf32>
    %94 = tpu.matmul %0, %92, %cst_89 {dimension_numbers = #tpu.dot_dimension_numbers<[1], [0], [0], [1], [0, 0, 1, 1], [], []>} : vector<6x75xf32>, vector<75x60xf32>, vector<6x60xf32> -> vector<6x60xf32>
    %95 = arith.maximumf %93, %94 : vector<6x60xf32>
    %cst_90 = arith.constant dense<0.000000e+00> : vector<6x30xf32>
    %96 = tpu.matmul %95, %2, %cst_90 {dimension_numbers = #tpu.dot_dimension_numbers<[1], [0], [0], [1], [0, 0, 1, 1], [], []>} : vector<6x60xf32>, vector<60x30xf32>, vector<6x30xf32> -> vector<6x30xf32>
    %cst_91 = arith.constant dense<0.000000e+00> : vector<6x30xf32>
    %97 = tpu.matmul %95, %3, %cst_91 {dimension_numbers = #tpu.dot_dimension_numbers<[1], [0], [0], [1], [0, 0, 1, 1], [], []>} : vector<6x60xf32>, vector<60x30xf32>, vector<6x30xf32> -> vector<6x30xf32>
    %98 = arith.maximumf %96, %97 : vector<6x30xf32>
    %99 = vector.broadcast %1 : vector<6x1xf32> to vector<6x30xf32>
    %100 = arith.addf %98, %99 : vector<6x30xf32>
    %cst_92 = arith.constant 0.000000e+00 : f32
    %101 = vector.broadcast %cst_92 : f32 to vector<6x30xf32>
    %102 = arith.maximumf %100, %101 : vector<6x30xf32>
    %c0_93 = arith.constant 0 : index
    %c0_94 = arith.constant 0 : index
    %c5_95 = arith.constant 5 : index
    %c0_96 = arith.constant 0 : index
    %103 = vector.load %arg6[%c0_93, %c0_94, %c5_95, %c0_96] : memref<1x6x30x30xf32, #tpu.memory_space<vmem>>, vector<1x6x1x30xf32>
    %104 = vector.shape_cast %103 : vector<1x6x1x30xf32> to vector<6x30xf32>
    %105 = vector.shape_cast %102 : vector<6x30xf32> to vector<1x6x1x30xf32>
    tpu.vector_store %arg6[%c0_93, %c0_94, %c5_95, %c0_96], %105 {strides = array<i32>} : memref<1x6x30x30xf32, #tpu.memory_space<vmem>>, vector<1x6x1x30xf32>,
    %c0_97 = arith.constant 0 : index
    %c12 = arith.constant 12 : index
    %c0_98 = arith.constant 0 : index
    %c0_99 = arith.constant 0 : index
    %106 = vector.load %arg1[%c0_97, %c12, %c0_98, %c0_99] : memref<1x60x75x60xf32, #tpu.memory_space<vmem>>, vector<1x1x75x60xf32>
    %107 = vector.shape_cast %106 : vector<1x1x75x60xf32> to vector<75x60xf32>
    %c0_100 = arith.constant 0 : index
    %c13 = arith.constant 13 : index
    %c0_101 = arith.constant 0 : index
    %c0_102 = arith.constant 0 : index
    %108 = vector.load %arg1[%c0_100, %c13, %c0_101, %c0_102] : memref<1x60x75x60xf32, #tpu.memory_space<vmem>>, vector<1x1x75x60xf32>
    %109 = vector.shape_cast %108 : vector<1x1x75x60xf32> to vector<75x60xf32>
    %cst_103 = arith.constant dense<0.000000e+00> : vector<6x60xf32>
    %110 = tpu.matmul %0, %107, %cst_103 {dimension_numbers = #tpu.dot_dimension_numbers<[1], [0], [0], [1], [0, 0, 1, 1], [], []>} : vector<6x75xf32>, vector<75x60xf32>, vector<6x60xf32> -> vector<6x60xf32>
    %cst_104 = arith.constant dense<0.000000e+00> : vector<6x60xf32>
    %111 = tpu.matmul %0, %109, %cst_104 {dimension_numbers = #tpu.dot_dimension_numbers<[1], [0], [0], [1], [0, 0, 1, 1], [], []>} : vector<6x75xf32>, vector<75x60xf32>, vector<6x60xf32> -> vector<6x60xf32>
    %112 = arith.maximumf %110, %111 : vector<6x60xf32>
    %cst_105 = arith.constant dense<0.000000e+00> : vector<6x30xf32>
    %113 = tpu.matmul %112, %2, %cst_105 {dimension_numbers = #tpu.dot_dimension_numbers<[1], [0], [0], [1], [0, 0, 1, 1], [], []>} : vector<6x60xf32>, vector<60x30xf32>, vector<6x30xf32> -> vector<6x30xf32>
    %cst_106 = arith.constant dense<0.000000e+00> : vector<6x30xf32>
    %114 = tpu.matmul %112, %3, %cst_106 {dimension_numbers = #tpu.dot_dimension_numbers<[1], [0], [0], [1], [0, 0, 1, 1], [], []>} : vector<6x60xf32>, vector<60x30xf32>, vector<6x30xf32> -> vector<6x30xf32>
    %115 = arith.maximumf %113, %114 : vector<6x30xf32>
    %116 = vector.broadcast %1 : vector<6x1xf32> to vector<6x30xf32>
    %117 = arith.addf %115, %116 : vector<6x30xf32>
    %cst_107 = arith.constant 0.000000e+00 : f32
    %118 = vector.broadcast %cst_107 : f32 to vector<6x30xf32>
    %119 = arith.maximumf %117, %118 : vector<6x30xf32>
    %c0_108 = arith.constant 0 : index
    %c0_109 = arith.constant 0 : index
    %c6_110 = arith.constant 6 : index
    %c0_111 = arith.constant 0 : index
    %120 = vector.load %arg6[%c0_108, %c0_109, %c6_110, %c0_111] : memref<1x6x30x30xf32, #tpu.memory_space<vmem>>, vector<1x6x1x30xf32>
    %121 = vector.shape_cast %120 : vector<1x6x1x30xf32> to vector<6x30xf32>
    %122 = vector.shape_cast %119 : vector<6x30xf32> to vector<1x6x1x30xf32>
    tpu.vector_store %arg6[%c0_108, %c0_109, %c6_110, %c0_111], %122 {strides = array<i32>} : memref<1x6x30x30xf32, #tpu.memory_space<vmem>>, vector<1x6x1x30xf32>,
    %c0_112 = arith.constant 0 : index
    %c14 = arith.constant 14 : index
    %c0_113 = arith.constant 0 : index
    %c0_114 = arith.constant 0 : index
    %123 = vector.load %arg1[%c0_112, %c14, %c0_113, %c0_114] : memref<1x60x75x60xf32, #tpu.memory_space<vmem>>, vector<1x1x75x60xf32>
    %124 = vector.shape_cast %123 : vector<1x1x75x60xf32> to vector<75x60xf32>
    %c0_115 = arith.constant 0 : index
    %c15 = arith.constant 15 : index
    %c0_116 = arith.constant 0 : index
    %c0_117 = arith.constant 0 : index
    %125 = vector.load %arg1[%c0_115, %c15, %c0_116, %c0_117] : memref<1x60x75x60xf32, #tpu.memory_space<vmem>>, vector<1x1x75x60xf32>
    %126 = vector.shape_cast %125 : vector<1x1x75x60xf32> to vector<75x60xf32>
    %cst_118 = arith.constant dense<0.000000e+00> : vector<6x60xf32>
    %127 = tpu.matmul %0, %124, %cst_118 {dimension_numbers = #tpu.dot_dimension_numbers<[1], [0], [0], [1], [0, 0, 1, 1], [], []>} : vector<6x75xf32>, vector<75x60xf32>, vector<6x60xf32> -> vector<6x60xf32>
    %cst_119 = arith.constant dense<0.000000e+00> : vector<6x60xf32>
    %128 = tpu.matmul %0, %126, %cst_119 {dimension_numbers = #tpu.dot_dimension_numbers<[1], [0], [0], [1], [0, 0, 1, 1], [], []>} : vector<6x75xf32>, vector<75x60xf32>, vector<6x60xf32> -> vector<6x60xf32>
    %129 = arith.maximumf %127, %128 : vector<6x60xf32>
    %cst_120 = arith.constant dense<0.000000e+00> : vector<6x30xf32>
    %130 = tpu.matmul %129, %2, %cst_120 {dimension_numbers = #tpu.dot_dimension_numbers<[1], [0], [0], [1], [0, 0, 1, 1], [], []>} : vector<6x60xf32>, vector<60x30xf32>, vector<6x30xf32> -> vector<6x30xf32>
    %cst_121 = arith.constant dense<0.000000e+00> : vector<6x30xf32>
    %131 = tpu.matmul %129, %3, %cst_121 {dimension_numbers = #tpu.dot_dimension_numbers<[1], [0], [0], [1], [0, 0, 1, 1], [], []>} : vector<6x60xf32>, vector<60x30xf32>, vector<6x30xf32> -> vector<6x30xf32>
    %132 = arith.maximumf %130, %131 : vector<6x30xf32>
    %133 = vector.broadcast %1 : vector<6x1xf32> to vector<6x30xf32>
    %134 = arith.addf %132, %133 : vector<6x30xf32>
    %cst_122 = arith.constant 0.000000e+00 : f32
    %135 = vector.broadcast %cst_122 : f32 to vector<6x30xf32>
    %136 = arith.maximumf %134, %135 : vector<6x30xf32>
    %c0_123 = arith.constant 0 : index
    %c0_124 = arith.constant 0 : index
    %c7_125 = arith.constant 7 : index
    %c0_126 = arith.constant 0 : index
    %137 = vector.load %arg6[%c0_123, %c0_124, %c7_125, %c0_126] : memref<1x6x30x30xf32, #tpu.memory_space<vmem>>, vector<1x6x1x30xf32>
    %138 = vector.shape_cast %137 : vector<1x6x1x30xf32> to vector<6x30xf32>
    %139 = vector.shape_cast %136 : vector<6x30xf32> to vector<1x6x1x30xf32>
    tpu.vector_store %arg6[%c0_123, %c0_124, %c7_125, %c0_126], %139 {strides = array<i32>} : memref<1x6x30x30xf32, #tpu.memory_space<vmem>>, vector<1x6x1x30xf32>,
    %c0_127 = arith.constant 0 : index
    %c16 = arith.constant 16 : index
    %c0_128 = arith.constant 0 : index
    %c0_129 = arith.constant 0 : index
    %140 = vector.load %arg1[%c0_127, %c16, %c0_128, %c0_129] : memref<1x60x75x60xf32, #tpu.memory_space<vmem>>, vector<1x1x75x60xf32>
    %141 = vector.shape_cast %140 : vector<1x1x75x60xf32> to vector<75x60xf32>
    %c0_130 = arith.constant 0 : index
    %c17 = arith.constant 17 : index
    %c0_131 = arith.constant 0 : index
    %c0_132 = arith.constant 0 : index
    %142 = vector.load %arg1[%c0_130, %c17, %c0_131, %c0_132] : memref<1x60x75x60xf32, #tpu.memory_space<vmem>>, vector<1x1x75x60xf32>
    %143 = vector.shape_cast %142 : vector<1x1x75x60xf32> to vector<75x60xf32>
    %cst_133 = arith.constant dense<0.000000e+00> : vector<6x60xf32>
    %144 = tpu.matmul %0, %141, %cst_133 {dimension_numbers = #tpu.dot_dimension_numbers<[1], [0], [0], [1], [0, 0, 1, 1], [], []>} : vector<6x75xf32>, vector<75x60xf32>, vector<6x60xf32> -> vector<6x60xf32>
    %cst_134 = arith.constant dense<0.000000e+00> : vector<6x60xf32>
    %145 = tpu.matmul %0, %143, %cst_134 {dimension_numbers = #tpu.dot_dimension_numbers<[1], [0], [0], [1], [0, 0, 1, 1], [], []>} : vector<6x75xf32>, vector<75x60xf32>, vector<6x60xf32> -> vector<6x60xf32>
    %146 = arith.maximumf %144, %145 : vector<6x60xf32>
    %cst_135 = arith.constant dense<0.000000e+00> : vector<6x30xf32>
    %147 = tpu.matmul %146, %2, %cst_135 {dimension_numbers = #tpu.dot_dimension_numbers<[1], [0], [0], [1], [0, 0, 1, 1], [], []>} : vector<6x60xf32>, vector<60x30xf32>, vector<6x30xf32> -> vector<6x30xf32>
    %cst_136 = arith.constant dense<0.000000e+00> : vector<6x30xf32>
    %148 = tpu.matmul %146, %3, %cst_136 {dimension_numbers = #tpu.dot_dimension_numbers<[1], [0], [0], [1], [0, 0, 1, 1], [], []>} : vector<6x60xf32>, vector<60x30xf32>, vector<6x30xf32> -> vector<6x30xf32>
    %149 = arith.maximumf %147, %148 : vector<6x30xf32>
    %150 = vector.broadcast %1 : vector<6x1xf32> to vector<6x30xf32>
    %151 = arith.addf %149, %150 : vector<6x30xf32>
    %cst_137 = arith.constant 0.000000e+00 : f32
    %152 = vector.broadcast %cst_137 : f32 to vector<6x30xf32>
    %153 = arith.maximumf %151, %152 : vector<6x30xf32>
    %c0_138 = arith.constant 0 : index
    %c0_139 = arith.constant 0 : index
    %c8_140 = arith.constant 8 : index
    %c0_141 = arith.constant 0 : index
    %154 = vector.load %arg6[%c0_138, %c0_139, %c8_140, %c0_141] : memref<1x6x30x30xf32, #tpu.memory_space<vmem>>, vector<1x6x1x30xf32>
    %155 = vector.shape_cast %154 : vector<1x6x1x30xf32> to vector<6x30xf32>
    %156 = vector.shape_cast %153 : vector<6x30xf32> to vector<1x6x1x30xf32>
    tpu.vector_store %arg6[%c0_138, %c0_139, %c8_140, %c0_141], %156 {strides = array<i32>} : memref<1x6x30x30xf32, #tpu.memory_space<vmem>>, vector<1x6x1x30xf32>,
    %c0_142 = arith.constant 0 : index
    %c18 = arith.constant 18 : index
    %c0_143 = arith.constant 0 : index
    %c0_144 = arith.constant 0 : index
    %157 = vector.load %arg1[%c0_142, %c18, %c0_143, %c0_144] : memref<1x60x75x60xf32, #tpu.memory_space<vmem>>, vector<1x1x75x60xf32>
    %158 = vector.shape_cast %157 : vector<1x1x75x60xf32> to vector<75x60xf32>
    %c0_145 = arith.constant 0 : index
    %c19 = arith.constant 19 : index
    %c0_146 = arith.constant 0 : index
    %c0_147 = arith.constant 0 : index
    %159 = vector.load %arg1[%c0_145, %c19, %c0_146, %c0_147] : memref<1x60x75x60xf32, #tpu.memory_space<vmem>>, vector<1x1x75x60xf32>
    %160 = vector.shape_cast %159 : vector<1x1x75x60xf32> to vector<75x60xf32>
    %cst_148 = arith.constant dense<0.000000e+00> : vector<6x60xf32>
    %161 = tpu.matmul %0, %158, %cst_148 {dimension_numbers = #tpu.dot_dimension_numbers<[1], [0], [0], [1], [0, 0, 1, 1], [], []>} : vector<6x75xf32>, vector<75x60xf32>, vector<6x60xf32> -> vector<6x60xf32>
    %cst_149 = arith.constant dense<0.000000e+00> : vector<6x60xf32>
    %162 = tpu.matmul %0, %160, %cst_149 {dimension_numbers = #tpu.dot_dimension_numbers<[1], [0], [0], [1], [0, 0, 1, 1], [], []>} : vector<6x75xf32>, vector<75x60xf32>, vector<6x60xf32> -> vector<6x60xf32>
    %163 = arith.maximumf %161, %162 : vector<6x60xf32>
    %cst_150 = arith.constant dense<0.000000e+00> : vector<6x30xf32>
    %164 = tpu.matmul %163, %2, %cst_150 {dimension_numbers = #tpu.dot_dimension_numbers<[1], [0], [0], [1], [0, 0, 1, 1], [], []>} : vector<6x60xf32>, vector<60x30xf32>, vector<6x30xf32> -> vector<6x30xf32>
    %cst_151 = arith.constant dense<0.000000e+00> : vector<6x30xf32>
    %165 = tpu.matmul %163, %3, %cst_151 {dimension_numbers = #tpu.dot_dimension_numbers<[1], [0], [0], [1], [0, 0, 1, 1], [], []>} : vector<6x60xf32>, vector<60x30xf32>, vector<6x30xf32> -> vector<6x30xf32>
    %166 = arith.maximumf %164, %165 : vector<6x30xf32>
    %167 = vector.broadcast %1 : vector<6x1xf32> to vector<6x30xf32>
    %168 = arith.addf %166, %167 : vector<6x30xf32>
    %cst_152 = arith.constant 0.000000e+00 : f32
    %169 = vector.broadcast %cst_152 : f32 to vector<6x30xf32>
    %170 = arith.maximumf %168, %169 : vector<6x30xf32>
    %c0_153 = arith.constant 0 : index
    %c0_154 = arith.constant 0 : index
    %c9_155 = arith.constant 9 : index
    %c0_156 = arith.constant 0 : index
    %171 = vector.load %arg6[%c0_153, %c0_154, %c9_155, %c0_156] : memref<1x6x30x30xf32, #tpu.memory_space<vmem>>, vector<1x6x1x30xf32>
    %172 = vector.shape_cast %171 : vector<1x6x1x30xf32> to vector<6x30xf32>
    %173 = vector.shape_cast %170 : vector<6x30xf32> to vector<1x6x1x30xf32>
    tpu.vector_store %arg6[%c0_153, %c0_154, %c9_155, %c0_156], %173 {strides = array<i32>} : memref<1x6x30x30xf32, #tpu.memory_space<vmem>>, vector<1x6x1x30xf32>,
    %c0_157 = arith.constant 0 : index
    %c20 = arith.constant 20 : index
    %c0_158 = arith.constant 0 : index
    %c0_159 = arith.constant 0 : index
    %174 = vector.load %arg1[%c0_157, %c20, %c0_158, %c0_159] : memref<1x60x75x60xf32, #tpu.memory_space<vmem>>, vector<1x1x75x60xf32>
    %175 = vector.shape_cast %174 : vector<1x1x75x60xf32> to vector<75x60xf32>
    %c0_160 = arith.constant 0 : index
    %c21 = arith.constant 21 : index
    %c0_161 = arith.constant 0 : index
    %c0_162 = arith.constant 0 : index
    %176 = vector.load %arg1[%c0_160, %c21, %c0_161, %c0_162] : memref<1x60x75x60xf32, #tpu.memory_space<vmem>>, vector<1x1x75x60xf32>
    %177 = vector.shape_cast %176 : vector<1x1x75x60xf32> to vector<75x60xf32>
    %cst_163 = arith.constant dense<0.000000e+00> : vector<6x60xf32>
    %178 = tpu.matmul %0, %175, %cst_163 {dimension_numbers = #tpu.dot_dimension_numbers<[1], [0], [0], [1], [0, 0, 1, 1], [], []>} : vector<6x75xf32>, vector<75x60xf32>, vector<6x60xf32> -> vector<6x60xf32>
    %cst_164 = arith.constant dense<0.000000e+00> : vector<6x60xf32>
    %179 = tpu.matmul %0, %177, %cst_164 {dimension_numbers = #tpu.dot_dimension_numbers<[1], [0], [0], [1], [0, 0, 1, 1], [], []>} : vector<6x75xf32>, vector<75x60xf32>, vector<6x60xf32> -> vector<6x60xf32>
    %180 = arith.maximumf %178, %179 : vector<6x60xf32>
    %cst_165 = arith.constant dense<0.000000e+00> : vector<6x30xf32>
    %181 = tpu.matmul %180, %2, %cst_165 {dimension_numbers = #tpu.dot_dimension_numbers<[1], [0], [0], [1], [0, 0, 1, 1], [], []>} : vector<6x60xf32>, vector<60x30xf32>, vector<6x30xf32> -> vector<6x30xf32>
    %cst_166 = arith.constant dense<0.000000e+00> : vector<6x30xf32>
    %182 = tpu.matmul %180, %3, %cst_166 {dimension_numbers = #tpu.dot_dimension_numbers<[1], [0], [0], [1], [0, 0, 1, 1], [], []>} : vector<6x60xf32>, vector<60x30xf32>, vector<6x30xf32> -> vector<6x30xf32>
    %183 = arith.maximumf %181, %182 : vector<6x30xf32>
    %184 = vector.broadcast %1 : vector<6x1xf32> to vector<6x30xf32>
    %185 = arith.addf %183, %184 : vector<6x30xf32>
    %cst_167 = arith.constant 0.000000e+00 : f32
    %186 = vector.broadcast %cst_167 : f32 to vector<6x30xf32>
    %187 = arith.maximumf %185, %186 : vector<6x30xf32>
    %c0_168 = arith.constant 0 : index
    %c0_169 = arith.constant 0 : index
    %c10_170 = arith.constant 10 : index
    %c0_171 = arith.constant 0 : index
    %188 = vector.load %arg6[%c0_168, %c0_169, %c10_170, %c0_171] : memref<1x6x30x30xf32, #tpu.memory_space<vmem>>, vector<1x6x1x30xf32>
    %189 = vector.shape_cast %188 : vector<1x6x1x30xf32> to vector<6x30xf32>
    %190 = vector.shape_cast %187 : vector<6x30xf32> to vector<1x6x1x30xf32>
    tpu.vector_store %arg6[%c0_168, %c0_169, %c10_170, %c0_171], %190 {strides = array<i32>} : memref<1x6x30x30xf32, #tpu.memory_space<vmem>>, vector<1x6x1x30xf32>,
    %c0_172 = arith.constant 0 : index
    %c22 = arith.constant 22 : index
    %c0_173 = arith.constant 0 : index
    %c0_174 = arith.constant 0 : index
    %191 = vector.load %arg1[%c0_172, %c22, %c0_173, %c0_174] : memref<1x60x75x60xf32, #tpu.memory_space<vmem>>, vector<1x1x75x60xf32>
    %192 = vector.shape_cast %191 : vector<1x1x75x60xf32> to vector<75x60xf32>
    %c0_175 = arith.constant 0 : index
    %c23 = arith.constant 23 : index
    %c0_176 = arith.constant 0 : index
    %c0_177 = arith.constant 0 : index
    %193 = vector.load %arg1[%c0_175, %c23, %c0_176, %c0_177] : memref<1x60x75x60xf32, #tpu.memory_space<vmem>>, vector<1x1x75x60xf32>
    %194 = vector.shape_cast %193 : vector<1x1x75x60xf32> to vector<75x60xf32>
    %cst_178 = arith.constant dense<0.000000e+00> : vector<6x60xf32>
    %195 = tpu.matmul %0, %192, %cst_178 {dimension_numbers = #tpu.dot_dimension_numbers<[1], [0], [0], [1], [0, 0, 1, 1], [], []>} : vector<6x75xf32>, vector<75x60xf32>, vector<6x60xf32> -> vector<6x60xf32>
    %cst_179 = arith.constant dense<0.000000e+00> : vector<6x60xf32>
    %196 = tpu.matmul %0, %194, %cst_179 {dimension_numbers = #tpu.dot_dimension_numbers<[1], [0], [0], [1], [0, 0, 1, 1], [], []>} : vector<6x75xf32>, vector<75x60xf32>, vector<6x60xf32> -> vector<6x60xf32>
    %197 = arith.maximumf %195, %196 : vector<6x60xf32>
    %cst_180 = arith.constant dense<0.000000e+00> : vector<6x30xf32>
    %198 = tpu.matmul %197, %2, %cst_180 {dimension_numbers = #tpu.dot_dimension_numbers<[1], [0], [0], [1], [0, 0, 1, 1], [], []>} : vector<6x60xf32>, vector<60x30xf32>, vector<6x30xf32> -> vector<6x30xf32>
    %cst_181 = arith.constant dense<0.000000e+00> : vector<6x30xf32>
    %199 = tpu.matmul %197, %3, %cst_181 {dimension_numbers = #tpu.dot_dimension_numbers<[1], [0], [0], [1], [0, 0, 1, 1], [], []>} : vector<6x60xf32>, vector<60x30xf32>, vector<6x30xf32> -> vector<6x30xf32>
    %200 = arith.maximumf %198, %199 : vector<6x30xf32>
    %201 = vector.broadcast %1 : vector<6x1xf32> to vector<6x30xf32>
    %202 = arith.addf %200, %201 : vector<6x30xf32>
    %cst_182 = arith.constant 0.000000e+00 : f32
    %203 = vector.broadcast %cst_182 : f32 to vector<6x30xf32>
    %204 = arith.maximumf %202, %203 : vector<6x30xf32>
    %c0_183 = arith.constant 0 : index
    %c0_184 = arith.constant 0 : index
    %c11_185 = arith.constant 11 : index
    %c0_186 = arith.constant 0 : index
    %205 = vector.load %arg6[%c0_183, %c0_184, %c11_185, %c0_186] : memref<1x6x30x30xf32, #tpu.memory_space<vmem>>, vector<1x6x1x30xf32>
    %206 = vector.shape_cast %205 : vector<1x6x1x30xf32> to vector<6x30xf32>
    %207 = vector.shape_cast %204 : vector<6x30xf32> to vector<1x6x1x30xf32>
    tpu.vector_store %arg6[%c0_183, %c0_184, %c11_185, %c0_186], %207 {strides = array<i32>} : memref<1x6x30x30xf32, #tpu.memory_space<vmem>>, vector<1x6x1x30xf32>,
    %c0_187 = arith.constant 0 : index
    %c24 = arith.constant 24 : index
    %c0_188 = arith.constant 0 : index
    %c0_189 = arith.constant 0 : index
    %208 = vector.load %arg1[%c0_187, %c24, %c0_188, %c0_189] : memref<1x60x75x60xf32, #tpu.memory_space<vmem>>, vector<1x1x75x60xf32>
    %209 = vector.shape_cast %208 : vector<1x1x75x60xf32> to vector<75x60xf32>
    %c0_190 = arith.constant 0 : index
    %c25 = arith.constant 25 : index
    %c0_191 = arith.constant 0 : index
    %c0_192 = arith.constant 0 : index
    %210 = vector.load %arg1[%c0_190, %c25, %c0_191, %c0_192] : memref<1x60x75x60xf32, #tpu.memory_space<vmem>>, vector<1x1x75x60xf32>
    %211 = vector.shape_cast %210 : vector<1x1x75x60xf32> to vector<75x60xf32>
    %cst_193 = arith.constant dense<0.000000e+00> : vector<6x60xf32>
    %212 = tpu.matmul %0, %209, %cst_193 {dimension_numbers = #tpu.dot_dimension_numbers<[1], [0], [0], [1], [0, 0, 1, 1], [], []>} : vector<6x75xf32>, vector<75x60xf32>, vector<6x60xf32> -> vector<6x60xf32>
    %cst_194 = arith.constant dense<0.000000e+00> : vector<6x60xf32>
    %213 = tpu.matmul %0, %211, %cst_194 {dimension_numbers = #tpu.dot_dimension_numbers<[1], [0], [0], [1], [0, 0, 1, 1], [], []>} : vector<6x75xf32>, vector<75x60xf32>, vector<6x60xf32> -> vector<6x60xf32>
    %214 = arith.maximumf %212, %213 : vector<6x60xf32>
    %cst_195 = arith.constant dense<0.000000e+00> : vector<6x30xf32>
    %215 = tpu.matmul %214, %2, %cst_195 {dimension_numbers = #tpu.dot_dimension_numbers<[1], [0], [0], [1], [0, 0, 1, 1], [], []>} : vector<6x60xf32>, vector<60x30xf32>, vector<6x30xf32> -> vector<6x30xf32>
    %cst_196 = arith.constant dense<0.000000e+00> : vector<6x30xf32>
    %216 = tpu.matmul %214, %3, %cst_196 {dimension_numbers = #tpu.dot_dimension_numbers<[1], [0], [0], [1], [0, 0, 1, 1], [], []>} : vector<6x60xf32>, vector<60x30xf32>, vector<6x30xf32> -> vector<6x30xf32>
    %217 = arith.maximumf %215, %216 : vector<6x30xf32>
    %218 = vector.broadcast %1 : vector<6x1xf32> to vector<6x30xf32>
    %219 = arith.addf %217, %218 : vector<6x30xf32>
    %cst_197 = arith.constant 0.000000e+00 : f32
    %220 = vector.broadcast %cst_197 : f32 to vector<6x30xf32>
    %221 = arith.maximumf %219, %220 : vector<6x30xf32>
    %c0_198 = arith.constant 0 : index
    %c0_199 = arith.constant 0 : index
    %c12_200 = arith.constant 12 : index
    %c0_201 = arith.constant 0 : index
    %222 = vector.load %arg6[%c0_198, %c0_199, %c12_200, %c0_201] : memref<1x6x30x30xf32, #tpu.memory_space<vmem>>, vector<1x6x1x30xf32>
    %223 = vector.shape_cast %222 : vector<1x6x1x30xf32> to vector<6x30xf32>
    %224 = vector.shape_cast %221 : vector<6x30xf32> to vector<1x6x1x30xf32>
    tpu.vector_store %arg6[%c0_198, %c0_199, %c12_200, %c0_201], %224 {strides = array<i32>} : memref<1x6x30x30xf32, #tpu.memory_space<vmem>>, vector<1x6x1x30xf32>,
    %c0_202 = arith.constant 0 : index
    %c26 = arith.constant 26 : index
    %c0_203 = arith.constant 0 : index
    %c0_204 = arith.constant 0 : index
    %225 = vector.load %arg1[%c0_202, %c26, %c0_203, %c0_204] : memref<1x60x75x60xf32, #tpu.memory_space<vmem>>, vector<1x1x75x60xf32>
    %226 = vector.shape_cast %225 : vector<1x1x75x60xf32> to vector<75x60xf32>
    %c0_205 = arith.constant 0 : index
    %c27 = arith.constant 27 : index
    %c0_206 = arith.constant 0 : index
    %c0_207 = arith.constant 0 : index
    %227 = vector.load %arg1[%c0_205, %c27, %c0_206, %c0_207] : memref<1x60x75x60xf32, #tpu.memory_space<vmem>>, vector<1x1x75x60xf32>
    %228 = vector.shape_cast %227 : vector<1x1x75x60xf32> to vector<75x60xf32>
    %cst_208 = arith.constant dense<0.000000e+00> : vector<6x60xf32>
    %229 = tpu.matmul %0, %226, %cst_208 {dimension_numbers = #tpu.dot_dimension_numbers<[1], [0], [0], [1], [0, 0, 1, 1], [], []>} : vector<6x75xf32>, vector<75x60xf32>, vector<6x60xf32> -> vector<6x60xf32>
    %cst_209 = arith.constant dense<0.000000e+00> : vector<6x60xf32>
    %230 = tpu.matmul %0, %228, %cst_209 {dimension_numbers = #tpu.dot_dimension_numbers<[1], [0], [0], [1], [0, 0, 1, 1], [], []>} : vector<6x75xf32>, vector<75x60xf32>, vector<6x60xf32> -> vector<6x60xf32>
    %231 = arith.maximumf %229, %230 : vector<6x60xf32>
    %cst_210 = arith.constant dense<0.000000e+00> : vector<6x30xf32>
    %232 = tpu.matmul %231, %2, %cst_210 {dimension_numbers = #tpu.dot_dimension_numbers<[1], [0], [0], [1], [0, 0, 1, 1], [], []>} : vector<6x60xf32>, vector<60x30xf32>, vector<6x30xf32> -> vector<6x30xf32>
    %cst_211 = arith.constant dense<0.000000e+00> : vector<6x30xf32>
    %233 = tpu.matmul %231, %3, %cst_211 {dimension_numbers = #tpu.dot_dimension_numbers<[1], [0], [0], [1], [0, 0, 1, 1], [], []>} : vector<6x60xf32>, vector<60x30xf32>, vector<6x30xf32> -> vector<6x30xf32>
    %234 = arith.maximumf %232, %233 : vector<6x30xf32>
    %235 = vector.broadcast %1 : vector<6x1xf32> to vector<6x30xf32>
    %236 = arith.addf %234, %235 : vector<6x30xf32>
    %cst_212 = arith.constant 0.000000e+00 : f32
    %237 = vector.broadcast %cst_212 : f32 to vector<6x30xf32>
    %238 = arith.maximumf %236, %237 : vector<6x30xf32>
    %c0_213 = arith.constant 0 : index
    %c0_214 = arith.constant 0 : index
    %c13_215 = arith.constant 13 : index
    %c0_216 = arith.constant 0 : index
    %239 = vector.load %arg6[%c0_213, %c0_214, %c13_215, %c0_216] : memref<1x6x30x30xf32, #tpu.memory_space<vmem>>, vector<1x6x1x30xf32>
    %240 = vector.shape_cast %239 : vector<1x6x1x30xf32> to vector<6x30xf32>
    %241 = vector.shape_cast %238 : vector<6x30xf32> to vector<1x6x1x30xf32>
    tpu.vector_store %arg6[%c0_213, %c0_214, %c13_215, %c0_216], %241 {strides = array<i32>} : memref<1x6x30x30xf32, #tpu.memory_space<vmem>>, vector<1x6x1x30xf32>,
    %c0_217 = arith.constant 0 : index
    %c28 = arith.constant 28 : index
    %c0_218 = arith.constant 0 : index
    %c0_219 = arith.constant 0 : index
    %242 = vector.load %arg1[%c0_217, %c28, %c0_218, %c0_219] : memref<1x60x75x60xf32, #tpu.memory_space<vmem>>, vector<1x1x75x60xf32>
    %243 = vector.shape_cast %242 : vector<1x1x75x60xf32> to vector<75x60xf32>
    %c0_220 = arith.constant 0 : index
    %c29 = arith.constant 29 : index
    %c0_221 = arith.constant 0 : index
    %c0_222 = arith.constant 0 : index
    %244 = vector.load %arg1[%c0_220, %c29, %c0_221, %c0_222] : memref<1x60x75x60xf32, #tpu.memory_space<vmem>>, vector<1x1x75x60xf32>
    %245 = vector.shape_cast %244 : vector<1x1x75x60xf32> to vector<75x60xf32>
    %cst_223 = arith.constant dense<0.000000e+00> : vector<6x60xf32>
    %246 = tpu.matmul %0, %243, %cst_223 {dimension_numbers = #tpu.dot_dimension_numbers<[1], [0], [0], [1], [0, 0, 1, 1], [], []>} : vector<6x75xf32>, vector<75x60xf32>, vector<6x60xf32> -> vector<6x60xf32>
    %cst_224 = arith.constant dense<0.000000e+00> : vector<6x60xf32>
    %247 = tpu.matmul %0, %245, %cst_224 {dimension_numbers = #tpu.dot_dimension_numbers<[1], [0], [0], [1], [0, 0, 1, 1], [], []>} : vector<6x75xf32>, vector<75x60xf32>, vector<6x60xf32> -> vector<6x60xf32>
    %248 = arith.maximumf %246, %247 : vector<6x60xf32>
    %cst_225 = arith.constant dense<0.000000e+00> : vector<6x30xf32>
    %249 = tpu.matmul %248, %2, %cst_225 {dimension_numbers = #tpu.dot_dimension_numbers<[1], [0], [0], [1], [0, 0, 1, 1], [], []>} : vector<6x60xf32>, vector<60x30xf32>, vector<6x30xf32> -> vector<6x30xf32>
    %cst_226 = arith.constant dense<0.000000e+00> : vector<6x30xf32>
    %250 = tpu.matmul %248, %3, %cst_226 {dimension_numbers = #tpu.dot_dimension_numbers<[1], [0], [0], [1], [0, 0, 1, 1], [], []>} : vector<6x60xf32>, vector<60x30xf32>, vector<6x30xf32> -> vector<6x30xf32>
    %251 = arith.maximumf %249, %250 : vector<6x30xf32>
    %252 = vector.broadcast %1 : vector<6x1xf32> to vector<6x30xf32>
    %253 = arith.addf %251, %252 : vector<6x30xf32>
    %cst_227 = arith.constant 0.000000e+00 : f32
    %254 = vector.broadcast %cst_227 : f32 to vector<6x30xf32>
    %255 = arith.maximumf %253, %254 : vector<6x30xf32>
    %c0_228 = arith.constant 0 : index
    %c0_229 = arith.constant 0 : index
    %c14_230 = arith.constant 14 : index
    %c0_231 = arith.constant 0 : index
    %256 = vector.load %arg6[%c0_228, %c0_229, %c14_230, %c0_231] : memref<1x6x30x30xf32, #tpu.memory_space<vmem>>, vector<1x6x1x30xf32>
    %257 = vector.shape_cast %256 : vector<1x6x1x30xf32> to vector<6x30xf32>
    %258 = vector.shape_cast %255 : vector<6x30xf32> to vector<1x6x1x30xf32>
    tpu.vector_store %arg6[%c0_228, %c0_229, %c14_230, %c0_231], %258 {strides = array<i32>} : memref<1x6x30x30xf32, #tpu.memory_space<vmem>>, vector<1x6x1x30xf32>,
    %c0_232 = arith.constant 0 : index
    %c30 = arith.constant 30 : index
    %c0_233 = arith.constant 0 : index
    %c0_234 = arith.constant 0 : index
    %259 = vector.load %arg1[%c0_232, %c30, %c0_233, %c0_234] : memref<1x60x75x60xf32, #tpu.memory_space<vmem>>, vector<1x1x75x60xf32>
    %260 = vector.shape_cast %259 : vector<1x1x75x60xf32> to vector<75x60xf32>
    %c0_235 = arith.constant 0 : index
    %c31 = arith.constant 31 : index
    %c0_236 = arith.constant 0 : index
    %c0_237 = arith.constant 0 : index
    %261 = vector.load %arg1[%c0_235, %c31, %c0_236, %c0_237] : memref<1x60x75x60xf32, #tpu.memory_space<vmem>>, vector<1x1x75x60xf32>
    %262 = vector.shape_cast %261 : vector<1x1x75x60xf32> to vector<75x60xf32>
    %cst_238 = arith.constant dense<0.000000e+00> : vector<6x60xf32>
    %263 = tpu.matmul %0, %260, %cst_238 {dimension_numbers = #tpu.dot_dimension_numbers<[1], [0], [0], [1], [0, 0, 1, 1], [], []>} : vector<6x75xf32>, vector<75x60xf32>, vector<6x60xf32> -> vector<6x60xf32>
    %cst_239 = arith.constant dense<0.000000e+00> : vector<6x60xf32>
    %264 = tpu.matmul %0, %262, %cst_239 {dimension_numbers = #tpu.dot_dimension_numbers<[1], [0], [0], [1], [0, 0, 1, 1], [], []>} : vector<6x75xf32>, vector<75x60xf32>, vector<6x60xf32> -> vector<6x60xf32>
    %265 = arith.maximumf %263, %264 : vector<6x60xf32>
    %cst_240 = arith.constant dense<0.000000e+00> : vector<6x30xf32>
    %266 = tpu.matmul %265, %2, %cst_240 {dimension_numbers = #tpu.dot_dimension_numbers<[1], [0], [0], [1], [0, 0, 1, 1], [], []>} : vector<6x60xf32>, vector<60x30xf32>, vector<6x30xf32> -> vector<6x30xf32>
    %cst_241 = arith.constant dense<0.000000e+00> : vector<6x30xf32>
    %267 = tpu.matmul %265, %3, %cst_241 {dimension_numbers = #tpu.dot_dimension_numbers<[1], [0], [0], [1], [0, 0, 1, 1], [], []>} : vector<6x60xf32>, vector<60x30xf32>, vector<6x30xf32> -> vector<6x30xf32>
    %268 = arith.maximumf %266, %267 : vector<6x30xf32>
    %269 = vector.broadcast %1 : vector<6x1xf32> to vector<6x30xf32>
    %270 = arith.addf %268, %269 : vector<6x30xf32>
    %cst_242 = arith.constant 0.000000e+00 : f32
    %271 = vector.broadcast %cst_242 : f32 to vector<6x30xf32>
    %272 = arith.maximumf %270, %271 : vector<6x30xf32>
    %c0_243 = arith.constant 0 : index
    %c0_244 = arith.constant 0 : index
    %c15_245 = arith.constant 15 : index
    %c0_246 = arith.constant 0 : index
    %273 = vector.load %arg6[%c0_243, %c0_244, %c15_245, %c0_246] : memref<1x6x30x30xf32, #tpu.memory_space<vmem>>, vector<1x6x1x30xf32>
    %274 = vector.shape_cast %273 : vector<1x6x1x30xf32> to vector<6x30xf32>
    %275 = vector.shape_cast %272 : vector<6x30xf32> to vector<1x6x1x30xf32>
    tpu.vector_store %arg6[%c0_243, %c0_244, %c15_245, %c0_246], %275 {strides = array<i32>} : memref<1x6x30x30xf32, #tpu.memory_space<vmem>>, vector<1x6x1x30xf32>,
    %c0_247 = arith.constant 0 : index
    %c32 = arith.constant 32 : index
    %c0_248 = arith.constant 0 : index
    %c0_249 = arith.constant 0 : index
    %276 = vector.load %arg1[%c0_247, %c32, %c0_248, %c0_249] : memref<1x60x75x60xf32, #tpu.memory_space<vmem>>, vector<1x1x75x60xf32>
    %277 = vector.shape_cast %276 : vector<1x1x75x60xf32> to vector<75x60xf32>
    %c0_250 = arith.constant 0 : index
    %c33 = arith.constant 33 : index
    %c0_251 = arith.constant 0 : index
    %c0_252 = arith.constant 0 : index
    %278 = vector.load %arg1[%c0_250, %c33, %c0_251, %c0_252] : memref<1x60x75x60xf32, #tpu.memory_space<vmem>>, vector<1x1x75x60xf32>
    %279 = vector.shape_cast %278 : vector<1x1x75x60xf32> to vector<75x60xf32>
    %cst_253 = arith.constant dense<0.000000e+00> : vector<6x60xf32>
    %280 = tpu.matmul %0, %277, %cst_253 {dimension_numbers = #tpu.dot_dimension_numbers<[1], [0], [0], [1], [0, 0, 1, 1], [], []>} : vector<6x75xf32>, vector<75x60xf32>, vector<6x60xf32> -> vector<6x60xf32>
    %cst_254 = arith.constant dense<0.000000e+00> : vector<6x60xf32>
    %281 = tpu.matmul %0, %279, %cst_254 {dimension_numbers = #tpu.dot_dimension_numbers<[1], [0], [0], [1], [0, 0, 1, 1], [], []>} : vector<6x75xf32>, vector<75x60xf32>, vector<6x60xf32> -> vector<6x60xf32>
    %282 = arith.maximumf %280, %281 : vector<6x60xf32>
    %cst_255 = arith.constant dense<0.000000e+00> : vector<6x30xf32>
    %283 = tpu.matmul %282, %2, %cst_255 {dimension_numbers = #tpu.dot_dimension_numbers<[1], [0], [0], [1], [0, 0, 1, 1], [], []>} : vector<6x60xf32>, vector<60x30xf32>, vector<6x30xf32> -> vector<6x30xf32>
    %cst_256 = arith.constant dense<0.000000e+00> : vector<6x30xf32>
    %284 = tpu.matmul %282, %3, %cst_256 {dimension_numbers = #tpu.dot_dimension_numbers<[1], [0], [0], [1], [0, 0, 1, 1], [], []>} : vector<6x60xf32>, vector<60x30xf32>, vector<6x30xf32> -> vector<6x30xf32>
    %285 = arith.maximumf %283, %284 : vector<6x30xf32>
    %286 = vector.broadcast %1 : vector<6x1xf32> to vector<6x30xf32>
    %287 = arith.addf %285, %286 : vector<6x30xf32>
    %cst_257 = arith.constant 0.000000e+00 : f32
    %288 = vector.broadcast %cst_257 : f32 to vector<6x30xf32>
    %289 = arith.maximumf %287, %288 : vector<6x30xf32>
    %c0_258 = arith.constant 0 : index
    %c0_259 = arith.constant 0 : index
    %c16_260 = arith.constant 16 : index
    %c0_261 = arith.constant 0 : index
    %290 = vector.load %arg6[%c0_258, %c0_259, %c16_260, %c0_261] : memref<1x6x30x30xf32, #tpu.memory_space<vmem>>, vector<1x6x1x30xf32>
    %291 = vector.shape_cast %290 : vector<1x6x1x30xf32> to vector<6x30xf32>
    %292 = vector.shape_cast %289 : vector<6x30xf32> to vector<1x6x1x30xf32>
    tpu.vector_store %arg6[%c0_258, %c0_259, %c16_260, %c0_261], %292 {strides = array<i32>} : memref<1x6x30x30xf32, #tpu.memory_space<vmem>>, vector<1x6x1x30xf32>,
    %c0_262 = arith.constant 0 : index
    %c34 = arith.constant 34 : index
    %c0_263 = arith.constant 0 : index
    %c0_264 = arith.constant 0 : index
    %293 = vector.load %arg1[%c0_262, %c34, %c0_263, %c0_264] : memref<1x60x75x60xf32, #tpu.memory_space<vmem>>, vector<1x1x75x60xf32>
    %294 = vector.shape_cast %293 : vector<1x1x75x60xf32> to vector<75x60xf32>
    %c0_265 = arith.constant 0 : index
    %c35 = arith.constant 35 : index
    %c0_266 = arith.constant 0 : index
    %c0_267 = arith.constant 0 : index
    %295 = vector.load %arg1[%c0_265, %c35, %c0_266, %c0_267] : memref<1x60x75x60xf32, #tpu.memory_space<vmem>>, vector<1x1x75x60xf32>
    %296 = vector.shape_cast %295 : vector<1x1x75x60xf32> to vector<75x60xf32>
    %cst_268 = arith.constant dense<0.000000e+00> : vector<6x60xf32>
    %297 = tpu.matmul %0, %294, %cst_268 {dimension_numbers = #tpu.dot_dimension_numbers<[1], [0], [0], [1], [0, 0, 1, 1], [], []>} : vector<6x75xf32>, vector<75x60xf32>, vector<6x60xf32> -> vector<6x60xf32>
    %cst_269 = arith.constant dense<0.000000e+00> : vector<6x60xf32>
    %298 = tpu.matmul %0, %296, %cst_269 {dimension_numbers = #tpu.dot_dimension_numbers<[1], [0], [0], [1], [0, 0, 1, 1], [], []>} : vector<6x75xf32>, vector<75x60xf32>, vector<6x60xf32> -> vector<6x60xf32>
    %299 = arith.maximumf %297, %298 : vector<6x60xf32>
    %cst_270 = arith.constant dense<0.000000e+00> : vector<6x30xf32>
    %300 = tpu.matmul %299, %2, %cst_270 {dimension_numbers = #tpu.dot_dimension_numbers<[1], [0], [0], [1], [0, 0, 1, 1], [], []>} : vector<6x60xf32>, vector<60x30xf32>, vector<6x30xf32> -> vector<6x30xf32>
    %cst_271 = arith.constant dense<0.000000e+00> : vector<6x30xf32>
    %301 = tpu.matmul %299, %3, %cst_271 {dimension_numbers = #tpu.dot_dimension_numbers<[1], [0], [0], [1], [0, 0, 1, 1], [], []>} : vector<6x60xf32>, vector<60x30xf32>, vector<6x30xf32> -> vector<6x30xf32>
    %302 = arith.maximumf %300, %301 : vector<6x30xf32>
    %303 = vector.broadcast %1 : vector<6x1xf32> to vector<6x30xf32>
    %304 = arith.addf %302, %303 : vector<6x30xf32>
    %cst_272 = arith.constant 0.000000e+00 : f32
    %305 = vector.broadcast %cst_272 : f32 to vector<6x30xf32>
    %306 = arith.maximumf %304, %305 : vector<6x30xf32>
    %c0_273 = arith.constant 0 : index
    %c0_274 = arith.constant 0 : index
    %c17_275 = arith.constant 17 : index
    %c0_276 = arith.constant 0 : index
    %307 = vector.load %arg6[%c0_273, %c0_274, %c17_275, %c0_276] : memref<1x6x30x30xf32, #tpu.memory_space<vmem>>, vector<1x6x1x30xf32>
    %308 = vector.shape_cast %307 : vector<1x6x1x30xf32> to vector<6x30xf32>
    %309 = vector.shape_cast %306 : vector<6x30xf32> to vector<1x6x1x30xf32>
    tpu.vector_store %arg6[%c0_273, %c0_274, %c17_275, %c0_276], %309 {strides = array<i32>} : memref<1x6x30x30xf32, #tpu.memory_space<vmem>>, vector<1x6x1x30xf32>,
    %c0_277 = arith.constant 0 : index
    %c36 = arith.constant 36 : index
    %c0_278 = arith.constant 0 : index
    %c0_279 = arith.constant 0 : index
    %310 = vector.load %arg1[%c0_277, %c36, %c0_278, %c0_279] : memref<1x60x75x60xf32, #tpu.memory_space<vmem>>, vector<1x1x75x60xf32>
    %311 = vector.shape_cast %310 : vector<1x1x75x60xf32> to vector<75x60xf32>
    %c0_280 = arith.constant 0 : index
    %c37 = arith.constant 37 : index
    %c0_281 = arith.constant 0 : index
    %c0_282 = arith.constant 0 : index
    %312 = vector.load %arg1[%c0_280, %c37, %c0_281, %c0_282] : memref<1x60x75x60xf32, #tpu.memory_space<vmem>>, vector<1x1x75x60xf32>
    %313 = vector.shape_cast %312 : vector<1x1x75x60xf32> to vector<75x60xf32>
    %cst_283 = arith.constant dense<0.000000e+00> : vector<6x60xf32>
    %314 = tpu.matmul %0, %311, %cst_283 {dimension_numbers = #tpu.dot_dimension_numbers<[1], [0], [0], [1], [0, 0, 1, 1], [], []>} : vector<6x75xf32>, vector<75x60xf32>, vector<6x60xf32> -> vector<6x60xf32>
    %cst_284 = arith.constant dense<0.000000e+00> : vector<6x60xf32>
    %315 = tpu.matmul %0, %313, %cst_284 {dimension_numbers = #tpu.dot_dimension_numbers<[1], [0], [0], [1], [0, 0, 1, 1], [], []>} : vector<6x75xf32>, vector<75x60xf32>, vector<6x60xf32> -> vector<6x60xf32>
    %316 = arith.maximumf %314, %315 : vector<6x60xf32>
    %cst_285 = arith.constant dense<0.000000e+00> : vector<6x30xf32>
    %317 = tpu.matmul %316, %2, %cst_285 {dimension_numbers = #tpu.dot_dimension_numbers<[1], [0], [0], [1], [0, 0, 1, 1], [], []>} : vector<6x60xf32>, vector<60x30xf32>, vector<6x30xf32> -> vector<6x30xf32>
    %cst_286 = arith.constant dense<0.000000e+00> : vector<6x30xf32>
    %318 = tpu.matmul %316, %3, %cst_286 {dimension_numbers = #tpu.dot_dimension_numbers<[1], [0], [0], [1], [0, 0, 1, 1], [], []>} : vector<6x60xf32>, vector<60x30xf32>, vector<6x30xf32> -> vector<6x30xf32>
    %319 = arith.maximumf %317, %318 : vector<6x30xf32>
    %320 = vector.broadcast %1 : vector<6x1xf32> to vector<6x30xf32>
    %321 = arith.addf %319, %320 : vector<6x30xf32>
    %cst_287 = arith.constant 0.000000e+00 : f32
    %322 = vector.broadcast %cst_287 : f32 to vector<6x30xf32>
    %323 = arith.maximumf %321, %322 : vector<6x30xf32>
    %c0_288 = arith.constant 0 : index
    %c0_289 = arith.constant 0 : index
    %c18_290 = arith.constant 18 : index
    %c0_291 = arith.constant 0 : index
    %324 = vector.load %arg6[%c0_288, %c0_289, %c18_290, %c0_291] : memref<1x6x30x30xf32, #tpu.memory_space<vmem>>, vector<1x6x1x30xf32>
    %325 = vector.shape_cast %324 : vector<1x6x1x30xf32> to vector<6x30xf32>
    %326 = vector.shape_cast %323 : vector<6x30xf32> to vector<1x6x1x30xf32>
    tpu.vector_store %arg6[%c0_288, %c0_289, %c18_290, %c0_291], %326 {strides = array<i32>} : memref<1x6x30x30xf32, #tpu.memory_space<vmem>>, vector<1x6x1x30xf32>,
    %c0_292 = arith.constant 0 : index
    %c38 = arith.constant 38 : index
    %c0_293 = arith.constant 0 : index
    %c0_294 = arith.constant 0 : index
    %327 = vector.load %arg1[%c0_292, %c38, %c0_293, %c0_294] : memref<1x60x75x60xf32, #tpu.memory_space<vmem>>, vector<1x1x75x60xf32>
    %328 = vector.shape_cast %327 : vector<1x1x75x60xf32> to vector<75x60xf32>
    %c0_295 = arith.constant 0 : index
    %c39 = arith.constant 39 : index
    %c0_296 = arith.constant 0 : index
    %c0_297 = arith.constant 0 : index
    %329 = vector.load %arg1[%c0_295, %c39, %c0_296, %c0_297] : memref<1x60x75x60xf32, #tpu.memory_space<vmem>>, vector<1x1x75x60xf32>
    %330 = vector.shape_cast %329 : vector<1x1x75x60xf32> to vector<75x60xf32>
    %cst_298 = arith.constant dense<0.000000e+00> : vector<6x60xf32>
    %331 = tpu.matmul %0, %328, %cst_298 {dimension_numbers = #tpu.dot_dimension_numbers<[1], [0], [0], [1], [0, 0, 1, 1], [], []>} : vector<6x75xf32>, vector<75x60xf32>, vector<6x60xf32> -> vector<6x60xf32>
    %cst_299 = arith.constant dense<0.000000e+00> : vector<6x60xf32>
    %332 = tpu.matmul %0, %330, %cst_299 {dimension_numbers = #tpu.dot_dimension_numbers<[1], [0], [0], [1], [0, 0, 1, 1], [], []>} : vector<6x75xf32>, vector<75x60xf32>, vector<6x60xf32> -> vector<6x60xf32>
    %333 = arith.maximumf %331, %332 : vector<6x60xf32>
    %cst_300 = arith.constant dense<0.000000e+00> : vector<6x30xf32>
    %334 = tpu.matmul %333, %2, %cst_300 {dimension_numbers = #tpu.dot_dimension_numbers<[1], [0], [0], [1], [0, 0, 1, 1], [], []>} : vector<6x60xf32>, vector<60x30xf32>, vector<6x30xf32> -> vector<6x30xf32>
    %cst_301 = arith.constant dense<0.000000e+00> : vector<6x30xf32>
    %335 = tpu.matmul %333, %3, %cst_301 {dimension_numbers = #tpu.dot_dimension_numbers<[1], [0], [0], [1], [0, 0, 1, 1], [], []>} : vector<6x60xf32>, vector<60x30xf32>, vector<6x30xf32> -> vector<6x30xf32>
    %336 = arith.maximumf %334, %335 : vector<6x30xf32>
    %337 = vector.broadcast %1 : vector<6x1xf32> to vector<6x30xf32>
    %338 = arith.addf %336, %337 : vector<6x30xf32>
    %cst_302 = arith.constant 0.000000e+00 : f32
    %339 = vector.broadcast %cst_302 : f32 to vector<6x30xf32>
    %340 = arith.maximumf %338, %339 : vector<6x30xf32>
    %c0_303 = arith.constant 0 : index
    %c0_304 = arith.constant 0 : index
    %c19_305 = arith.constant 19 : index
    %c0_306 = arith.constant 0 : index
    %341 = vector.load %arg6[%c0_303, %c0_304, %c19_305, %c0_306] : memref<1x6x30x30xf32, #tpu.memory_space<vmem>>, vector<1x6x1x30xf32>
    %342 = vector.shape_cast %341 : vector<1x6x1x30xf32> to vector<6x30xf32>
    %343 = vector.shape_cast %340 : vector<6x30xf32> to vector<1x6x1x30xf32>
    tpu.vector_store %arg6[%c0_303, %c0_304, %c19_305, %c0_306], %343 {strides = array<i32>} : memref<1x6x30x30xf32, #tpu.memory_space<vmem>>, vector<1x6x1x30xf32>,
    %c0_307 = arith.constant 0 : index
    %c40 = arith.constant 40 : index
    %c0_308 = arith.constant 0 : index
    %c0_309 = arith.constant 0 : index
    %344 = vector.load %arg1[%c0_307, %c40, %c0_308, %c0_309] : memref<1x60x75x60xf32, #tpu.memory_space<vmem>>, vector<1x1x75x60xf32>
    %345 = vector.shape_cast %344 : vector<1x1x75x60xf32> to vector<75x60xf32>
    %c0_310 = arith.constant 0 : index
    %c41 = arith.constant 41 : index
    %c0_311 = arith.constant 0 : index
    %c0_312 = arith.constant 0 : index
    %346 = vector.load %arg1[%c0_310, %c41, %c0_311, %c0_312] : memref<1x60x75x60xf32, #tpu.memory_space<vmem>>, vector<1x1x75x60xf32>
    %347 = vector.shape_cast %346 : vector<1x1x75x60xf32> to vector<75x60xf32>
    %cst_313 = arith.constant dense<0.000000e+00> : vector<6x60xf32>
    %348 = tpu.matmul %0, %345, %cst_313 {dimension_numbers = #tpu.dot_dimension_numbers<[1], [0], [0], [1], [0, 0, 1, 1], [], []>} : vector<6x75xf32>, vector<75x60xf32>, vector<6x60xf32> -> vector<6x60xf32>
    %cst_314 = arith.constant dense<0.000000e+00> : vector<6x60xf32>
    %349 = tpu.matmul %0, %347, %cst_314 {dimension_numbers = #tpu.dot_dimension_numbers<[1], [0], [0], [1], [0, 0, 1, 1], [], []>} : vector<6x75xf32>, vector<75x60xf32>, vector<6x60xf32> -> vector<6x60xf32>
    %350 = arith.maximumf %348, %349 : vector<6x60xf32>
    %cst_315 = arith.constant dense<0.000000e+00> : vector<6x30xf32>
    %351 = tpu.matmul %350, %2, %cst_315 {dimension_numbers = #tpu.dot_dimension_numbers<[1], [0], [0], [1], [0, 0, 1, 1], [], []>} : vector<6x60xf32>, vector<60x30xf32>, vector<6x30xf32> -> vector<6x30xf32>
    %cst_316 = arith.constant dense<0.000000e+00> : vector<6x30xf32>
    %352 = tpu.matmul %350, %3, %cst_316 {dimension_numbers = #tpu.dot_dimension_numbers<[1], [0], [0], [1], [0, 0, 1, 1], [], []>} : vector<6x60xf32>, vector<60x30xf32>, vector<6x30xf32> -> vector<6x30xf32>
    %353 = arith.maximumf %351, %352 : vector<6x30xf32>
    %354 = vector.broadcast %1 : vector<6x1xf32> to vector<6x30xf32>
    %355 = arith.addf %353, %354 : vector<6x30xf32>
    %cst_317 = arith.constant 0.000000e+00 : f32
    %356 = vector.broadcast %cst_317 : f32 to vector<6x30xf32>
    %357 = arith.maximumf %355, %356 : vector<6x30xf32>
    %c0_318 = arith.constant 0 : index
    %c0_319 = arith.constant 0 : index
    %c20_320 = arith.constant 20 : index
    %c0_321 = arith.constant 0 : index
    %358 = vector.load %arg6[%c0_318, %c0_319, %c20_320, %c0_321] : memref<1x6x30x30xf32, #tpu.memory_space<vmem>>, vector<1x6x1x30xf32>
    %359 = vector.shape_cast %358 : vector<1x6x1x30xf32> to vector<6x30xf32>
    %360 = vector.shape_cast %357 : vector<6x30xf32> to vector<1x6x1x30xf32>
    tpu.vector_store %arg6[%c0_318, %c0_319, %c20_320, %c0_321], %360 {strides = array<i32>} : memref<1x6x30x30xf32, #tpu.memory_space<vmem>>, vector<1x6x1x30xf32>,
    %c0_322 = arith.constant 0 : index
    %c42 = arith.constant 42 : index
    %c0_323 = arith.constant 0 : index
    %c0_324 = arith.constant 0 : index
    %361 = vector.load %arg1[%c0_322, %c42, %c0_323, %c0_324] : memref<1x60x75x60xf32, #tpu.memory_space<vmem>>, vector<1x1x75x60xf32>
    %362 = vector.shape_cast %361 : vector<1x1x75x60xf32> to vector<75x60xf32>
    %c0_325 = arith.constant 0 : index
    %c43 = arith.constant 43 : index
    %c0_326 = arith.constant 0 : index
    %c0_327 = arith.constant 0 : index
    %363 = vector.load %arg1[%c0_325, %c43, %c0_326, %c0_327] : memref<1x60x75x60xf32, #tpu.memory_space<vmem>>, vector<1x1x75x60xf32>
    %364 = vector.shape_cast %363 : vector<1x1x75x60xf32> to vector<75x60xf32>
    %cst_328 = arith.constant dense<0.000000e+00> : vector<6x60xf32>
    %365 = tpu.matmul %0, %362, %cst_328 {dimension_numbers = #tpu.dot_dimension_numbers<[1], [0], [0], [1], [0, 0, 1, 1], [], []>} : vector<6x75xf32>, vector<75x60xf32>, vector<6x60xf32> -> vector<6x60xf32>
    %cst_329 = arith.constant dense<0.000000e+00> : vector<6x60xf32>
    %366 = tpu.matmul %0, %364, %cst_329 {dimension_numbers = #tpu.dot_dimension_numbers<[1], [0], [0], [1], [0, 0, 1, 1], [], []>} : vector<6x75xf32>, vector<75x60xf32>, vector<6x60xf32> -> vector<6x60xf32>
    %367 = arith.maximumf %365, %366 : vector<6x60xf32>
    %cst_330 = arith.constant dense<0.000000e+00> : vector<6x30xf32>
    %368 = tpu.matmul %367, %2, %cst_330 {dimension_numbers = #tpu.dot_dimension_numbers<[1], [0], [0], [1], [0, 0, 1, 1], [], []>} : vector<6x60xf32>, vector<60x30xf32>, vector<6x30xf32> -> vector<6x30xf32>
    %cst_331 = arith.constant dense<0.000000e+00> : vector<6x30xf32>
    %369 = tpu.matmul %367, %3, %cst_331 {dimension_numbers = #tpu.dot_dimension_numbers<[1], [0], [0], [1], [0, 0, 1, 1], [], []>} : vector<6x60xf32>, vector<60x30xf32>, vector<6x30xf32> -> vector<6x30xf32>
    %370 = arith.maximumf %368, %369 : vector<6x30xf32>
    %371 = vector.broadcast %1 : vector<6x1xf32> to vector<6x30xf32>
    %372 = arith.addf %370, %371 : vector<6x30xf32>
    %cst_332 = arith.constant 0.000000e+00 : f32
    %373 = vector.broadcast %cst_332 : f32 to vector<6x30xf32>
    %374 = arith.maximumf %372, %373 : vector<6x30xf32>
    %c0_333 = arith.constant 0 : index
    %c0_334 = arith.constant 0 : index
    %c21_335 = arith.constant 21 : index
    %c0_336 = arith.constant 0 : index
    %375 = vector.load %arg6[%c0_333, %c0_334, %c21_335, %c0_336] : memref<1x6x30x30xf32, #tpu.memory_space<vmem>>, vector<1x6x1x30xf32>
    %376 = vector.shape_cast %375 : vector<1x6x1x30xf32> to vector<6x30xf32>
    %377 = vector.shape_cast %374 : vector<6x30xf32> to vector<1x6x1x30xf32>
    tpu.vector_store %arg6[%c0_333, %c0_334, %c21_335, %c0_336], %377 {strides = array<i32>} : memref<1x6x30x30xf32, #tpu.memory_space<vmem>>, vector<1x6x1x30xf32>,
    %c0_337 = arith.constant 0 : index
    %c44 = arith.constant 44 : index
    %c0_338 = arith.constant 0 : index
    %c0_339 = arith.constant 0 : index
    %378 = vector.load %arg1[%c0_337, %c44, %c0_338, %c0_339] : memref<1x60x75x60xf32, #tpu.memory_space<vmem>>, vector<1x1x75x60xf32>
    %379 = vector.shape_cast %378 : vector<1x1x75x60xf32> to vector<75x60xf32>
    %c0_340 = arith.constant 0 : index
    %c45 = arith.constant 45 : index
    %c0_341 = arith.constant 0 : index
    %c0_342 = arith.constant 0 : index
    %380 = vector.load %arg1[%c0_340, %c45, %c0_341, %c0_342] : memref<1x60x75x60xf32, #tpu.memory_space<vmem>>, vector<1x1x75x60xf32>
    %381 = vector.shape_cast %380 : vector<1x1x75x60xf32> to vector<75x60xf32>
    %cst_343 = arith.constant dense<0.000000e+00> : vector<6x60xf32>
    %382 = tpu.matmul %0, %379, %cst_343 {dimension_numbers = #tpu.dot_dimension_numbers<[1], [0], [0], [1], [0, 0, 1, 1], [], []>} : vector<6x75xf32>, vector<75x60xf32>, vector<6x60xf32> -> vector<6x60xf32>
    %cst_344 = arith.constant dense<0.000000e+00> : vector<6x60xf32>
    %383 = tpu.matmul %0, %381, %cst_344 {dimension_numbers = #tpu.dot_dimension_numbers<[1], [0], [0], [1], [0, 0, 1, 1], [], []>} : vector<6x75xf32>, vector<75x60xf32>, vector<6x60xf32> -> vector<6x60xf32>
    %384 = arith.maximumf %382, %383 : vector<6x60xf32>
    %cst_345 = arith.constant dense<0.000000e+00> : vector<6x30xf32>
    %385 = tpu.matmul %384, %2, %cst_345 {dimension_numbers = #tpu.dot_dimension_numbers<[1], [0], [0], [1], [0, 0, 1, 1], [], []>} : vector<6x60xf32>, vector<60x30xf32>, vector<6x30xf32> -> vector<6x30xf32>
    %cst_346 = arith.constant dense<0.000000e+00> : vector<6x30xf32>
    %386 = tpu.matmul %384, %3, %cst_346 {dimension_numbers = #tpu.dot_dimension_numbers<[1], [0], [0], [1], [0, 0, 1, 1], [], []>} : vector<6x60xf32>, vector<60x30xf32>, vector<6x30xf32> -> vector<6x30xf32>
    %387 = arith.maximumf %385, %386 : vector<6x30xf32>
    %388 = vector.broadcast %1 : vector<6x1xf32> to vector<6x30xf32>
    %389 = arith.addf %387, %388 : vector<6x30xf32>
    %cst_347 = arith.constant 0.000000e+00 : f32
    %390 = vector.broadcast %cst_347 : f32 to vector<6x30xf32>
    %391 = arith.maximumf %389, %390 : vector<6x30xf32>
    %c0_348 = arith.constant 0 : index
    %c0_349 = arith.constant 0 : index
    %c22_350 = arith.constant 22 : index
    %c0_351 = arith.constant 0 : index
    %392 = vector.load %arg6[%c0_348, %c0_349, %c22_350, %c0_351] : memref<1x6x30x30xf32, #tpu.memory_space<vmem>>, vector<1x6x1x30xf32>
    %393 = vector.shape_cast %392 : vector<1x6x1x30xf32> to vector<6x30xf32>
    %394 = vector.shape_cast %391 : vector<6x30xf32> to vector<1x6x1x30xf32>
    tpu.vector_store %arg6[%c0_348, %c0_349, %c22_350, %c0_351], %394 {strides = array<i32>} : memref<1x6x30x30xf32, #tpu.memory_space<vmem>>, vector<1x6x1x30xf32>,
    %c0_352 = arith.constant 0 : index
    %c46 = arith.constant 46 : index
    %c0_353 = arith.constant 0 : index
    %c0_354 = arith.constant 0 : index
    %395 = vector.load %arg1[%c0_352, %c46, %c0_353, %c0_354] : memref<1x60x75x60xf32, #tpu.memory_space<vmem>>, vector<1x1x75x60xf32>
    %396 = vector.shape_cast %395 : vector<1x1x75x60xf32> to vector<75x60xf32>
    %c0_355 = arith.constant 0 : index
    %c47 = arith.constant 47 : index
    %c0_356 = arith.constant 0 : index
    %c0_357 = arith.constant 0 : index
    %397 = vector.load %arg1[%c0_355, %c47, %c0_356, %c0_357] : memref<1x60x75x60xf32, #tpu.memory_space<vmem>>, vector<1x1x75x60xf32>
    %398 = vector.shape_cast %397 : vector<1x1x75x60xf32> to vector<75x60xf32>
    %cst_358 = arith.constant dense<0.000000e+00> : vector<6x60xf32>
    %399 = tpu.matmul %0, %396, %cst_358 {dimension_numbers = #tpu.dot_dimension_numbers<[1], [0], [0], [1], [0, 0, 1, 1], [], []>} : vector<6x75xf32>, vector<75x60xf32>, vector<6x60xf32> -> vector<6x60xf32>
    %cst_359 = arith.constant dense<0.000000e+00> : vector<6x60xf32>
    %400 = tpu.matmul %0, %398, %cst_359 {dimension_numbers = #tpu.dot_dimension_numbers<[1], [0], [0], [1], [0, 0, 1, 1], [], []>} : vector<6x75xf32>, vector<75x60xf32>, vector<6x60xf32> -> vector<6x60xf32>
    %401 = arith.maximumf %399, %400 : vector<6x60xf32>
    %cst_360 = arith.constant dense<0.000000e+00> : vector<6x30xf32>
    %402 = tpu.matmul %401, %2, %cst_360 {dimension_numbers = #tpu.dot_dimension_numbers<[1], [0], [0], [1], [0, 0, 1, 1], [], []>} : vector<6x60xf32>, vector<60x30xf32>, vector<6x30xf32> -> vector<6x30xf32>
    %cst_361 = arith.constant dense<0.000000e+00> : vector<6x30xf32>
    %403 = tpu.matmul %401, %3, %cst_361 {dimension_numbers = #tpu.dot_dimension_numbers<[1], [0], [0], [1], [0, 0, 1, 1], [], []>} : vector<6x60xf32>, vector<60x30xf32>, vector<6x30xf32> -> vector<6x30xf32>
    %404 = arith.maximumf %402, %403 : vector<6x30xf32>
    %405 = vector.broadcast %1 : vector<6x1xf32> to vector<6x30xf32>
    %406 = arith.addf %404, %405 : vector<6x30xf32>
    %cst_362 = arith.constant 0.000000e+00 : f32
    %407 = vector.broadcast %cst_362 : f32 to vector<6x30xf32>
    %408 = arith.maximumf %406, %407 : vector<6x30xf32>
    %c0_363 = arith.constant 0 : index
    %c0_364 = arith.constant 0 : index
    %c23_365 = arith.constant 23 : index
    %c0_366 = arith.constant 0 : index
    %409 = vector.load %arg6[%c0_363, %c0_364, %c23_365, %c0_366] : memref<1x6x30x30xf32, #tpu.memory_space<vmem>>, vector<1x6x1x30xf32>
    %410 = vector.shape_cast %409 : vector<1x6x1x30xf32> to vector<6x30xf32>
    %411 = vector.shape_cast %408 : vector<6x30xf32> to vector<1x6x1x30xf32>
    tpu.vector_store %arg6[%c0_363, %c0_364, %c23_365, %c0_366], %411 {strides = array<i32>} : memref<1x6x30x30xf32, #tpu.memory_space<vmem>>, vector<1x6x1x30xf32>,
    %c0_367 = arith.constant 0 : index
    %c48 = arith.constant 48 : index
    %c0_368 = arith.constant 0 : index
    %c0_369 = arith.constant 0 : index
    %412 = vector.load %arg1[%c0_367, %c48, %c0_368, %c0_369] : memref<1x60x75x60xf32, #tpu.memory_space<vmem>>, vector<1x1x75x60xf32>
    %413 = vector.shape_cast %412 : vector<1x1x75x60xf32> to vector<75x60xf32>
    %c0_370 = arith.constant 0 : index
    %c49 = arith.constant 49 : index
    %c0_371 = arith.constant 0 : index
    %c0_372 = arith.constant 0 : index
    %414 = vector.load %arg1[%c0_370, %c49, %c0_371, %c0_372] : memref<1x60x75x60xf32, #tpu.memory_space<vmem>>, vector<1x1x75x60xf32>
    %415 = vector.shape_cast %414 : vector<1x1x75x60xf32> to vector<75x60xf32>
    %cst_373 = arith.constant dense<0.000000e+00> : vector<6x60xf32>
    %416 = tpu.matmul %0, %413, %cst_373 {dimension_numbers = #tpu.dot_dimension_numbers<[1], [0], [0], [1], [0, 0, 1, 1], [], []>} : vector<6x75xf32>, vector<75x60xf32>, vector<6x60xf32> -> vector<6x60xf32>
    %cst_374 = arith.constant dense<0.000000e+00> : vector<6x60xf32>
    %417 = tpu.matmul %0, %415, %cst_374 {dimension_numbers = #tpu.dot_dimension_numbers<[1], [0], [0], [1], [0, 0, 1, 1], [], []>} : vector<6x75xf32>, vector<75x60xf32>, vector<6x60xf32> -> vector<6x60xf32>
    %418 = arith.maximumf %416, %417 : vector<6x60xf32>
    %cst_375 = arith.constant dense<0.000000e+00> : vector<6x30xf32>
    %419 = tpu.matmul %418, %2, %cst_375 {dimension_numbers = #tpu.dot_dimension_numbers<[1], [0], [0], [1], [0, 0, 1, 1], [], []>} : vector<6x60xf32>, vector<60x30xf32>, vector<6x30xf32> -> vector<6x30xf32>
    %cst_376 = arith.constant dense<0.000000e+00> : vector<6x30xf32>
    %420 = tpu.matmul %418, %3, %cst_376 {dimension_numbers = #tpu.dot_dimension_numbers<[1], [0], [0], [1], [0, 0, 1, 1], [], []>} : vector<6x60xf32>, vector<60x30xf32>, vector<6x30xf32> -> vector<6x30xf32>
    %421 = arith.maximumf %419, %420 : vector<6x30xf32>
    %422 = vector.broadcast %1 : vector<6x1xf32> to vector<6x30xf32>
    %423 = arith.addf %421, %422 : vector<6x30xf32>
    %cst_377 = arith.constant 0.000000e+00 : f32
    %424 = vector.broadcast %cst_377 : f32 to vector<6x30xf32>
    %425 = arith.maximumf %423, %424 : vector<6x30xf32>
    %c0_378 = arith.constant 0 : index
    %c0_379 = arith.constant 0 : index
    %c24_380 = arith.constant 24 : index
    %c0_381 = arith.constant 0 : index
    %426 = vector.load %arg6[%c0_378, %c0_379, %c24_380, %c0_381] : memref<1x6x30x30xf32, #tpu.memory_space<vmem>>, vector<1x6x1x30xf32>
    %427 = vector.shape_cast %426 : vector<1x6x1x30xf32> to vector<6x30xf32>
    %428 = vector.shape_cast %425 : vector<6x30xf32> to vector<1x6x1x30xf32>
    tpu.vector_store %arg6[%c0_378, %c0_379, %c24_380, %c0_381], %428 {strides = array<i32>} : memref<1x6x30x30xf32, #tpu.memory_space<vmem>>, vector<1x6x1x30xf32>,
    %c0_382 = arith.constant 0 : index
    %c50 = arith.constant 50 : index
    %c0_383 = arith.constant 0 : index
    %c0_384 = arith.constant 0 : index
    %429 = vector.load %arg1[%c0_382, %c50, %c0_383, %c0_384] : memref<1x60x75x60xf32, #tpu.memory_space<vmem>>, vector<1x1x75x60xf32>
    %430 = vector.shape_cast %429 : vector<1x1x75x60xf32> to vector<75x60xf32>
    %c0_385 = arith.constant 0 : index
    %c51 = arith.constant 51 : index
    %c0_386 = arith.constant 0 : index
    %c0_387 = arith.constant 0 : index
    %431 = vector.load %arg1[%c0_385, %c51, %c0_386, %c0_387] : memref<1x60x75x60xf32, #tpu.memory_space<vmem>>, vector<1x1x75x60xf32>
    %432 = vector.shape_cast %431 : vector<1x1x75x60xf32> to vector<75x60xf32>
    %cst_388 = arith.constant dense<0.000000e+00> : vector<6x60xf32>
    %433 = tpu.matmul %0, %430, %cst_388 {dimension_numbers = #tpu.dot_dimension_numbers<[1], [0], [0], [1], [0, 0, 1, 1], [], []>} : vector<6x75xf32>, vector<75x60xf32>, vector<6x60xf32> -> vector<6x60xf32>
    %cst_389 = arith.constant dense<0.000000e+00> : vector<6x60xf32>
    %434 = tpu.matmul %0, %432, %cst_389 {dimension_numbers = #tpu.dot_dimension_numbers<[1], [0], [0], [1], [0, 0, 1, 1], [], []>} : vector<6x75xf32>, vector<75x60xf32>, vector<6x60xf32> -> vector<6x60xf32>
    %435 = arith.maximumf %433, %434 : vector<6x60xf32>
    %cst_390 = arith.constant dense<0.000000e+00> : vector<6x30xf32>
    %436 = tpu.matmul %435, %2, %cst_390 {dimension_numbers = #tpu.dot_dimension_numbers<[1], [0], [0], [1], [0, 0, 1, 1], [], []>} : vector<6x60xf32>, vector<60x30xf32>, vector<6x30xf32> -> vector<6x30xf32>
    %cst_391 = arith.constant dense<0.000000e+00> : vector<6x30xf32>
    %437 = tpu.matmul %435, %3, %cst_391 {dimension_numbers = #tpu.dot_dimension_numbers<[1], [0], [0], [1], [0, 0, 1, 1], [], []>} : vector<6x60xf32>, vector<60x30xf32>, vector<6x30xf32> -> vector<6x30xf32>
    %438 = arith.maximumf %436, %437 : vector<6x30xf32>
    %439 = vector.broadcast %1 : vector<6x1xf32> to vector<6x30xf32>
    %440 = arith.addf %438, %439 : vector<6x30xf32>
    %cst_392 = arith.constant 0.000000e+00 : f32
    %441 = vector.broadcast %cst_392 : f32 to vector<6x30xf32>
    %442 = arith.maximumf %440, %441 : vector<6x30xf32>
    %c0_393 = arith.constant 0 : index
    %c0_394 = arith.constant 0 : index
    %c25_395 = arith.constant 25 : index
    %c0_396 = arith.constant 0 : index
    %443 = vector.load %arg6[%c0_393, %c0_394, %c25_395, %c0_396] : memref<1x6x30x30xf32, #tpu.memory_space<vmem>>, vector<1x6x1x30xf32>
    %444 = vector.shape_cast %443 : vector<1x6x1x30xf32> to vector<6x30xf32>
    %445 = vector.shape_cast %442 : vector<6x30xf32> to vector<1x6x1x30xf32>
    tpu.vector_store %arg6[%c0_393, %c0_394, %c25_395, %c0_396], %445 {strides = array<i32>} : memref<1x6x30x30xf32, #tpu.memory_space<vmem>>, vector<1x6x1x30xf32>,
    %c0_397 = arith.constant 0 : index
    %c52 = arith.constant 52 : index
    %c0_398 = arith.constant 0 : index
    %c0_399 = arith.constant 0 : index
    %446 = vector.load %arg1[%c0_397, %c52, %c0_398, %c0_399] : memref<1x60x75x60xf32, #tpu.memory_space<vmem>>, vector<1x1x75x60xf32>
    %447 = vector.shape_cast %446 : vector<1x1x75x60xf32> to vector<75x60xf32>
    %c0_400 = arith.constant 0 : index
    %c53 = arith.constant 53 : index
    %c0_401 = arith.constant 0 : index
    %c0_402 = arith.constant 0 : index
    %448 = vector.load %arg1[%c0_400, %c53, %c0_401, %c0_402] : memref<1x60x75x60xf32, #tpu.memory_space<vmem>>, vector<1x1x75x60xf32>
    %449 = vector.shape_cast %448 : vector<1x1x75x60xf32> to vector<75x60xf32>
    %cst_403 = arith.constant dense<0.000000e+00> : vector<6x60xf32>
    %450 = tpu.matmul %0, %447, %cst_403 {dimension_numbers = #tpu.dot_dimension_numbers<[1], [0], [0], [1], [0, 0, 1, 1], [], []>} : vector<6x75xf32>, vector<75x60xf32>, vector<6x60xf32> -> vector<6x60xf32>
    %cst_404 = arith.constant dense<0.000000e+00> : vector<6x60xf32>
    %451 = tpu.matmul %0, %449, %cst_404 {dimension_numbers = #tpu.dot_dimension_numbers<[1], [0], [0], [1], [0, 0, 1, 1], [], []>} : vector<6x75xf32>, vector<75x60xf32>, vector<6x60xf32> -> vector<6x60xf32>
    %452 = arith.maximumf %450, %451 : vector<6x60xf32>
    %cst_405 = arith.constant dense<0.000000e+00> : vector<6x30xf32>
    %453 = tpu.matmul %452, %2, %cst_405 {dimension_numbers = #tpu.dot_dimension_numbers<[1], [0], [0], [1], [0, 0, 1, 1], [], []>} : vector<6x60xf32>, vector<60x30xf32>, vector<6x30xf32> -> vector<6x30xf32>
    %cst_406 = arith.constant dense<0.000000e+00> : vector<6x30xf32>
    %454 = tpu.matmul %452, %3, %cst_406 {dimension_numbers = #tpu.dot_dimension_numbers<[1], [0], [0], [1], [0, 0, 1, 1], [], []>} : vector<6x60xf32>, vector<60x30xf32>, vector<6x30xf32> -> vector<6x30xf32>
    %455 = arith.maximumf %453, %454 : vector<6x30xf32>
    %456 = vector.broadcast %1 : vector<6x1xf32> to vector<6x30xf32>
    %457 = arith.addf %455, %456 : vector<6x30xf32>
    %cst_407 = arith.constant 0.000000e+00 : f32
    %458 = vector.broadcast %cst_407 : f32 to vector<6x30xf32>
    %459 = arith.maximumf %457, %458 : vector<6x30xf32>
    %c0_408 = arith.constant 0 : index
    %c0_409 = arith.constant 0 : index
    %c26_410 = arith.constant 26 : index
    %c0_411 = arith.constant 0 : index
    %460 = vector.load %arg6[%c0_408, %c0_409, %c26_410, %c0_411] : memref<1x6x30x30xf32, #tpu.memory_space<vmem>>, vector<1x6x1x30xf32>
    %461 = vector.shape_cast %460 : vector<1x6x1x30xf32> to vector<6x30xf32>
    %462 = vector.shape_cast %459 : vector<6x30xf32> to vector<1x6x1x30xf32>
    tpu.vector_store %arg6[%c0_408, %c0_409, %c26_410, %c0_411], %462 {strides = array<i32>} : memref<1x6x30x30xf32, #tpu.memory_space<vmem>>, vector<1x6x1x30xf32>,
    %c0_412 = arith.constant 0 : index
    %c54 = arith.constant 54 : index
    %c0_413 = arith.constant 0 : index
    %c0_414 = arith.constant 0 : index
    %463 = vector.load %arg1[%c0_412, %c54, %c0_413, %c0_414] : memref<1x60x75x60xf32, #tpu.memory_space<vmem>>, vector<1x1x75x60xf32>
    %464 = vector.shape_cast %463 : vector<1x1x75x60xf32> to vector<75x60xf32>
    %c0_415 = arith.constant 0 : index
    %c55 = arith.constant 55 : index
    %c0_416 = arith.constant 0 : index
    %c0_417 = arith.constant 0 : index
    %465 = vector.load %arg1[%c0_415, %c55, %c0_416, %c0_417] : memref<1x60x75x60xf32, #tpu.memory_space<vmem>>, vector<1x1x75x60xf32>
    %466 = vector.shape_cast %465 : vector<1x1x75x60xf32> to vector<75x60xf32>
    %cst_418 = arith.constant dense<0.000000e+00> : vector<6x60xf32>
    %467 = tpu.matmul %0, %464, %cst_418 {dimension_numbers = #tpu.dot_dimension_numbers<[1], [0], [0], [1], [0, 0, 1, 1], [], []>} : vector<6x75xf32>, vector<75x60xf32>, vector<6x60xf32> -> vector<6x60xf32>
    %cst_419 = arith.constant dense<0.000000e+00> : vector<6x60xf32>
    %468 = tpu.matmul %0, %466, %cst_419 {dimension_numbers = #tpu.dot_dimension_numbers<[1], [0], [0], [1], [0, 0, 1, 1], [], []>} : vector<6x75xf32>, vector<75x60xf32>, vector<6x60xf32> -> vector<6x60xf32>
    %469 = arith.maximumf %467, %468 : vector<6x60xf32>
    %cst_420 = arith.constant dense<0.000000e+00> : vector<6x30xf32>
    %470 = tpu.matmul %469, %2, %cst_420 {dimension_numbers = #tpu.dot_dimension_numbers<[1], [0], [0], [1], [0, 0, 1, 1], [], []>} : vector<6x60xf32>, vector<60x30xf32>, vector<6x30xf32> -> vector<6x30xf32>
    %cst_421 = arith.constant dense<0.000000e+00> : vector<6x30xf32>
    %471 = tpu.matmul %469, %3, %cst_421 {dimension_numbers = #tpu.dot_dimension_numbers<[1], [0], [0], [1], [0, 0, 1, 1], [], []>} : vector<6x60xf32>, vector<60x30xf32>, vector<6x30xf32> -> vector<6x30xf32>
    %472 = arith.maximumf %470, %471 : vector<6x30xf32>
    %473 = vector.broadcast %1 : vector<6x1xf32> to vector<6x30xf32>
    %474 = arith.addf %472, %473 : vector<6x30xf32>
    %cst_422 = arith.constant 0.000000e+00 : f32
    %475 = vector.broadcast %cst_422 : f32 to vector<6x30xf32>
    %476 = arith.maximumf %474, %475 : vector<6x30xf32>
    %c0_423 = arith.constant 0 : index
    %c0_424 = arith.constant 0 : index
    %c27_425 = arith.constant 27 : index
    %c0_426 = arith.constant 0 : index
    %477 = vector.load %arg6[%c0_423, %c0_424, %c27_425, %c0_426] : memref<1x6x30x30xf32, #tpu.memory_space<vmem>>, vector<1x6x1x30xf32>
    %478 = vector.shape_cast %477 : vector<1x6x1x30xf32> to vector<6x30xf32>
    %479 = vector.shape_cast %476 : vector<6x30xf32> to vector<1x6x1x30xf32>
    tpu.vector_store %arg6[%c0_423, %c0_424, %c27_425, %c0_426], %479 {strides = array<i32>} : memref<1x6x30x30xf32, #tpu.memory_space<vmem>>, vector<1x6x1x30xf32>,
    %c0_427 = arith.constant 0 : index
    %c56 = arith.constant 56 : index
    %c0_428 = arith.constant 0 : index
    %c0_429 = arith.constant 0 : index
    %480 = vector.load %arg1[%c0_427, %c56, %c0_428, %c0_429] : memref<1x60x75x60xf32, #tpu.memory_space<vmem>>, vector<1x1x75x60xf32>
    %481 = vector.shape_cast %480 : vector<1x1x75x60xf32> to vector<75x60xf32>
    %c0_430 = arith.constant 0 : index
    %c57 = arith.constant 57 : index
    %c0_431 = arith.constant 0 : index
    %c0_432 = arith.constant 0 : index
    %482 = vector.load %arg1[%c0_430, %c57, %c0_431, %c0_432] : memref<1x60x75x60xf32, #tpu.memory_space<vmem>>, vector<1x1x75x60xf32>
    %483 = vector.shape_cast %482 : vector<1x1x75x60xf32> to vector<75x60xf32>
    %cst_433 = arith.constant dense<0.000000e+00> : vector<6x60xf32>
    %484 = tpu.matmul %0, %481, %cst_433 {dimension_numbers = #tpu.dot_dimension_numbers<[1], [0], [0], [1], [0, 0, 1, 1], [], []>} : vector<6x75xf32>, vector<75x60xf32>, vector<6x60xf32> -> vector<6x60xf32>
    %cst_434 = arith.constant dense<0.000000e+00> : vector<6x60xf32>
    %485 = tpu.matmul %0, %483, %cst_434 {dimension_numbers = #tpu.dot_dimension_numbers<[1], [0], [0], [1], [0, 0, 1, 1], [], []>} : vector<6x75xf32>, vector<75x60xf32>, vector<6x60xf32> -> vector<6x60xf32>
    %486 = arith.maximumf %484, %485 : vector<6x60xf32>
    %cst_435 = arith.constant dense<0.000000e+00> : vector<6x30xf32>
    %487 = tpu.matmul %486, %2, %cst_435 {dimension_numbers = #tpu.dot_dimension_numbers<[1], [0], [0], [1], [0, 0, 1, 1], [], []>} : vector<6x60xf32>, vector<60x30xf32>, vector<6x30xf32> -> vector<6x30xf32>
    %cst_436 = arith.constant dense<0.000000e+00> : vector<6x30xf32>
    %488 = tpu.matmul %486, %3, %cst_436 {dimension_numbers = #tpu.dot_dimension_numbers<[1], [0], [0], [1], [0, 0, 1, 1], [], []>} : vector<6x60xf32>, vector<60x30xf32>, vector<6x30xf32> -> vector<6x30xf32>
    %489 = arith.maximumf %487, %488 : vector<6x30xf32>
    %490 = vector.broadcast %1 : vector<6x1xf32> to vector<6x30xf32>
    %491 = arith.addf %489, %490 : vector<6x30xf32>
    %cst_437 = arith.constant 0.000000e+00 : f32
    %492 = vector.broadcast %cst_437 : f32 to vector<6x30xf32>
    %493 = arith.maximumf %491, %492 : vector<6x30xf32>
    %c0_438 = arith.constant 0 : index
    %c0_439 = arith.constant 0 : index
    %c28_440 = arith.constant 28 : index
    %c0_441 = arith.constant 0 : index
    %494 = vector.load %arg6[%c0_438, %c0_439, %c28_440, %c0_441] : memref<1x6x30x30xf32, #tpu.memory_space<vmem>>, vector<1x6x1x30xf32>
    %495 = vector.shape_cast %494 : vector<1x6x1x30xf32> to vector<6x30xf32>
    %496 = vector.shape_cast %493 : vector<6x30xf32> to vector<1x6x1x30xf32>
    tpu.vector_store %arg6[%c0_438, %c0_439, %c28_440, %c0_441], %496 {strides = array<i32>} : memref<1x6x30x30xf32, #tpu.memory_space<vmem>>, vector<1x6x1x30xf32>,
    %c0_442 = arith.constant 0 : index
    %c58 = arith.constant 58 : index
    %c0_443 = arith.constant 0 : index
    %c0_444 = arith.constant 0 : index
    %497 = vector.load %arg1[%c0_442, %c58, %c0_443, %c0_444] : memref<1x60x75x60xf32, #tpu.memory_space<vmem>>, vector<1x1x75x60xf32>
    %498 = vector.shape_cast %497 : vector<1x1x75x60xf32> to vector<75x60xf32>
    %c0_445 = arith.constant 0 : index
    %c59 = arith.constant 59 : index
    %c0_446 = arith.constant 0 : index
    %c0_447 = arith.constant 0 : index
    %499 = vector.load %arg1[%c0_445, %c59, %c0_446, %c0_447] : memref<1x60x75x60xf32, #tpu.memory_space<vmem>>, vector<1x1x75x60xf32>
    %500 = vector.shape_cast %499 : vector<1x1x75x60xf32> to vector<75x60xf32>
    %cst_448 = arith.constant dense<0.000000e+00> : vector<6x60xf32>
    %501 = tpu.matmul %0, %498, %cst_448 {dimension_numbers = #tpu.dot_dimension_numbers<[1], [0], [0], [1], [0, 0, 1, 1], [], []>} : vector<6x75xf32>, vector<75x60xf32>, vector<6x60xf32> -> vector<6x60xf32>
    %cst_449 = arith.constant dense<0.000000e+00> : vector<6x60xf32>
    %502 = tpu.matmul %0, %500, %cst_449 {dimension_numbers = #tpu.dot_dimension_numbers<[1], [0], [0], [1], [0, 0, 1, 1], [], []>} : vector<6x75xf32>, vector<75x60xf32>, vector<6x60xf32> -> vector<6x60xf32>
    %503 = arith.maximumf %501, %502 : vector<6x60xf32>
    %cst_450 = arith.constant dense<0.000000e+00> : vector<6x30xf32>
    %504 = tpu.matmul %503, %2, %cst_450 {dimension_numbers = #tpu.dot_dimension_numbers<[1], [0], [0], [1], [0, 0, 1, 1], [], []>} : vector<6x60xf32>, vector<60x30xf32>, vector<6x30xf32> -> vector<6x30xf32>
    %cst_451 = arith.constant dense<0.000000e+00> : vector<6x30xf32>
    %505 = tpu.matmul %503, %3, %cst_451 {dimension_numbers = #tpu.dot_dimension_numbers<[1], [0], [0], [1], [0, 0, 1, 1], [], []>} : vector<6x60xf32>, vector<60x30xf32>, vector<6x30xf32> -> vector<6x30xf32>
    %506 = arith.maximumf %504, %505 : vector<6x30xf32>
    %507 = vector.broadcast %1 : vector<6x1xf32> to vector<6x30xf32>
    %508 = arith.addf %506, %507 : vector<6x30xf32>
    %cst_452 = arith.constant 0.000000e+00 : f32
    %509 = vector.broadcast %cst_452 : f32 to vector<6x30xf32>
    %510 = arith.maximumf %508, %509 : vector<6x30xf32>
    %c0_453 = arith.constant 0 : index
    %c0_454 = arith.constant 0 : index
    %c29_455 = arith.constant 29 : index
    %c0_456 = arith.constant 0 : index
    %511 = vector.load %arg6[%c0_453, %c0_454, %c29_455, %c0_456] : memref<1x6x30x30xf32, #tpu.memory_space<vmem>>, vector<1x6x1x30xf32>
    %512 = vector.shape_cast %511 : vector<1x6x1x30xf32> to vector<6x30xf32>
    %513 = vector.shape_cast %510 : vector<6x30xf32> to vector<1x6x1x30xf32>
    tpu.vector_store %arg6[%c0_453, %c0_454, %c29_455, %c0_456], %513 {strides = array<i32>} : memref<1x6x30x30xf32, #tpu.memory_space<vmem>>, vector<1x6x1x30xf32>,
    return
  }
  func.func @transform_0(%arg0: i32) -> (i32, i32, i32, i32) {
    %c0_i32 = arith.constant 0 : i32
    %c0_i32_0 = arith.constant 0 : i32
    %c0_i32_1 = arith.constant 0 : i32
    %c0_i32_2 = arith.constant 0 : i32
    return %arg0, %c0_i32, %c0_i32_0, %c0_i32_1 : i32, i32, i32, i32
  }
  func.func @transform_1(%arg0: i32) -> (i32, i32) {
    %c0_i32 = arith.constant 0 : i32
    %c0_i32_0 = arith.constant 0 : i32
    %c0_i32_1 = arith.constant 0 : i32
    return %c0_i32, %c0_i32_0 : i32, i32
  }
  func.func @transform_2(%arg0: i32) -> (i32, i32) {
    %c0_i32 = arith.constant 0 : i32
    %c0_i32_0 = arith.constant 0 : i32
    %c0_i32_1 = arith.constant 0 : i32
    return %c0_i32, %c0_i32_0 : i32, i32
  }
  func.func @transform_3(%arg0: i32) -> (i32, i32) {
    %c0_i32 = arith.constant 0 : i32
    %c0_i32_0 = arith.constant 0 : i32
    %c0_i32_1 = arith.constant 0 : i32
    return %c0_i32, %c0_i32_0 : i32, i32
  }
  func.func @transform_4(%arg0: i32) -> (i32, i32) {
    %c0_i32 = arith.constant 0 : i32
    %c0_i32_0 = arith.constant 0 : i32
    %c0_i32_1 = arith.constant 0 : i32
    return %c0_i32, %c0_i32_0 : i32, i32
  }
  func.func @transform_5(%arg0: i32) -> (i32, i32, i32, i32) {
    %c0_i32 = arith.constant 0 : i32
    %c0_i32_0 = arith.constant 0 : i32
    %c0_i32_1 = arith.constant 0 : i32
    %c0_i32_2 = arith.constant 0 : i32
    return %arg0, %c0_i32, %c0_i32_0, %c0_i32_1 : i32, i32, i32, i32
  }
}

module attributes {stable_mosaic.version = 11 : i64} {
  func.func @_conv_relu_pool_kernel(%arg0: i32, %arg1: memref<1x26x150x26xf32, #tpu.memory_space<vmem>>, %arg2: memref<16x150xf32, #tpu.memory_space<vmem>>, %arg3: memref<16x1xf32, #tpu.memory_space<vmem>>, %arg4: memref<26x13xf32, #tpu.memory_space<vmem>>, %arg5: memref<26x13xf32, #tpu.memory_space<vmem>>, %arg6: memref<1x16x13x13xf32, #tpu.memory_space<vmem>>) attributes {dimension_semantics = [#tpu.dimension_semantics<parallel>], iteration_bounds = array<i64: 2>, scalar_prefetch = 0 : i64, scratch_operands = 0 : i64, tpu.core_type = #tpu.core_type<tc>, window_params = [{transform_indices = @transform_0, window_bounds = array<i64: 1, 26, 150, 26>}, {pipeline_mode = #tpu.pipeline_mode<synchronous>, transform_indices = @transform_1, window_bounds = array<i64: 16, 150>}, {pipeline_mode = #tpu.pipeline_mode<synchronous>, transform_indices = @transform_2, window_bounds = array<i64: 16, 1>}, {pipeline_mode = #tpu.pipeline_mode<synchronous>, transform_indices = @transform_3, window_bounds = array<i64: 26, 13>}, {pipeline_mode = #tpu.pipeline_mode<synchronous>, transform_indices = @transform_4, window_bounds = array<i64: 26, 13>}, {transform_indices = @transform_5, window_bounds = array<i64: 1, 16, 13, 13>}]} {
    %c0 = arith.constant 0 : index
    %c0_0 = arith.constant 0 : index
    %0 = vector.load %arg2[%c0, %c0_0] : memref<16x150xf32, #tpu.memory_space<vmem>>, vector<16x150xf32>
    %c0_1 = arith.constant 0 : index
    %c0_2 = arith.constant 0 : index
    %1 = vector.load %arg3[%c0_1, %c0_2] : memref<16x1xf32, #tpu.memory_space<vmem>>, vector<16x1xf32>
    %c0_3 = arith.constant 0 : index
    %c0_4 = arith.constant 0 : index
    %2 = vector.load %arg4[%c0_3, %c0_4] : memref<26x13xf32, #tpu.memory_space<vmem>>, vector<26x13xf32>
    %c0_5 = arith.constant 0 : index
    %c0_6 = arith.constant 0 : index
    %3 = vector.load %arg5[%c0_5, %c0_6] : memref<26x13xf32, #tpu.memory_space<vmem>>, vector<26x13xf32>
    %c0_7 = arith.constant 0 : index
    %c0_8 = arith.constant 0 : index
    %c0_9 = arith.constant 0 : index
    %c0_10 = arith.constant 0 : index
    %4 = vector.load %arg1[%c0_7, %c0_8, %c0_9, %c0_10] : memref<1x26x150x26xf32, #tpu.memory_space<vmem>>, vector<1x1x150x26xf32>
    %5 = vector.shape_cast %4 : vector<1x1x150x26xf32> to vector<150x26xf32>
    %c0_11 = arith.constant 0 : index
    %c1 = arith.constant 1 : index
    %c0_12 = arith.constant 0 : index
    %c0_13 = arith.constant 0 : index
    %6 = vector.load %arg1[%c0_11, %c1, %c0_12, %c0_13] : memref<1x26x150x26xf32, #tpu.memory_space<vmem>>, vector<1x1x150x26xf32>
    %7 = vector.shape_cast %6 : vector<1x1x150x26xf32> to vector<150x26xf32>
    %cst = arith.constant dense<0.000000e+00> : vector<16x26xf32>
    %8 = tpu.matmul %0, %5, %cst {dimension_numbers = #tpu.dot_dimension_numbers<[1], [0], [0], [1], [0, 0, 1, 1], [], []>} : vector<16x150xf32>, vector<150x26xf32>, vector<16x26xf32> -> vector<16x26xf32>
    %cst_14 = arith.constant dense<0.000000e+00> : vector<16x26xf32>
    %9 = tpu.matmul %0, %7, %cst_14 {dimension_numbers = #tpu.dot_dimension_numbers<[1], [0], [0], [1], [0, 0, 1, 1], [], []>} : vector<16x150xf32>, vector<150x26xf32>, vector<16x26xf32> -> vector<16x26xf32>
    %10 = arith.maximumf %8, %9 : vector<16x26xf32>
    %cst_15 = arith.constant dense<0.000000e+00> : vector<16x13xf32>
    %11 = tpu.matmul %10, %2, %cst_15 {dimension_numbers = #tpu.dot_dimension_numbers<[1], [0], [0], [1], [0, 0, 1, 1], [], []>} : vector<16x26xf32>, vector<26x13xf32>, vector<16x13xf32> -> vector<16x13xf32>
    %cst_16 = arith.constant dense<0.000000e+00> : vector<16x13xf32>
    %12 = tpu.matmul %10, %3, %cst_16 {dimension_numbers = #tpu.dot_dimension_numbers<[1], [0], [0], [1], [0, 0, 1, 1], [], []>} : vector<16x26xf32>, vector<26x13xf32>, vector<16x13xf32> -> vector<16x13xf32>
    %13 = arith.maximumf %11, %12 : vector<16x13xf32>
    %14 = vector.broadcast %1 : vector<16x1xf32> to vector<16x13xf32>
    %15 = arith.addf %13, %14 : vector<16x13xf32>
    %cst_17 = arith.constant 0.000000e+00 : f32
    %16 = vector.broadcast %cst_17 : f32 to vector<16x13xf32>
    %17 = arith.maximumf %15, %16 : vector<16x13xf32>
    %c0_18 = arith.constant 0 : index
    %c0_19 = arith.constant 0 : index
    %c0_20 = arith.constant 0 : index
    %c0_21 = arith.constant 0 : index
    %18 = vector.load %arg6[%c0_18, %c0_19, %c0_20, %c0_21] : memref<1x16x13x13xf32, #tpu.memory_space<vmem>>, vector<1x16x1x13xf32>
    %19 = vector.shape_cast %18 : vector<1x16x1x13xf32> to vector<16x13xf32>
    %20 = vector.shape_cast %17 : vector<16x13xf32> to vector<1x16x1x13xf32>
    tpu.vector_store %arg6[%c0_18, %c0_19, %c0_20, %c0_21], %20 {strides = array<i32>} : memref<1x16x13x13xf32, #tpu.memory_space<vmem>>, vector<1x16x1x13xf32>,
    %c0_22 = arith.constant 0 : index
    %c2 = arith.constant 2 : index
    %c0_23 = arith.constant 0 : index
    %c0_24 = arith.constant 0 : index
    %21 = vector.load %arg1[%c0_22, %c2, %c0_23, %c0_24] : memref<1x26x150x26xf32, #tpu.memory_space<vmem>>, vector<1x1x150x26xf32>
    %22 = vector.shape_cast %21 : vector<1x1x150x26xf32> to vector<150x26xf32>
    %c0_25 = arith.constant 0 : index
    %c3 = arith.constant 3 : index
    %c0_26 = arith.constant 0 : index
    %c0_27 = arith.constant 0 : index
    %23 = vector.load %arg1[%c0_25, %c3, %c0_26, %c0_27] : memref<1x26x150x26xf32, #tpu.memory_space<vmem>>, vector<1x1x150x26xf32>
    %24 = vector.shape_cast %23 : vector<1x1x150x26xf32> to vector<150x26xf32>
    %cst_28 = arith.constant dense<0.000000e+00> : vector<16x26xf32>
    %25 = tpu.matmul %0, %22, %cst_28 {dimension_numbers = #tpu.dot_dimension_numbers<[1], [0], [0], [1], [0, 0, 1, 1], [], []>} : vector<16x150xf32>, vector<150x26xf32>, vector<16x26xf32> -> vector<16x26xf32>
    %cst_29 = arith.constant dense<0.000000e+00> : vector<16x26xf32>
    %26 = tpu.matmul %0, %24, %cst_29 {dimension_numbers = #tpu.dot_dimension_numbers<[1], [0], [0], [1], [0, 0, 1, 1], [], []>} : vector<16x150xf32>, vector<150x26xf32>, vector<16x26xf32> -> vector<16x26xf32>
    %27 = arith.maximumf %25, %26 : vector<16x26xf32>
    %cst_30 = arith.constant dense<0.000000e+00> : vector<16x13xf32>
    %28 = tpu.matmul %27, %2, %cst_30 {dimension_numbers = #tpu.dot_dimension_numbers<[1], [0], [0], [1], [0, 0, 1, 1], [], []>} : vector<16x26xf32>, vector<26x13xf32>, vector<16x13xf32> -> vector<16x13xf32>
    %cst_31 = arith.constant dense<0.000000e+00> : vector<16x13xf32>
    %29 = tpu.matmul %27, %3, %cst_31 {dimension_numbers = #tpu.dot_dimension_numbers<[1], [0], [0], [1], [0, 0, 1, 1], [], []>} : vector<16x26xf32>, vector<26x13xf32>, vector<16x13xf32> -> vector<16x13xf32>
    %30 = arith.maximumf %28, %29 : vector<16x13xf32>
    %31 = vector.broadcast %1 : vector<16x1xf32> to vector<16x13xf32>
    %32 = arith.addf %30, %31 : vector<16x13xf32>
    %cst_32 = arith.constant 0.000000e+00 : f32
    %33 = vector.broadcast %cst_32 : f32 to vector<16x13xf32>
    %34 = arith.maximumf %32, %33 : vector<16x13xf32>
    %c0_33 = arith.constant 0 : index
    %c0_34 = arith.constant 0 : index
    %c1_35 = arith.constant 1 : index
    %c0_36 = arith.constant 0 : index
    %35 = vector.load %arg6[%c0_33, %c0_34, %c1_35, %c0_36] : memref<1x16x13x13xf32, #tpu.memory_space<vmem>>, vector<1x16x1x13xf32>
    %36 = vector.shape_cast %35 : vector<1x16x1x13xf32> to vector<16x13xf32>
    %37 = vector.shape_cast %34 : vector<16x13xf32> to vector<1x16x1x13xf32>
    tpu.vector_store %arg6[%c0_33, %c0_34, %c1_35, %c0_36], %37 {strides = array<i32>} : memref<1x16x13x13xf32, #tpu.memory_space<vmem>>, vector<1x16x1x13xf32>,
    %c0_37 = arith.constant 0 : index
    %c4 = arith.constant 4 : index
    %c0_38 = arith.constant 0 : index
    %c0_39 = arith.constant 0 : index
    %38 = vector.load %arg1[%c0_37, %c4, %c0_38, %c0_39] : memref<1x26x150x26xf32, #tpu.memory_space<vmem>>, vector<1x1x150x26xf32>
    %39 = vector.shape_cast %38 : vector<1x1x150x26xf32> to vector<150x26xf32>
    %c0_40 = arith.constant 0 : index
    %c5 = arith.constant 5 : index
    %c0_41 = arith.constant 0 : index
    %c0_42 = arith.constant 0 : index
    %40 = vector.load %arg1[%c0_40, %c5, %c0_41, %c0_42] : memref<1x26x150x26xf32, #tpu.memory_space<vmem>>, vector<1x1x150x26xf32>
    %41 = vector.shape_cast %40 : vector<1x1x150x26xf32> to vector<150x26xf32>
    %cst_43 = arith.constant dense<0.000000e+00> : vector<16x26xf32>
    %42 = tpu.matmul %0, %39, %cst_43 {dimension_numbers = #tpu.dot_dimension_numbers<[1], [0], [0], [1], [0, 0, 1, 1], [], []>} : vector<16x150xf32>, vector<150x26xf32>, vector<16x26xf32> -> vector<16x26xf32>
    %cst_44 = arith.constant dense<0.000000e+00> : vector<16x26xf32>
    %43 = tpu.matmul %0, %41, %cst_44 {dimension_numbers = #tpu.dot_dimension_numbers<[1], [0], [0], [1], [0, 0, 1, 1], [], []>} : vector<16x150xf32>, vector<150x26xf32>, vector<16x26xf32> -> vector<16x26xf32>
    %44 = arith.maximumf %42, %43 : vector<16x26xf32>
    %cst_45 = arith.constant dense<0.000000e+00> : vector<16x13xf32>
    %45 = tpu.matmul %44, %2, %cst_45 {dimension_numbers = #tpu.dot_dimension_numbers<[1], [0], [0], [1], [0, 0, 1, 1], [], []>} : vector<16x26xf32>, vector<26x13xf32>, vector<16x13xf32> -> vector<16x13xf32>
    %cst_46 = arith.constant dense<0.000000e+00> : vector<16x13xf32>
    %46 = tpu.matmul %44, %3, %cst_46 {dimension_numbers = #tpu.dot_dimension_numbers<[1], [0], [0], [1], [0, 0, 1, 1], [], []>} : vector<16x26xf32>, vector<26x13xf32>, vector<16x13xf32> -> vector<16x13xf32>
    %47 = arith.maximumf %45, %46 : vector<16x13xf32>
    %48 = vector.broadcast %1 : vector<16x1xf32> to vector<16x13xf32>
    %49 = arith.addf %47, %48 : vector<16x13xf32>
    %cst_47 = arith.constant 0.000000e+00 : f32
    %50 = vector.broadcast %cst_47 : f32 to vector<16x13xf32>
    %51 = arith.maximumf %49, %50 : vector<16x13xf32>
    %c0_48 = arith.constant 0 : index
    %c0_49 = arith.constant 0 : index
    %c2_50 = arith.constant 2 : index
    %c0_51 = arith.constant 0 : index
    %52 = vector.load %arg6[%c0_48, %c0_49, %c2_50, %c0_51] : memref<1x16x13x13xf32, #tpu.memory_space<vmem>>, vector<1x16x1x13xf32>
    %53 = vector.shape_cast %52 : vector<1x16x1x13xf32> to vector<16x13xf32>
    %54 = vector.shape_cast %51 : vector<16x13xf32> to vector<1x16x1x13xf32>
    tpu.vector_store %arg6[%c0_48, %c0_49, %c2_50, %c0_51], %54 {strides = array<i32>} : memref<1x16x13x13xf32, #tpu.memory_space<vmem>>, vector<1x16x1x13xf32>,
    %c0_52 = arith.constant 0 : index
    %c6 = arith.constant 6 : index
    %c0_53 = arith.constant 0 : index
    %c0_54 = arith.constant 0 : index
    %55 = vector.load %arg1[%c0_52, %c6, %c0_53, %c0_54] : memref<1x26x150x26xf32, #tpu.memory_space<vmem>>, vector<1x1x150x26xf32>
    %56 = vector.shape_cast %55 : vector<1x1x150x26xf32> to vector<150x26xf32>
    %c0_55 = arith.constant 0 : index
    %c7 = arith.constant 7 : index
    %c0_56 = arith.constant 0 : index
    %c0_57 = arith.constant 0 : index
    %57 = vector.load %arg1[%c0_55, %c7, %c0_56, %c0_57] : memref<1x26x150x26xf32, #tpu.memory_space<vmem>>, vector<1x1x150x26xf32>
    %58 = vector.shape_cast %57 : vector<1x1x150x26xf32> to vector<150x26xf32>
    %cst_58 = arith.constant dense<0.000000e+00> : vector<16x26xf32>
    %59 = tpu.matmul %0, %56, %cst_58 {dimension_numbers = #tpu.dot_dimension_numbers<[1], [0], [0], [1], [0, 0, 1, 1], [], []>} : vector<16x150xf32>, vector<150x26xf32>, vector<16x26xf32> -> vector<16x26xf32>
    %cst_59 = arith.constant dense<0.000000e+00> : vector<16x26xf32>
    %60 = tpu.matmul %0, %58, %cst_59 {dimension_numbers = #tpu.dot_dimension_numbers<[1], [0], [0], [1], [0, 0, 1, 1], [], []>} : vector<16x150xf32>, vector<150x26xf32>, vector<16x26xf32> -> vector<16x26xf32>
    %61 = arith.maximumf %59, %60 : vector<16x26xf32>
    %cst_60 = arith.constant dense<0.000000e+00> : vector<16x13xf32>
    %62 = tpu.matmul %61, %2, %cst_60 {dimension_numbers = #tpu.dot_dimension_numbers<[1], [0], [0], [1], [0, 0, 1, 1], [], []>} : vector<16x26xf32>, vector<26x13xf32>, vector<16x13xf32> -> vector<16x13xf32>
    %cst_61 = arith.constant dense<0.000000e+00> : vector<16x13xf32>
    %63 = tpu.matmul %61, %3, %cst_61 {dimension_numbers = #tpu.dot_dimension_numbers<[1], [0], [0], [1], [0, 0, 1, 1], [], []>} : vector<16x26xf32>, vector<26x13xf32>, vector<16x13xf32> -> vector<16x13xf32>
    %64 = arith.maximumf %62, %63 : vector<16x13xf32>
    %65 = vector.broadcast %1 : vector<16x1xf32> to vector<16x13xf32>
    %66 = arith.addf %64, %65 : vector<16x13xf32>
    %cst_62 = arith.constant 0.000000e+00 : f32
    %67 = vector.broadcast %cst_62 : f32 to vector<16x13xf32>
    %68 = arith.maximumf %66, %67 : vector<16x13xf32>
    %c0_63 = arith.constant 0 : index
    %c0_64 = arith.constant 0 : index
    %c3_65 = arith.constant 3 : index
    %c0_66 = arith.constant 0 : index
    %69 = vector.load %arg6[%c0_63, %c0_64, %c3_65, %c0_66] : memref<1x16x13x13xf32, #tpu.memory_space<vmem>>, vector<1x16x1x13xf32>
    %70 = vector.shape_cast %69 : vector<1x16x1x13xf32> to vector<16x13xf32>
    %71 = vector.shape_cast %68 : vector<16x13xf32> to vector<1x16x1x13xf32>
    tpu.vector_store %arg6[%c0_63, %c0_64, %c3_65, %c0_66], %71 {strides = array<i32>} : memref<1x16x13x13xf32, #tpu.memory_space<vmem>>, vector<1x16x1x13xf32>,
    %c0_67 = arith.constant 0 : index
    %c8 = arith.constant 8 : index
    %c0_68 = arith.constant 0 : index
    %c0_69 = arith.constant 0 : index
    %72 = vector.load %arg1[%c0_67, %c8, %c0_68, %c0_69] : memref<1x26x150x26xf32, #tpu.memory_space<vmem>>, vector<1x1x150x26xf32>
    %73 = vector.shape_cast %72 : vector<1x1x150x26xf32> to vector<150x26xf32>
    %c0_70 = arith.constant 0 : index
    %c9 = arith.constant 9 : index
    %c0_71 = arith.constant 0 : index
    %c0_72 = arith.constant 0 : index
    %74 = vector.load %arg1[%c0_70, %c9, %c0_71, %c0_72] : memref<1x26x150x26xf32, #tpu.memory_space<vmem>>, vector<1x1x150x26xf32>
    %75 = vector.shape_cast %74 : vector<1x1x150x26xf32> to vector<150x26xf32>
    %cst_73 = arith.constant dense<0.000000e+00> : vector<16x26xf32>
    %76 = tpu.matmul %0, %73, %cst_73 {dimension_numbers = #tpu.dot_dimension_numbers<[1], [0], [0], [1], [0, 0, 1, 1], [], []>} : vector<16x150xf32>, vector<150x26xf32>, vector<16x26xf32> -> vector<16x26xf32>
    %cst_74 = arith.constant dense<0.000000e+00> : vector<16x26xf32>
    %77 = tpu.matmul %0, %75, %cst_74 {dimension_numbers = #tpu.dot_dimension_numbers<[1], [0], [0], [1], [0, 0, 1, 1], [], []>} : vector<16x150xf32>, vector<150x26xf32>, vector<16x26xf32> -> vector<16x26xf32>
    %78 = arith.maximumf %76, %77 : vector<16x26xf32>
    %cst_75 = arith.constant dense<0.000000e+00> : vector<16x13xf32>
    %79 = tpu.matmul %78, %2, %cst_75 {dimension_numbers = #tpu.dot_dimension_numbers<[1], [0], [0], [1], [0, 0, 1, 1], [], []>} : vector<16x26xf32>, vector<26x13xf32>, vector<16x13xf32> -> vector<16x13xf32>
    %cst_76 = arith.constant dense<0.000000e+00> : vector<16x13xf32>
    %80 = tpu.matmul %78, %3, %cst_76 {dimension_numbers = #tpu.dot_dimension_numbers<[1], [0], [0], [1], [0, 0, 1, 1], [], []>} : vector<16x26xf32>, vector<26x13xf32>, vector<16x13xf32> -> vector<16x13xf32>
    %81 = arith.maximumf %79, %80 : vector<16x13xf32>
    %82 = vector.broadcast %1 : vector<16x1xf32> to vector<16x13xf32>
    %83 = arith.addf %81, %82 : vector<16x13xf32>
    %cst_77 = arith.constant 0.000000e+00 : f32
    %84 = vector.broadcast %cst_77 : f32 to vector<16x13xf32>
    %85 = arith.maximumf %83, %84 : vector<16x13xf32>
    %c0_78 = arith.constant 0 : index
    %c0_79 = arith.constant 0 : index
    %c4_80 = arith.constant 4 : index
    %c0_81 = arith.constant 0 : index
    %86 = vector.load %arg6[%c0_78, %c0_79, %c4_80, %c0_81] : memref<1x16x13x13xf32, #tpu.memory_space<vmem>>, vector<1x16x1x13xf32>
    %87 = vector.shape_cast %86 : vector<1x16x1x13xf32> to vector<16x13xf32>
    %88 = vector.shape_cast %85 : vector<16x13xf32> to vector<1x16x1x13xf32>
    tpu.vector_store %arg6[%c0_78, %c0_79, %c4_80, %c0_81], %88 {strides = array<i32>} : memref<1x16x13x13xf32, #tpu.memory_space<vmem>>, vector<1x16x1x13xf32>,
    %c0_82 = arith.constant 0 : index
    %c10 = arith.constant 10 : index
    %c0_83 = arith.constant 0 : index
    %c0_84 = arith.constant 0 : index
    %89 = vector.load %arg1[%c0_82, %c10, %c0_83, %c0_84] : memref<1x26x150x26xf32, #tpu.memory_space<vmem>>, vector<1x1x150x26xf32>
    %90 = vector.shape_cast %89 : vector<1x1x150x26xf32> to vector<150x26xf32>
    %c0_85 = arith.constant 0 : index
    %c11 = arith.constant 11 : index
    %c0_86 = arith.constant 0 : index
    %c0_87 = arith.constant 0 : index
    %91 = vector.load %arg1[%c0_85, %c11, %c0_86, %c0_87] : memref<1x26x150x26xf32, #tpu.memory_space<vmem>>, vector<1x1x150x26xf32>
    %92 = vector.shape_cast %91 : vector<1x1x150x26xf32> to vector<150x26xf32>
    %cst_88 = arith.constant dense<0.000000e+00> : vector<16x26xf32>
    %93 = tpu.matmul %0, %90, %cst_88 {dimension_numbers = #tpu.dot_dimension_numbers<[1], [0], [0], [1], [0, 0, 1, 1], [], []>} : vector<16x150xf32>, vector<150x26xf32>, vector<16x26xf32> -> vector<16x26xf32>
    %cst_89 = arith.constant dense<0.000000e+00> : vector<16x26xf32>
    %94 = tpu.matmul %0, %92, %cst_89 {dimension_numbers = #tpu.dot_dimension_numbers<[1], [0], [0], [1], [0, 0, 1, 1], [], []>} : vector<16x150xf32>, vector<150x26xf32>, vector<16x26xf32> -> vector<16x26xf32>
    %95 = arith.maximumf %93, %94 : vector<16x26xf32>
    %cst_90 = arith.constant dense<0.000000e+00> : vector<16x13xf32>
    %96 = tpu.matmul %95, %2, %cst_90 {dimension_numbers = #tpu.dot_dimension_numbers<[1], [0], [0], [1], [0, 0, 1, 1], [], []>} : vector<16x26xf32>, vector<26x13xf32>, vector<16x13xf32> -> vector<16x13xf32>
    %cst_91 = arith.constant dense<0.000000e+00> : vector<16x13xf32>
    %97 = tpu.matmul %95, %3, %cst_91 {dimension_numbers = #tpu.dot_dimension_numbers<[1], [0], [0], [1], [0, 0, 1, 1], [], []>} : vector<16x26xf32>, vector<26x13xf32>, vector<16x13xf32> -> vector<16x13xf32>
    %98 = arith.maximumf %96, %97 : vector<16x13xf32>
    %99 = vector.broadcast %1 : vector<16x1xf32> to vector<16x13xf32>
    %100 = arith.addf %98, %99 : vector<16x13xf32>
    %cst_92 = arith.constant 0.000000e+00 : f32
    %101 = vector.broadcast %cst_92 : f32 to vector<16x13xf32>
    %102 = arith.maximumf %100, %101 : vector<16x13xf32>
    %c0_93 = arith.constant 0 : index
    %c0_94 = arith.constant 0 : index
    %c5_95 = arith.constant 5 : index
    %c0_96 = arith.constant 0 : index
    %103 = vector.load %arg6[%c0_93, %c0_94, %c5_95, %c0_96] : memref<1x16x13x13xf32, #tpu.memory_space<vmem>>, vector<1x16x1x13xf32>
    %104 = vector.shape_cast %103 : vector<1x16x1x13xf32> to vector<16x13xf32>
    %105 = vector.shape_cast %102 : vector<16x13xf32> to vector<1x16x1x13xf32>
    tpu.vector_store %arg6[%c0_93, %c0_94, %c5_95, %c0_96], %105 {strides = array<i32>} : memref<1x16x13x13xf32, #tpu.memory_space<vmem>>, vector<1x16x1x13xf32>,
    %c0_97 = arith.constant 0 : index
    %c12 = arith.constant 12 : index
    %c0_98 = arith.constant 0 : index
    %c0_99 = arith.constant 0 : index
    %106 = vector.load %arg1[%c0_97, %c12, %c0_98, %c0_99] : memref<1x26x150x26xf32, #tpu.memory_space<vmem>>, vector<1x1x150x26xf32>
    %107 = vector.shape_cast %106 : vector<1x1x150x26xf32> to vector<150x26xf32>
    %c0_100 = arith.constant 0 : index
    %c13 = arith.constant 13 : index
    %c0_101 = arith.constant 0 : index
    %c0_102 = arith.constant 0 : index
    %108 = vector.load %arg1[%c0_100, %c13, %c0_101, %c0_102] : memref<1x26x150x26xf32, #tpu.memory_space<vmem>>, vector<1x1x150x26xf32>
    %109 = vector.shape_cast %108 : vector<1x1x150x26xf32> to vector<150x26xf32>
    %cst_103 = arith.constant dense<0.000000e+00> : vector<16x26xf32>
    %110 = tpu.matmul %0, %107, %cst_103 {dimension_numbers = #tpu.dot_dimension_numbers<[1], [0], [0], [1], [0, 0, 1, 1], [], []>} : vector<16x150xf32>, vector<150x26xf32>, vector<16x26xf32> -> vector<16x26xf32>
    %cst_104 = arith.constant dense<0.000000e+00> : vector<16x26xf32>
    %111 = tpu.matmul %0, %109, %cst_104 {dimension_numbers = #tpu.dot_dimension_numbers<[1], [0], [0], [1], [0, 0, 1, 1], [], []>} : vector<16x150xf32>, vector<150x26xf32>, vector<16x26xf32> -> vector<16x26xf32>
    %112 = arith.maximumf %110, %111 : vector<16x26xf32>
    %cst_105 = arith.constant dense<0.000000e+00> : vector<16x13xf32>
    %113 = tpu.matmul %112, %2, %cst_105 {dimension_numbers = #tpu.dot_dimension_numbers<[1], [0], [0], [1], [0, 0, 1, 1], [], []>} : vector<16x26xf32>, vector<26x13xf32>, vector<16x13xf32> -> vector<16x13xf32>
    %cst_106 = arith.constant dense<0.000000e+00> : vector<16x13xf32>
    %114 = tpu.matmul %112, %3, %cst_106 {dimension_numbers = #tpu.dot_dimension_numbers<[1], [0], [0], [1], [0, 0, 1, 1], [], []>} : vector<16x26xf32>, vector<26x13xf32>, vector<16x13xf32> -> vector<16x13xf32>
    %115 = arith.maximumf %113, %114 : vector<16x13xf32>
    %116 = vector.broadcast %1 : vector<16x1xf32> to vector<16x13xf32>
    %117 = arith.addf %115, %116 : vector<16x13xf32>
    %cst_107 = arith.constant 0.000000e+00 : f32
    %118 = vector.broadcast %cst_107 : f32 to vector<16x13xf32>
    %119 = arith.maximumf %117, %118 : vector<16x13xf32>
    %c0_108 = arith.constant 0 : index
    %c0_109 = arith.constant 0 : index
    %c6_110 = arith.constant 6 : index
    %c0_111 = arith.constant 0 : index
    %120 = vector.load %arg6[%c0_108, %c0_109, %c6_110, %c0_111] : memref<1x16x13x13xf32, #tpu.memory_space<vmem>>, vector<1x16x1x13xf32>
    %121 = vector.shape_cast %120 : vector<1x16x1x13xf32> to vector<16x13xf32>
    %122 = vector.shape_cast %119 : vector<16x13xf32> to vector<1x16x1x13xf32>
    tpu.vector_store %arg6[%c0_108, %c0_109, %c6_110, %c0_111], %122 {strides = array<i32>} : memref<1x16x13x13xf32, #tpu.memory_space<vmem>>, vector<1x16x1x13xf32>,
    %c0_112 = arith.constant 0 : index
    %c14 = arith.constant 14 : index
    %c0_113 = arith.constant 0 : index
    %c0_114 = arith.constant 0 : index
    %123 = vector.load %arg1[%c0_112, %c14, %c0_113, %c0_114] : memref<1x26x150x26xf32, #tpu.memory_space<vmem>>, vector<1x1x150x26xf32>
    %124 = vector.shape_cast %123 : vector<1x1x150x26xf32> to vector<150x26xf32>
    %c0_115 = arith.constant 0 : index
    %c15 = arith.constant 15 : index
    %c0_116 = arith.constant 0 : index
    %c0_117 = arith.constant 0 : index
    %125 = vector.load %arg1[%c0_115, %c15, %c0_116, %c0_117] : memref<1x26x150x26xf32, #tpu.memory_space<vmem>>, vector<1x1x150x26xf32>
    %126 = vector.shape_cast %125 : vector<1x1x150x26xf32> to vector<150x26xf32>
    %cst_118 = arith.constant dense<0.000000e+00> : vector<16x26xf32>
    %127 = tpu.matmul %0, %124, %cst_118 {dimension_numbers = #tpu.dot_dimension_numbers<[1], [0], [0], [1], [0, 0, 1, 1], [], []>} : vector<16x150xf32>, vector<150x26xf32>, vector<16x26xf32> -> vector<16x26xf32>
    %cst_119 = arith.constant dense<0.000000e+00> : vector<16x26xf32>
    %128 = tpu.matmul %0, %126, %cst_119 {dimension_numbers = #tpu.dot_dimension_numbers<[1], [0], [0], [1], [0, 0, 1, 1], [], []>} : vector<16x150xf32>, vector<150x26xf32>, vector<16x26xf32> -> vector<16x26xf32>
    %129 = arith.maximumf %127, %128 : vector<16x26xf32>
    %cst_120 = arith.constant dense<0.000000e+00> : vector<16x13xf32>
    %130 = tpu.matmul %129, %2, %cst_120 {dimension_numbers = #tpu.dot_dimension_numbers<[1], [0], [0], [1], [0, 0, 1, 1], [], []>} : vector<16x26xf32>, vector<26x13xf32>, vector<16x13xf32> -> vector<16x13xf32>
    %cst_121 = arith.constant dense<0.000000e+00> : vector<16x13xf32>
    %131 = tpu.matmul %129, %3, %cst_121 {dimension_numbers = #tpu.dot_dimension_numbers<[1], [0], [0], [1], [0, 0, 1, 1], [], []>} : vector<16x26xf32>, vector<26x13xf32>, vector<16x13xf32> -> vector<16x13xf32>
    %132 = arith.maximumf %130, %131 : vector<16x13xf32>
    %133 = vector.broadcast %1 : vector<16x1xf32> to vector<16x13xf32>
    %134 = arith.addf %132, %133 : vector<16x13xf32>
    %cst_122 = arith.constant 0.000000e+00 : f32
    %135 = vector.broadcast %cst_122 : f32 to vector<16x13xf32>
    %136 = arith.maximumf %134, %135 : vector<16x13xf32>
    %c0_123 = arith.constant 0 : index
    %c0_124 = arith.constant 0 : index
    %c7_125 = arith.constant 7 : index
    %c0_126 = arith.constant 0 : index
    %137 = vector.load %arg6[%c0_123, %c0_124, %c7_125, %c0_126] : memref<1x16x13x13xf32, #tpu.memory_space<vmem>>, vector<1x16x1x13xf32>
    %138 = vector.shape_cast %137 : vector<1x16x1x13xf32> to vector<16x13xf32>
    %139 = vector.shape_cast %136 : vector<16x13xf32> to vector<1x16x1x13xf32>
    tpu.vector_store %arg6[%c0_123, %c0_124, %c7_125, %c0_126], %139 {strides = array<i32>} : memref<1x16x13x13xf32, #tpu.memory_space<vmem>>, vector<1x16x1x13xf32>,
    %c0_127 = arith.constant 0 : index
    %c16 = arith.constant 16 : index
    %c0_128 = arith.constant 0 : index
    %c0_129 = arith.constant 0 : index
    %140 = vector.load %arg1[%c0_127, %c16, %c0_128, %c0_129] : memref<1x26x150x26xf32, #tpu.memory_space<vmem>>, vector<1x1x150x26xf32>
    %141 = vector.shape_cast %140 : vector<1x1x150x26xf32> to vector<150x26xf32>
    %c0_130 = arith.constant 0 : index
    %c17 = arith.constant 17 : index
    %c0_131 = arith.constant 0 : index
    %c0_132 = arith.constant 0 : index
    %142 = vector.load %arg1[%c0_130, %c17, %c0_131, %c0_132] : memref<1x26x150x26xf32, #tpu.memory_space<vmem>>, vector<1x1x150x26xf32>
    %143 = vector.shape_cast %142 : vector<1x1x150x26xf32> to vector<150x26xf32>
    %cst_133 = arith.constant dense<0.000000e+00> : vector<16x26xf32>
    %144 = tpu.matmul %0, %141, %cst_133 {dimension_numbers = #tpu.dot_dimension_numbers<[1], [0], [0], [1], [0, 0, 1, 1], [], []>} : vector<16x150xf32>, vector<150x26xf32>, vector<16x26xf32> -> vector<16x26xf32>
    %cst_134 = arith.constant dense<0.000000e+00> : vector<16x26xf32>
    %145 = tpu.matmul %0, %143, %cst_134 {dimension_numbers = #tpu.dot_dimension_numbers<[1], [0], [0], [1], [0, 0, 1, 1], [], []>} : vector<16x150xf32>, vector<150x26xf32>, vector<16x26xf32> -> vector<16x26xf32>
    %146 = arith.maximumf %144, %145 : vector<16x26xf32>
    %cst_135 = arith.constant dense<0.000000e+00> : vector<16x13xf32>
    %147 = tpu.matmul %146, %2, %cst_135 {dimension_numbers = #tpu.dot_dimension_numbers<[1], [0], [0], [1], [0, 0, 1, 1], [], []>} : vector<16x26xf32>, vector<26x13xf32>, vector<16x13xf32> -> vector<16x13xf32>
    %cst_136 = arith.constant dense<0.000000e+00> : vector<16x13xf32>
    %148 = tpu.matmul %146, %3, %cst_136 {dimension_numbers = #tpu.dot_dimension_numbers<[1], [0], [0], [1], [0, 0, 1, 1], [], []>} : vector<16x26xf32>, vector<26x13xf32>, vector<16x13xf32> -> vector<16x13xf32>
    %149 = arith.maximumf %147, %148 : vector<16x13xf32>
    %150 = vector.broadcast %1 : vector<16x1xf32> to vector<16x13xf32>
    %151 = arith.addf %149, %150 : vector<16x13xf32>
    %cst_137 = arith.constant 0.000000e+00 : f32
    %152 = vector.broadcast %cst_137 : f32 to vector<16x13xf32>
    %153 = arith.maximumf %151, %152 : vector<16x13xf32>
    %c0_138 = arith.constant 0 : index
    %c0_139 = arith.constant 0 : index
    %c8_140 = arith.constant 8 : index
    %c0_141 = arith.constant 0 : index
    %154 = vector.load %arg6[%c0_138, %c0_139, %c8_140, %c0_141] : memref<1x16x13x13xf32, #tpu.memory_space<vmem>>, vector<1x16x1x13xf32>
    %155 = vector.shape_cast %154 : vector<1x16x1x13xf32> to vector<16x13xf32>
    %156 = vector.shape_cast %153 : vector<16x13xf32> to vector<1x16x1x13xf32>
    tpu.vector_store %arg6[%c0_138, %c0_139, %c8_140, %c0_141], %156 {strides = array<i32>} : memref<1x16x13x13xf32, #tpu.memory_space<vmem>>, vector<1x16x1x13xf32>,
    %c0_142 = arith.constant 0 : index
    %c18 = arith.constant 18 : index
    %c0_143 = arith.constant 0 : index
    %c0_144 = arith.constant 0 : index
    %157 = vector.load %arg1[%c0_142, %c18, %c0_143, %c0_144] : memref<1x26x150x26xf32, #tpu.memory_space<vmem>>, vector<1x1x150x26xf32>
    %158 = vector.shape_cast %157 : vector<1x1x150x26xf32> to vector<150x26xf32>
    %c0_145 = arith.constant 0 : index
    %c19 = arith.constant 19 : index
    %c0_146 = arith.constant 0 : index
    %c0_147 = arith.constant 0 : index
    %159 = vector.load %arg1[%c0_145, %c19, %c0_146, %c0_147] : memref<1x26x150x26xf32, #tpu.memory_space<vmem>>, vector<1x1x150x26xf32>
    %160 = vector.shape_cast %159 : vector<1x1x150x26xf32> to vector<150x26xf32>
    %cst_148 = arith.constant dense<0.000000e+00> : vector<16x26xf32>
    %161 = tpu.matmul %0, %158, %cst_148 {dimension_numbers = #tpu.dot_dimension_numbers<[1], [0], [0], [1], [0, 0, 1, 1], [], []>} : vector<16x150xf32>, vector<150x26xf32>, vector<16x26xf32> -> vector<16x26xf32>
    %cst_149 = arith.constant dense<0.000000e+00> : vector<16x26xf32>
    %162 = tpu.matmul %0, %160, %cst_149 {dimension_numbers = #tpu.dot_dimension_numbers<[1], [0], [0], [1], [0, 0, 1, 1], [], []>} : vector<16x150xf32>, vector<150x26xf32>, vector<16x26xf32> -> vector<16x26xf32>
    %163 = arith.maximumf %161, %162 : vector<16x26xf32>
    %cst_150 = arith.constant dense<0.000000e+00> : vector<16x13xf32>
    %164 = tpu.matmul %163, %2, %cst_150 {dimension_numbers = #tpu.dot_dimension_numbers<[1], [0], [0], [1], [0, 0, 1, 1], [], []>} : vector<16x26xf32>, vector<26x13xf32>, vector<16x13xf32> -> vector<16x13xf32>
    %cst_151 = arith.constant dense<0.000000e+00> : vector<16x13xf32>
    %165 = tpu.matmul %163, %3, %cst_151 {dimension_numbers = #tpu.dot_dimension_numbers<[1], [0], [0], [1], [0, 0, 1, 1], [], []>} : vector<16x26xf32>, vector<26x13xf32>, vector<16x13xf32> -> vector<16x13xf32>
    %166 = arith.maximumf %164, %165 : vector<16x13xf32>
    %167 = vector.broadcast %1 : vector<16x1xf32> to vector<16x13xf32>
    %168 = arith.addf %166, %167 : vector<16x13xf32>
    %cst_152 = arith.constant 0.000000e+00 : f32
    %169 = vector.broadcast %cst_152 : f32 to vector<16x13xf32>
    %170 = arith.maximumf %168, %169 : vector<16x13xf32>
    %c0_153 = arith.constant 0 : index
    %c0_154 = arith.constant 0 : index
    %c9_155 = arith.constant 9 : index
    %c0_156 = arith.constant 0 : index
    %171 = vector.load %arg6[%c0_153, %c0_154, %c9_155, %c0_156] : memref<1x16x13x13xf32, #tpu.memory_space<vmem>>, vector<1x16x1x13xf32>
    %172 = vector.shape_cast %171 : vector<1x16x1x13xf32> to vector<16x13xf32>
    %173 = vector.shape_cast %170 : vector<16x13xf32> to vector<1x16x1x13xf32>
    tpu.vector_store %arg6[%c0_153, %c0_154, %c9_155, %c0_156], %173 {strides = array<i32>} : memref<1x16x13x13xf32, #tpu.memory_space<vmem>>, vector<1x16x1x13xf32>,
    %c0_157 = arith.constant 0 : index
    %c20 = arith.constant 20 : index
    %c0_158 = arith.constant 0 : index
    %c0_159 = arith.constant 0 : index
    %174 = vector.load %arg1[%c0_157, %c20, %c0_158, %c0_159] : memref<1x26x150x26xf32, #tpu.memory_space<vmem>>, vector<1x1x150x26xf32>
    %175 = vector.shape_cast %174 : vector<1x1x150x26xf32> to vector<150x26xf32>
    %c0_160 = arith.constant 0 : index
    %c21 = arith.constant 21 : index
    %c0_161 = arith.constant 0 : index
    %c0_162 = arith.constant 0 : index
    %176 = vector.load %arg1[%c0_160, %c21, %c0_161, %c0_162] : memref<1x26x150x26xf32, #tpu.memory_space<vmem>>, vector<1x1x150x26xf32>
    %177 = vector.shape_cast %176 : vector<1x1x150x26xf32> to vector<150x26xf32>
    %cst_163 = arith.constant dense<0.000000e+00> : vector<16x26xf32>
    %178 = tpu.matmul %0, %175, %cst_163 {dimension_numbers = #tpu.dot_dimension_numbers<[1], [0], [0], [1], [0, 0, 1, 1], [], []>} : vector<16x150xf32>, vector<150x26xf32>, vector<16x26xf32> -> vector<16x26xf32>
    %cst_164 = arith.constant dense<0.000000e+00> : vector<16x26xf32>
    %179 = tpu.matmul %0, %177, %cst_164 {dimension_numbers = #tpu.dot_dimension_numbers<[1], [0], [0], [1], [0, 0, 1, 1], [], []>} : vector<16x150xf32>, vector<150x26xf32>, vector<16x26xf32> -> vector<16x26xf32>
    %180 = arith.maximumf %178, %179 : vector<16x26xf32>
    %cst_165 = arith.constant dense<0.000000e+00> : vector<16x13xf32>
    %181 = tpu.matmul %180, %2, %cst_165 {dimension_numbers = #tpu.dot_dimension_numbers<[1], [0], [0], [1], [0, 0, 1, 1], [], []>} : vector<16x26xf32>, vector<26x13xf32>, vector<16x13xf32> -> vector<16x13xf32>
    %cst_166 = arith.constant dense<0.000000e+00> : vector<16x13xf32>
    %182 = tpu.matmul %180, %3, %cst_166 {dimension_numbers = #tpu.dot_dimension_numbers<[1], [0], [0], [1], [0, 0, 1, 1], [], []>} : vector<16x26xf32>, vector<26x13xf32>, vector<16x13xf32> -> vector<16x13xf32>
    %183 = arith.maximumf %181, %182 : vector<16x13xf32>
    %184 = vector.broadcast %1 : vector<16x1xf32> to vector<16x13xf32>
    %185 = arith.addf %183, %184 : vector<16x13xf32>
    %cst_167 = arith.constant 0.000000e+00 : f32
    %186 = vector.broadcast %cst_167 : f32 to vector<16x13xf32>
    %187 = arith.maximumf %185, %186 : vector<16x13xf32>
    %c0_168 = arith.constant 0 : index
    %c0_169 = arith.constant 0 : index
    %c10_170 = arith.constant 10 : index
    %c0_171 = arith.constant 0 : index
    %188 = vector.load %arg6[%c0_168, %c0_169, %c10_170, %c0_171] : memref<1x16x13x13xf32, #tpu.memory_space<vmem>>, vector<1x16x1x13xf32>
    %189 = vector.shape_cast %188 : vector<1x16x1x13xf32> to vector<16x13xf32>
    %190 = vector.shape_cast %187 : vector<16x13xf32> to vector<1x16x1x13xf32>
    tpu.vector_store %arg6[%c0_168, %c0_169, %c10_170, %c0_171], %190 {strides = array<i32>} : memref<1x16x13x13xf32, #tpu.memory_space<vmem>>, vector<1x16x1x13xf32>,
    %c0_172 = arith.constant 0 : index
    %c22 = arith.constant 22 : index
    %c0_173 = arith.constant 0 : index
    %c0_174 = arith.constant 0 : index
    %191 = vector.load %arg1[%c0_172, %c22, %c0_173, %c0_174] : memref<1x26x150x26xf32, #tpu.memory_space<vmem>>, vector<1x1x150x26xf32>
    %192 = vector.shape_cast %191 : vector<1x1x150x26xf32> to vector<150x26xf32>
    %c0_175 = arith.constant 0 : index
    %c23 = arith.constant 23 : index
    %c0_176 = arith.constant 0 : index
    %c0_177 = arith.constant 0 : index
    %193 = vector.load %arg1[%c0_175, %c23, %c0_176, %c0_177] : memref<1x26x150x26xf32, #tpu.memory_space<vmem>>, vector<1x1x150x26xf32>
    %194 = vector.shape_cast %193 : vector<1x1x150x26xf32> to vector<150x26xf32>
    %cst_178 = arith.constant dense<0.000000e+00> : vector<16x26xf32>
    %195 = tpu.matmul %0, %192, %cst_178 {dimension_numbers = #tpu.dot_dimension_numbers<[1], [0], [0], [1], [0, 0, 1, 1], [], []>} : vector<16x150xf32>, vector<150x26xf32>, vector<16x26xf32> -> vector<16x26xf32>
    %cst_179 = arith.constant dense<0.000000e+00> : vector<16x26xf32>
    %196 = tpu.matmul %0, %194, %cst_179 {dimension_numbers = #tpu.dot_dimension_numbers<[1], [0], [0], [1], [0, 0, 1, 1], [], []>} : vector<16x150xf32>, vector<150x26xf32>, vector<16x26xf32> -> vector<16x26xf32>
    %197 = arith.maximumf %195, %196 : vector<16x26xf32>
    %cst_180 = arith.constant dense<0.000000e+00> : vector<16x13xf32>
    %198 = tpu.matmul %197, %2, %cst_180 {dimension_numbers = #tpu.dot_dimension_numbers<[1], [0], [0], [1], [0, 0, 1, 1], [], []>} : vector<16x26xf32>, vector<26x13xf32>, vector<16x13xf32> -> vector<16x13xf32>
    %cst_181 = arith.constant dense<0.000000e+00> : vector<16x13xf32>
    %199 = tpu.matmul %197, %3, %cst_181 {dimension_numbers = #tpu.dot_dimension_numbers<[1], [0], [0], [1], [0, 0, 1, 1], [], []>} : vector<16x26xf32>, vector<26x13xf32>, vector<16x13xf32> -> vector<16x13xf32>
    %200 = arith.maximumf %198, %199 : vector<16x13xf32>
    %201 = vector.broadcast %1 : vector<16x1xf32> to vector<16x13xf32>
    %202 = arith.addf %200, %201 : vector<16x13xf32>
    %cst_182 = arith.constant 0.000000e+00 : f32
    %203 = vector.broadcast %cst_182 : f32 to vector<16x13xf32>
    %204 = arith.maximumf %202, %203 : vector<16x13xf32>
    %c0_183 = arith.constant 0 : index
    %c0_184 = arith.constant 0 : index
    %c11_185 = arith.constant 11 : index
    %c0_186 = arith.constant 0 : index
    %205 = vector.load %arg6[%c0_183, %c0_184, %c11_185, %c0_186] : memref<1x16x13x13xf32, #tpu.memory_space<vmem>>, vector<1x16x1x13xf32>
    %206 = vector.shape_cast %205 : vector<1x16x1x13xf32> to vector<16x13xf32>
    %207 = vector.shape_cast %204 : vector<16x13xf32> to vector<1x16x1x13xf32>
    tpu.vector_store %arg6[%c0_183, %c0_184, %c11_185, %c0_186], %207 {strides = array<i32>} : memref<1x16x13x13xf32, #tpu.memory_space<vmem>>, vector<1x16x1x13xf32>,
    %c0_187 = arith.constant 0 : index
    %c24 = arith.constant 24 : index
    %c0_188 = arith.constant 0 : index
    %c0_189 = arith.constant 0 : index
    %208 = vector.load %arg1[%c0_187, %c24, %c0_188, %c0_189] : memref<1x26x150x26xf32, #tpu.memory_space<vmem>>, vector<1x1x150x26xf32>
    %209 = vector.shape_cast %208 : vector<1x1x150x26xf32> to vector<150x26xf32>
    %c0_190 = arith.constant 0 : index
    %c25 = arith.constant 25 : index
    %c0_191 = arith.constant 0 : index
    %c0_192 = arith.constant 0 : index
    %210 = vector.load %arg1[%c0_190, %c25, %c0_191, %c0_192] : memref<1x26x150x26xf32, #tpu.memory_space<vmem>>, vector<1x1x150x26xf32>
    %211 = vector.shape_cast %210 : vector<1x1x150x26xf32> to vector<150x26xf32>
    %cst_193 = arith.constant dense<0.000000e+00> : vector<16x26xf32>
    %212 = tpu.matmul %0, %209, %cst_193 {dimension_numbers = #tpu.dot_dimension_numbers<[1], [0], [0], [1], [0, 0, 1, 1], [], []>} : vector<16x150xf32>, vector<150x26xf32>, vector<16x26xf32> -> vector<16x26xf32>
    %cst_194 = arith.constant dense<0.000000e+00> : vector<16x26xf32>
    %213 = tpu.matmul %0, %211, %cst_194 {dimension_numbers = #tpu.dot_dimension_numbers<[1], [0], [0], [1], [0, 0, 1, 1], [], []>} : vector<16x150xf32>, vector<150x26xf32>, vector<16x26xf32> -> vector<16x26xf32>
    %214 = arith.maximumf %212, %213 : vector<16x26xf32>
    %cst_195 = arith.constant dense<0.000000e+00> : vector<16x13xf32>
    %215 = tpu.matmul %214, %2, %cst_195 {dimension_numbers = #tpu.dot_dimension_numbers<[1], [0], [0], [1], [0, 0, 1, 1], [], []>} : vector<16x26xf32>, vector<26x13xf32>, vector<16x13xf32> -> vector<16x13xf32>
    %cst_196 = arith.constant dense<0.000000e+00> : vector<16x13xf32>
    %216 = tpu.matmul %214, %3, %cst_196 {dimension_numbers = #tpu.dot_dimension_numbers<[1], [0], [0], [1], [0, 0, 1, 1], [], []>} : vector<16x26xf32>, vector<26x13xf32>, vector<16x13xf32> -> vector<16x13xf32>
    %217 = arith.maximumf %215, %216 : vector<16x13xf32>
    %218 = vector.broadcast %1 : vector<16x1xf32> to vector<16x13xf32>
    %219 = arith.addf %217, %218 : vector<16x13xf32>
    %cst_197 = arith.constant 0.000000e+00 : f32
    %220 = vector.broadcast %cst_197 : f32 to vector<16x13xf32>
    %221 = arith.maximumf %219, %220 : vector<16x13xf32>
    %c0_198 = arith.constant 0 : index
    %c0_199 = arith.constant 0 : index
    %c12_200 = arith.constant 12 : index
    %c0_201 = arith.constant 0 : index
    %222 = vector.load %arg6[%c0_198, %c0_199, %c12_200, %c0_201] : memref<1x16x13x13xf32, #tpu.memory_space<vmem>>, vector<1x16x1x13xf32>
    %223 = vector.shape_cast %222 : vector<1x16x1x13xf32> to vector<16x13xf32>
    %224 = vector.shape_cast %221 : vector<16x13xf32> to vector<1x16x1x13xf32>
    tpu.vector_store %arg6[%c0_198, %c0_199, %c12_200, %c0_201], %224 {strides = array<i32>} : memref<1x16x13x13xf32, #tpu.memory_space<vmem>>, vector<1x16x1x13xf32>,
    return
  }
  func.func @transform_0(%arg0: i32) -> (i32, i32, i32, i32) {
    %c0_i32 = arith.constant 0 : i32
    %c0_i32_0 = arith.constant 0 : i32
    %c0_i32_1 = arith.constant 0 : i32
    %c0_i32_2 = arith.constant 0 : i32
    return %arg0, %c0_i32, %c0_i32_0, %c0_i32_1 : i32, i32, i32, i32
  }
  func.func @transform_1(%arg0: i32) -> (i32, i32) {
    %c0_i32 = arith.constant 0 : i32
    %c0_i32_0 = arith.constant 0 : i32
    %c0_i32_1 = arith.constant 0 : i32
    return %c0_i32, %c0_i32_0 : i32, i32
  }
  func.func @transform_2(%arg0: i32) -> (i32, i32) {
    %c0_i32 = arith.constant 0 : i32
    %c0_i32_0 = arith.constant 0 : i32
    %c0_i32_1 = arith.constant 0 : i32
    return %c0_i32, %c0_i32_0 : i32, i32
  }
  func.func @transform_3(%arg0: i32) -> (i32, i32) {
    %c0_i32 = arith.constant 0 : i32
    %c0_i32_0 = arith.constant 0 : i32
    %c0_i32_1 = arith.constant 0 : i32
    return %c0_i32, %c0_i32_0 : i32, i32
  }
  func.func @transform_4(%arg0: i32) -> (i32, i32) {
    %c0_i32 = arith.constant 0 : i32
    %c0_i32_0 = arith.constant 0 : i32
    %c0_i32_1 = arith.constant 0 : i32
    return %c0_i32, %c0_i32_0 : i32, i32
  }
  func.func @transform_5(%arg0: i32) -> (i32, i32, i32, i32) {
    %c0_i32 = arith.constant 0 : i32
    %c0_i32_0 = arith.constant 0 : i32
    %c0_i32_1 = arith.constant 0 : i32
    %c0_i32_2 = arith.constant 0 : i32
    return %arg0, %c0_i32, %c0_i32_0, %c0_i32_1 : i32, i32, i32, i32
  }
}

module attributes {stable_mosaic.version = 11 : i64} {
  func.func @_fc_fused_kernel(%arg0: i32, %arg1: memref<2x2704xf32, #tpu.memory_space<vmem>>, %arg2: memref<2704x120xf32, #tpu.memory_space<vmem>>, %arg3: memref<1x120xf32, #tpu.memory_space<vmem>>, %arg4: memref<120x84xf32, #tpu.memory_space<vmem>>, %arg5: memref<1x84xf32, #tpu.memory_space<vmem>>, %arg6: memref<84x10xf32, #tpu.memory_space<vmem>>, %arg7: memref<1x10xf32, #tpu.memory_space<vmem>>, %arg8: memref<2x10xf32, #tpu.memory_space<vmem>>) attributes {dimension_semantics = [#tpu.dimension_semantics<arbitrary>], iteration_bounds = array<i64: 1>, scalar_prefetch = 0 : i64, scratch_operands = 0 : i64, tpu.core_type = #tpu.core_type<tc>, window_params = [{pipeline_mode = #tpu.pipeline_mode<synchronous>, transform_indices = @transform_0, window_bounds = array<i64: 2, 2704>}, {pipeline_mode = #tpu.pipeline_mode<synchronous>, transform_indices = @transform_1, window_bounds = array<i64: 2704, 120>}, {pipeline_mode = #tpu.pipeline_mode<synchronous>, transform_indices = @transform_2, window_bounds = array<i64: 1, 120>}, {pipeline_mode = #tpu.pipeline_mode<synchronous>, transform_indices = @transform_3, window_bounds = array<i64: 120, 84>}, {pipeline_mode = #tpu.pipeline_mode<synchronous>, transform_indices = @transform_4, window_bounds = array<i64: 1, 84>}, {pipeline_mode = #tpu.pipeline_mode<synchronous>, transform_indices = @transform_5, window_bounds = array<i64: 84, 10>}, {pipeline_mode = #tpu.pipeline_mode<synchronous>, transform_indices = @transform_6, window_bounds = array<i64: 1, 10>}, {pipeline_mode = #tpu.pipeline_mode<synchronous>, transform_indices = @transform_7, window_bounds = array<i64: 2, 10>}]} {
    %c0 = arith.constant 0 : index
    %c0_0 = arith.constant 0 : index
    %0 = vector.load %arg1[%c0, %c0_0] : memref<2x2704xf32, #tpu.memory_space<vmem>>, vector<2x2704xf32>
    %c0_1 = arith.constant 0 : index
    %c0_2 = arith.constant 0 : index
    %1 = vector.load %arg2[%c0_1, %c0_2] : memref<2704x120xf32, #tpu.memory_space<vmem>>, vector<2704x120xf32>
    %cst = arith.constant dense<0.000000e+00> : vector<2x120xf32>
    %2 = tpu.matmul %0, %1, %cst {dimension_numbers = #tpu.dot_dimension_numbers<[1], [0], [0], [1], [0, 0, 1, 1], [], []>} : vector<2x2704xf32>, vector<2704x120xf32>, vector<2x120xf32> -> vector<2x120xf32>
    %c0_3 = arith.constant 0 : index
    %c0_4 = arith.constant 0 : index
    %3 = vector.load %arg3[%c0_3, %c0_4] : memref<1x120xf32, #tpu.memory_space<vmem>>, vector<1x120xf32>
    %4 = vector.broadcast %3 : vector<1x120xf32> to vector<2x120xf32>
    %5 = arith.addf %2, %4 : vector<2x120xf32>
    %cst_5 = arith.constant 0.000000e+00 : f32
    %6 = vector.broadcast %cst_5 : f32 to vector<2x120xf32>
    %7 = arith.maximumf %5, %6 : vector<2x120xf32>
    %c0_6 = arith.constant 0 : index
    %c0_7 = arith.constant 0 : index
    %8 = vector.load %arg4[%c0_6, %c0_7] : memref<120x84xf32, #tpu.memory_space<vmem>>, vector<120x84xf32>
    %cst_8 = arith.constant dense<0.000000e+00> : vector<2x84xf32>
    %9 = tpu.matmul %7, %8, %cst_8 {dimension_numbers = #tpu.dot_dimension_numbers<[1], [0], [0], [1], [0, 0, 1, 1], [], []>} : vector<2x120xf32>, vector<120x84xf32>, vector<2x84xf32> -> vector<2x84xf32>
    %c0_9 = arith.constant 0 : index
    %c0_10 = arith.constant 0 : index
    %10 = vector.load %arg5[%c0_9, %c0_10] : memref<1x84xf32, #tpu.memory_space<vmem>>, vector<1x84xf32>
    %11 = vector.broadcast %10 : vector<1x84xf32> to vector<2x84xf32>
    %12 = arith.addf %9, %11 : vector<2x84xf32>
    %cst_11 = arith.constant 0.000000e+00 : f32
    %13 = vector.broadcast %cst_11 : f32 to vector<2x84xf32>
    %14 = arith.maximumf %12, %13 : vector<2x84xf32>
    %c0_12 = arith.constant 0 : index
    %c0_13 = arith.constant 0 : index
    %15 = vector.load %arg6[%c0_12, %c0_13] : memref<84x10xf32, #tpu.memory_space<vmem>>, vector<84x10xf32>
    %cst_14 = arith.constant dense<0.000000e+00> : vector<2x10xf32>
    %16 = tpu.matmul %14, %15, %cst_14 {dimension_numbers = #tpu.dot_dimension_numbers<[1], [0], [0], [1], [0, 0, 1, 1], [], []>} : vector<2x84xf32>, vector<84x10xf32>, vector<2x10xf32> -> vector<2x10xf32>
    %c0_15 = arith.constant 0 : index
    %c0_16 = arith.constant 0 : index
    %17 = vector.load %arg7[%c0_15, %c0_16] : memref<1x10xf32, #tpu.memory_space<vmem>>, vector<1x10xf32>
    %18 = vector.broadcast %17 : vector<1x10xf32> to vector<2x10xf32>
    %19 = arith.addf %16, %18 : vector<2x10xf32>
    %c0_17 = arith.constant 0 : index
    %c0_18 = arith.constant 0 : index
    %20 = vector.load %arg8[%c0_17, %c0_18] : memref<2x10xf32, #tpu.memory_space<vmem>>, vector<2x10xf32>
    tpu.vector_store %arg8[%c0_17, %c0_18], %19 {strides = array<i32>} : memref<2x10xf32, #tpu.memory_space<vmem>>, vector<2x10xf32>,
    return
  }
  func.func @transform_0(%arg0: i32) -> (i32, i32) {
    %c0_i32 = arith.constant 0 : i32
    %c0_i32_0 = arith.constant 0 : i32
    %c0_i32_1 = arith.constant 0 : i32
    return %c0_i32, %c0_i32_0 : i32, i32
  }
  func.func @transform_1(%arg0: i32) -> (i32, i32) {
    %c0_i32 = arith.constant 0 : i32
    %c0_i32_0 = arith.constant 0 : i32
    %c0_i32_1 = arith.constant 0 : i32
    return %c0_i32, %c0_i32_0 : i32, i32
  }
  func.func @transform_2(%arg0: i32) -> (i32, i32) {
    %c0_i32 = arith.constant 0 : i32
    %c0_i32_0 = arith.constant 0 : i32
    %c0_i32_1 = arith.constant 0 : i32
    return %c0_i32, %c0_i32_0 : i32, i32
  }
  func.func @transform_3(%arg0: i32) -> (i32, i32) {
    %c0_i32 = arith.constant 0 : i32
    %c0_i32_0 = arith.constant 0 : i32
    %c0_i32_1 = arith.constant 0 : i32
    return %c0_i32, %c0_i32_0 : i32, i32
  }
  func.func @transform_4(%arg0: i32) -> (i32, i32) {
    %c0_i32 = arith.constant 0 : i32
    %c0_i32_0 = arith.constant 0 : i32
    %c0_i32_1 = arith.constant 0 : i32
    return %c0_i32, %c0_i32_0 : i32, i32
  }
  func.func @transform_5(%arg0: i32) -> (i32, i32) {
    %c0_i32 = arith.constant 0 : i32
    %c0_i32_0 = arith.constant 0 : i32
    %c0_i32_1 = arith.constant 0 : i32
    return %c0_i32, %c0_i32_0 : i32, i32
  }
  func.func @transform_6(%arg0: i32) -> (i32, i32) {
    %c0_i32 = arith.constant 0 : i32
    %c0_i32_0 = arith.constant 0 : i32
    %c0_i32_1 = arith.constant 0 : i32
    return %c0_i32, %c0_i32_0 : i32, i32
  }
  func.func @transform_7(%arg0: i32) -> (i32, i32) {
    %c0_i32 = arith.constant 0 : i32
    %c0_i32_0 = arith.constant 0 : i32
    %c0_i32_1 = arith.constant 0 : i32
    return %c0_i32, %c0_i32_0 : i32, i32
  }
}

</mosaic_0001>

<llo_original>
// kernel: net_forward.3
$region0: #{net_forward.3}
  #allocation0 [shape = 'u32[]', space=smem, size = 0x4, offset = 0x4, fixed_abs, tag = 'smem constant byte address 0x4 - core index']
  #allocation1 [shape = 'u32[72,128]{1,0:T(1,128)}', space=vmem, size = 0x9000, scoped, tag = 'internal scratch']
  %s0 = inlined_call_operand.vmem [shape: f32[2,60,75,60], index: 0, kind: input, shape index: {}]
  %s1 = inlined_call_operand.vmem [shape: f32[6,75], index: 1, kind: input, shape index: {}]
  %s2 = inlined_call_operand.vmem [shape: f32[6,1], index: 2, kind: input, shape index: {}]
  %s3 = inlined_call_operand.vmem [shape: f32[60,30], index: 3, kind: input, shape index: {}]
  %s4 = inlined_call_operand.vmem [shape: f32[60,30], index: 4, kind: input, shape index: {}]
  %s5 = inlined_call_operand.vmem [shape: f32[2,6,30,30], index: 5, kind: output, shape index: {}]
  %s6 = sld [smem:[#allocation0]]
  $region53: #{net_forward.3} parent=0
    _
  %s8 = ssub.s32 1, %s6
  %s9 = scalar_select 0, %s8, %s6
  loop: start=0, step=1, limit=4
  $region2: #{net_forward.3} parent=0 // loop_pre_header
    _
  $region3: #{net_forward.3} parent=0 // loop_header
    %s11 = sphi 0, %s15
    %p12 = scmp.ge.s32.totalorder %s11, 4
    %s21 = sphi 0, %s23
    %s24 = sphi 0, %s21
    %s25 = sphi 0, %s24
    %s41 = sphi 0, %s25
    %s45 = sphi 0, %s45
    %s47 = sphi 0, %s45
    %s48 = sphi 0, %s47
    %s62 = sphi 0, %s48
    %s66 = sphi 0, %s66
    %s68 = sphi 0, %s66
    %s69 = sphi 0, %s68
    %s83 = sphi 0, %s69
    %s87 = sphi 0, %s87
    %s89 = sphi 0, %s87
    %s90 = sphi 0, %s89
    %s104 = sphi 0, %s90
    %s108 = sphi 0, %s108
    %s110 = sphi 0, %s108
    %s111 = sphi 0, %s110
    %s125 = sphi 0, %s111
    %s131 = sphi 0, %s133
    %s134 = sphi 0, %s131
    %s135 = sphi 0, %s134
    %s151 = sphi 0, %s135
  $region4: #{net_forward.3} parent=0 // loop_header_branch
    %14 = sbr.rel (%p12) target = $region8
  $region5: #{net_forward.3} parent=0 // loop_body
    %s16 = ssub.s32 %s11, 1
    %s17 = ssub.s32 %s11, 2
    %s18 = sadd.s32 %s11, 1
    %s19 = ssub.s32 %s11, %s18
    %p20 = scmp.eq.s32.totalorder %s19, 0
    %s22 = sadd.s32 %s21, 1
    %s23 = scalar_select %p20, %s21, %s22
    %p26 = pneg %p20
    %p27 = scmp.eq.s32.totalorder %s11, 1
    %p28 = por %p26, %p27
    %p29 = scmp.ne.s32.totalorder %s21, %s24
    %p30 = scmp.eq.s32.totalorder %s11, 0
    %p31 = por %p29, %p30
    %p32 = scmp.ne.s32.totalorder %s21, %s24
    %p33 = scmp.eq.s32.totalorder %s16, 1
    %p34 = por %p32, %p33
    %p35 = scmp.ne.s32.totalorder %s24, %s25
    %p36 = scmp.eq.s32.totalorder %s16, 0
    %p37 = por %p35, %p36
    %p38 = scmp.ne.s32.totalorder %s24, %s25
    %p39 = scmp.eq.s32.totalorder %s17, 1
    %p40 = por %p38, %p39
    %p42 = scmp.ne.s32.totalorder %s25, %s41
    %p43 = scmp.eq.s32.totalorder %s17, 0
    %p44 = por %p42, %p43
    %s46 = sadd.s32 %s45, 1
    %p49 = scmp.eq.s32.totalorder %s11, 1
    %p50 = scmp.ne.s32.totalorder %s45, %s47
    %p51 = scmp.eq.s32.totalorder %s11, 0
    %p52 = por %p50, %p51
    %p53 = scmp.ne.s32.totalorder %s45, %s47
    %p54 = scmp.eq.s32.totalorder %s16, 1
    %p55 = por %p53, %p54
    %p56 = scmp.ne.s32.totalorder %s47, %s48
    %p57 = scmp.eq.s32.totalorder %s16, 0
    %p58 = por %p56, %p57
    %p59 = scmp.ne.s32.totalorder %s47, %s48
    %p60 = scmp.eq.s32.totalorder %s17, 1
    %p61 = por %p59, %p60
    %p63 = scmp.ne.s32.totalorder %s48, %s62
    %p64 = scmp.eq.s32.totalorder %s17, 0
    %p65 = por %p63, %p64
    %s67 = sadd.s32 %s66, 1
    %p70 = scmp.eq.s32.totalorder %s11, 1
    %p71 = scmp.ne.s32.totalorder %s66, %s68
    %p72 = scmp.eq.s32.totalorder %s11, 0
    %p73 = por %p71, %p72
    %p74 = scmp.ne.s32.totalorder %s66, %s68
    %p75 = scmp.eq.s32.totalorder %s16, 1
    %p76 = por %p74, %p75
    %p77 = scmp.ne.s32.totalorder %s68, %s69
    %p78 = scmp.eq.s32.totalorder %s16, 0
    %p79 = por %p77, %p78
    %p80 = scmp.ne.s32.totalorder %s68, %s69
    %p81 = scmp.eq.s32.totalorder %s17, 1
    %p82 = por %p80, %p81
    %p84 = scmp.ne.s32.totalorder %s69, %s83
    %p85 = scmp.eq.s32.totalorder %s17, 0
    %p86 = por %p84, %p85
    %s88 = sadd.s32 %s87, 1
    %p91 = scmp.eq.s32.totalorder %s11, 1
    %p92 = scmp.ne.s32.totalorder %s87, %s89
    %p93 = scmp.eq.s32.totalorder %s11, 0
    %p94 = por %p92, %p93
    %p95 = scmp.ne.s32.totalorder %s87, %s89
    %p96 = scmp.eq.s32.totalorder %s16, 1
    %p97 = por %p95, %p96
    %p98 = scmp.ne.s32.totalorder %s89, %s90
    %p99 = scmp.eq.s32.totalorder %s16, 0
    %p100 = por %p98, %p99
    %p101 = scmp.ne.s32.totalorder %s89, %s90
    %p102 = scmp.eq.s32.totalorder %s17, 1
    %p103 = por %p101, %p102
    %p105 = scmp.ne.s32.totalorder %s90, %s104
    %p106 = scmp.eq.s32.totalorder %s17, 0
    %p107 = por %p105, %p106
    %s109 = sadd.s32 %s108, 1
    %p112 = scmp.eq.s32.totalorder %s11, 1
    %p113 = scmp.ne.s32.totalorder %s108, %s110
    %p114 = scmp.eq.s32.totalorder %s11, 0
    %p115 = por %p113, %p114
    %p116 = scmp.ne.s32.totalorder %s108, %s110
    %p117 = scmp.eq.s32.totalorder %s16, 1
    %p118 = por %p116, %p117
    %p119 = scmp.ne.s32.totalorder %s110, %s111
    %p120 = scmp.eq.s32.totalorder %s16, 0
    %p121 = por %p119, %p120
    %p122 = scmp.ne.s32.totalorder %s110, %s111
    %p123 = scmp.eq.s32.totalorder %s17, 1
    %p124 = por %p122, %p123
    %p126 = scmp.ne.s32.totalorder %s111, %s125
    %p127 = scmp.eq.s32.totalorder %s17, 0
    %p128 = por %p126, %p127
    %s129 = ssub.s32 %s11, %s18
    %p130 = scmp.eq.s32.totalorder %s129, 0
    %s132 = sadd.s32 %s131, 1
    %s133 = scalar_select %p130, %s131, %s132
    %p136 = pneg %p130
    %p137 = scmp.eq.s32.totalorder %s11, 1
    %p138 = por %p136, %p137
    %p139 = scmp.ne.s32.totalorder %s131, %s134
    %p140 = scmp.eq.s32.totalorder %s11, 0
    %p141 = por %p139, %p140
    %p142 = scmp.ne.s32.totalorder %s131, %s134
    %p143 = scmp.eq.s32.totalorder %s16, 1
    %p144 = por %p142, %p143
    %p145 = scmp.ne.s32.totalorder %s134, %s135
    %p146 = scmp.eq.s32.totalorder %s16, 0
    %p147 = por %p145, %p146
    %p148 = scmp.ne.s32.totalorder %s134, %s135
    %p149 = scmp.eq.s32.totalorder %s17, 1
    %p150 = por %p148, %p149
    %p152 = scmp.ne.s32.totalorder %s135, %s151
    %p153 = scmp.eq.s32.totalorder %s17, 0
    %p154 = por %p152, %p153
    %p155 = scmp.le.s32.totalorder 1, %s11
    %p156 = scmp.lt.s32.totalorder %s11, 3
    %p157 = pnand %p155, %p156
    %p158 = pneg %p157
    // Predicated region
    $region9: #{net_forward.3} parent=5 // pred_check
      _
    $region10: #{net_forward.3} parent=5 // pred_check_branch
      %160 = sbr.rel (%p157) target = $region12
    $region11: #{net_forward.3} parent=5 // pred_region
      %s161 = ssub.s32 %s11, 1
      // Predicated region
      $region13: #{net_forward.3} parent=11 // pred_check
        %p162 = pneg %p58
      $region14: #{net_forward.3} parent=11 // pred_check_branch
        %164 = sbr.rel (%p162) target = $region16
      $region15: #{net_forward.3} parent=11 // pred_region
        _
      $region16: #{net_forward.3} parent=11 // pred_fallthru
        _
      // Predicated region
      $region17: #{net_forward.3} parent=11 // pred_check
        %p165 = pneg %p79
      $region18: #{net_forward.3} parent=11 // pred_check_branch
        %167 = sbr.rel (%p165) target = $region20
      $region19: #{net_forward.3} parent=11 // pred_region
        _
      $region20: #{net_forward.3} parent=11 // pred_fallthru
        _
      // Predicated region
      $region21: #{net_forward.3} parent=11 // pred_check
        %p168 = pneg %p100
      $region22: #{net_forward.3} parent=11 // pred_check_branch
        %170 = sbr.rel (%p168) target = $region24
      $region23: #{net_forward.3} parent=11 // pred_region
        _
      $region24: #{net_forward.3} parent=11 // pred_fallthru
        _
      // Predicated region
      $region25: #{net_forward.3} parent=11 // pred_check
        %p171 = pneg %p121
      $region26: #{net_forward.3} parent=11 // pred_check_branch
        %173 = sbr.rel (%p171) target = $region28
      $region27: #{net_forward.3} parent=11 // pred_region
        _
      $region28: #{net_forward.3} parent=11 // pred_fallthru
        _
    $region12: #{net_forward.3} parent=5 // pred_fallthru
      _
    %p174 = scmp.lt.s32.totalorder %s11, 2
    // Predicated region
    $region29: #{net_forward.3} parent=5 // pred_check
      %p175 = pneg %p174
    $region30: #{net_forward.3} parent=5 // pred_check_branch
      %177 = sbr.rel (%p175) target = $region32
    $region31: #{net_forward.3} parent=5 // pred_region
      // Predicated region
      $region33: #{net_forward.3} parent=31 // pred_check
        %p178 = pneg %p31
      $region34: #{net_forward.3} parent=31 // pred_check_branch
        %180 = sbr.rel (%p178) target = $region36
      $region35: #{net_forward.3} parent=31 // pred_region
        %p181 = scmp.lt.s32.totalorder %s11, 1
        %s182 = scalar_select %p181, %s11, 1
        %s183 = smul.addr %s182, 600
        %s184 = smul.addr %s183, 8
        %s185 = scalar_lea.vmem %s0, %s184
      $region36: #{net_forward.3} parent=31 // pred_fallthru
        _
    $region32: #{net_forward.3} parent=5 // pred_fallthru
      _
    %p186 = scmp.le.s32.totalorder 1, %s11
    %p187 = scmp.lt.s32.totalorder %s11, 3
    %p188 = pnand %p186, %p187
    %p189 = pneg %p188
    // Predicated region
    $region37: #{net_forward.3} parent=5 // pred_check
      _
    $region38: #{net_forward.3} parent=5 // pred_check_branch
      %191 = sbr.rel (%p188) target = $region40
    $region39: #{net_forward.3} parent=5 // pred_region
      %s192 = ssub.s32 %s11, 1
      %p193 = scmp.lt.s32.totalorder %s16, 1
      %s194 = scalar_select %p193, %s16, 1
      %s195 = smul.addr %s194, 600
      %s196 = smul.addr %s195, 8
      %s197 = scalar_lea.vmem %s0, %s196
      %p198 = pneg %p37
      %p199 = pneg %p34
      %p200 = pneg %p58
      %p201 = pneg %p55
      %p202 = pneg %p79
      %p203 = pneg %p76
      %p204 = pneg %p100
      %p205 = pneg %p97
      %p206 = pneg %p121
      %p207 = pneg %p118
      %p208 = pneg %p147
      %p209 = pneg %p144
      %p210 = scmp.lt.s32.totalorder %s16, 1
      %s211 = scalar_select %p210, %s16, 1
      %s212 = smul.addr %s211, 24
      %s213 = smul.addr %s212, 8
      %s214 = scalar_lea.vmem %s5, %s213
      %p215 = scmp.lt.s32.totalorder %s16, 1
      %s216 = scalar_select %p215, %s16, 1
      %s217 = smul.addr %s216, 600
      %s218 = smul.addr %s217, 8
      %s219 = scalar_lea.vmem %s0, %s218
      %p220 = scmp.lt.s32.totalorder %s16, 1
      %s221 = scalar_select %p220, %s16, 1
      %s222 = smul.addr %s221, 24
      %s223 = smul.addr %s222, 8
      %s224 = scalar_lea.vmem %s5, %s223
      %v225 = vld [vmem:[%s1] sm:$0x3f]
      %v226 = vld [vmem:[%s2] sm:$0x3f]
      %v227 = vld [vmem:[%s3] sm:$0xff]
      %v228 = vld [vmem:[%s3 + $0x8] sm:$0xff]
      %v229 = vld [vmem:[%s3 + $0x10] sm:$0xff]
      %v230 = vld [vmem:[%s3 + $0x18] sm:$0xff]
      %v231 = vld [vmem:[%s3 + $0x20] sm:$0xff]
      %v232 = vld [vmem:[%s3 + $0x28] sm:$0xff]
      %v233 = vld [vmem:[%s3 + $0x30] sm:$0xff]
      %v234 = vld [vmem:[%s3 + $0x38] sm:$0xf]
      %v235 = vld [vmem:[%s4] sm:$0xff]
      %v236 = vld [vmem:[%s4 + $0x8] sm:$0xff]
      %v237 = vld [vmem:[%s4 + $0x10] sm:$0xff]
      %v238 = vld [vmem:[%s4 + $0x18] sm:$0xff]
      %v239 = vld [vmem:[%s4 + $0x20] sm:$0xff]
      %v240 = vld [vmem:[%s4 + $0x28] sm:$0xff]
      %v241 = vld [vmem:[%s4 + $0x30] sm:$0xff]
      %v242 = vld [vmem:[%s4 + $0x38] sm:$0xf]
      %v243 = vld [vmem:[%s219] sm:$0xff]
      %v244 = vld [vmem:[%s219 + $0x8] sm:$0xff]
      %v245 = vld [vmem:[%s219 + $0x10] sm:$0xff]
      %v246 = vld [vmem:[%s219 + $0x18] sm:$0xff]
      %v247 = vld [vmem:[%s219 + $0x20] sm:$0xff]
      %v248 = vld [vmem:[%s219 + $0x28] sm:$0xff]
      %v249 = vld [vmem:[%s219 + $0x30] sm:$0xff]
      %v250 = vld [vmem:[%s219 + $0x38] sm:$0xff]
      %v251 = vld [vmem:[%s219 + $0x40] sm:$0xff]
      %v252 = vld [vmem:[%s219 + $0x48] sm:$0x7]
      %s253 = scalar_lea.vmem %s219, 80
      %v254 = vld [vmem:[%s253] sm:$0xff]
      %v255 = vld [vmem:[%s253 + $0x8] sm:$0xff]
      %v256 = vld [vmem:[%s253 + $0x10] sm:$0xff]
      %v257 = vld [vmem:[%s253 + $0x18] sm:$0xff]
      %v258 = vld [vmem:[%s253 + $0x20] sm:$0xff]
      %v259 = vld [vmem:[%s253 + $0x28] sm:$0xff]
      %v260 = vld [vmem:[%s253 + $0x30] sm:$0xff]
      %v261 = vld [vmem:[%s253 + $0x38] sm:$0xff]
      %v262 = vld [vmem:[%s253 + $0x40] sm:$0xff]
      %v263 = vld [vmem:[%s253 + $0x48] sm:$0x7]
      %vm264 = vcmask 613376
      %v266 = vsel %vm264, %v225, 0
      %vm268 = vcmask 1042432
      %v270 = vsel %vm268, %v252, 0
      %272 = vmatpush.msra.mxu0 0.0
      %273 = vmatpush.msra.mxu0 0.0
      %274 = vmatpush.msra.mxu0 0.0
      %275 = vmatpush.msra.mxu0 0.0
      %276 = vmatpush.msra.mxu0 0.0
      %277 = vmatpush.msra.mxu0 0.0
      %278 = vmatpush.msra.mxu0 %v270
      %279 = vmatpush.msra.mxu0 %v251
      %280 = vmatpush.msra.mxu0 %v250
      %281 = vmatpush.msra.mxu0 %v249
      %282 = vmatpush.msra.mxu0 %v248
      %283 = vmatpush.msra.mxu0 %v247
      %284 = vmatpush.msra.mxu0 %v246
      %285 = vmatpush.msra.mxu0 %v245
      %286 = vmatpush.msra.mxu0 %v244
      %287 = vmatpush.msra.mxu0 %v243
      %288 = vmatmul.f32.gmra.mxu0 %v266
      %v289 = vpop.f32.mrf.mxu0
      %v290 = vadd.f32 0.0, %v289
      %291 = vdwg.mxu0
      %v293 = vsel %vm268, %v263, 0
      %295 = vmatpush.msra.mxu0 0.0
      %296 = vmatpush.msra.mxu0 0.0
      %297 = vmatpush.msra.mxu0 0.0
      %298 = vmatpush.msra.mxu0 0.0
      %299 = vmatpush.msra.mxu0 0.0
      %300 = vmatpush.msra.mxu0 0.0
      %301 = vmatpush.msra.mxu0 %v293
      %302 = vmatpush.msra.mxu0 %v262
      %303 = vmatpush.msra.mxu0 %v261
      %304 = vmatpush.msra.mxu0 %v260
      %305 = vmatpush.msra.mxu0 %v259
      %306 = vmatpush.msra.mxu0 %v258
      %307 = vmatpush.msra.mxu0 %v257
      %308 = vmatpush.msra.mxu0 %v256
      %309 = vmatpush.msra.mxu0 %v255
      %310 = vmatpush.msra.mxu0 %v254
      %311 = vmatmul.f32.gmra.mxu0 %v266
      %v312 = vpop.f32.mrf.mxu0
      %v313 = vadd.f32 0.0, %v312
      %314 = vdwg.mxu0
      %v315 = vmax.f32 %v290, %v313
      %vm316 = vcmask 490496
      %v318 = vsel %vm316, %v315, 0
      %vm320 = vcmask 1043456
      %v322 = vsel %vm320, %v234, 0
      %324 = vmatpush.msra.mxu0 0.0
      %325 = vmatpush.msra.mxu0 0.0
      %326 = vmatpush.msra.mxu0 0.0
      %327 = vmatpush.msra.mxu0 0.0
      %328 = vmatpush.msra.mxu0 0.0
      %329 = vmatpush.msra.mxu0 0.0
      %330 = vmatpush.msra.mxu0 0.0
      %331 = vmatpush.msra.mxu0 0.0
      %332 = vmatpush.msra.mxu0 %v322
      %333 = vmatpush.msra.mxu0 %v233
      %334 = vmatpush.msra.mxu0 %v232
      %335 = vmatpush.msra.mxu0 %v231
      %336 = vmatpush.msra.mxu0 %v230
      %337 = vmatpush.msra.mxu0 %v229
      %338 = vmatpush.msra.mxu0 %v228
      %339 = vmatpush.msra.mxu0 %v227
      %340 = vmatmul.f32.gmra.mxu0 %v318
      %v341 = vpop.f32.mrf.mxu0
      %v342 = vadd.f32 0.0, %v341
      %343 = vdwg.mxu0
      %v345 = vsel %vm320, %v242, 0
      %347 = vmatpush.msra.mxu0 0.0
      %348 = vmatpush.msra.mxu0 0.0
      %349 = vmatpush.msra.mxu0 0.0
      %350 = vmatpush.msra.mxu0 0.0
      %351 = vmatpush.msra.mxu0 0.0
      %352 = vmatpush.msra.mxu0 0.0
      %353 = vmatpush.msra.mxu0 0.0
      %354 = vmatpush.msra.mxu0 0.0
      %355 = vmatpush.msra.mxu0 %v345
      %356 = vmatpush.msra.mxu0 %v241
      %357 = vmatpush.msra.mxu0 %v240
      %358 = vmatpush.msra.mxu0 %v239
      %359 = vmatpush.msra.mxu0 %v238
      %360 = vmatpush.msra.mxu0 %v237
      %361 = vmatpush.msra.mxu0 %v236
      %362 = vmatpush.msra.mxu0 %v235
      %363 = vmatmul.f32.gmra.mxu0 %v318
      %v364 = vpop.f32.mrf.mxu0
      %v365 = vadd.f32 0.0, %v364
      %366 = vdwg.mxu0
      %v367 = vmax.f32 %v342, %v365
      %369 = vset.pattern.permute.xlu0 0
      %370 = vperm.xlu0 %369, %v226
      %v371 = vpop.permute.xlu0 %370
      %v373 = vadd.f32 %v367, %v371
      %v374 = vmax.f32 %v373, 0.0
      %v376 = vrot.slane %v374, 1
      %v377 = vrot.slane %v374, 2
      %v378 = vrot.slane %v374, 3
      %v379 = vrot.slane %v374, 4
      %v380 = vrot.slane %v374, 5
      %vm386 = vcmask 237568
      %387 = vst.msk [vmem:[%s224] sm:$0x1] %vm386, %v374
      %388 = vst.msk [vmem:[%s224 + $0x20] sm:$0x1] %vm386, %v376
      %389 = vst.msk [vmem:[%s224 + $0x40] sm:$0x1] %vm386, %v377
      %390 = vst.msk [vmem:[%s224 + $0x60] sm:$0x1] %vm386, %v378
      %391 = vst.msk [vmem:[%s224 + $0x80] sm:$0x1] %vm386, %v379
      %392 = vst.msk [vmem:[%s224 + $0xa0] sm:$0x1] %vm386, %v380
      %s393 = scalar_lea.vmem %s219, 160
      %v394 = vld [vmem:[%s393] sm:$0xff]
      %v395 = vld [vmem:[%s393 + $0x8] sm:$0xff]
      %v396 = vld [vmem:[%s393 + $0x10] sm:$0xff]
      %v397 = vld [vmem:[%s393 + $0x18] sm:$0xff]
      %v398 = vld [vmem:[%s393 + $0x20] sm:$0xff]
      %v399 = vld [vmem:[%s393 + $0x28] sm:$0xff]
      %v400 = vld [vmem:[%s393 + $0x30] sm:$0xff]
      %v401 = vld [vmem:[%s393 + $0x38] sm:$0xff]
      %v402 = vld [vmem:[%s393 + $0x40] sm:$0xff]
      %v403 = vld [vmem:[%s393 + $0x48] sm:$0x7]
      %s404 = scalar_lea.vmem %s219, 240
      %v405 = vld [vmem:[%s404] sm:$0xff]
      %v406 = vld [vmem:[%s404 + $0x8] sm:$0xff]
      %v407 = vld [vmem:[%s404 + $0x10] sm:$0xff]
      %v408 = vld [vmem:[%s404 + $0x18] sm:$0xff]
      %v409 = vld [vmem:[%s404 + $0x20] sm:$0xff]
      %v410 = vld [vmem:[%s404 + $0x28] sm:$0xff]
      %v411 = vld [vmem:[%s404 + $0x30] sm:$0xff]
      %v412 = vld [vmem:[%s404 + $0x38] sm:$0xff]
      %v413 = vld [vmem:[%s404 + $0x40] sm:$0xff]
      %v414 = vld [vmem:[%s404 + $0x48] sm:$0x7]
      %v416 = vsel %vm268, %v403, 0
      %418 = vmatpush.msra.mxu0 0.0
      %419 = vmatpush.msra.mxu0 0.0
      %420 = vmatpush.msra.mxu0 0.0
      %421 = vmatpush.msra.mxu0 0.0
      %422 = vmatpush.msra.mxu0 0.0
      %423 = vmatpush.msra.mxu0 0.0
      %424 = vmatpush.msra.mxu0 %v416
      %425 = vmatpush.msra.mxu0 %v402
      %426 = vmatpush.msra.mxu0 %v401
      %427 = vmatpush.msra.mxu0 %v400
      %428 = vmatpush.msra.mxu0 %v399
      %429 = vmatpush.msra.mxu0 %v398
      %430 = vmatpush.msra.mxu0 %v397
      %431 = vmatpush.msra.mxu0 %v396
      %432 = vmatpush.msra.mxu0 %v395
      %433 = vmatpush.msra.mxu0 %v394
      %434 = vmatmul.f32.gmra.mxu0 %v266
      %v435 = vpop.f32.mrf.mxu0
      %v436 = vadd.f32 0.0, %v435
      %437 = vdwg.mxu0
      %v439 = vsel %vm268, %v414, 0
      %441 = vmatpush.msra.mxu0 0.0
      %442 = vmatpush.msra.mxu0 0.0
      %443 = vmatpush.msra.mxu0 0.0
      %444 = vmatpush.msra.mxu0 0.0
      %445 = vmatpush.msra.mxu0 0.0
      %446 = vmatpush.msra.mxu0 0.0
      %447 = vmatpush.msra.mxu0 %v439
      %448 = vmatpush.msra.mxu0 %v413
      %449 = vmatpush.msra.mxu0 %v412
      %450 = vmatpush.msra.mxu0 %v411
      %451 = vmatpush.msra.mxu0 %v410
      %452 = vmatpush.msra.mxu0 %v409
      %453 = vmatpush.msra.mxu0 %v408
      %454 = vmatpush.msra.mxu0 %v407
      %455 = vmatpush.msra.mxu0 %v406
      %456 = vmatpush.msra.mxu0 %v405
      %457 = vmatmul.f32.gmra.mxu0 %v266
      %v458 = vpop.f32.mrf.mxu0
      %v459 = vadd.f32 0.0, %v458
      %460 = vdwg.mxu0
      %v461 = vmax.f32 %v436, %v459
      %v463 = vsel %vm316, %v461, 0
      %465 = vmatpush.msra.mxu0 0.0
      %466 = vmatpush.msra.mxu0 0.0
      %467 = vmatpush.msra.mxu0 0.0
      %468 = vmatpush.msra.mxu0 0.0
      %469 = vmatpush.msra.mxu0 0.0
      %470 = vmatpush.msra.mxu0 0.0
      %471 = vmatpush.msra.mxu0 0.0
      %472 = vmatpush.msra.mxu0 0.0
      %473 = vmatpush.msra.mxu0 %v322
      %474 = vmatpush.msra.mxu0 %v233
      %475 = vmatpush.msra.mxu0 %v232
      %476 = vmatpush.msra.mxu0 %v231
      %477 = vmatpush.msra.mxu0 %v230
      %478 = vmatpush.msra.mxu0 %v229
      %479 = vmatpush.msra.mxu0 %v228
      %480 = vmatpush.msra.mxu0 %v227
      %481 = vmatmul.f32.gmra.mxu0 %v463
      %v482 = vpop.f32.mrf.mxu0
      %v483 = vadd.f32 0.0, %v482
      %484 = vdwg.mxu0
      %485 = vmatpush.msra.mxu0 0.0
      %486 = vmatpush.msra.mxu0 0.0
      %487 = vmatpush.msra.mxu0 0.0
      %488 = vmatpush.msra.mxu0 0.0
      %489 = vmatpush.msra.mxu0 0.0
      %490 = vmatpush.msra.mxu0 0.0
      %491 = vmatpush.msra.mxu0 0.0
      %492 = vmatpush.msra.mxu0 0.0
      %493 = vmatpush.msra.mxu0 %v345
      %494 = vmatpush.msra.mxu0 %v241
      %495 = vmatpush.msra.mxu0 %v240
      %496 = vmatpush.msra.mxu0 %v239
      %497 = vmatpush.msra.mxu0 %v238
      %498 = vmatpush.msra.mxu0 %v237
      %499 = vmatpush.msra.mxu0 %v236
      %500 = vmatpush.msra.mxu0 %v235
      %501 = vmatmul.f32.gmra.mxu0 %v463
      %v502 = vpop.f32.mrf.mxu0
      %v503 = vadd.f32 0.0, %v502
      %504 = vdwg.mxu0
      %v505 = vmax.f32 %v483, %v503
      %v506 = vadd.f32 %v505, %v371
      %v507 = vmax.f32 %v506, 0.0
      %v509 = vrot.slane %v507, 1
      %v510 = vrot.slane %v507, 2
      %v511 = vrot.slane %v507, 3
      %v512 = vrot.slane %v507, 4
      %v513 = vrot.slane %v507, 5
      %519 = vst.msk [vmem:[%s224 + $0x1] sm:$0x1] %vm386, %v507
      %520 = vst.msk [vmem:[%s224 + $0x21] sm:$0x1] %vm386, %v509
      %521 = vst.msk [vmem:[%s224 + $0x41] sm:$0x1] %vm386, %v510
      %522 = vst.msk [vmem:[%s224 + $0x61] sm:$0x1] %vm386, %v511
      %523 = vst.msk [vmem:[%s224 + $0x81] sm:$0x1] %vm386, %v512
      %524 = vst.msk [vmem:[%s224 + $0xa1] sm:$0x1] %vm386, %v513
      %s525 = scalar_lea.vmem %s219, 320
      %v526 = vld [vmem:[%s525] sm:$0xff]
      %v527 = vld [vmem:[%s525 + $0x8] sm:$0xff]
      %v528 = vld [vmem:[%s525 + $0x10] sm:$0xff]
      %v529 = vld [vmem:[%s525 + $0x18] sm:$0xff]
      %v530 = vld [vmem:[%s525 + $0x20] sm:$0xff]
      %v531 = vld [vmem:[%s525 + $0x28] sm:$0xff]
      %v532 = vld [vmem:[%s525 + $0x30] sm:$0xff]
      %v533 = vld [vmem:[%s525 + $0x38] sm:$0xff]
      %v534 = vld [vmem:[%s525 + $0x40] sm:$0xff]
      %v535 = vld [vmem:[%s525 + $0x48] sm:$0x7]
      %s536 = scalar_lea.vmem %s219, 400
      %v537 = vld [vmem:[%s536] sm:$0xff]
      %v538 = vld [vmem:[%s536 + $0x8] sm:$0xff]
      %v539 = vld [vmem:[%s536 + $0x10] sm:$0xff]
      %v540 = vld [vmem:[%s536 + $0x18] sm:$0xff]
      %v541 = vld [vmem:[%s536 + $0x20] sm:$0xff]
      %v542 = vld [vmem:[%s536 + $0x28] sm:$0xff]
      %v543 = vld [vmem:[%s536 + $0x30] sm:$0xff]
      %v544 = vld [vmem:[%s536 + $0x38] sm:$0xff]
      %v545 = vld [vmem:[%s536 + $0x40] sm:$0xff]
      %v546 = vld [vmem:[%s536 + $0x48] sm:$0x7]
      %v548 = vsel %vm268, %v535, 0
      %550 = vmatpush.msra.mxu0 0.0
      %551 = vmatpush.msra.mxu0 0.0
      %552 = vmatpush.msra.mxu0 0.0
      %553 = vmatpush.msra.mxu0 0.0
      %554 = vmatpush.msra.mxu0 0.0
      %555 = vmatpush.msra.mxu0 0.0
      %556 = vmatpush.msra.mxu0 %v548
      %557 = vmatpush.msra.mxu0 %v534
      %558 = vmatpush.msra.mxu0 %v533
      %559 = vmatpush.msra.mxu0 %v532
      %560 = vmatpush.msra.mxu0 %v531
      %561 = vmatpush.msra.mxu0 %v530
      %562 = vmatpush.msra.mxu0 %v529
      %563 = vmatpush.msra.mxu0 %v528
      %564 = vmatpush.msra.mxu0 %v527
      %565 = vmatpush.msra.mxu0 %v526
      %566 = vmatmul.f32.gmra.mxu0 %v266
      %v567 = vpop.f32.mrf.mxu0
      %v568 = vadd.f32 0.0, %v567
      %569 = vdwg.mxu0
      %v571 = vsel %vm268, %v546, 0
      %573 = vmatpush.msra.mxu0 0.0
      %574 = vmatpush.msra.mxu0 0.0
      %575 = vmatpush.msra.mxu0 0.0
      %576 = vmatpush.msra.mxu0 0.0
      %577 = vmatpush.msra.mxu0 0.0
      %578 = vmatpush.msra.mxu0 0.0
      %579 = vmatpush.msra.mxu0 %v571
      %580 = vmatpush.msra.mxu0 %v545
      %581 = vmatpush.msra.mxu0 %v544
      %582 = vmatpush.msra.mxu0 %v543
      %583 = vmatpush.msra.mxu0 %v542
      %584 = vmatpush.msra.mxu0 %v541
      %585 = vmatpush.msra.mxu0 %v540
      %586 = vmatpush.msra.mxu0 %v539
      %587 = vmatpush.msra.mxu0 %v538
      %588 = vmatpush.msra.mxu0 %v537
      %589 = vmatmul.f32.gmra.mxu0 %v266
      %v590 = vpop.f32.mrf.mxu0
      %v591 = vadd.f32 0.0, %v590
      %592 = vdwg.mxu0
      %v593 = vmax.f32 %v568, %v591
      %v595 = vsel %vm316, %v593, 0
      %597 = vmatpush.msra.mxu0 0.0
      %598 = vmatpush.msra.mxu0 0.0
      %599 = vmatpush.msra.mxu0 0.0
      %600 = vmatpush.msra.mxu0 0.0
      %601 = vmatpush.msra.mxu0 0.0
      %602 = vmatpush.msra.mxu0 0.0
      %603 = vmatpush.msra.mxu0 0.0
      %604 = vmatpush.msra.mxu0 0.0
      %605 = vmatpush.msra.mxu0 %v322
      %606 = vmatpush.msra.mxu0 %v233
      %607 = vmatpush.msra.mxu0 %v232
      %608 = vmatpush.msra.mxu0 %v231
      %609 = vmatpush.msra.mxu0 %v230
      %610 = vmatpush.msra.mxu0 %v229
      %611 = vmatpush.msra.mxu0 %v228
      %612 = vmatpush.msra.mxu0 %v227
      %613 = vmatmul.f32.gmra.mxu0 %v595
      %v614 = vpop.f32.mrf.mxu0
      %v615 = vadd.f32 0.0, %v614
      %616 = vdwg.mxu0
      %617 = vmatpush.msra.mxu0 0.0
      %618 = vmatpush.msra.mxu0 0.0
      %619 = vmatpush.msra.mxu0 0.0
      %620 = vmatpush.msra.mxu0 0.0
      %621 = vmatpush.msra.mxu0 0.0
      %622 = vmatpush.msra.mxu0 0.0
      %623 = vmatpush.msra.mxu0 0.0
      %624 = vmatpush.msra.mxu0 0.0
      %625 = vmatpush.msra.mxu0 %v345
      %626 = vmatpush.msra.mxu0 %v241
      %627 = vmatpush.msra.mxu0 %v240
      %628 = vmatpush.msra.mxu0 %v239
      %629 = vmatpush.msra.mxu0 %v238
      %630 = vmatpush.msra.mxu0 %v237
      %631 = vmatpush.msra.mxu0 %v236
      %632 = vmatpush.msra.mxu0 %v235
      %633 = vmatmul.f32.gmra.mxu0 %v595
      %v634 = vpop.f32.mrf.mxu0
      %v635 = vadd.f32 0.0, %v634
      %636 = vdwg.mxu0
      %v637 = vmax.f32 %v615, %v635
      %v638 = vadd.f32 %v637, %v371
      %v639 = vmax.f32 %v638, 0.0
      %v641 = vrot.slane %v639, 1
      %v642 = vrot.slane %v639, 2
      %v643 = vrot.slane %v639, 3
      %v644 = vrot.slane %v639, 4
      %v645 = vrot.slane %v639, 5
      %651 = vst.msk [vmem:[%s224 + $0x2] sm:$0x1] %vm386, %v639
      %652 = vst.msk [vmem:[%s224 + $0x22] sm:$0x1] %vm386, %v641
      %653 = vst.msk [vmem:[%s224 + $0x42] sm:$0x1] %vm386, %v642
      %654 = vst.msk [vmem:[%s224 + $0x62] sm:$0x1] %vm386, %v643
      %655 = vst.msk [vmem:[%s224 + $0x82] sm:$0x1] %vm386, %v644
      %656 = vst.msk [vmem:[%s224 + $0xa2] sm:$0x1] %vm386, %v645
      %s657 = scalar_lea.vmem %s219, 480
      %v658 = vld [vmem:[%s657] sm:$0xff]
      %v659 = vld [vmem:[%s657 + $0x8] sm:$0xff]
      %v660 = vld [vmem:[%s657 + $0x10] sm:$0xff]
      %v661 = vld [vmem:[%s657 + $0x18] sm:$0xff]
      %v662 = vld [vmem:[%s657 + $0x20] sm:$0xff]
      %v663 = vld [vmem:[%s657 + $0x28] sm:$0xff]
      %v664 = vld [vmem:[%s657 + $0x30] sm:$0xff]
      %v665 = vld [vmem:[%s657 + $0x38] sm:$0xff]
      %v666 = vld [vmem:[%s657 + $0x40] sm:$0xff]
      %v667 = vld [vmem:[%s657 + $0x48] sm:$0x7]
      %s668 = scalar_lea.vmem %s219, 560
      %v669 = vld [vmem:[%s668] sm:$0xff]
      %v670 = vld [vmem:[%s668 + $0x8] sm:$0xff]
      %v671 = vld [vmem:[%s668 + $0x10] sm:$0xff]
      %v672 = vld [vmem:[%s668 + $0x18] sm:$0xff]
      %v673 = vld [vmem:[%s668 + $0x20] sm:$0xff]
      %v674 = vld [vmem:[%s668 + $0x28] sm:$0xff]
      %v675 = vld [vmem:[%s668 + $0x30] sm:$0xff]
      %v676 = vld [vmem:[%s668 + $0x38] sm:$0xff]
      %v677 = vld [vmem:[%s668 + $0x40] sm:$0xff]
      %v678 = vld [vmem:[%s668 + $0x48] sm:$0x7]
      %v680 = vsel %vm268, %v667, 0
      %682 = vmatpush.msra.mxu0 0.0
      %683 = vmatpush.msra.mxu0 0.0
      %684 = vmatpush.msra.mxu0 0.0
      %685 = vmatpush.msra.mxu0 0.0
      %686 = vmatpush.msra.mxu0 0.0
      %687 = vmatpush.msra.mxu0 0.0
      %688 = vmatpush.msra.mxu0 %v680
      %689 = vmatpush.msra.mxu0 %v666
      %690 = vmatpush.msra.mxu0 %v665
      %691 = vmatpush.msra.mxu0 %v664
      %692 = vmatpush.msra.mxu0 %v663
      %693 = vmatpush.msra.mxu0 %v662
      %694 = vmatpush.msra.mxu0 %v661
      %695 = vmatpush.msra.mxu0 %v660
      %696 = vmatpush.msra.mxu0 %v659
      %697 = vmatpush.msra.mxu0 %v658
      %698 = vmatmul.f32.gmra.mxu0 %v266
      %v699 = vpop.f32.mrf.mxu0
      %v700 = vadd.f32 0.0, %v699
      %701 = vdwg.mxu0
      %v703 = vsel %vm268, %v678, 0
      %705 = vmatpush.msra.mxu0 0.0
      %706 = vmatpush.msra.mxu0 0.0
      %707 = vmatpush.msra.mxu0 0.0
      %708 = vmatpush.msra.mxu0 0.0
      %709 = vmatpush.msra.mxu0 0.0
      %710 = vmatpush.msra.mxu0 0.0
      %711 = vmatpush.msra.mxu0 %v703
      %712 = vmatpush.msra.mxu0 %v677
      %713 = vmatpush.msra.mxu0 %v676
      %714 = vmatpush.msra.mxu0 %v675
      %715 = vmatpush.msra.mxu0 %v674
      %716 = vmatpush.msra.mxu0 %v673
      %717 = vmatpush.msra.mxu0 %v672
      %718 = vmatpush.msra.mxu0 %v671
      %719 = vmatpush.msra.mxu0 %v670
      %720 = vmatpush.msra.mxu0 %v669
      %721 = vmatmul.f32.gmra.mxu0 %v266
      %v722 = vpop.f32.mrf.mxu0
      %v723 = vadd.f32 0.0, %v722
      %724 = vdwg.mxu0
      %v725 = vmax.f32 %v700, %v723
      %v727 = vsel %vm316, %v725, 0
      %729 = vmatpush.msra.mxu0 0.0
      %730 = vmatpush.msra.mxu0 0.0
      %731 = vmatpush.msra.mxu0 0.0
      %732 = vmatpush.msra.mxu0 0.0
      %733 = vmatpush.msra.mxu0 0.0
      %734 = vmatpush.msra.mxu0 0.0
      %735 = vmatpush.msra.mxu0 0.0
      %736 = vmatpush.msra.mxu0 0.0
      %737 = vmatpush.msra.mxu0 %v322
      %738 = vmatpush.msra.mxu0 %v233
      %739 = vmatpush.msra.mxu0 %v232
      %740 = vmatpush.msra.mxu0 %v231
      %741 = vmatpush.msra.mxu0 %v230
      %742 = vmatpush.msra.mxu0 %v229
      %743 = vmatpush.msra.mxu0 %v228
      %744 = vmatpush.msra.mxu0 %v227
      %745 = vmatmul.f32.gmra.mxu0 %v727
      %v746 = vpop.f32.mrf.mxu0
      %v747 = vadd.f32 0.0, %v746
      %748 = vdwg.mxu0
      %749 = vmatpush.msra.mxu0 0.0
      %750 = vmatpush.msra.mxu0 0.0
      %751 = vmatpush.msra.mxu0 0.0
      %752 = vmatpush.msra.mxu0 0.0
      %753 = vmatpush.msra.mxu0 0.0
      %754 = vmatpush.msra.mxu0 0.0
      %755 = vmatpush.msra.mxu0 0.0
      %756 = vmatpush.msra.mxu0 0.0
      %757 = vmatpush.msra.mxu0 %v345
      %758 = vmatpush.msra.mxu0 %v241
      %759 = vmatpush.msra.mxu0 %v240
      %760 = vmatpush.msra.mxu0 %v239
      %761 = vmatpush.msra.mxu0 %v238
      %762 = vmatpush.msra.mxu0 %v237
      %763 = vmatpush.msra.mxu0 %v236
      %764 = vmatpush.msra.mxu0 %v235
      %765 = vmatmul.f32.gmra.mxu0 %v727
      %v766 = vpop.f32.mrf.mxu0
      %v767 = vadd.f32 0.0, %v766
      %768 = vdwg.mxu0
      %v769 = vmax.f32 %v747, %v767
      %v770 = vadd.f32 %v769, %v371
      %v771 = vmax.f32 %v770, 0.0
      %v773 = vrot.slane %v771, 1
      %v774 = vrot.slane %v771, 2
      %v775 = vrot.slane %v771, 3
      %v776 = vrot.slane %v771, 4
      %v777 = vrot.slane %v771, 5
      %783 = vst.msk [vmem:[%s224 + $0x3] sm:$0x1] %vm386, %v771
      %784 = vst.msk [vmem:[%s224 + $0x23] sm:$0x1] %vm386, %v773
      %785 = vst.msk [vmem:[%s224 + $0x43] sm:$0x1] %vm386, %v774
      %786 = vst.msk [vmem:[%s224 + $0x63] sm:$0x1] %vm386, %v775
      %787 = vst.msk [vmem:[%s224 + $0x83] sm:$0x1] %vm386, %v776
      %788 = vst.msk [vmem:[%s224 + $0xa3] sm:$0x1] %vm386, %v777
      %s789 = scalar_lea.vmem %s219, 640
      %v790 = vld [vmem:[%s789] sm:$0xff]
      %v791 = vld [vmem:[%s789 + $0x8] sm:$0xff]
      %v792 = vld [vmem:[%s789 + $0x10] sm:$0xff]
      %v793 = vld [vmem:[%s789 + $0x18] sm:$0xff]
      %v794 = vld [vmem:[%s789 + $0x20] sm:$0xff]
      %v795 = vld [vmem:[%s789 + $0x28] sm:$0xff]
      %v796 = vld [vmem:[%s789 + $0x30] sm:$0xff]
      %v797 = vld [vmem:[%s789 + $0x38] sm:$0xff]
      %v798 = vld [vmem:[%s789 + $0x40] sm:$0xff]
      %v799 = vld [vmem:[%s789 + $0x48] sm:$0x7]
      %s800 = scalar_lea.vmem %s219, 720
      %v801 = vld [vmem:[%s800] sm:$0xff]
      %v802 = vld [vmem:[%s800 + $0x8] sm:$0xff]
      %v803 = vld [vmem:[%s800 + $0x10] sm:$0xff]
      %v804 = vld [vmem:[%s800 + $0x18] sm:$0xff]
      %v805 = vld [vmem:[%s800 + $0x20] sm:$0xff]
      %v806 = vld [vmem:[%s800 + $0x28] sm:$0xff]
      %v807 = vld [vmem:[%s800 + $0x30] sm:$0xff]
      %v808 = vld [vmem:[%s800 + $0x38] sm:$0xff]
      %v809 = vld [vmem:[%s800 + $0x40] sm:$0xff]
      %v810 = vld [vmem:[%s800 + $0x48] sm:$0x7]
      %v812 = vsel %vm268, %v799, 0
      %814 = vmatpush.msra.mxu0 0.0
      %815 = vmatpush.msra.mxu0 0.0
      %816 = vmatpush.msra.mxu0 0.0
      %817 = vmatpush.msra.mxu0 0.0
      %818 = vmatpush.msra.mxu0 0.0
      %819 = vmatpush.msra.mxu0 0.0
      %820 = vmatpush.msra.mxu0 %v812
      %821 = vmatpush.msra.mxu0 %v798
      %822 = vmatpush.msra.mxu0 %v797
      %823 = vmatpush.msra.mxu0 %v796
      %824 = vmatpush.msra.mxu0 %v795
      %825 = vmatpush.msra.mxu0 %v794
      %826 = vmatpush.msra.mxu0 %v793
      %827 = vmatpush.msra.mxu0 %v792
      %828 = vmatpush.msra.mxu0 %v791
      %829 = vmatpush.msra.mxu0 %v790
      %830 = vmatmul.f32.gmra.mxu0 %v266
      %v831 = vpop.f32.mrf.mxu0
      %v832 = vadd.f32 0.0, %v831
      %833 = vdwg.mxu0
      %v835 = vsel %vm268, %v810, 0
      %837 = vmatpush.msra.mxu0 0.0
      %838 = vmatpush.msra.mxu0 0.0
      %839 = vmatpush.msra.mxu0 0.0
      %840 = vmatpush.msra.mxu0 0.0
      %841 = vmatpush.msra.mxu0 0.0
      %842 = vmatpush.msra.mxu0 0.0
      %843 = vmatpush.msra.mxu0 %v835
      %844 = vmatpush.msra.mxu0 %v809
      %845 = vmatpush.msra.mxu0 %v808
      %846 = vmatpush.msra.mxu0 %v807
      %847 = vmatpush.msra.mxu0 %v806
      %848 = vmatpush.msra.mxu0 %v805
      %849 = vmatpush.msra.mxu0 %v804
      %850 = vmatpush.msra.mxu0 %v803
      %851 = vmatpush.msra.mxu0 %v802
      %852 = vmatpush.msra.mxu0 %v801
      %853 = vmatmul.f32.gmra.mxu0 %v266
      %v854 = vpop.f32.mrf.mxu0
      %v855 = vadd.f32 0.0, %v854
      %856 = vdwg.mxu0
      %v857 = vmax.f32 %v832, %v855
      %v859 = vsel %vm316, %v857, 0
      %861 = vmatpush.msra.mxu0 0.0
      %862 = vmatpush.msra.mxu0 0.0
      %863 = vmatpush.msra.mxu0 0.0
      %864 = vmatpush.msra.mxu0 0.0
      %865 = vmatpush.msra.mxu0 0.0
      %866 = vmatpush.msra.mxu0 0.0
      %867 = vmatpush.msra.mxu0 0.0
      %868 = vmatpush.msra.mxu0 0.0
      %869 = vmatpush.msra.mxu0 %v322
      %870 = vmatpush.msra.mxu0 %v233
      %871 = vmatpush.msra.mxu0 %v232
      %872 = vmatpush.msra.mxu0 %v231
      %873 = vmatpush.msra.mxu0 %v230
      %874 = vmatpush.msra.mxu0 %v229
      %875 = vmatpush.msra.mxu0 %v228
      %876 = vmatpush.msra.mxu0 %v227
      %877 = vmatmul.f32.gmra.mxu0 %v859
      %v878 = vpop.f32.mrf.mxu0
      %v879 = vadd.f32 0.0, %v878
      %880 = vdwg.mxu0
      %881 = vmatpush.msra.mxu0 0.0
      %882 = vmatpush.msra.mxu0 0.0
      %883 = vmatpush.msra.mxu0 0.0
      %884 = vmatpush.msra.mxu0 0.0
      %885 = vmatpush.msra.mxu0 0.0
      %886 = vmatpush.msra.mxu0 0.0
      %887 = vmatpush.msra.mxu0 0.0
      %888 = vmatpush.msra.mxu0 0.0
      %889 = vmatpush.msra.mxu0 %v345
      %890 = vmatpush.msra.mxu0 %v241
      %891 = vmatpush.msra.mxu0 %v240
      %892 = vmatpush.msra.mxu0 %v239
      %893 = vmatpush.msra.mxu0 %v238
      %894 = vmatpush.msra.mxu0 %v237
      %895 = vmatpush.msra.mxu0 %v236
      %896 = vmatpush.msra.mxu0 %v235
      %897 = vmatmul.f32.gmra.mxu0 %v859
      %v898 = vpop.f32.mrf.mxu0
      %v899 = vadd.f32 0.0, %v898
      %900 = vdwg.mxu0
      %v901 = vmax.f32 %v879, %v899
      %v902 = vadd.f32 %v901, %v371
      %v903 = vmax.f32 %v902, 0.0
      %v905 = vrot.slane %v903, 1
      %v906 = vrot.slane %v903, 2
      %v907 = vrot.slane %v903, 3
      %v908 = vrot.slane %v903, 4
      %v909 = vrot.slane %v903, 5
      %915 = vst.msk [vmem:[%s224 + $0x4] sm:$0x1] %vm386, %v903
      %916 = vst.msk [vmem:[%s224 + $0x24] sm:$0x1] %vm386, %v905
      %917 = vst.msk [vmem:[%s224 + $0x44] sm:$0x1] %vm386, %v906
      %918 = vst.msk [vmem:[%s224 + $0x64] sm:$0x1] %vm386, %v907
      %919 = vst.msk [vmem:[%s224 + $0x84] sm:$0x1] %vm386, %v908
      %920 = vst.msk [vmem:[%s224 + $0xa4] sm:$0x1] %vm386, %v909
      %s921 = scalar_lea.vmem %s219, 800
      %v922 = vld [vmem:[%s921] sm:$0xff]
      %v923 = vld [vmem:[%s921 + $0x8] sm:$0xff]
      %v924 = vld [vmem:[%s921 + $0x10] sm:$0xff]
      %v925 = vld [vmem:[%s921 + $0x18] sm:$0xff]
      %v926 = vld [vmem:[%s921 + $0x20] sm:$0xff]
      %v927 = vld [vmem:[%s921 + $0x28] sm:$0xff]
      %v928 = vld [vmem:[%s921 + $0x30] sm:$0xff]
      %v929 = vld [vmem:[%s921 + $0x38] sm:$0xff]
      %v930 = vld [vmem:[%s921 + $0x40] sm:$0xff]
      %v931 = vld [vmem:[%s921 + $0x48] sm:$0x7]
      %s932 = scalar_lea.vmem %s219, 880
      %v933 = vld [vmem:[%s932] sm:$0xff]
      %v934 = vld [vmem:[%s932 + $0x8] sm:$0xff]
      %v935 = vld [vmem:[%s932 + $0x10] sm:$0xff]
      %v936 = vld [vmem:[%s932 + $0x18] sm:$0xff]
      %v937 = vld [vmem:[%s932 + $0x20] sm:$0xff]
      %v938 = vld [vmem:[%s932 + $0x28] sm:$0xff]
      %v939 = vld [vmem:[%s932 + $0x30] sm:$0xff]
      %v940 = vld [vmem:[%s932 + $0x38] sm:$0xff]
      %v941 = vld [vmem:[%s932 + $0x40] sm:$0xff]
      %v942 = vld [vmem:[%s932 + $0x48] sm:$0x7]
      %v944 = vsel %vm268, %v931, 0
      %946 = vmatpush.msra.mxu0 0.0
      %947 = vmatpush.msra.mxu0 0.0
      %948 = vmatpush.msra.mxu0 0.0
      %949 = vmatpush.msra.mxu0 0.0
      %950 = vmatpush.msra.mxu0 0.0
      %951 = vmatpush.msra.mxu0 0.0
      %952 = vmatpush.msra.mxu0 %v944
      %953 = vmatpush.msra.mxu0 %v930
      %954 = vmatpush.msra.mxu0 %v929
      %955 = vmatpush.msra.mxu0 %v928
      %956 = vmatpush.msra.mxu0 %v927
      %957 = vmatpush.msra.mxu0 %v926
      %958 = vmatpush.msra.mxu0 %v925
      %959 = vmatpush.msra.mxu0 %v924
      %960 = vmatpush.msra.mxu0 %v923
      %961 = vmatpush.msra.mxu0 %v922
      %962 = vmatmul.f32.gmra.mxu0 %v266
      %v963 = vpop.f32.mrf.mxu0
      %v964 = vadd.f32 0.0, %v963
      %965 = vdwg.mxu0
      %v967 = vsel %vm268, %v942, 0
      %969 = vmatpush.msra.mxu0 0.0
      %970 = vmatpush.msra.mxu0 0.0
      %971 = vmatpush.msra.mxu0 0.0
      %972 = vmatpush.msra.mxu0 0.0
      %973 = vmatpush.msra.mxu0 0.0
      %974 = vmatpush.msra.mxu0 0.0
      %975 = vmatpush.msra.mxu0 %v967
      %976 = vmatpush.msra.mxu0 %v941
      %977 = vmatpush.msra.mxu0 %v940
      %978 = vmatpush.msra.mxu0 %v939
      %979 = vmatpush.msra.mxu0 %v938
      %980 = vmatpush.msra.mxu0 %v937
      %981 = vmatpush.msra.mxu0 %v936
      %982 = vmatpush.msra.mxu0 %v935
      %983 = vmatpush.msra.mxu0 %v934
      %984 = vmatpush.msra.mxu0 %v933
      %985 = vmatmul.f32.gmra.mxu0 %v266
      %v986 = vpop.f32.mrf.mxu0
      %v987 = vadd.f32 0.0, %v986
      %988 = vdwg.mxu0
      %v989 = vmax.f32 %v964, %v987
      %v991 = vsel %vm316, %v989, 0
      %993 = vmatpush.msra.mxu0 0.0
      %994 = vmatpush.msra.mxu0 0.0
      %995 = vmatpush.msra.mxu0 0.0
      %996 = vmatpush.msra.mxu0 0.0
      %997 = vmatpush.msra.mxu0 0.0
      %998 = vmatpush.msra.mxu0 0.0
      %999 = vmatpush.msra.mxu0 0.0
      %1000 = vmatpush.msra.mxu0 0.0
      %1001 = vmatpush.msra.mxu0 %v322
      %1002 = vmatpush.msra.mxu0 %v233
      %1003 = vmatpush.msra.mxu0 %v232
      %1004 = vmatpush.msra.mxu0 %v231
      %1005 = vmatpush.msra.mxu0 %v230
      %1006 = vmatpush.msra.mxu0 %v229
      %1007 = vmatpush.msra.mxu0 %v228
      %1008 = vmatpush.msra.mxu0 %v227
      %1009 = vmatmul.f32.gmra.mxu0 %v991
      %v1010 = vpop.f32.mrf.mxu0
      %v1011 = vadd.f32 0.0, %v1010
      %1012 = vdwg.mxu0
      %1013 = vmatpush.msra.mxu0 0.0
      %1014 = vmatpush.msra.mxu0 0.0
      %1015 = vmatpush.msra.mxu0 0.0
      %1016 = vmatpush.msra.mxu0 0.0
      %1017 = vmatpush.msra.mxu0 0.0
      %1018 = vmatpush.msra.mxu0 0.0
      %1019 = vmatpush.msra.mxu0 0.0
      %1020 = vmatpush.msra.mxu0 0.0
      %1021 = vmatpush.msra.mxu0 %v345
      %1022 = vmatpush.msra.mxu0 %v241
      %1023 = vmatpush.msra.mxu0 %v240
      %1024 = vmatpush.msra.mxu0 %v239
      %1025 = vmatpush.msra.mxu0 %v238
      %1026 = vmatpush.msra.mxu0 %v237
      %1027 = vmatpush.msra.mxu0 %v236
      %1028 = vmatpush.msra.mxu0 %v235
      %1029 = vmatmul.f32.gmra.mxu0 %v991
      %v1030 = vpop.f32.mrf.mxu0
      %v1031 = vadd.f32 0.0, %v1030
      %1032 = vdwg.mxu0
      %v1033 = vmax.f32 %v1011, %v1031
      %v1034 = vadd.f32 %v1033, %v371
      %v1035 = vmax.f32 %v1034, 0.0
      %v1037 = vrot.slane %v1035, 1
      %v1038 = vrot.slane %v1035, 2
      %v1039 = vrot.slane %v1035, 3
      %v1040 = vrot.slane %v1035, 4
      %v1041 = vrot.slane %v1035, 5
      %1047 = vst.msk [vmem:[%s224 + $0x5] sm:$0x1] %vm386, %v1035
      %1048 = vst.msk [vmem:[%s224 + $0x25] sm:$0x1] %vm386, %v1037
      %1049 = vst.msk [vmem:[%s224 + $0x45] sm:$0x1] %vm386, %v1038
      %1050 = vst.msk [vmem:[%s224 + $0x65] sm:$0x1] %vm386, %v1039
      %1051 = vst.msk [vmem:[%s224 + $0x85] sm:$0x1] %vm386, %v1040
      %1052 = vst.msk [vmem:[%s224 + $0xa5] sm:$0x1] %vm386, %v1041
      %s1053 = scalar_lea.vmem %s219, 960
      %v1054 = vld [vmem:[%s1053] sm:$0xff]
      %v1055 = vld [vmem:[%s1053 + $0x8] sm:$0xff]
      %v1056 = vld [vmem:[%s1053 + $0x10] sm:$0xff]
      %v1057 = vld [vmem:[%s1053 + $0x18] sm:$0xff]
      %v1058 = vld [vmem:[%s1053 + $0x20] sm:$0xff]
      %v1059 = vld [vmem:[%s1053 + $0x28] sm:$0xff]
      %v1060 = vld [vmem:[%s1053 + $0x30] sm:$0xff]
      %v1061 = vld [vmem:[%s1053 + $0x38] sm:$0xff]
      %v1062 = vld [vmem:[%s1053 + $0x40] sm:$0xff]
      %v1063 = vld [vmem:[%s1053 + $0x48] sm:$0x7]
      %s1064 = scalar_lea.vmem %s219, 1040
      %v1065 = vld [vmem:[%s1064] sm:$0xff]
      %v1066 = vld [vmem:[%s1064 + $0x8] sm:$0xff]
      %v1067 = vld [vmem:[%s1064 + $0x10] sm:$0xff]
      %v1068 = vld [vmem:[%s1064 + $0x18] sm:$0xff]
      %v1069 = vld [vmem:[%s1064 + $0x20] sm:$0xff]
      %v1070 = vld [vmem:[%s1064 + $0x28] sm:$0xff]
      %v1071 = vld [vmem:[%s1064 + $0x30] sm:$0xff]
      %v1072 = vld [vmem:[%s1064 + $0x38] sm:$0xff]
      %v1073 = vld [vmem:[%s1064 + $0x40] sm:$0xff]
      %v1074 = vld [vmem:[%s1064 + $0x48] sm:$0x7]
      %v1076 = vsel %vm268, %v1063, 0
      %1078 = vmatpush.msra.mxu0 0.0
      %1079 = vmatpush.msra.mxu0 0.0
      %1080 = vmatpush.msra.mxu0 0.0
      %1081 = vmatpush.msra.mxu0 0.0
      %1082 = vmatpush.msra.mxu0 0.0
      %1083 = vmatpush.msra.mxu0 0.0
      %1084 = vmatpush.msra.mxu0 %v1076
      %1085 = vmatpush.msra.mxu0 %v1062
      %1086 = vmatpush.msra.mxu0 %v1061
      %1087 = vmatpush.msra.mxu0 %v1060
      %1088 = vmatpush.msra.mxu0 %v1059
      %1089 = vmatpush.msra.mxu0 %v1058
      %1090 = vmatpush.msra.mxu0 %v1057
      %1091 = vmatpush.msra.mxu0 %v1056
      %1092 = vmatpush.msra.mxu0 %v1055
      %1093 = vmatpush.msra.mxu0 %v1054
      %1094 = vmatmul.f32.gmra.mxu0 %v266
      %v1095 = vpop.f32.mrf.mxu0
      %v1096 = vadd.f32 0.0, %v1095
      %1097 = vdwg.mxu0
      %v1099 = vsel %vm268, %v1074, 0
      %1101 = vmatpush.msra.mxu0 0.0
      %1102 = vmatpush.msra.mxu0 0.0
      %1103 = vmatpush.msra.mxu0 0.0
      %1104 = vmatpush.msra.mxu0 0.0
      %1105 = vmatpush.msra.mxu0 0.0
      %1106 = vmatpush.msra.mxu0 0.0
      %1107 = vmatpush.msra.mxu0 %v1099
      %1108 = vmatpush.msra.mxu0 %v1073
      %1109 = vmatpush.msra.mxu0 %v1072
      %1110 = vmatpush.msra.mxu0 %v1071
      %1111 = vmatpush.msra.mxu0 %v1070
      %1112 = vmatpush.msra.mxu0 %v1069
      %1113 = vmatpush.msra.mxu0 %v1068
      %1114 = vmatpush.msra.mxu0 %v1067
      %1115 = vmatpush.msra.mxu0 %v1066
      %1116 = vmatpush.msra.mxu0 %v1065
      %1117 = vmatmul.f32.gmra.mxu0 %v266
      %v1118 = vpop.f32.mrf.mxu0
      %v1119 = vadd.f32 0.0, %v1118
      %1120 = vdwg.mxu0
      %v1121 = vmax.f32 %v1096, %v1119
      %v1123 = vsel %vm316, %v1121, 0
      %1125 = vmatpush.msra.mxu0 0.0
      %1126 = vmatpush.msra.mxu0 0.0
      %1127 = vmatpush.msra.mxu0 0.0
      %1128 = vmatpush.msra.mxu0 0.0
      %1129 = vmatpush.msra.mxu0 0.0
      %1130 = vmatpush.msra.mxu0 0.0
      %1131 = vmatpush.msra.mxu0 0.0
      %1132 = vmatpush.msra.mxu0 0.0
      %1133 = vmatpush.msra.mxu0 %v322
      %1134 = vmatpush.msra.mxu0 %v233
      %1135 = vmatpush.msra.mxu0 %v232
      %1136 = vmatpush.msra.mxu0 %v231
      %1137 = vmatpush.msra.mxu0 %v230
      %1138 = vmatpush.msra.mxu0 %v229
      %1139 = vmatpush.msra.mxu0 %v228
      %1140 = vmatpush.msra.mxu0 %v227
      %1141 = vmatmul.f32.gmra.mxu0 %v1123
      %v1142 = vpop.f32.mrf.mxu0
      %v1143 = vadd.f32 0.0, %v1142
      %1144 = vdwg.mxu0
      %1145 = vmatpush.msra.mxu0 0.0
      %1146 = vmatpush.msra.mxu0 0.0
      %1147 = vmatpush.msra.mxu0 0.0
      %1148 = vmatpush.msra.mxu0 0.0
      %1149 = vmatpush.msra.mxu0 0.0
      %1150 = vmatpush.msra.mxu0 0.0
      %1151 = vmatpush.msra.mxu0 0.0
      %1152 = vmatpush.msra.mxu0 0.0
      %1153 = vmatpush.msra.mxu0 %v345
      %1154 = vmatpush.msra.mxu0 %v241
      %1155 = vmatpush.msra.mxu0 %v240
      %1156 = vmatpush.msra.mxu0 %v239
      %1157 = vmatpush.msra.mxu0 %v238
      %1158 = vmatpush.msra.mxu0 %v237
      %1159 = vmatpush.msra.mxu0 %v236
      %1160 = vmatpush.msra.mxu0 %v235
      %1161 = vmatmul.f32.gmra.mxu0 %v1123
      %v1162 = vpop.f32.mrf.mxu0
      %v1163 = vadd.f32 0.0, %v1162
      %1164 = vdwg.mxu0
      %v1165 = vmax.f32 %v1143, %v1163
      %v1166 = vadd.f32 %v1165, %v371
      %v1167 = vmax.f32 %v1166, 0.0
      %v1169 = vrot.slane %v1167, 1
      %v1170 = vrot.slane %v1167, 2
      %v1171 = vrot.slane %v1167, 3
      %v1172 = vrot.slane %v1167, 4
      %v1173 = vrot.slane %v1167, 5
      %1179 = vst.msk [vmem:[%s224 + $0x6] sm:$0x1] %vm386, %v1167
      %1180 = vst.msk [vmem:[%s224 + $0x26] sm:$0x1] %vm386, %v1169
      %1181 = vst.msk [vmem:[%s224 + $0x46] sm:$0x1] %vm386, %v1170
      %1182 = vst.msk [vmem:[%s224 + $0x66] sm:$0x1] %vm386, %v1171
      %1183 = vst.msk [vmem:[%s224 + $0x86] sm:$0x1] %vm386, %v1172
      %1184 = vst.msk [vmem:[%s224 + $0xa6] sm:$0x1] %vm386, %v1173
      %s1185 = scalar_lea.vmem %s219, 1120
      %v1186 = vld [vmem:[%s1185] sm:$0xff]
      %v1187 = vld [vmem:[%s1185 + $0x8] sm:$0xff]
      %v1188 = vld [vmem:[%s1185 + $0x10] sm:$0xff]
      %v1189 = vld [vmem:[%s1185 + $0x18] sm:$0xff]
      %v1190 = vld [vmem:[%s1185 + $0x20] sm:$0xff]
      %v1191 = vld [vmem:[%s1185 + $0x28] sm:$0xff]
      %v1192 = vld [vmem:[%s1185 + $0x30] sm:$0xff]
      %v1193 = vld [vmem:[%s1185 + $0x38] sm:$0xff]
      %v1194 = vld [vmem:[%s1185 + $0x40] sm:$0xff]
      %v1195 = vld [vmem:[%s1185 + $0x48] sm:$0x7]
      %s1196 = scalar_lea.vmem %s219, 1200
      %v1197 = vld [vmem:[%s1196] sm:$0xff]
      %v1198 = vld [vmem:[%s1196 + $0x8] sm:$0xff]
      %v1199 = vld [vmem:[%s1196 + $0x10] sm:$0xff]
      %v1200 = vld [vmem:[%s1196 + $0x18] sm:$0xff]
      %v1201 = vld [vmem:[%s1196 + $0x20] sm:$0xff]
      %v1202 = vld [vmem:[%s1196 + $0x28] sm:$0xff]
      %v1203 = vld [vmem:[%s1196 + $0x30] sm:$0xff]
      %v1204 = vld [vmem:[%s1196 + $0x38] sm:$0xff]
      %v1205 = vld [vmem:[%s1196 + $0x40] sm:$0xff]
      %v1206 = vld [vmem:[%s1196 + $0x48] sm:$0x7]
      %v1208 = vsel %vm268, %v1195, 0
      %1210 = vmatpush.msra.mxu0 0.0
      %1211 = vmatpush.msra.mxu0 0.0
      %1212 = vmatpush.msra.mxu0 0.0
      %1213 = vmatpush.msra.mxu0 0.0
      %1214 = vmatpush.msra.mxu0 0.0
      %1215 = vmatpush.msra.mxu0 0.0
      %1216 = vmatpush.msra.mxu0 %v1208
      %1217 = vmatpush.msra.mxu0 %v1194
      %1218 = vmatpush.msra.mxu0 %v1193
      %1219 = vmatpush.msra.mxu0 %v1192
      %1220 = vmatpush.msra.mxu0 %v1191
      %1221 = vmatpush.msra.mxu0 %v1190
      %1222 = vmatpush.msra.mxu0 %v1189
      %1223 = vmatpush.msra.mxu0 %v1188
      %1224 = vmatpush.msra.mxu0 %v1187
      %1225 = vmatpush.msra.mxu0 %v1186
      %1226 = vmatmul.f32.gmra.mxu0 %v266
      %v1227 = vpop.f32.mrf.mxu0
      %v1228 = vadd.f32 0.0, %v1227
      %1229 = vdwg.mxu0
      %v1231 = vsel %vm268, %v1206, 0
      %1233 = vmatpush.msra.mxu0 0.0
      %1234 = vmatpush.msra.mxu0 0.0
      %1235 = vmatpush.msra.mxu0 0.0
      %1236 = vmatpush.msra.mxu0 0.0
      %1237 = vmatpush.msra.mxu0 0.0
      %1238 = vmatpush.msra.mxu0 0.0
      %1239 = vmatpush.msra.mxu0 %v1231
      %1240 = vmatpush.msra.mxu0 %v1205
      %1241 = vmatpush.msra.mxu0 %v1204
      %1242 = vmatpush.msra.mxu0 %v1203
      %1243 = vmatpush.msra.mxu0 %v1202
      %1244 = vmatpush.msra.mxu0 %v1201
      %1245 = vmatpush.msra.mxu0 %v1200
      %1246 = vmatpush.msra.mxu0 %v1199
      %1247 = vmatpush.msra.mxu0 %v1198
      %1248 = vmatpush.msra.mxu0 %v1197
      %1249 = vmatmul.f32.gmra.mxu0 %v266
      %v1250 = vpop.f32.mrf.mxu0
      %v1251 = vadd.f32 0.0, %v1250
      %1252 = vdwg.mxu0
      %v1253 = vmax.f32 %v1228, %v1251
      %v1255 = vsel %vm316, %v1253, 0
      %1257 = vmatpush.msra.mxu0 0.0
      %1258 = vmatpush.msra.mxu0 0.0
      %1259 = vmatpush.msra.mxu0 0.0
      %1260 = vmatpush.msra.mxu0 0.0
      %1261 = vmatpush.msra.mxu0 0.0
      %1262 = vmatpush.msra.mxu0 0.0
      %1263 = vmatpush.msra.mxu0 0.0
      %1264 = vmatpush.msra.mxu0 0.0
      %1265 = vmatpush.msra.mxu0 %v322
      %1266 = vmatpush.msra.mxu0 %v233
      %1267 = vmatpush.msra.mxu0 %v232
      %1268 = vmatpush.msra.mxu0 %v231
      %1269 = vmatpush.msra.mxu0 %v230
      %1270 = vmatpush.msra.mxu0 %v229
      %1271 = vmatpush.msra.mxu0 %v228
      %1272 = vmatpush.msra.mxu0 %v227
      %1273 = vmatmul.f32.gmra.mxu0 %v1255
      %v1274 = vpop.f32.mrf.mxu0
      %v1275 = vadd.f32 0.0, %v1274
      %1276 = vdwg.mxu0
      %1277 = vmatpush.msra.mxu0 0.0
      %1278 = vmatpush.msra.mxu0 0.0
      %1279 = vmatpush.msra.mxu0 0.0
      %1280 = vmatpush.msra.mxu0 0.0
      %1281 = vmatpush.msra.mxu0 0.0
      %1282 = vmatpush.msra.mxu0 0.0
      %1283 = vmatpush.msra.mxu0 0.0
      %1284 = vmatpush.msra.mxu0 0.0
      %1285 = vmatpush.msra.mxu0 %v345
      %1286 = vmatpush.msra.mxu0 %v241
      %1287 = vmatpush.msra.mxu0 %v240
      %1288 = vmatpush.msra.mxu0 %v239
      %1289 = vmatpush.msra.mxu0 %v238
      %1290 = vmatpush.msra.mxu0 %v237
      %1291 = vmatpush.msra.mxu0 %v236
      %1292 = vmatpush.msra.mxu0 %v235
      %1293 = vmatmul.f32.gmra.mxu0 %v1255
      %v1294 = vpop.f32.mrf.mxu0
      %v1295 = vadd.f32 0.0, %v1294
      %1296 = vdwg.mxu0
      %v1297 = vmax.f32 %v1275, %v1295
      %v1298 = vadd.f32 %v1297, %v371
      %v1299 = vmax.f32 %v1298, 0.0
      %v1301 = vrot.slane %v1299, 1
      %v1302 = vrot.slane %v1299, 2
      %v1303 = vrot.slane %v1299, 3
      %v1304 = vrot.slane %v1299, 4
      %v1305 = vrot.slane %v1299, 5
      %1311 = vst.msk [vmem:[%s224 + $0x7] sm:$0x1] %vm386, %v1299
      %1312 = vst.msk [vmem:[%s224 + $0x27] sm:$0x1] %vm386, %v1301
      %1313 = vst.msk [vmem:[%s224 + $0x47] sm:$0x1] %vm386, %v1302
      %1314 = vst.msk [vmem:[%s224 + $0x67] sm:$0x1] %vm386, %v1303
      %1315 = vst.msk [vmem:[%s224 + $0x87] sm:$0x1] %vm386, %v1304
      %1316 = vst.msk [vmem:[%s224 + $0xa7] sm:$0x1] %vm386, %v1305
      %s1317 = scalar_lea.vmem %s219, 1280
      %v1318 = vld [vmem:[%s1317] sm:$0xff]
      %v1319 = vld [vmem:[%s1317 + $0x8] sm:$0xff]
      %v1320 = vld [vmem:[%s1317 + $0x10] sm:$0xff]
      %v1321 = vld [vmem:[%s1317 + $0x18] sm:$0xff]
      %v1322 = vld [vmem:[%s1317 + $0x20] sm:$0xff]
      %v1323 = vld [vmem:[%s1317 + $0x28] sm:$0xff]
      %v1324 = vld [vmem:[%s1317 + $0x30] sm:$0xff]
      %v1325 = vld [vmem:[%s1317 + $0x38] sm:$0xff]
      %v1326 = vld [vmem:[%s1317 + $0x40] sm:$0xff]
      %v1327 = vld [vmem:[%s1317 + $0x48] sm:$0x7]
      %s1328 = scalar_lea.vmem %s219, 1360
      %v1329 = vld [vmem:[%s1328] sm:$0xff]
      %v1330 = vld [vmem:[%s1328 + $0x8] sm:$0xff]
      %v1331 = vld [vmem:[%s1328 + $0x10] sm:$0xff]
      %v1332 = vld [vmem:[%s1328 + $0x18] sm:$0xff]
      %v1333 = vld [vmem:[%s1328 + $0x20] sm:$0xff]
      %v1334 = vld [vmem:[%s1328 + $0x28] sm:$0xff]
      %v1335 = vld [vmem:[%s1328 + $0x30] sm:$0xff]
      %v1336 = vld [vmem:[%s1328 + $0x38] sm:$0xff]
      %v1337 = vld [vmem:[%s1328 + $0x40] sm:$0xff]
      %v1338 = vld [vmem:[%s1328 + $0x48] sm:$0x7]
      %v1340 = vsel %vm268, %v1327, 0
      %1342 = vmatpush.msra.mxu0 0.0
      %1343 = vmatpush.msra.mxu0 0.0
      %1344 = vmatpush.msra.mxu0 0.0
      %1345 = vmatpush.msra.mxu0 0.0
      %1346 = vmatpush.msra.mxu0 0.0
      %1347 = vmatpush.msra.mxu0 0.0
      %1348 = vmatpush.msra.mxu0 %v1340
      %1349 = vmatpush.msra.mxu0 %v1326
      %1350 = vmatpush.msra.mxu0 %v1325
      %1351 = vmatpush.msra.mxu0 %v1324
      %1352 = vmatpush.msra.mxu0 %v1323
      %1353 = vmatpush.msra.mxu0 %v1322
      %1354 = vmatpush.msra.mxu0 %v1321
      %1355 = vmatpush.msra.mxu0 %v1320
      %1356 = vmatpush.msra.mxu0 %v1319
      %1357 = vmatpush.msra.mxu0 %v1318
      %1358 = vmatmul.f32.gmra.mxu0 %v266
      %v1359 = vpop.f32.mrf.mxu0
      %v1360 = vadd.f32 0.0, %v1359
      %1361 = vdwg.mxu0
      %v1363 = vsel %vm268, %v1338, 0
      %1365 = vmatpush.msra.mxu0 0.0
      %1366 = vmatpush.msra.mxu0 0.0
      %1367 = vmatpush.msra.mxu0 0.0
      %1368 = vmatpush.msra.mxu0 0.0
      %1369 = vmatpush.msra.mxu0 0.0
      %1370 = vmatpush.msra.mxu0 0.0
      %1371 = vmatpush.msra.mxu0 %v1363
      %1372 = vmatpush.msra.mxu0 %v1337
      %1373 = vmatpush.msra.mxu0 %v1336
      %1374 = vmatpush.msra.mxu0 %v1335
      %1375 = vmatpush.msra.mxu0 %v1334
      %1376 = vmatpush.msra.mxu0 %v1333
      %1377 = vmatpush.msra.mxu0 %v1332
      %1378 = vmatpush.msra.mxu0 %v1331
      %1379 = vmatpush.msra.mxu0 %v1330
      %1380 = vmatpush.msra.mxu0 %v1329
      %1381 = vmatmul.f32.gmra.mxu0 %v266
      %v1382 = vpop.f32.mrf.mxu0
      %v1383 = vadd.f32 0.0, %v1382
      %1384 = vdwg.mxu0
      %v1385 = vmax.f32 %v1360, %v1383
      %v1387 = vsel %vm316, %v1385, 0
      %1389 = vmatpush.msra.mxu0 0.0
      %1390 = vmatpush.msra.mxu0 0.0
      %1391 = vmatpush.msra.mxu0 0.0
      %1392 = vmatpush.msra.mxu0 0.0
      %1393 = vmatpush.msra.mxu0 0.0
      %1394 = vmatpush.msra.mxu0 0.0
      %1395 = vmatpush.msra.mxu0 0.0
      %1396 = vmatpush.msra.mxu0 0.0
      %1397 = vmatpush.msra.mxu0 %v322
      %1398 = vmatpush.msra.mxu0 %v233
      %1399 = vmatpush.msra.mxu0 %v232
      %1400 = vmatpush.msra.mxu0 %v231
      %1401 = vmatpush.msra.mxu0 %v230
      %1402 = vmatpush.msra.mxu0 %v229
      %1403 = vmatpush.msra.mxu0 %v228
      %1404 = vmatpush.msra.mxu0 %v227
      %1405 = vmatmul.f32.gmra.mxu0 %v1387
      %v1406 = vpop.f32.mrf.mxu0
      %v1407 = vadd.f32 0.0, %v1406
      %1408 = vdwg.mxu0
      %1409 = vmatpush.msra.mxu0 0.0
      %1410 = vmatpush.msra.mxu0 0.0
      %1411 = vmatpush.msra.mxu0 0.0
      %1412 = vmatpush.msra.mxu0 0.0
      %1413 = vmatpush.msra.mxu0 0.0
      %1414 = vmatpush.msra.mxu0 0.0
      %1415 = vmatpush.msra.mxu0 0.0
      %1416 = vmatpush.msra.mxu0 0.0
      %1417 = vmatpush.msra.mxu0 %v345
      %1418 = vmatpush.msra.mxu0 %v241
      %1419 = vmatpush.msra.mxu0 %v240
      %1420 = vmatpush.msra.mxu0 %v239
      %1421 = vmatpush.msra.mxu0 %v238
      %1422 = vmatpush.msra.mxu0 %v237
      %1423 = vmatpush.msra.mxu0 %v236
      %1424 = vmatpush.msra.mxu0 %v235
      %1425 = vmatmul.f32.gmra.mxu0 %v1387
      %v1426 = vpop.f32.mrf.mxu0
      %v1427 = vadd.f32 0.0, %v1426
      %1428 = vdwg.mxu0
      %v1429 = vmax.f32 %v1407, %v1427
      %v1430 = vadd.f32 %v1429, %v371
      %v1431 = vmax.f32 %v1430, 0.0
      %v1433 = vrot.slane %v1431, 1
      %v1434 = vrot.slane %v1431, 2
      %v1435 = vrot.slane %v1431, 3
      %v1436 = vrot.slane %v1431, 4
      %v1437 = vrot.slane %v1431, 5
      %1443 = vst.msk [vmem:[%s224 + $0x8] sm:$0x1] %vm386, %v1431
      %1444 = vst.msk [vmem:[%s224 + $0x28] sm:$0x1] %vm386, %v1433
      %1445 = vst.msk [vmem:[%s224 + $0x48] sm:$0x1] %vm386, %v1434
      %1446 = vst.msk [vmem:[%s224 + $0x68] sm:$0x1] %vm386, %v1435
      %1447 = vst.msk [vmem:[%s224 + $0x88] sm:$0x1] %vm386, %v1436
      %1448 = vst.msk [vmem:[%s224 + $0xa8] sm:$0x1] %vm386, %v1437
      %s1449 = scalar_lea.vmem %s219, 1440
      %v1450 = vld [vmem:[%s1449] sm:$0xff]
      %v1451 = vld [vmem:[%s1449 + $0x8] sm:$0xff]
      %v1452 = vld [vmem:[%s1449 + $0x10] sm:$0xff]
      %v1453 = vld [vmem:[%s1449 + $0x18] sm:$0xff]
      %v1454 = vld [vmem:[%s1449 + $0x20] sm:$0xff]
      %v1455 = vld [vmem:[%s1449 + $0x28] sm:$0xff]
      %v1456 = vld [vmem:[%s1449 + $0x30] sm:$0xff]
      %v1457 = vld [vmem:[%s1449 + $0x38] sm:$0xff]
      %v1458 = vld [vmem:[%s1449 + $0x40] sm:$0xff]
      %v1459 = vld [vmem:[%s1449 + $0x48] sm:$0x7]
      %s1460 = scalar_lea.vmem %s219, 1520
      %v1461 = vld [vmem:[%s1460] sm:$0xff]
      %v1462 = vld [vmem:[%s1460 + $0x8] sm:$0xff]
      %v1463 = vld [vmem:[%s1460 + $0x10] sm:$0xff]
      %v1464 = vld [vmem:[%s1460 + $0x18] sm:$0xff]
      %v1465 = vld [vmem:[%s1460 + $0x20] sm:$0xff]
      %v1466 = vld [vmem:[%s1460 + $0x28] sm:$0xff]
      %v1467 = vld [vmem:[%s1460 + $0x30] sm:$0xff]
      %v1468 = vld [vmem:[%s1460 + $0x38] sm:$0xff]
      %v1469 = vld [vmem:[%s1460 + $0x40] sm:$0xff]
      %v1470 = vld [vmem:[%s1460 + $0x48] sm:$0x7]
      %v1472 = vsel %vm268, %v1459, 0
      %1474 = vmatpush.msra.mxu0 0.0
      %1475 = vmatpush.msra.mxu0 0.0
      %1476 = vmatpush.msra.mxu0 0.0
      %1477 = vmatpush.msra.mxu0 0.0
      %1478 = vmatpush.msra.mxu0 0.0
      %1479 = vmatpush.msra.mxu0 0.0
      %1480 = vmatpush.msra.mxu0 %v1472
      %1481 = vmatpush.msra.mxu0 %v1458
      %1482 = vmatpush.msra.mxu0 %v1457
      %1483 = vmatpush.msra.mxu0 %v1456
      %1484 = vmatpush.msra.mxu0 %v1455
      %1485 = vmatpush.msra.mxu0 %v1454
      %1486 = vmatpush.msra.mxu0 %v1453
      %1487 = vmatpush.msra.mxu0 %v1452
      %1488 = vmatpush.msra.mxu0 %v1451
      %1489 = vmatpush.msra.mxu0 %v1450
      %1490 = vmatmul.f32.gmra.mxu0 %v266
      %v1491 = vpop.f32.mrf.mxu0
      %v1492 = vadd.f32 0.0, %v1491
      %1493 = vdwg.mxu0
      %v1495 = vsel %vm268, %v1470, 0
      %1497 = vmatpush.msra.mxu0 0.0
      %1498 = vmatpush.msra.mxu0 0.0
      %1499 = vmatpush.msra.mxu0 0.0
      %1500 = vmatpush.msra.mxu0 0.0
      %1501 = vmatpush.msra.mxu0 0.0
      %1502 = vmatpush.msra.mxu0 0.0
      %1503 = vmatpush.msra.mxu0 %v1495
      %1504 = vmatpush.msra.mxu0 %v1469
      %1505 = vmatpush.msra.mxu0 %v1468
      %1506 = vmatpush.msra.mxu0 %v1467
      %1507 = vmatpush.msra.mxu0 %v1466
      %1508 = vmatpush.msra.mxu0 %v1465
      %1509 = vmatpush.msra.mxu0 %v1464
      %1510 = vmatpush.msra.mxu0 %v1463
      %1511 = vmatpush.msra.mxu0 %v1462
      %1512 = vmatpush.msra.mxu0 %v1461
      %1513 = vmatmul.f32.gmra.mxu0 %v266
      %v1514 = vpop.f32.mrf.mxu0
      %v1515 = vadd.f32 0.0, %v1514
      %1516 = vdwg.mxu0
      %v1517 = vmax.f32 %v1492, %v1515
      %v1519 = vsel %vm316, %v1517, 0
      %1521 = vmatpush.msra.mxu0 0.0
      %1522 = vmatpush.msra.mxu0 0.0
      %1523 = vmatpush.msra.mxu0 0.0
      %1524 = vmatpush.msra.mxu0 0.0
      %1525 = vmatpush.msra.mxu0 0.0
      %1526 = vmatpush.msra.mxu0 0.0
      %1527 = vmatpush.msra.mxu0 0.0
      %1528 = vmatpush.msra.mxu0 0.0
      %1529 = vmatpush.msra.mxu0 %v322
      %1530 = vmatpush.msra.mxu0 %v233
      %1531 = vmatpush.msra.mxu0 %v232
      %1532 = vmatpush.msra.mxu0 %v231
      %1533 = vmatpush.msra.mxu0 %v230
      %1534 = vmatpush.msra.mxu0 %v229
      %1535 = vmatpush.msra.mxu0 %v228
      %1536 = vmatpush.msra.mxu0 %v227
      %1537 = vmatmul.f32.gmra.mxu0 %v1519
      %v1538 = vpop.f32.mrf.mxu0
      %v1539 = vadd.f32 0.0, %v1538
      %1540 = vdwg.mxu0
      %1541 = vmatpush.msra.mxu0 0.0
      %1542 = vmatpush.msra.mxu0 0.0
      %1543 = vmatpush.msra.mxu0 0.0
      %1544 = vmatpush.msra.mxu0 0.0
      %1545 = vmatpush.msra.mxu0 0.0
      %1546 = vmatpush.msra.mxu0 0.0
      %1547 = vmatpush.msra.mxu0 0.0
      %1548 = vmatpush.msra.mxu0 0.0
      %1549 = vmatpush.msra.mxu0 %v345
      %1550 = vmatpush.msra.mxu0 %v241
      %1551 = vmatpush.msra.mxu0 %v240
      %1552 = vmatpush.msra.mxu0 %v239
      %1553 = vmatpush.msra.mxu0 %v238
      %1554 = vmatpush.msra.mxu0 %v237
      %1555 = vmatpush.msra.mxu0 %v236
      %1556 = vmatpush.msra.mxu0 %v235
      %1557 = vmatmul.f32.gmra.mxu0 %v1519
      %v1558 = vpop.f32.mrf.mxu0
      %v1559 = vadd.f32 0.0, %v1558
      %1560 = vdwg.mxu0
      %v1561 = vmax.f32 %v1539, %v1559
      %v1562 = vadd.f32 %v1561, %v371
      %v1563 = vmax.f32 %v1562, 0.0
      %v1565 = vrot.slane %v1563, 1
      %v1566 = vrot.slane %v1563, 2
      %v1567 = vrot.slane %v1563, 3
      %v1568 = vrot.slane %v1563, 4
      %v1569 = vrot.slane %v1563, 5
      %1575 = vst.msk [vmem:[%s224 + $0x9] sm:$0x1] %vm386, %v1563
      %1576 = vst.msk [vmem:[%s224 + $0x29] sm:$0x1] %vm386, %v1565
      %1577 = vst.msk [vmem:[%s224 + $0x49] sm:$0x1] %vm386, %v1566
      %1578 = vst.msk [vmem:[%s224 + $0x69] sm:$0x1] %vm386, %v1567
      %1579 = vst.msk [vmem:[%s224 + $0x89] sm:$0x1] %vm386, %v1568
      %1580 = vst.msk [vmem:[%s224 + $0xa9] sm:$0x1] %vm386, %v1569
      %s1581 = scalar_lea.vmem %s219, 1600
      %v1582 = vld [vmem:[%s1581] sm:$0xff]
      %v1583 = vld [vmem:[%s1581 + $0x8] sm:$0xff]
      %v1584 = vld [vmem:[%s1581 + $0x10] sm:$0xff]
      %v1585 = vld [vmem:[%s1581 + $0x18] sm:$0xff]
      %v1586 = vld [vmem:[%s1581 + $0x20] sm:$0xff]
      %v1587 = vld [vmem:[%s1581 + $0x28] sm:$0xff]
      %v1588 = vld [vmem:[%s1581 + $0x30] sm:$0xff]
      %v1589 = vld [vmem:[%s1581 + $0x38] sm:$0xff]
      %v1590 = vld [vmem:[%s1581 + $0x40] sm:$0xff]
      %v1591 = vld [vmem:[%s1581 + $0x48] sm:$0x7]
      %s1592 = scalar_lea.vmem %s219, 1680
      %v1593 = vld [vmem:[%s1592] sm:$0xff]
      %v1594 = vld [vmem:[%s1592 + $0x8] sm:$0xff]
      %v1595 = vld [vmem:[%s1592 + $0x10] sm:$0xff]
      %v1596 = vld [vmem:[%s1592 + $0x18] sm:$0xff]
      %v1597 = vld [vmem:[%s1592 + $0x20] sm:$0xff]
      %v1598 = vld [vmem:[%s1592 + $0x28] sm:$0xff]
      %v1599 = vld [vmem:[%s1592 + $0x30] sm:$0xff]
      %v1600 = vld [vmem:[%s1592 + $0x38] sm:$0xff]
      %v1601 = vld [vmem:[%s1592 + $0x40] sm:$0xff]
      %v1602 = vld [vmem:[%s1592 + $0x48] sm:$0x7]
      %v1604 = vsel %vm268, %v1591, 0
      %1606 = vmatpush.msra.mxu0 0.0
      %1607 = vmatpush.msra.mxu0 0.0
      %1608 = vmatpush.msra.mxu0 0.0
      %1609 = vmatpush.msra.mxu0 0.0
      %1610 = vmatpush.msra.mxu0 0.0
      %1611 = vmatpush.msra.mxu0 0.0
      %1612 = vmatpush.msra.mxu0 %v1604
      %1613 = vmatpush.msra.mxu0 %v1590
      %1614 = vmatpush.msra.mxu0 %v1589
      %1615 = vmatpush.msra.mxu0 %v1588
      %1616 = vmatpush.msra.mxu0 %v1587
      %1617 = vmatpush.msra.mxu0 %v1586
      %1618 = vmatpush.msra.mxu0 %v1585
      %1619 = vmatpush.msra.mxu0 %v1584
      %1620 = vmatpush.msra.mxu0 %v1583
      %1621 = vmatpush.msra.mxu0 %v1582
      %1622 = vmatmul.f32.gmra.mxu0 %v266
      %v1623 = vpop.f32.mrf.mxu0
      %v1624 = vadd.f32 0.0, %v1623
      %1625 = vdwg.mxu0
      %v1627 = vsel %vm268, %v1602, 0
      %1629 = vmatpush.msra.mxu0 0.0
      %1630 = vmatpush.msra.mxu0 0.0
      %1631 = vmatpush.msra.mxu0 0.0
      %1632 = vmatpush.msra.mxu0 0.0
      %1633 = vmatpush.msra.mxu0 0.0
      %1634 = vmatpush.msra.mxu0 0.0
      %1635 = vmatpush.msra.mxu0 %v1627
      %1636 = vmatpush.msra.mxu0 %v1601
      %1637 = vmatpush.msra.mxu0 %v1600
      %1638 = vmatpush.msra.mxu0 %v1599
      %1639 = vmatpush.msra.mxu0 %v1598
      %1640 = vmatpush.msra.mxu0 %v1597
      %1641 = vmatpush.msra.mxu0 %v1596
      %1642 = vmatpush.msra.mxu0 %v1595
      %1643 = vmatpush.msra.mxu0 %v1594
      %1644 = vmatpush.msra.mxu0 %v1593
      %1645 = vmatmul.f32.gmra.mxu0 %v266
      %v1646 = vpop.f32.mrf.mxu0
      %v1647 = vadd.f32 0.0, %v1646
      %1648 = vdwg.mxu0
      %v1649 = vmax.f32 %v1624, %v1647
      %v1651 = vsel %vm316, %v1649, 0
      %1653 = vmatpush.msra.mxu0 0.0
      %1654 = vmatpush.msra.mxu0 0.0
      %1655 = vmatpush.msra.mxu0 0.0
      %1656 = vmatpush.msra.mxu0 0.0
      %1657 = vmatpush.msra.mxu0 0.0
      %1658 = vmatpush.msra.mxu0 0.0
      %1659 = vmatpush.msra.mxu0 0.0
      %1660 = vmatpush.msra.mxu0 0.0
      %1661 = vmatpush.msra.mxu0 %v322
      %1662 = vmatpush.msra.mxu0 %v233
      %1663 = vmatpush.msra.mxu0 %v232
      %1664 = vmatpush.msra.mxu0 %v231
      %1665 = vmatpush.msra.mxu0 %v230
      %1666 = vmatpush.msra.mxu0 %v229
      %1667 = vmatpush.msra.mxu0 %v228
      %1668 = vmatpush.msra.mxu0 %v227
      %1669 = vmatmul.f32.gmra.mxu0 %v1651
      %v1670 = vpop.f32.mrf.mxu0
      %v1671 = vadd.f32 0.0, %v1670
      %1672 = vdwg.mxu0
      %1673 = vmatpush.msra.mxu0 0.0
      %1674 = vmatpush.msra.mxu0 0.0
      %1675 = vmatpush.msra.mxu0 0.0
      %1676 = vmatpush.msra.mxu0 0.0
      %1677 = vmatpush.msra.mxu0 0.0
      %1678 = vmatpush.msra.mxu0 0.0
      %1679 = vmatpush.msra.mxu0 0.0
      %1680 = vmatpush.msra.mxu0 0.0
      %1681 = vmatpush.msra.mxu0 %v345
      %1682 = vmatpush.msra.mxu0 %v241
      %1683 = vmatpush.msra.mxu0 %v240
      %1684 = vmatpush.msra.mxu0 %v239
      %1685 = vmatpush.msra.mxu0 %v238
      %1686 = vmatpush.msra.mxu0 %v237
      %1687 = vmatpush.msra.mxu0 %v236
      %1688 = vmatpush.msra.mxu0 %v235
      %1689 = vmatmul.f32.gmra.mxu0 %v1651
      %v1690 = vpop.f32.mrf.mxu0
      %v1691 = vadd.f32 0.0, %v1690
      %1692 = vdwg.mxu0
      %v1693 = vmax.f32 %v1671, %v1691
      %v1694 = vadd.f32 %v1693, %v371
      %v1695 = vmax.f32 %v1694, 0.0
      %v1697 = vrot.slane %v1695, 1
      %v1698 = vrot.slane %v1695, 2
      %v1699 = vrot.slane %v1695, 3
      %v1700 = vrot.slane %v1695, 4
      %v1701 = vrot.slane %v1695, 5
      %1707 = vst.msk [vmem:[%s224 + $0xa] sm:$0x1] %vm386, %v1695
      %1708 = vst.msk [vmem:[%s224 + $0x2a] sm:$0x1] %vm386, %v1697
      %1709 = vst.msk [vmem:[%s224 + $0x4a] sm:$0x1] %vm386, %v1698
      %1710 = vst.msk [vmem:[%s224 + $0x6a] sm:$0x1] %vm386, %v1699
      %1711 = vst.msk [vmem:[%s224 + $0x8a] sm:$0x1] %vm386, %v1700
      %1712 = vst.msk [vmem:[%s224 + $0xaa] sm:$0x1] %vm386, %v1701
      %s1713 = scalar_lea.vmem %s219, 1760
      %v1714 = vld [vmem:[%s1713] sm:$0xff]
      %v1715 = vld [vmem:[%s1713 + $0x8] sm:$0xff]
      %v1716 = vld [vmem:[%s1713 + $0x10] sm:$0xff]
      %v1717 = vld [vmem:[%s1713 + $0x18] sm:$0xff]
      %v1718 = vld [vmem:[%s1713 + $0x20] sm:$0xff]
      %v1719 = vld [vmem:[%s1713 + $0x28] sm:$0xff]
      %v1720 = vld [vmem:[%s1713 + $0x30] sm:$0xff]
      %v1721 = vld [vmem:[%s1713 + $0x38] sm:$0xff]
      %v1722 = vld [vmem:[%s1713 + $0x40] sm:$0xff]
      %v1723 = vld [vmem:[%s1713 + $0x48] sm:$0x7]
      %s1724 = scalar_lea.vmem %s219, 1840
      %v1725 = vld [vmem:[%s1724] sm:$0xff]
      %v1726 = vld [vmem:[%s1724 + $0x8] sm:$0xff]
      %v1727 = vld [vmem:[%s1724 + $0x10] sm:$0xff]
      %v1728 = vld [vmem:[%s1724 + $0x18] sm:$0xff]
      %v1729 = vld [vmem:[%s1724 + $0x20] sm:$0xff]
      %v1730 = vld [vmem:[%s1724 + $0x28] sm:$0xff]
      %v1731 = vld [vmem:[%s1724 + $0x30] sm:$0xff]
      %v1732 = vld [vmem:[%s1724 + $0x38] sm:$0xff]
      %v1733 = vld [vmem:[%s1724 + $0x40] sm:$0xff]
      %v1734 = vld [vmem:[%s1724 + $0x48] sm:$0x7]
      %v1736 = vsel %vm268, %v1723, 0
      %1738 = vmatpush.msra.mxu0 0.0
      %1739 = vmatpush.msra.mxu0 0.0
      %1740 = vmatpush.msra.mxu0 0.0
      %1741 = vmatpush.msra.mxu0 0.0
      %1742 = vmatpush.msra.mxu0 0.0
      %1743 = vmatpush.msra.mxu0 0.0
      %1744 = vmatpush.msra.mxu0 %v1736
      %1745 = vmatpush.msra.mxu0 %v1722
      %1746 = vmatpush.msra.mxu0 %v1721
      %1747 = vmatpush.msra.mxu0 %v1720
      %1748 = vmatpush.msra.mxu0 %v1719
      %1749 = vmatpush.msra.mxu0 %v1718
      %1750 = vmatpush.msra.mxu0 %v1717
      %1751 = vmatpush.msra.mxu0 %v1716
      %1752 = vmatpush.msra.mxu0 %v1715
      %1753 = vmatpush.msra.mxu0 %v1714
      %1754 = vmatmul.f32.gmra.mxu0 %v266
      %v1755 = vpop.f32.mrf.mxu0
      %v1756 = vadd.f32 0.0, %v1755
      %1757 = vdwg.mxu0
      %v1759 = vsel %vm268, %v1734, 0
      %1761 = vmatpush.msra.mxu0 0.0
      %1762 = vmatpush.msra.mxu0 0.0
      %1763 = vmatpush.msra.mxu0 0.0
      %1764 = vmatpush.msra.mxu0 0.0
      %1765 = vmatpush.msra.mxu0 0.0
      %1766 = vmatpush.msra.mxu0 0.0
      %1767 = vmatpush.msra.mxu0 %v1759
      %1768 = vmatpush.msra.mxu0 %v1733
      %1769 = vmatpush.msra.mxu0 %v1732
      %1770 = vmatpush.msra.mxu0 %v1731
      %1771 = vmatpush.msra.mxu0 %v1730
      %1772 = vmatpush.msra.mxu0 %v1729
      %1773 = vmatpush.msra.mxu0 %v1728
      %1774 = vmatpush.msra.mxu0 %v1727
      %1775 = vmatpush.msra.mxu0 %v1726
      %1776 = vmatpush.msra.mxu0 %v1725
      %1777 = vmatmul.f32.gmra.mxu0 %v266
      %v1778 = vpop.f32.mrf.mxu0
      %v1779 = vadd.f32 0.0, %v1778
      %1780 = vdwg.mxu0
      %v1781 = vmax.f32 %v1756, %v1779
      %v1783 = vsel %vm316, %v1781, 0
      %1785 = vmatpush.msra.mxu0 0.0
      %1786 = vmatpush.msra.mxu0 0.0
      %1787 = vmatpush.msra.mxu0 0.0
      %1788 = vmatpush.msra.mxu0 0.0
      %1789 = vmatpush.msra.mxu0 0.0
      %1790 = vmatpush.msra.mxu0 0.0
      %1791 = vmatpush.msra.mxu0 0.0
      %1792 = vmatpush.msra.mxu0 0.0
      %1793 = vmatpush.msra.mxu0 %v322
      %1794 = vmatpush.msra.mxu0 %v233
      %1795 = vmatpush.msra.mxu0 %v232
      %1796 = vmatpush.msra.mxu0 %v231
      %1797 = vmatpush.msra.mxu0 %v230
      %1798 = vmatpush.msra.mxu0 %v229
      %1799 = vmatpush.msra.mxu0 %v228
      %1800 = vmatpush.msra.mxu0 %v227
      %1801 = vmatmul.f32.gmra.mxu0 %v1783
      %v1802 = vpop.f32.mrf.mxu0
      %v1803 = vadd.f32 0.0, %v1802
      %1804 = vdwg.mxu0
      %1805 = vmatpush.msra.mxu0 0.0
      %1806 = vmatpush.msra.mxu0 0.0
      %1807 = vmatpush.msra.mxu0 0.0
      %1808 = vmatpush.msra.mxu0 0.0
      %1809 = vmatpush.msra.mxu0 0.0
      %1810 = vmatpush.msra.mxu0 0.0
      %1811 = vmatpush.msra.mxu0 0.0
      %1812 = vmatpush.msra.mxu0 0.0
      %1813 = vmatpush.msra.mxu0 %v345
      %1814 = vmatpush.msra.mxu0 %v241
      %1815 = vmatpush.msra.mxu0 %v240
      %1816 = vmatpush.msra.mxu0 %v239
      %1817 = vmatpush.msra.mxu0 %v238
      %1818 = vmatpush.msra.mxu0 %v237
      %1819 = vmatpush.msra.mxu0 %v236
      %1820 = vmatpush.msra.mxu0 %v235
      %1821 = vmatmul.f32.gmra.mxu0 %v1783
      %v1822 = vpop.f32.mrf.mxu0
      %v1823 = vadd.f32 0.0, %v1822
      %1824 = vdwg.mxu0
      %v1825 = vmax.f32 %v1803, %v1823
      %v1826 = vadd.f32 %v1825, %v371
      %v1827 = vmax.f32 %v1826, 0.0
      %v1829 = vrot.slane %v1827, 1
      %v1830 = vrot.slane %v1827, 2
      %v1831 = vrot.slane %v1827, 3
      %v1832 = vrot.slane %v1827, 4
      %v1833 = vrot.slane %v1827, 5
      %1839 = vst.msk [vmem:[%s224 + $0xb] sm:$0x1] %vm386, %v1827
      %1840 = vst.msk [vmem:[%s224 + $0x2b] sm:$0x1] %vm386, %v1829
      %1841 = vst.msk [vmem:[%s224 + $0x4b] sm:$0x1] %vm386, %v1830
      %1842 = vst.msk [vmem:[%s224 + $0x6b] sm:$0x1] %vm386, %v1831
      %1843 = vst.msk [vmem:[%s224 + $0x8b] sm:$0x1] %vm386, %v1832
      %1844 = vst.msk [vmem:[%s224 + $0xab] sm:$0x1] %vm386, %v1833
      %s1845 = scalar_lea.vmem %s219, 1920
      %v1846 = vld [vmem:[%s1845] sm:$0xff]
      %v1847 = vld [vmem:[%s1845 + $0x8] sm:$0xff]
      %v1848 = vld [vmem:[%s1845 + $0x10] sm:$0xff]
      %v1849 = vld [vmem:[%s1845 + $0x18] sm:$0xff]
      %v1850 = vld [vmem:[%s1845 + $0x20] sm:$0xff]
      %v1851 = vld [vmem:[%s1845 + $0x28] sm:$0xff]
      %v1852 = vld [vmem:[%s1845 + $0x30] sm:$0xff]
      %v1853 = vld [vmem:[%s1845 + $0x38] sm:$0xff]
      %v1854 = vld [vmem:[%s1845 + $0x40] sm:$0xff]
      %v1855 = vld [vmem:[%s1845 + $0x48] sm:$0x7]
      %s1856 = scalar_lea.vmem %s219, 2000
      %v1857 = vld [vmem:[%s1856] sm:$0xff]
      %v1858 = vld [vmem:[%s1856 + $0x8] sm:$0xff]
      %v1859 = vld [vmem:[%s1856 + $0x10] sm:$0xff]
      %v1860 = vld [vmem:[%s1856 + $0x18] sm:$0xff]
      %v1861 = vld [vmem:[%s1856 + $0x20] sm:$0xff]
      %v1862 = vld [vmem:[%s1856 + $0x28] sm:$0xff]
      %v1863 = vld [vmem:[%s1856 + $0x30] sm:$0xff]
      %v1864 = vld [vmem:[%s1856 + $0x38] sm:$0xff]
      %v1865 = vld [vmem:[%s1856 + $0x40] sm:$0xff]
      %v1866 = vld [vmem:[%s1856 + $0x48] sm:$0x7]
      %v1868 = vsel %vm268, %v1855, 0
      %1870 = vmatpush.msra.mxu0 0.0
      %1871 = vmatpush.msra.mxu0 0.0
      %1872 = vmatpush.msra.mxu0 0.0
      %1873 = vmatpush.msra.mxu0 0.0
      %1874 = vmatpush.msra.mxu0 0.0
      %1875 = vmatpush.msra.mxu0 0.0
      %1876 = vmatpush.msra.mxu0 %v1868
      %1877 = vmatpush.msra.mxu0 %v1854
      %1878 = vmatpush.msra.mxu0 %v1853
      %1879 = vmatpush.msra.mxu0 %v1852
      %1880 = vmatpush.msra.mxu0 %v1851
      %1881 = vmatpush.msra.mxu0 %v1850
      %1882 = vmatpush.msra.mxu0 %v1849
      %1883 = vmatpush.msra.mxu0 %v1848
      %1884 = vmatpush.msra.mxu0 %v1847
      %1885 = vmatpush.msra.mxu0 %v1846
      %1886 = vmatmul.f32.gmra.mxu0 %v266
      %v1887 = vpop.f32.mrf.mxu0
      %v1888 = vadd.f32 0.0, %v1887
      %1889 = vdwg.mxu0
      %v1891 = vsel %vm268, %v1866, 0
      %1893 = vmatpush.msra.mxu0 0.0
      %1894 = vmatpush.msra.mxu0 0.0
      %1895 = vmatpush.msra.mxu0 0.0
      %1896 = vmatpush.msra.mxu0 0.0
      %1897 = vmatpush.msra.mxu0 0.0
      %1898 = vmatpush.msra.mxu0 0.0
      %1899 = vmatpush.msra.mxu0 %v1891
      %1900 = vmatpush.msra.mxu0 %v1865
      %1901 = vmatpush.msra.mxu0 %v1864
      %1902 = vmatpush.msra.mxu0 %v1863
      %1903 = vmatpush.msra.mxu0 %v1862
      %1904 = vmatpush.msra.mxu0 %v1861
      %1905 = vmatpush.msra.mxu0 %v1860
      %1906 = vmatpush.msra.mxu0 %v1859
      %1907 = vmatpush.msra.mxu0 %v1858
      %1908 = vmatpush.msra.mxu0 %v1857
      %1909 = vmatmul.f32.gmra.mxu0 %v266
      %v1910 = vpop.f32.mrf.mxu0
      %v1911 = vadd.f32 0.0, %v1910
      %1912 = vdwg.mxu0
      %v1913 = vmax.f32 %v1888, %v1911
      %v1915 = vsel %vm316, %v1913, 0
      %1917 = vmatpush.msra.mxu0 0.0
      %1918 = vmatpush.msra.mxu0 0.0
      %1919 = vmatpush.msra.mxu0 0.0
      %1920 = vmatpush.msra.mxu0 0.0
      %1921 = vmatpush.msra.mxu0 0.0
      %1922 = vmatpush.msra.mxu0 0.0
      %1923 = vmatpush.msra.mxu0 0.0
      %1924 = vmatpush.msra.mxu0 0.0
      %1925 = vmatpush.msra.mxu0 %v322
      %1926 = vmatpush.msra.mxu0 %v233
      %1927 = vmatpush.msra.mxu0 %v232
      %1928 = vmatpush.msra.mxu0 %v231
      %1929 = vmatpush.msra.mxu0 %v230
      %1930 = vmatpush.msra.mxu0 %v229
      %1931 = vmatpush.msra.mxu0 %v228
      %1932 = vmatpush.msra.mxu0 %v227
      %1933 = vmatmul.f32.gmra.mxu0 %v1915
      %v1934 = vpop.f32.mrf.mxu0
      %v1935 = vadd.f32 0.0, %v1934
      %1936 = vdwg.mxu0
      %1937 = vmatpush.msra.mxu0 0.0
      %1938 = vmatpush.msra.mxu0 0.0
      %1939 = vmatpush.msra.mxu0 0.0
      %1940 = vmatpush.msra.mxu0 0.0
      %1941 = vmatpush.msra.mxu0 0.0
      %1942 = vmatpush.msra.mxu0 0.0
      %1943 = vmatpush.msra.mxu0 0.0
      %1944 = vmatpush.msra.mxu0 0.0
      %1945 = vmatpush.msra.mxu0 %v345
      %1946 = vmatpush.msra.mxu0 %v241
      %1947 = vmatpush.msra.mxu0 %v240
      %1948 = vmatpush.msra.mxu0 %v239
      %1949 = vmatpush.msra.mxu0 %v238
      %1950 = vmatpush.msra.mxu0 %v237
      %1951 = vmatpush.msra.mxu0 %v236
      %1952 = vmatpush.msra.mxu0 %v235
      %1953 = vmatmul.f32.gmra.mxu0 %v1915
      %v1954 = vpop.f32.mrf.mxu0
      %v1955 = vadd.f32 0.0, %v1954
      %1956 = vdwg.mxu0
      %v1957 = vmax.f32 %v1935, %v1955
      %v1958 = vadd.f32 %v1957, %v371
      %v1959 = vmax.f32 %v1958, 0.0
      %v1961 = vrot.slane %v1959, 1
      %v1962 = vrot.slane %v1959, 2
      %v1963 = vrot.slane %v1959, 3
      %v1964 = vrot.slane %v1959, 4
      %v1965 = vrot.slane %v1959, 5
      %1971 = vst.msk [vmem:[%s224 + $0xc] sm:$0x1] %vm386, %v1959
      %1972 = vst.msk [vmem:[%s224 + $0x2c] sm:$0x1] %vm386, %v1961
      %1973 = vst.msk [vmem:[%s224 + $0x4c] sm:$0x1] %vm386, %v1962
      %1974 = vst.msk [vmem:[%s224 + $0x6c] sm:$0x1] %vm386, %v1963
      %1975 = vst.msk [vmem:[%s224 + $0x8c] sm:$0x1] %vm386, %v1964
      %1976 = vst.msk [vmem:[%s224 + $0xac] sm:$0x1] %vm386, %v1965
      %s1977 = scalar_lea.vmem %s219, 2080
      %v1978 = vld [vmem:[%s1977] sm:$0xff]
      %v1979 = vld [vmem:[%s1977 + $0x8] sm:$0xff]
      %v1980 = vld [vmem:[%s1977 + $0x10] sm:$0xff]
      %v1981 = vld [vmem:[%s1977 + $0x18] sm:$0xff]
      %v1982 = vld [vmem:[%s1977 + $0x20] sm:$0xff]
      %v1983 = vld [vmem:[%s1977 + $0x28] sm:$0xff]
      %v1984 = vld [vmem:[%s1977 + $0x30] sm:$0xff]
      %v1985 = vld [vmem:[%s1977 + $0x38] sm:$0xff]
      %v1986 = vld [vmem:[%s1977 + $0x40] sm:$0xff]
      %v1987 = vld [vmem:[%s1977 + $0x48] sm:$0x7]
      %s1988 = scalar_lea.vmem %s219, 2160
      %v1989 = vld [vmem:[%s1988] sm:$0xff]
      %v1990 = vld [vmem:[%s1988 + $0x8] sm:$0xff]
      %v1991 = vld [vmem:[%s1988 + $0x10] sm:$0xff]
      %v1992 = vld [vmem:[%s1988 + $0x18] sm:$0xff]
      %v1993 = vld [vmem:[%s1988 + $0x20] sm:$0xff]
      %v1994 = vld [vmem:[%s1988 + $0x28] sm:$0xff]
      %v1995 = vld [vmem:[%s1988 + $0x30] sm:$0xff]
      %v1996 = vld [vmem:[%s1988 + $0x38] sm:$0xff]
      %v1997 = vld [vmem:[%s1988 + $0x40] sm:$0xff]
      %v1998 = vld [vmem:[%s1988 + $0x48] sm:$0x7]
      %v2000 = vsel %vm268, %v1987, 0
      %2002 = vmatpush.msra.mxu0 0.0
      %2003 = vmatpush.msra.mxu0 0.0
      %2004 = vmatpush.msra.mxu0 0.0
      %2005 = vmatpush.msra.mxu0 0.0
      %2006 = vmatpush.msra.mxu0 0.0
      %2007 = vmatpush.msra.mxu0 0.0
      %2008 = vmatpush.msra.mxu0 %v2000
      %2009 = vmatpush.msra.mxu0 %v1986
      %2010 = vmatpush.msra.mxu0 %v1985
      %2011 = vmatpush.msra.mxu0 %v1984
      %2012 = vmatpush.msra.mxu0 %v1983
      %2013 = vmatpush.msra.mxu0 %v1982
      %2014 = vmatpush.msra.mxu0 %v1981
      %2015 = vmatpush.msra.mxu0 %v1980
      %2016 = vmatpush.msra.mxu0 %v1979
      %2017 = vmatpush.msra.mxu0 %v1978
      %2018 = vmatmul.f32.gmra.mxu0 %v266
      %v2019 = vpop.f32.mrf.mxu0
      %v2020 = vadd.f32 0.0, %v2019
      %2021 = vdwg.mxu0
      %v2023 = vsel %vm268, %v1998, 0
      %2025 = vmatpush.msra.mxu0 0.0
      %2026 = vmatpush.msra.mxu0 0.0
      %2027 = vmatpush.msra.mxu0 0.0
      %2028 = vmatpush.msra.mxu0 0.0
      %2029 = vmatpush.msra.mxu0 0.0
      %2030 = vmatpush.msra.mxu0 0.0
      %2031 = vmatpush.msra.mxu0 %v2023
      %2032 = vmatpush.msra.mxu0 %v1997
      %2033 = vmatpush.msra.mxu0 %v1996
      %2034 = vmatpush.msra.mxu0 %v1995
      %2035 = vmatpush.msra.mxu0 %v1994
      %2036 = vmatpush.msra.mxu0 %v1993
      %2037 = vmatpush.msra.mxu0 %v1992
      %2038 = vmatpush.msra.mxu0 %v1991
      %2039 = vmatpush.msra.mxu0 %v1990
      %2040 = vmatpush.msra.mxu0 %v1989
      %2041 = vmatmul.f32.gmra.mxu0 %v266
      %v2042 = vpop.f32.mrf.mxu0
      %v2043 = vadd.f32 0.0, %v2042
      %2044 = vdwg.mxu0
      %v2045 = vmax.f32 %v2020, %v2043
      %v2047 = vsel %vm316, %v2045, 0
      %2049 = vmatpush.msra.mxu0 0.0
      %2050 = vmatpush.msra.mxu0 0.0
      %2051 = vmatpush.msra.mxu0 0.0
      %2052 = vmatpush.msra.mxu0 0.0
      %2053 = vmatpush.msra.mxu0 0.0
      %2054 = vmatpush.msra.mxu0 0.0
      %2055 = vmatpush.msra.mxu0 0.0
      %2056 = vmatpush.msra.mxu0 0.0
      %2057 = vmatpush.msra.mxu0 %v322
      %2058 = vmatpush.msra.mxu0 %v233
      %2059 = vmatpush.msra.mxu0 %v232
      %2060 = vmatpush.msra.mxu0 %v231
      %2061 = vmatpush.msra.mxu0 %v230
      %2062 = vmatpush.msra.mxu0 %v229
      %2063 = vmatpush.msra.mxu0 %v228
      %2064 = vmatpush.msra.mxu0 %v227
      %2065 = vmatmul.f32.gmra.mxu0 %v2047
      %v2066 = vpop.f32.mrf.mxu0
      %v2067 = vadd.f32 0.0, %v2066
      %2068 = vdwg.mxu0
      %2069 = vmatpush.msra.mxu0 0.0
      %2070 = vmatpush.msra.mxu0 0.0
      %2071 = vmatpush.msra.mxu0 0.0
      %2072 = vmatpush.msra.mxu0 0.0
      %2073 = vmatpush.msra.mxu0 0.0
      %2074 = vmatpush.msra.mxu0 0.0
      %2075 = vmatpush.msra.mxu0 0.0
      %2076 = vmatpush.msra.mxu0 0.0
      %2077 = vmatpush.msra.mxu0 %v345
      %2078 = vmatpush.msra.mxu0 %v241
      %2079 = vmatpush.msra.mxu0 %v240
      %2080 = vmatpush.msra.mxu0 %v239
      %2081 = vmatpush.msra.mxu0 %v238
      %2082 = vmatpush.msra.mxu0 %v237
      %2083 = vmatpush.msra.mxu0 %v236
      %2084 = vmatpush.msra.mxu0 %v235
      %2085 = vmatmul.f32.gmra.mxu0 %v2047
      %v2086 = vpop.f32.mrf.mxu0
      %v2087 = vadd.f32 0.0, %v2086
      %2088 = vdwg.mxu0
      %v2089 = vmax.f32 %v2067, %v2087
      %v2090 = vadd.f32 %v2089, %v371
      %v2091 = vmax.f32 %v2090, 0.0
      %v2093 = vrot.slane %v2091, 1
      %v2094 = vrot.slane %v2091, 2
      %v2095 = vrot.slane %v2091, 3
      %v2096 = vrot.slane %v2091, 4
      %v2097 = vrot.slane %v2091, 5
      %2103 = vst.msk [vmem:[%s224 + $0xd] sm:$0x1] %vm386, %v2091
      %2104 = vst.msk [vmem:[%s224 + $0x2d] sm:$0x1] %vm386, %v2093
      %2105 = vst.msk [vmem:[%s224 + $0x4d] sm:$0x1] %vm386, %v2094
      %2106 = vst.msk [vmem:[%s224 + $0x6d] sm:$0x1] %vm386, %v2095
      %2107 = vst.msk [vmem:[%s224 + $0x8d] sm:$0x1] %vm386, %v2096
      %2108 = vst.msk [vmem:[%s224 + $0xad] sm:$0x1] %vm386, %v2097
      %s2109 = scalar_lea.vmem %s219, 2240
      %v2110 = vld [vmem:[%s2109] sm:$0xff]
      %v2111 = vld [vmem:[%s2109 + $0x8] sm:$0xff]
      %v2112 = vld [vmem:[%s2109 + $0x10] sm:$0xff]
      %v2113 = vld [vmem:[%s2109 + $0x18] sm:$0xff]
      %v2114 = vld [vmem:[%s2109 + $0x20] sm:$0xff]
      %v2115 = vld [vmem:[%s2109 + $0x28] sm:$0xff]
      %v2116 = vld [vmem:[%s2109 + $0x30] sm:$0xff]
      %v2117 = vld [vmem:[%s2109 + $0x38] sm:$0xff]
      %v2118 = vld [vmem:[%s2109 + $0x40] sm:$0xff]
      %v2119 = vld [vmem:[%s2109 + $0x48] sm:$0x7]
      %s2120 = scalar_lea.vmem %s219, 2320
      %v2121 = vld [vmem:[%s2120] sm:$0xff]
      %v2122 = vld [vmem:[%s2120 + $0x8] sm:$0xff]
      %v2123 = vld [vmem:[%s2120 + $0x10] sm:$0xff]
      %v2124 = vld [vmem:[%s2120 + $0x18] sm:$0xff]
      %v2125 = vld [vmem:[%s2120 + $0x20] sm:$0xff]
      %v2126 = vld [vmem:[%s2120 + $0x28] sm:$0xff]
      %v2127 = vld [vmem:[%s2120 + $0x30] sm:$0xff]
      %v2128 = vld [vmem:[%s2120 + $0x38] sm:$0xff]
      %v2129 = vld [vmem:[%s2120 + $0x40] sm:$0xff]
      %v2130 = vld [vmem:[%s2120 + $0x48] sm:$0x7]
      %v2132 = vsel %vm268, %v2119, 0
      %2134 = vmatpush.msra.mxu0 0.0
      %2135 = vmatpush.msra.mxu0 0.0
      %2136 = vmatpush.msra.mxu0 0.0
      %2137 = vmatpush.msra.mxu0 0.0
      %2138 = vmatpush.msra.mxu0 0.0
      %2139 = vmatpush.msra.mxu0 0.0
      %2140 = vmatpush.msra.mxu0 %v2132
      %2141 = vmatpush.msra.mxu0 %v2118
      %2142 = vmatpush.msra.mxu0 %v2117
      %2143 = vmatpush.msra.mxu0 %v2116
      %2144 = vmatpush.msra.mxu0 %v2115
      %2145 = vmatpush.msra.mxu0 %v2114
      %2146 = vmatpush.msra.mxu0 %v2113
      %2147 = vmatpush.msra.mxu0 %v2112
      %2148 = vmatpush.msra.mxu0 %v2111
      %2149 = vmatpush.msra.mxu0 %v2110
      %2150 = vmatmul.f32.gmra.mxu0 %v266
      %v2151 = vpop.f32.mrf.mxu0
      %v2152 = vadd.f32 0.0, %v2151
      %2153 = vdwg.mxu0
      %v2155 = vsel %vm268, %v2130, 0
      %2157 = vmatpush.msra.mxu0 0.0
      %2158 = vmatpush.msra.mxu0 0.0
      %2159 = vmatpush.msra.mxu0 0.0
      %2160 = vmatpush.msra.mxu0 0.0
      %2161 = vmatpush.msra.mxu0 0.0
      %2162 = vmatpush.msra.mxu0 0.0
      %2163 = vmatpush.msra.mxu0 %v2155
      %2164 = vmatpush.msra.mxu0 %v2129
      %2165 = vmatpush.msra.mxu0 %v2128
      %2166 = vmatpush.msra.mxu0 %v2127
      %2167 = vmatpush.msra.mxu0 %v2126
      %2168 = vmatpush.msra.mxu0 %v2125
      %2169 = vmatpush.msra.mxu0 %v2124
      %2170 = vmatpush.msra.mxu0 %v2123
      %2171 = vmatpush.msra.mxu0 %v2122
      %2172 = vmatpush.msra.mxu0 %v2121
      %2173 = vmatmul.f32.gmra.mxu0 %v266
      %v2174 = vpop.f32.mrf.mxu0
      %v2175 = vadd.f32 0.0, %v2174
      %2176 = vdwg.mxu0
      %v2177 = vmax.f32 %v2152, %v2175
      %v2179 = vsel %vm316, %v2177, 0
      %2181 = vmatpush.msra.mxu0 0.0
      %2182 = vmatpush.msra.mxu0 0.0
      %2183 = vmatpush.msra.mxu0 0.0
      %2184 = vmatpush.msra.mxu0 0.0
      %2185 = vmatpush.msra.mxu0 0.0
      %2186 = vmatpush.msra.mxu0 0.0
      %2187 = vmatpush.msra.mxu0 0.0
      %2188 = vmatpush.msra.mxu0 0.0
      %2189 = vmatpush.msra.mxu0 %v322
      %2190 = vmatpush.msra.mxu0 %v233
      %2191 = vmatpush.msra.mxu0 %v232
      %2192 = vmatpush.msra.mxu0 %v231
      %2193 = vmatpush.msra.mxu0 %v230
      %2194 = vmatpush.msra.mxu0 %v229
      %2195 = vmatpush.msra.mxu0 %v228
      %2196 = vmatpush.msra.mxu0 %v227
      %2197 = vmatmul.f32.gmra.mxu0 %v2179
      %v2198 = vpop.f32.mrf.mxu0
      %v2199 = vadd.f32 0.0, %v2198
      %2200 = vdwg.mxu0
      %2201 = vmatpush.msra.mxu0 0.0
      %2202 = vmatpush.msra.mxu0 0.0
      %2203 = vmatpush.msra.mxu0 0.0
      %2204 = vmatpush.msra.mxu0 0.0
      %2205 = vmatpush.msra.mxu0 0.0
      %2206 = vmatpush.msra.mxu0 0.0
      %2207 = vmatpush.msra.mxu0 0.0
      %2208 = vmatpush.msra.mxu0 0.0
      %2209 = vmatpush.msra.mxu0 %v345
      %2210 = vmatpush.msra.mxu0 %v241
      %2211 = vmatpush.msra.mxu0 %v240
      %2212 = vmatpush.msra.mxu0 %v239
      %2213 = vmatpush.msra.mxu0 %v238
      %2214 = vmatpush.msra.mxu0 %v237
      %2215 = vmatpush.msra.mxu0 %v236
      %2216 = vmatpush.msra.mxu0 %v235
      %2217 = vmatmul.f32.gmra.mxu0 %v2179
      %v2218 = vpop.f32.mrf.mxu0
      %v2219 = vadd.f32 0.0, %v2218
      %2220 = vdwg.mxu0
      %v2221 = vmax.f32 %v2199, %v2219
      %v2222 = vadd.f32 %v2221, %v371
      %v2223 = vmax.f32 %v2222, 0.0
      %v2225 = vrot.slane %v2223, 1
      %v2226 = vrot.slane %v2223, 2
      %v2227 = vrot.slane %v2223, 3
      %v2228 = vrot.slane %v2223, 4
      %v2229 = vrot.slane %v2223, 5
      %2235 = vst.msk [vmem:[%s224 + $0xe] sm:$0x1] %vm386, %v2223
      %2236 = vst.msk [vmem:[%s224 + $0x2e] sm:$0x1] %vm386, %v2225
      %2237 = vst.msk [vmem:[%s224 + $0x4e] sm:$0x1] %vm386, %v2226
      %2238 = vst.msk [vmem:[%s224 + $0x6e] sm:$0x1] %vm386, %v2227
      %2239 = vst.msk [vmem:[%s224 + $0x8e] sm:$0x1] %vm386, %v2228
      %2240 = vst.msk [vmem:[%s224 + $0xae] sm:$0x1] %vm386, %v2229
      %s2241 = scalar_lea.vmem %s219, 2400
      %v2242 = vld [vmem:[%s2241] sm:$0xff]
      %v2243 = vld [vmem:[%s2241 + $0x8] sm:$0xff]
      %v2244 = vld [vmem:[%s2241 + $0x10] sm:$0xff]
      %v2245 = vld [vmem:[%s2241 + $0x18] sm:$0xff]
      %v2246 = vld [vmem:[%s2241 + $0x20] sm:$0xff]
      %v2247 = vld [vmem:[%s2241 + $0x28] sm:$0xff]
      %v2248 = vld [vmem:[%s2241 + $0x30] sm:$0xff]
      %v2249 = vld [vmem:[%s2241 + $0x38] sm:$0xff]
      %v2250 = vld [vmem:[%s2241 + $0x40] sm:$0xff]
      %v2251 = vld [vmem:[%s2241 + $0x48] sm:$0x7]
      %s2252 = scalar_lea.vmem %s219, 2480
      %v2253 = vld [vmem:[%s2252] sm:$0xff]
      %v2254 = vld [vmem:[%s2252 + $0x8] sm:$0xff]
      %v2255 = vld [vmem:[%s2252 + $0x10] sm:$0xff]
      %v2256 = vld [vmem:[%s2252 + $0x18] sm:$0xff]
      %v2257 = vld [vmem:[%s2252 + $0x20] sm:$0xff]
      %v2258 = vld [vmem:[%s2252 + $0x28] sm:$0xff]
      %v2259 = vld [vmem:[%s2252 + $0x30] sm:$0xff]
      %v2260 = vld [vmem:[%s2252 + $0x38] sm:$0xff]
      %v2261 = vld [vmem:[%s2252 + $0x40] sm:$0xff]
      %v2262 = vld [vmem:[%s2252 + $0x48] sm:$0x7]
      %v2264 = vsel %vm268, %v2251, 0
      %2266 = vmatpush.msra.mxu0 0.0
      %2267 = vmatpush.msra.mxu0 0.0
      %2268 = vmatpush.msra.mxu0 0.0
      %2269 = vmatpush.msra.mxu0 0.0
      %2270 = vmatpush.msra.mxu0 0.0
      %2271 = vmatpush.msra.mxu0 0.0
      %2272 = vmatpush.msra.mxu0 %v2264
      %2273 = vmatpush.msra.mxu0 %v2250
      %2274 = vmatpush.msra.mxu0 %v2249
      %2275 = vmatpush.msra.mxu0 %v2248
      %2276 = vmatpush.msra.mxu0 %v2247
      %2277 = vmatpush.msra.mxu0 %v2246
      %2278 = vmatpush.msra.mxu0 %v2245
      %2279 = vmatpush.msra.mxu0 %v2244
      %2280 = vmatpush.msra.mxu0 %v2243
      %2281 = vmatpush.msra.mxu0 %v2242
      %2282 = vmatmul.f32.gmra.mxu0 %v266
      %v2283 = vpop.f32.mrf.mxu0
      %v2284 = vadd.f32 0.0, %v2283
      %2285 = vdwg.mxu0
      %v2287 = vsel %vm268, %v2262, 0
      %2289 = vmatpush.msra.mxu0 0.0
      %2290 = vmatpush.msra.mxu0 0.0
      %2291 = vmatpush.msra.mxu0 0.0
      %2292 = vmatpush.msra.mxu0 0.0
      %2293 = vmatpush.msra.mxu0 0.0
      %2294 = vmatpush.msra.mxu0 0.0
      %2295 = vmatpush.msra.mxu0 %v2287
      %2296 = vmatpush.msra.mxu0 %v2261
      %2297 = vmatpush.msra.mxu0 %v2260
      %2298 = vmatpush.msra.mxu0 %v2259
      %2299 = vmatpush.msra.mxu0 %v2258
      %2300 = vmatpush.msra.mxu0 %v2257
      %2301 = vmatpush.msra.mxu0 %v2256
      %2302 = vmatpush.msra.mxu0 %v2255
      %2303 = vmatpush.msra.mxu0 %v2254
      %2304 = vmatpush.msra.mxu0 %v2253
      %2305 = vmatmul.f32.gmra.mxu0 %v266
      %v2306 = vpop.f32.mrf.mxu0
      %v2307 = vadd.f32 0.0, %v2306
      %2308 = vdwg.mxu0
      %v2309 = vmax.f32 %v2284, %v2307
      %v2311 = vsel %vm316, %v2309, 0
      %2313 = vmatpush.msra.mxu0 0.0
      %2314 = vmatpush.msra.mxu0 0.0
      %2315 = vmatpush.msra.mxu0 0.0
      %2316 = vmatpush.msra.mxu0 0.0
      %2317 = vmatpush.msra.mxu0 0.0
      %2318 = vmatpush.msra.mxu0 0.0
      %2319 = vmatpush.msra.mxu0 0.0
      %2320 = vmatpush.msra.mxu0 0.0
      %2321 = vmatpush.msra.mxu0 %v322
      %2322 = vmatpush.msra.mxu0 %v233
      %2323 = vmatpush.msra.mxu0 %v232
      %2324 = vmatpush.msra.mxu0 %v231
      %2325 = vmatpush.msra.mxu0 %v230
      %2326 = vmatpush.msra.mxu0 %v229
      %2327 = vmatpush.msra.mxu0 %v228
      %2328 = vmatpush.msra.mxu0 %v227
      %2329 = vmatmul.f32.gmra.mxu0 %v2311
      %v2330 = vpop.f32.mrf.mxu0
      %v2331 = vadd.f32 0.0, %v2330
      %2332 = vdwg.mxu0
      %2333 = vmatpush.msra.mxu0 0.0
      %2334 = vmatpush.msra.mxu0 0.0
      %2335 = vmatpush.msra.mxu0 0.0
      %2336 = vmatpush.msra.mxu0 0.0
      %2337 = vmatpush.msra.mxu0 0.0
      %2338 = vmatpush.msra.mxu0 0.0
      %2339 = vmatpush.msra.mxu0 0.0
      %2340 = vmatpush.msra.mxu0 0.0
      %2341 = vmatpush.msra.mxu0 %v345
      %2342 = vmatpush.msra.mxu0 %v241
      %2343 = vmatpush.msra.mxu0 %v240
      %2344 = vmatpush.msra.mxu0 %v239
      %2345 = vmatpush.msra.mxu0 %v238
      %2346 = vmatpush.msra.mxu0 %v237
      %2347 = vmatpush.msra.mxu0 %v236
      %2348 = vmatpush.msra.mxu0 %v235
      %2349 = vmatmul.f32.gmra.mxu0 %v2311
      %v2350 = vpop.f32.mrf.mxu0
      %v2351 = vadd.f32 0.0, %v2350
      %2352 = vdwg.mxu0
      %v2353 = vmax.f32 %v2331, %v2351
      %v2354 = vadd.f32 %v2353, %v371
      %v2355 = vmax.f32 %v2354, 0.0
      %v2357 = vrot.slane %v2355, 1
      %v2358 = vrot.slane %v2355, 2
      %v2359 = vrot.slane %v2355, 3
      %v2360 = vrot.slane %v2355, 4
      %v2361 = vrot.slane %v2355, 5
      %2367 = vst.msk [vmem:[%s224 + $0xf] sm:$0x1] %vm386, %v2355
      %2368 = vst.msk [vmem:[%s224 + $0x2f] sm:$0x1] %vm386, %v2357
      %2369 = vst.msk [vmem:[%s224 + $0x4f] sm:$0x1] %vm386, %v2358
      %2370 = vst.msk [vmem:[%s224 + $0x6f] sm:$0x1] %vm386, %v2359
      %2371 = vst.msk [vmem:[%s224 + $0x8f] sm:$0x1] %vm386, %v2360
      %2372 = vst.msk [vmem:[%s224 + $0xaf] sm:$0x1] %vm386, %v2361
      %s2373 = scalar_lea.vmem %s219, 2560
      %v2374 = vld [vmem:[%s2373] sm:$0xff]
      %v2375 = vld [vmem:[%s2373 + $0x8] sm:$0xff]
      %v2376 = vld [vmem:[%s2373 + $0x10] sm:$0xff]
      %v2377 = vld [vmem:[%s2373 + $0x18] sm:$0xff]
      %v2378 = vld [vmem:[%s2373 + $0x20] sm:$0xff]
      %v2379 = vld [vmem:[%s2373 + $0x28] sm:$0xff]
      %v2380 = vld [vmem:[%s2373 + $0x30] sm:$0xff]
      %v2381 = vld [vmem:[%s2373 + $0x38] sm:$0xff]
      %v2382 = vld [vmem:[%s2373 + $0x40] sm:$0xff]
      %v2383 = vld [vmem:[%s2373 + $0x48] sm:$0x7]
      %s2384 = scalar_lea.vmem %s219, 2640
      %v2385 = vld [vmem:[%s2384] sm:$0xff]
      %v2386 = vld [vmem:[%s2384 + $0x8] sm:$0xff]
      %v2387 = vld [vmem:[%s2384 + $0x10] sm:$0xff]
      %v2388 = vld [vmem:[%s2384 + $0x18] sm:$0xff]
      %v2389 = vld [vmem:[%s2384 + $0x20] sm:$0xff]
      %v2390 = vld [vmem:[%s2384 + $0x28] sm:$0xff]
      %v2391 = vld [vmem:[%s2384 + $0x30] sm:$0xff]
      %v2392 = vld [vmem:[%s2384 + $0x38] sm:$0xff]
      %v2393 = vld [vmem:[%s2384 + $0x40] sm:$0xff]
      %v2394 = vld [vmem:[%s2384 + $0x48] sm:$0x7]
      %v2396 = vsel %vm268, %v2383, 0
      %2398 = vmatpush.msra.mxu0 0.0
      %2399 = vmatpush.msra.mxu0 0.0
      %2400 = vmatpush.msra.mxu0 0.0
      %2401 = vmatpush.msra.mxu0 0.0
      %2402 = vmatpush.msra.mxu0 0.0
      %2403 = vmatpush.msra.mxu0 0.0
      %2404 = vmatpush.msra.mxu0 %v2396
      %2405 = vmatpush.msra.mxu0 %v2382
      %2406 = vmatpush.msra.mxu0 %v2381
      %2407 = vmatpush.msra.mxu0 %v2380
      %2408 = vmatpush.msra.mxu0 %v2379
      %2409 = vmatpush.msra.mxu0 %v2378
      %2410 = vmatpush.msra.mxu0 %v2377
      %2411 = vmatpush.msra.mxu0 %v2376
      %2412 = vmatpush.msra.mxu0 %v2375
      %2413 = vmatpush.msra.mxu0 %v2374
      %2414 = vmatmul.f32.gmra.mxu0 %v266
      %v2415 = vpop.f32.mrf.mxu0
      %v2416 = vadd.f32 0.0, %v2415
      %2417 = vdwg.mxu0
      %v2419 = vsel %vm268, %v2394, 0
      %2421 = vmatpush.msra.mxu0 0.0
      %2422 = vmatpush.msra.mxu0 0.0
      %2423 = vmatpush.msra.mxu0 0.0
      %2424 = vmatpush.msra.mxu0 0.0
      %2425 = vmatpush.msra.mxu0 0.0
      %2426 = vmatpush.msra.mxu0 0.0
      %2427 = vmatpush.msra.mxu0 %v2419
      %2428 = vmatpush.msra.mxu0 %v2393
      %2429 = vmatpush.msra.mxu0 %v2392
      %2430 = vmatpush.msra.mxu0 %v2391
      %2431 = vmatpush.msra.mxu0 %v2390
      %2432 = vmatpush.msra.mxu0 %v2389
      %2433 = vmatpush.msra.mxu0 %v2388
      %2434 = vmatpush.msra.mxu0 %v2387
      %2435 = vmatpush.msra.mxu0 %v2386
      %2436 = vmatpush.msra.mxu0 %v2385
      %2437 = vmatmul.f32.gmra.mxu0 %v266
      %v2438 = vpop.f32.mrf.mxu0
      %v2439 = vadd.f32 0.0, %v2438
      %2440 = vdwg.mxu0
      %v2441 = vmax.f32 %v2416, %v2439
      %v2443 = vsel %vm316, %v2441, 0
      %2445 = vmatpush.msra.mxu0 0.0
      %2446 = vmatpush.msra.mxu0 0.0
      %2447 = vmatpush.msra.mxu0 0.0
      %2448 = vmatpush.msra.mxu0 0.0
      %2449 = vmatpush.msra.mxu0 0.0
      %2450 = vmatpush.msra.mxu0 0.0
      %2451 = vmatpush.msra.mxu0 0.0
      %2452 = vmatpush.msra.mxu0 0.0
      %2453 = vmatpush.msra.mxu0 %v322
      %2454 = vmatpush.msra.mxu0 %v233
      %2455 = vmatpush.msra.mxu0 %v232
      %2456 = vmatpush.msra.mxu0 %v231
      %2457 = vmatpush.msra.mxu0 %v230
      %2458 = vmatpush.msra.mxu0 %v229
      %2459 = vmatpush.msra.mxu0 %v228
      %2460 = vmatpush.msra.mxu0 %v227
      %2461 = vmatmul.f32.gmra.mxu0 %v2443
      %v2462 = vpop.f32.mrf.mxu0
      %v2463 = vadd.f32 0.0, %v2462
      %2464 = vdwg.mxu0
      %2465 = vmatpush.msra.mxu0 0.0
      %2466 = vmatpush.msra.mxu0 0.0
      %2467 = vmatpush.msra.mxu0 0.0
      %2468 = vmatpush.msra.mxu0 0.0
      %2469 = vmatpush.msra.mxu0 0.0
      %2470 = vmatpush.msra.mxu0 0.0
      %2471 = vmatpush.msra.mxu0 0.0
      %2472 = vmatpush.msra.mxu0 0.0
      %2473 = vmatpush.msra.mxu0 %v345
      %2474 = vmatpush.msra.mxu0 %v241
      %2475 = vmatpush.msra.mxu0 %v240
      %2476 = vmatpush.msra.mxu0 %v239
      %2477 = vmatpush.msra.mxu0 %v238
      %2478 = vmatpush.msra.mxu0 %v237
      %2479 = vmatpush.msra.mxu0 %v236
      %2480 = vmatpush.msra.mxu0 %v235
      %2481 = vmatmul.f32.gmra.mxu0 %v2443
      %v2482 = vpop.f32.mrf.mxu0
      %v2483 = vadd.f32 0.0, %v2482
      %2484 = vdwg.mxu0
      %v2485 = vmax.f32 %v2463, %v2483
      %v2486 = vadd.f32 %v2485, %v371
      %v2487 = vmax.f32 %v2486, 0.0
      %v2489 = vrot.slane %v2487, 1
      %v2490 = vrot.slane %v2487, 2
      %v2491 = vrot.slane %v2487, 3
      %v2492 = vrot.slane %v2487, 4
      %v2493 = vrot.slane %v2487, 5
      %2499 = vst.msk [vmem:[%s224 + $0x10] sm:$0x1] %vm386, %v2487
      %2500 = vst.msk [vmem:[%s224 + $0x30] sm:$0x1] %vm386, %v2489
      %2501 = vst.msk [vmem:[%s224 + $0x50] sm:$0x1] %vm386, %v2490
      %2502 = vst.msk [vmem:[%s224 + $0x70] sm:$0x1] %vm386, %v2491
      %2503 = vst.msk [vmem:[%s224 + $0x90] sm:$0x1] %vm386, %v2492
      %2504 = vst.msk [vmem:[%s224 + $0xb0] sm:$0x1] %vm386, %v2493
      %s2505 = scalar_lea.vmem %s219, 2720
      %v2506 = vld [vmem:[%s2505] sm:$0xff]
      %v2507 = vld [vmem:[%s2505 + $0x8] sm:$0xff]
      %v2508 = vld [vmem:[%s2505 + $0x10] sm:$0xff]
      %v2509 = vld [vmem:[%s2505 + $0x18] sm:$0xff]
      %v2510 = vld [vmem:[%s2505 + $0x20] sm:$0xff]
      %v2511 = vld [vmem:[%s2505 + $0x28] sm:$0xff]
      %v2512 = vld [vmem:[%s2505 + $0x30] sm:$0xff]
      %v2513 = vld [vmem:[%s2505 + $0x38] sm:$0xff]
      %v2514 = vld [vmem:[%s2505 + $0x40] sm:$0xff]
      %v2515 = vld [vmem:[%s2505 + $0x48] sm:$0x7]
      %s2516 = scalar_lea.vmem %s219, 2800
      %v2517 = vld [vmem:[%s2516] sm:$0xff]
      %v2518 = vld [vmem:[%s2516 + $0x8] sm:$0xff]
      %v2519 = vld [vmem:[%s2516 + $0x10] sm:$0xff]
      %v2520 = vld [vmem:[%s2516 + $0x18] sm:$0xff]
      %v2521 = vld [vmem:[%s2516 + $0x20] sm:$0xff]
      %v2522 = vld [vmem:[%s2516 + $0x28] sm:$0xff]
      %v2523 = vld [vmem:[%s2516 + $0x30] sm:$0xff]
      %v2524 = vld [vmem:[%s2516 + $0x38] sm:$0xff]
      %v2525 = vld [vmem:[%s2516 + $0x40] sm:$0xff]
      %v2526 = vld [vmem:[%s2516 + $0x48] sm:$0x7]
      %v2528 = vsel %vm268, %v2515, 0
      %2530 = vmatpush.msra.mxu0 0.0
      %2531 = vmatpush.msra.mxu0 0.0
      %2532 = vmatpush.msra.mxu0 0.0
      %2533 = vmatpush.msra.mxu0 0.0
      %2534 = vmatpush.msra.mxu0 0.0
      %2535 = vmatpush.msra.mxu0 0.0
      %2536 = vmatpush.msra.mxu0 %v2528
      %2537 = vmatpush.msra.mxu0 %v2514
      %2538 = vmatpush.msra.mxu0 %v2513
      %2539 = vmatpush.msra.mxu0 %v2512
      %2540 = vmatpush.msra.mxu0 %v2511
      %2541 = vmatpush.msra.mxu0 %v2510
      %2542 = vmatpush.msra.mxu0 %v2509
      %2543 = vmatpush.msra.mxu0 %v2508
      %2544 = vmatpush.msra.mxu0 %v2507
      %2545 = vmatpush.msra.mxu0 %v2506
      %2546 = vmatmul.f32.gmra.mxu0 %v266
      %v2547 = vpop.f32.mrf.mxu0
      %v2548 = vadd.f32 0.0, %v2547
      %2549 = vdwg.mxu0
      %v2551 = vsel %vm268, %v2526, 0
      %2553 = vmatpush.msra.mxu0 0.0
      %2554 = vmatpush.msra.mxu0 0.0
      %2555 = vmatpush.msra.mxu0 0.0
      %2556 = vmatpush.msra.mxu0 0.0
      %2557 = vmatpush.msra.mxu0 0.0
      %2558 = vmatpush.msra.mxu0 0.0
      %2559 = vmatpush.msra.mxu0 %v2551
      %2560 = vmatpush.msra.mxu0 %v2525
      %2561 = vmatpush.msra.mxu0 %v2524
      %2562 = vmatpush.msra.mxu0 %v2523
      %2563 = vmatpush.msra.mxu0 %v2522
      %2564 = vmatpush.msra.mxu0 %v2521
      %2565 = vmatpush.msra.mxu0 %v2520
      %2566 = vmatpush.msra.mxu0 %v2519
      %2567 = vmatpush.msra.mxu0 %v2518
      %2568 = vmatpush.msra.mxu0 %v2517
      %2569 = vmatmul.f32.gmra.mxu0 %v266
      %v2570 = vpop.f32.mrf.mxu0
      %v2571 = vadd.f32 0.0, %v2570
      %2572 = vdwg.mxu0
      %v2573 = vmax.f32 %v2548, %v2571
      %v2575 = vsel %vm316, %v2573, 0
      %2577 = vmatpush.msra.mxu0 0.0
      %2578 = vmatpush.msra.mxu0 0.0
      %2579 = vmatpush.msra.mxu0 0.0
      %2580 = vmatpush.msra.mxu0 0.0
      %2581 = vmatpush.msra.mxu0 0.0
      %2582 = vmatpush.msra.mxu0 0.0
      %2583 = vmatpush.msra.mxu0 0.0
      %2584 = vmatpush.msra.mxu0 0.0
      %2585 = vmatpush.msra.mxu0 %v322
      %2586 = vmatpush.msra.mxu0 %v233
      %2587 = vmatpush.msra.mxu0 %v232
      %2588 = vmatpush.msra.mxu0 %v231
      %2589 = vmatpush.msra.mxu0 %v230
      %2590 = vmatpush.msra.mxu0 %v229
      %2591 = vmatpush.msra.mxu0 %v228
      %2592 = vmatpush.msra.mxu0 %v227
      %2593 = vmatmul.f32.gmra.mxu0 %v2575
      %v2594 = vpop.f32.mrf.mxu0
      %v2595 = vadd.f32 0.0, %v2594
      %2596 = vdwg.mxu0
      %2597 = vmatpush.msra.mxu0 0.0
      %2598 = vmatpush.msra.mxu0 0.0
      %2599 = vmatpush.msra.mxu0 0.0
      %2600 = vmatpush.msra.mxu0 0.0
      %2601 = vmatpush.msra.mxu0 0.0
      %2602 = vmatpush.msra.mxu0 0.0
      %2603 = vmatpush.msra.mxu0 0.0
      %2604 = vmatpush.msra.mxu0 0.0
      %2605 = vmatpush.msra.mxu0 %v345
      %2606 = vmatpush.msra.mxu0 %v241
      %2607 = vmatpush.msra.mxu0 %v240
      %2608 = vmatpush.msra.mxu0 %v239
      %2609 = vmatpush.msra.mxu0 %v238
      %2610 = vmatpush.msra.mxu0 %v237
      %2611 = vmatpush.msra.mxu0 %v236
      %2612 = vmatpush.msra.mxu0 %v235
      %2613 = vmatmul.f32.gmra.mxu0 %v2575
      %v2614 = vpop.f32.mrf.mxu0
      %v2615 = vadd.f32 0.0, %v2614
      %2616 = vdwg.mxu0
      %v2617 = vmax.f32 %v2595, %v2615
      %v2618 = vadd.f32 %v2617, %v371
      %v2619 = vmax.f32 %v2618, 0.0
      %v2621 = vrot.slane %v2619, 1
      %v2622 = vrot.slane %v2619, 2
      %v2623 = vrot.slane %v2619, 3
      %v2624 = vrot.slane %v2619, 4
      %v2625 = vrot.slane %v2619, 5
      %2631 = vst.msk [vmem:[%s224 + $0x11] sm:$0x1] %vm386, %v2619
      %2632 = vst.msk [vmem:[%s224 + $0x31] sm:$0x1] %vm386, %v2621
      %2633 = vst.msk [vmem:[%s224 + $0x51] sm:$0x1] %vm386, %v2622
      %2634 = vst.msk [vmem:[%s224 + $0x71] sm:$0x1] %vm386, %v2623
      %2635 = vst.msk [vmem:[%s224 + $0x91] sm:$0x1] %vm386, %v2624
      %2636 = vst.msk [vmem:[%s224 + $0xb1] sm:$0x1] %vm386, %v2625
      %s2637 = scalar_lea.vmem %s219, 2880
      %v2638 = vld [vmem:[%s2637] sm:$0xff]
      %v2639 = vld [vmem:[%s2637 + $0x8] sm:$0xff]
      %v2640 = vld [vmem:[%s2637 + $0x10] sm:$0xff]
      %v2641 = vld [vmem:[%s2637 + $0x18] sm:$0xff]
      %v2642 = vld [vmem:[%s2637 + $0x20] sm:$0xff]
      %v2643 = vld [vmem:[%s2637 + $0x28] sm:$0xff]
      %v2644 = vld [vmem:[%s2637 + $0x30] sm:$0xff]
      %v2645 = vld [vmem:[%s2637 + $0x38] sm:$0xff]
      %v2646 = vld [vmem:[%s2637 + $0x40] sm:$0xff]
      %v2647 = vld [vmem:[%s2637 + $0x48] sm:$0x7]
      %s2648 = scalar_lea.vmem %s219, 2960
      %v2649 = vld [vmem:[%s2648] sm:$0xff]
      %v2650 = vld [vmem:[%s2648 + $0x8] sm:$0xff]
      %v2651 = vld [vmem:[%s2648 + $0x10] sm:$0xff]
      %v2652 = vld [vmem:[%s2648 + $0x18] sm:$0xff]
      %v2653 = vld [vmem:[%s2648 + $0x20] sm:$0xff]
      %v2654 = vld [vmem:[%s2648 + $0x28] sm:$0xff]
      %v2655 = vld [vmem:[%s2648 + $0x30] sm:$0xff]
      %v2656 = vld [vmem:[%s2648 + $0x38] sm:$0xff]
      %v2657 = vld [vmem:[%s2648 + $0x40] sm:$0xff]
      %v2658 = vld [vmem:[%s2648 + $0x48] sm:$0x7]
      %v2660 = vsel %vm268, %v2647, 0
      %2662 = vmatpush.msra.mxu0 0.0
      %2663 = vmatpush.msra.mxu0 0.0
      %2664 = vmatpush.msra.mxu0 0.0
      %2665 = vmatpush.msra.mxu0 0.0
      %2666 = vmatpush.msra.mxu0 0.0
      %2667 = vmatpush.msra.mxu0 0.0
      %2668 = vmatpush.msra.mxu0 %v2660
      %2669 = vmatpush.msra.mxu0 %v2646
      %2670 = vmatpush.msra.mxu0 %v2645
      %2671 = vmatpush.msra.mxu0 %v2644
      %2672 = vmatpush.msra.mxu0 %v2643
      %2673 = vmatpush.msra.mxu0 %v2642
      %2674 = vmatpush.msra.mxu0 %v2641
      %2675 = vmatpush.msra.mxu0 %v2640
      %2676 = vmatpush.msra.mxu0 %v2639
      %2677 = vmatpush.msra.mxu0 %v2638
      %2678 = vmatmul.f32.gmra.mxu0 %v266
      %v2679 = vpop.f32.mrf.mxu0
      %v2680 = vadd.f32 0.0, %v2679
      %2681 = vdwg.mxu0
      %v2683 = vsel %vm268, %v2658, 0
      %2685 = vmatpush.msra.mxu0 0.0
      %2686 = vmatpush.msra.mxu0 0.0
      %2687 = vmatpush.msra.mxu0 0.0
      %2688 = vmatpush.msra.mxu0 0.0
      %2689 = vmatpush.msra.mxu0 0.0
      %2690 = vmatpush.msra.mxu0 0.0
      %2691 = vmatpush.msra.mxu0 %v2683
      %2692 = vmatpush.msra.mxu0 %v2657
      %2693 = vmatpush.msra.mxu0 %v2656
      %2694 = vmatpush.msra.mxu0 %v2655
      %2695 = vmatpush.msra.mxu0 %v2654
      %2696 = vmatpush.msra.mxu0 %v2653
      %2697 = vmatpush.msra.mxu0 %v2652
      %2698 = vmatpush.msra.mxu0 %v2651
      %2699 = vmatpush.msra.mxu0 %v2650
      %2700 = vmatpush.msra.mxu0 %v2649
      %2701 = vmatmul.f32.gmra.mxu0 %v266
      %v2702 = vpop.f32.mrf.mxu0
      %v2703 = vadd.f32 0.0, %v2702
      %2704 = vdwg.mxu0
      %v2705 = vmax.f32 %v2680, %v2703
      %v2707 = vsel %vm316, %v2705, 0
      %2709 = vmatpush.msra.mxu0 0.0
      %2710 = vmatpush.msra.mxu0 0.0
      %2711 = vmatpush.msra.mxu0 0.0
      %2712 = vmatpush.msra.mxu0 0.0
      %2713 = vmatpush.msra.mxu0 0.0
      %2714 = vmatpush.msra.mxu0 0.0
      %2715 = vmatpush.msra.mxu0 0.0
      %2716 = vmatpush.msra.mxu0 0.0
      %2717 = vmatpush.msra.mxu0 %v322
      %2718 = vmatpush.msra.mxu0 %v233
      %2719 = vmatpush.msra.mxu0 %v232
      %2720 = vmatpush.msra.mxu0 %v231
      %2721 = vmatpush.msra.mxu0 %v230
      %2722 = vmatpush.msra.mxu0 %v229
      %2723 = vmatpush.msra.mxu0 %v228
      %2724 = vmatpush.msra.mxu0 %v227
      %2725 = vmatmul.f32.gmra.mxu0 %v2707
      %v2726 = vpop.f32.mrf.mxu0
      %v2727 = vadd.f32 0.0, %v2726
      %2728 = vdwg.mxu0
      %2729 = vmatpush.msra.mxu0 0.0
      %2730 = vmatpush.msra.mxu0 0.0
      %2731 = vmatpush.msra.mxu0 0.0
      %2732 = vmatpush.msra.mxu0 0.0
      %2733 = vmatpush.msra.mxu0 0.0
      %2734 = vmatpush.msra.mxu0 0.0
      %2735 = vmatpush.msra.mxu0 0.0
      %2736 = vmatpush.msra.mxu0 0.0
      %2737 = vmatpush.msra.mxu0 %v345
      %2738 = vmatpush.msra.mxu0 %v241
      %2739 = vmatpush.msra.mxu0 %v240
      %2740 = vmatpush.msra.mxu0 %v239
      %2741 = vmatpush.msra.mxu0 %v238
      %2742 = vmatpush.msra.mxu0 %v237
      %2743 = vmatpush.msra.mxu0 %v236
      %2744 = vmatpush.msra.mxu0 %v235
      %2745 = vmatmul.f32.gmra.mxu0 %v2707
      %v2746 = vpop.f32.mrf.mxu0
      %v2747 = vadd.f32 0.0, %v2746
      %2748 = vdwg.mxu0
      %v2749 = vmax.f32 %v2727, %v2747
      %v2750 = vadd.f32 %v2749, %v371
      %v2751 = vmax.f32 %v2750, 0.0
      %v2753 = vrot.slane %v2751, 1
      %v2754 = vrot.slane %v2751, 2
      %v2755 = vrot.slane %v2751, 3
      %v2756 = vrot.slane %v2751, 4
      %v2757 = vrot.slane %v2751, 5
      %2763 = vst.msk [vmem:[%s224 + $0x12] sm:$0x1] %vm386, %v2751
      %2764 = vst.msk [vmem:[%s224 + $0x32] sm:$0x1] %vm386, %v2753
      %2765 = vst.msk [vmem:[%s224 + $0x52] sm:$0x1] %vm386, %v2754
      %2766 = vst.msk [vmem:[%s224 + $0x72] sm:$0x1] %vm386, %v2755
      %2767 = vst.msk [vmem:[%s224 + $0x92] sm:$0x1] %vm386, %v2756
      %2768 = vst.msk [vmem:[%s224 + $0xb2] sm:$0x1] %vm386, %v2757
      %s2769 = scalar_lea.vmem %s219, 3040
      %v2770 = vld [vmem:[%s2769] sm:$0xff]
      %v2771 = vld [vmem:[%s2769 + $0x8] sm:$0xff]
      %v2772 = vld [vmem:[%s2769 + $0x10] sm:$0xff]
      %v2773 = vld [vmem:[%s2769 + $0x18] sm:$0xff]
      %v2774 = vld [vmem:[%s2769 + $0x20] sm:$0xff]
      %v2775 = vld [vmem:[%s2769 + $0x28] sm:$0xff]
      %v2776 = vld [vmem:[%s2769 + $0x30] sm:$0xff]
      %v2777 = vld [vmem:[%s2769 + $0x38] sm:$0xff]
      %v2778 = vld [vmem:[%s2769 + $0x40] sm:$0xff]
      %v2779 = vld [vmem:[%s2769 + $0x48] sm:$0x7]
      %s2780 = scalar_lea.vmem %s219, 3120
      %v2781 = vld [vmem:[%s2780] sm:$0xff]
      %v2782 = vld [vmem:[%s2780 + $0x8] sm:$0xff]
      %v2783 = vld [vmem:[%s2780 + $0x10] sm:$0xff]
      %v2784 = vld [vmem:[%s2780 + $0x18] sm:$0xff]
      %v2785 = vld [vmem:[%s2780 + $0x20] sm:$0xff]
      %v2786 = vld [vmem:[%s2780 + $0x28] sm:$0xff]
      %v2787 = vld [vmem:[%s2780 + $0x30] sm:$0xff]
      %v2788 = vld [vmem:[%s2780 + $0x38] sm:$0xff]
      %v2789 = vld [vmem:[%s2780 + $0x40] sm:$0xff]
      %v2790 = vld [vmem:[%s2780 + $0x48] sm:$0x7]
      %v2792 = vsel %vm268, %v2779, 0
      %2794 = vmatpush.msra.mxu0 0.0
      %2795 = vmatpush.msra.mxu0 0.0
      %2796 = vmatpush.msra.mxu0 0.0
      %2797 = vmatpush.msra.mxu0 0.0
      %2798 = vmatpush.msra.mxu0 0.0
      %2799 = vmatpush.msra.mxu0 0.0
      %2800 = vmatpush.msra.mxu0 %v2792
      %2801 = vmatpush.msra.mxu0 %v2778
      %2802 = vmatpush.msra.mxu0 %v2777
      %2803 = vmatpush.msra.mxu0 %v2776
      %2804 = vmatpush.msra.mxu0 %v2775
      %2805 = vmatpush.msra.mxu0 %v2774
      %2806 = vmatpush.msra.mxu0 %v2773
      %2807 = vmatpush.msra.mxu0 %v2772
      %2808 = vmatpush.msra.mxu0 %v2771
      %2809 = vmatpush.msra.mxu0 %v2770
      %2810 = vmatmul.f32.gmra.mxu0 %v266
      %v2811 = vpop.f32.mrf.mxu0
      %v2812 = vadd.f32 0.0, %v2811
      %2813 = vdwg.mxu0
      %v2815 = vsel %vm268, %v2790, 0
      %2817 = vmatpush.msra.mxu0 0.0
      %2818 = vmatpush.msra.mxu0 0.0
      %2819 = vmatpush.msra.mxu0 0.0
      %2820 = vmatpush.msra.mxu0 0.0
      %2821 = vmatpush.msra.mxu0 0.0
      %2822 = vmatpush.msra.mxu0 0.0
      %2823 = vmatpush.msra.mxu0 %v2815
      %2824 = vmatpush.msra.mxu0 %v2789
      %2825 = vmatpush.msra.mxu0 %v2788
      %2826 = vmatpush.msra.mxu0 %v2787
      %2827 = vmatpush.msra.mxu0 %v2786
      %2828 = vmatpush.msra.mxu0 %v2785
      %2829 = vmatpush.msra.mxu0 %v2784
      %2830 = vmatpush.msra.mxu0 %v2783
      %2831 = vmatpush.msra.mxu0 %v2782
      %2832 = vmatpush.msra.mxu0 %v2781
      %2833 = vmatmul.f32.gmra.mxu0 %v266
      %v2834 = vpop.f32.mrf.mxu0
      %v2835 = vadd.f32 0.0, %v2834
      %2836 = vdwg.mxu0
      %v2837 = vmax.f32 %v2812, %v2835
      %v2839 = vsel %vm316, %v2837, 0
      %2841 = vmatpush.msra.mxu0 0.0
      %2842 = vmatpush.msra.mxu0 0.0
      %2843 = vmatpush.msra.mxu0 0.0
      %2844 = vmatpush.msra.mxu0 0.0
      %2845 = vmatpush.msra.mxu0 0.0
      %2846 = vmatpush.msra.mxu0 0.0
      %2847 = vmatpush.msra.mxu0 0.0
      %2848 = vmatpush.msra.mxu0 0.0
      %2849 = vmatpush.msra.mxu0 %v322
      %2850 = vmatpush.msra.mxu0 %v233
      %2851 = vmatpush.msra.mxu0 %v232
      %2852 = vmatpush.msra.mxu0 %v231
      %2853 = vmatpush.msra.mxu0 %v230
      %2854 = vmatpush.msra.mxu0 %v229
      %2855 = vmatpush.msra.mxu0 %v228
      %2856 = vmatpush.msra.mxu0 %v227
      %2857 = vmatmul.f32.gmra.mxu0 %v2839
      %v2858 = vpop.f32.mrf.mxu0
      %v2859 = vadd.f32 0.0, %v2858
      %2860 = vdwg.mxu0
      %2861 = vmatpush.msra.mxu0 0.0
      %2862 = vmatpush.msra.mxu0 0.0
      %2863 = vmatpush.msra.mxu0 0.0
      %2864 = vmatpush.msra.mxu0 0.0
      %2865 = vmatpush.msra.mxu0 0.0
      %2866 = vmatpush.msra.mxu0 0.0
      %2867 = vmatpush.msra.mxu0 0.0
      %2868 = vmatpush.msra.mxu0 0.0
      %2869 = vmatpush.msra.mxu0 %v345
      %2870 = vmatpush.msra.mxu0 %v241
      %2871 = vmatpush.msra.mxu0 %v240
      %2872 = vmatpush.msra.mxu0 %v239
      %2873 = vmatpush.msra.mxu0 %v238
      %2874 = vmatpush.msra.mxu0 %v237
      %2875 = vmatpush.msra.mxu0 %v236
      %2876 = vmatpush.msra.mxu0 %v235
      %2877 = vmatmul.f32.gmra.mxu0 %v2839
      %v2878 = vpop.f32.mrf.mxu0
      %v2879 = vadd.f32 0.0, %v2878
      %2880 = vdwg.mxu0
      %v2881 = vmax.f32 %v2859, %v2879
      %v2882 = vadd.f32 %v2881, %v371
      %v2883 = vmax.f32 %v2882, 0.0
      %v2885 = vrot.slane %v2883, 1
      %v2886 = vrot.slane %v2883, 2
      %v2887 = vrot.slane %v2883, 3
      %v2888 = vrot.slane %v2883, 4
      %v2889 = vrot.slane %v2883, 5
      %2895 = vst.msk [vmem:[%s224 + $0x13] sm:$0x1] %vm386, %v2883
      %2896 = vst.msk [vmem:[%s224 + $0x33] sm:$0x1] %vm386, %v2885
      %2897 = vst.msk [vmem:[%s224 + $0x53] sm:$0x1] %vm386, %v2886
      %2898 = vst.msk [vmem:[%s224 + $0x73] sm:$0x1] %vm386, %v2887
      %2899 = vst.msk [vmem:[%s224 + $0x93] sm:$0x1] %vm386, %v2888
      %2900 = vst.msk [vmem:[%s224 + $0xb3] sm:$0x1] %vm386, %v2889
      %s2901 = scalar_lea.vmem %s219, 3200
      %v2902 = vld [vmem:[%s2901] sm:$0xff]
      %v2903 = vld [vmem:[%s2901 + $0x8] sm:$0xff]
      %v2904 = vld [vmem:[%s2901 + $0x10] sm:$0xff]
      %v2905 = vld [vmem:[%s2901 + $0x18] sm:$0xff]
      %v2906 = vld [vmem:[%s2901 + $0x20] sm:$0xff]
      %v2907 = vld [vmem:[%s2901 + $0x28] sm:$0xff]
      %v2908 = vld [vmem:[%s2901 + $0x30] sm:$0xff]
      %v2909 = vld [vmem:[%s2901 + $0x38] sm:$0xff]
      %v2910 = vld [vmem:[%s2901 + $0x40] sm:$0xff]
      %v2911 = vld [vmem:[%s2901 + $0x48] sm:$0x7]
      %s2912 = scalar_lea.vmem %s219, 3280
      %v2913 = vld [vmem:[%s2912] sm:$0xff]
      %v2914 = vld [vmem:[%s2912 + $0x8] sm:$0xff]
      %v2915 = vld [vmem:[%s2912 + $0x10] sm:$0xff]
      %v2916 = vld [vmem:[%s2912 + $0x18] sm:$0xff]
      %v2917 = vld [vmem:[%s2912 + $0x20] sm:$0xff]
      %v2918 = vld [vmem:[%s2912 + $0x28] sm:$0xff]
      %v2919 = vld [vmem:[%s2912 + $0x30] sm:$0xff]
      %v2920 = vld [vmem:[%s2912 + $0x38] sm:$0xff]
      %v2921 = vld [vmem:[%s2912 + $0x40] sm:$0xff]
      %v2922 = vld [vmem:[%s2912 + $0x48] sm:$0x7]
      %v2924 = vsel %vm268, %v2911, 0
      %2926 = vmatpush.msra.mxu0 0.0
      %2927 = vmatpush.msra.mxu0 0.0
      %2928 = vmatpush.msra.mxu0 0.0
      %2929 = vmatpush.msra.mxu0 0.0
      %2930 = vmatpush.msra.mxu0 0.0
      %2931 = vmatpush.msra.mxu0 0.0
      %2932 = vmatpush.msra.mxu0 %v2924
      %2933 = vmatpush.msra.mxu0 %v2910
      %2934 = vmatpush.msra.mxu0 %v2909
      %2935 = vmatpush.msra.mxu0 %v2908
      %2936 = vmatpush.msra.mxu0 %v2907
      %2937 = vmatpush.msra.mxu0 %v2906
      %2938 = vmatpush.msra.mxu0 %v2905
      %2939 = vmatpush.msra.mxu0 %v2904
      %2940 = vmatpush.msra.mxu0 %v2903
      %2941 = vmatpush.msra.mxu0 %v2902
      %2942 = vmatmul.f32.gmra.mxu0 %v266
      %v2943 = vpop.f32.mrf.mxu0
      %v2944 = vadd.f32 0.0, %v2943
      %2945 = vdwg.mxu0
      %v2947 = vsel %vm268, %v2922, 0
      %2949 = vmatpush.msra.mxu0 0.0
      %2950 = vmatpush.msra.mxu0 0.0
      %2951 = vmatpush.msra.mxu0 0.0
      %2952 = vmatpush.msra.mxu0 0.0
      %2953 = vmatpush.msra.mxu0 0.0
      %2954 = vmatpush.msra.mxu0 0.0
      %2955 = vmatpush.msra.mxu0 %v2947
      %2956 = vmatpush.msra.mxu0 %v2921
      %2957 = vmatpush.msra.mxu0 %v2920
      %2958 = vmatpush.msra.mxu0 %v2919
      %2959 = vmatpush.msra.mxu0 %v2918
      %2960 = vmatpush.msra.mxu0 %v2917
      %2961 = vmatpush.msra.mxu0 %v2916
      %2962 = vmatpush.msra.mxu0 %v2915
      %2963 = vmatpush.msra.mxu0 %v2914
      %2964 = vmatpush.msra.mxu0 %v2913
      %2965 = vmatmul.f32.gmra.mxu0 %v266
      %v2966 = vpop.f32.mrf.mxu0
      %v2967 = vadd.f32 0.0, %v2966
      %2968 = vdwg.mxu0
      %v2969 = vmax.f32 %v2944, %v2967
      %v2971 = vsel %vm316, %v2969, 0
      %2973 = vmatpush.msra.mxu0 0.0
      %2974 = vmatpush.msra.mxu0 0.0
      %2975 = vmatpush.msra.mxu0 0.0
      %2976 = vmatpush.msra.mxu0 0.0
      %2977 = vmatpush.msra.mxu0 0.0
      %2978 = vmatpush.msra.mxu0 0.0
      %2979 = vmatpush.msra.mxu0 0.0
      %2980 = vmatpush.msra.mxu0 0.0
      %2981 = vmatpush.msra.mxu0 %v322
      %2982 = vmatpush.msra.mxu0 %v233
      %2983 = vmatpush.msra.mxu0 %v232
      %2984 = vmatpush.msra.mxu0 %v231
      %2985 = vmatpush.msra.mxu0 %v230
      %2986 = vmatpush.msra.mxu0 %v229
      %2987 = vmatpush.msra.mxu0 %v228
      %2988 = vmatpush.msra.mxu0 %v227
      %2989 = vmatmul.f32.gmra.mxu0 %v2971
      %v2990 = vpop.f32.mrf.mxu0
      %v2991 = vadd.f32 0.0, %v2990
      %2992 = vdwg.mxu0
      %2993 = vmatpush.msra.mxu0 0.0
      %2994 = vmatpush.msra.mxu0 0.0
      %2995 = vmatpush.msra.mxu0 0.0
      %2996 = vmatpush.msra.mxu0 0.0
      %2997 = vmatpush.msra.mxu0 0.0
      %2998 = vmatpush.msra.mxu0 0.0
      %2999 = vmatpush.msra.mxu0 0.0
      %3000 = vmatpush.msra.mxu0 0.0
      %3001 = vmatpush.msra.mxu0 %v345
      %3002 = vmatpush.msra.mxu0 %v241
      %3003 = vmatpush.msra.mxu0 %v240
      %3004 = vmatpush.msra.mxu0 %v239
      %3005 = vmatpush.msra.mxu0 %v238
      %3006 = vmatpush.msra.mxu0 %v237
      %3007 = vmatpush.msra.mxu0 %v236
      %3008 = vmatpush.msra.mxu0 %v235
      %3009 = vmatmul.f32.gmra.mxu0 %v2971
      %v3010 = vpop.f32.mrf.mxu0
      %v3011 = vadd.f32 0.0, %v3010
      %3012 = vdwg.mxu0
      %v3013 = vmax.f32 %v2991, %v3011
      %v3014 = vadd.f32 %v3013, %v371
      %v3015 = vmax.f32 %v3014, 0.0
      %v3017 = vrot.slane %v3015, 1
      %v3018 = vrot.slane %v3015, 2
      %v3019 = vrot.slane %v3015, 3
      %v3020 = vrot.slane %v3015, 4
      %v3021 = vrot.slane %v3015, 5
      %3027 = vst.msk [vmem:[%s224 + $0x14] sm:$0x1] %vm386, %v3015
      %3028 = vst.msk [vmem:[%s224 + $0x34] sm:$0x1] %vm386, %v3017
      %3029 = vst.msk [vmem:[%s224 + $0x54] sm:$0x1] %vm386, %v3018
      %3030 = vst.msk [vmem:[%s224 + $0x74] sm:$0x1] %vm386, %v3019
      %3031 = vst.msk [vmem:[%s224 + $0x94] sm:$0x1] %vm386, %v3020
      %3032 = vst.msk [vmem:[%s224 + $0xb4] sm:$0x1] %vm386, %v3021
      %s3033 = scalar_lea.vmem %s219, 3360
      %v3034 = vld [vmem:[%s3033] sm:$0xff]
      %v3035 = vld [vmem:[%s3033 + $0x8] sm:$0xff]
      %v3036 = vld [vmem:[%s3033 + $0x10] sm:$0xff]
      %v3037 = vld [vmem:[%s3033 + $0x18] sm:$0xff]
      %v3038 = vld [vmem:[%s3033 + $0x20] sm:$0xff]
      %v3039 = vld [vmem:[%s3033 + $0x28] sm:$0xff]
      %v3040 = vld [vmem:[%s3033 + $0x30] sm:$0xff]
      %v3041 = vld [vmem:[%s3033 + $0x38] sm:$0xff]
      %v3042 = vld [vmem:[%s3033 + $0x40] sm:$0xff]
      %v3043 = vld [vmem:[%s3033 + $0x48] sm:$0x7]
      %s3044 = scalar_lea.vmem %s219, 3440
      %v3045 = vld [vmem:[%s3044] sm:$0xff]
      %v3046 = vld [vmem:[%s3044 + $0x8] sm:$0xff]
      %v3047 = vld [vmem:[%s3044 + $0x10] sm:$0xff]
      %v3048 = vld [vmem:[%s3044 + $0x18] sm:$0xff]
      %v3049 = vld [vmem:[%s3044 + $0x20] sm:$0xff]
      %v3050 = vld [vmem:[%s3044 + $0x28] sm:$0xff]
      %v3051 = vld [vmem:[%s3044 + $0x30] sm:$0xff]
      %v3052 = vld [vmem:[%s3044 + $0x38] sm:$0xff]
      %v3053 = vld [vmem:[%s3044 + $0x40] sm:$0xff]
      %v3054 = vld [vmem:[%s3044 + $0x48] sm:$0x7]
      %v3056 = vsel %vm268, %v3043, 0
      %3058 = vmatpush.msra.mxu0 0.0
      %3059 = vmatpush.msra.mxu0 0.0
      %3060 = vmatpush.msra.mxu0 0.0
      %3061 = vmatpush.msra.mxu0 0.0
      %3062 = vmatpush.msra.mxu0 0.0
      %3063 = vmatpush.msra.mxu0 0.0
      %3064 = vmatpush.msra.mxu0 %v3056
      %3065 = vmatpush.msra.mxu0 %v3042
      %3066 = vmatpush.msra.mxu0 %v3041
      %3067 = vmatpush.msra.mxu0 %v3040
      %3068 = vmatpush.msra.mxu0 %v3039
      %3069 = vmatpush.msra.mxu0 %v3038
      %3070 = vmatpush.msra.mxu0 %v3037
      %3071 = vmatpush.msra.mxu0 %v3036
      %3072 = vmatpush.msra.mxu0 %v3035
      %3073 = vmatpush.msra.mxu0 %v3034
      %3074 = vmatmul.f32.gmra.mxu0 %v266
      %v3075 = vpop.f32.mrf.mxu0
      %v3076 = vadd.f32 0.0, %v3075
      %3077 = vdwg.mxu0
      %v3079 = vsel %vm268, %v3054, 0
      %3081 = vmatpush.msra.mxu0 0.0
      %3082 = vmatpush.msra.mxu0 0.0
      %3083 = vmatpush.msra.mxu0 0.0
      %3084 = vmatpush.msra.mxu0 0.0
      %3085 = vmatpush.msra.mxu0 0.0
      %3086 = vmatpush.msra.mxu0 0.0
      %3087 = vmatpush.msra.mxu0 %v3079
      %3088 = vmatpush.msra.mxu0 %v3053
      %3089 = vmatpush.msra.mxu0 %v3052
      %3090 = vmatpush.msra.mxu0 %v3051
      %3091 = vmatpush.msra.mxu0 %v3050
      %3092 = vmatpush.msra.mxu0 %v3049
      %3093 = vmatpush.msra.mxu0 %v3048
      %3094 = vmatpush.msra.mxu0 %v3047
      %3095 = vmatpush.msra.mxu0 %v3046
      %3096 = vmatpush.msra.mxu0 %v3045
      %3097 = vmatmul.f32.gmra.mxu0 %v266
      %v3098 = vpop.f32.mrf.mxu0
      %v3099 = vadd.f32 0.0, %v3098
      %3100 = vdwg.mxu0
      %v3101 = vmax.f32 %v3076, %v3099
      %v3103 = vsel %vm316, %v3101, 0
      %3105 = vmatpush.msra.mxu0 0.0
      %3106 = vmatpush.msra.mxu0 0.0
      %3107 = vmatpush.msra.mxu0 0.0
      %3108 = vmatpush.msra.mxu0 0.0
      %3109 = vmatpush.msra.mxu0 0.0
      %3110 = vmatpush.msra.mxu0 0.0
      %3111 = vmatpush.msra.mxu0 0.0
      %3112 = vmatpush.msra.mxu0 0.0
      %3113 = vmatpush.msra.mxu0 %v322
      %3114 = vmatpush.msra.mxu0 %v233
      %3115 = vmatpush.msra.mxu0 %v232
      %3116 = vmatpush.msra.mxu0 %v231
      %3117 = vmatpush.msra.mxu0 %v230
      %3118 = vmatpush.msra.mxu0 %v229
      %3119 = vmatpush.msra.mxu0 %v228
      %3120 = vmatpush.msra.mxu0 %v227
      %3121 = vmatmul.f32.gmra.mxu0 %v3103
      %v3122 = vpop.f32.mrf.mxu0
      %v3123 = vadd.f32 0.0, %v3122
      %3124 = vdwg.mxu0
      %3125 = vmatpush.msra.mxu0 0.0
      %3126 = vmatpush.msra.mxu0 0.0
      %3127 = vmatpush.msra.mxu0 0.0
      %3128 = vmatpush.msra.mxu0 0.0
      %3129 = vmatpush.msra.mxu0 0.0
      %3130 = vmatpush.msra.mxu0 0.0
      %3131 = vmatpush.msra.mxu0 0.0
      %3132 = vmatpush.msra.mxu0 0.0
      %3133 = vmatpush.msra.mxu0 %v345
      %3134 = vmatpush.msra.mxu0 %v241
      %3135 = vmatpush.msra.mxu0 %v240
      %3136 = vmatpush.msra.mxu0 %v239
      %3137 = vmatpush.msra.mxu0 %v238
      %3138 = vmatpush.msra.mxu0 %v237
      %3139 = vmatpush.msra.mxu0 %v236
      %3140 = vmatpush.msra.mxu0 %v235
      %3141 = vmatmul.f32.gmra.mxu0 %v3103
      %v3142 = vpop.f32.mrf.mxu0
      %v3143 = vadd.f32 0.0, %v3142
      %3144 = vdwg.mxu0
      %v3145 = vmax.f32 %v3123, %v3143
      %v3146 = vadd.f32 %v3145, %v371
      %v3147 = vmax.f32 %v3146, 0.0
      %v3149 = vrot.slane %v3147, 1
      %v3150 = vrot.slane %v3147, 2
      %v3151 = vrot.slane %v3147, 3
      %v3152 = vrot.slane %v3147, 4
      %v3153 = vrot.slane %v3147, 5
      %3159 = vst.msk [vmem:[%s224 + $0x15] sm:$0x1] %vm386, %v3147
      %3160 = vst.msk [vmem:[%s224 + $0x35] sm:$0x1] %vm386, %v3149
      %3161 = vst.msk [vmem:[%s224 + $0x55] sm:$0x1] %vm386, %v3150
      %3162 = vst.msk [vmem:[%s224 + $0x75] sm:$0x1] %vm386, %v3151
      %3163 = vst.msk [vmem:[%s224 + $0x95] sm:$0x1] %vm386, %v3152
      %3164 = vst.msk [vmem:[%s224 + $0xb5] sm:$0x1] %vm386, %v3153
      %s3165 = scalar_lea.vmem %s219, 3520
      %v3166 = vld [vmem:[%s3165] sm:$0xff]
      %v3167 = vld [vmem:[%s3165 + $0x8] sm:$0xff]
      %v3168 = vld [vmem:[%s3165 + $0x10] sm:$0xff]
      %v3169 = vld [vmem:[%s3165 + $0x18] sm:$0xff]
      %v3170 = vld [vmem:[%s3165 + $0x20] sm:$0xff]
      %v3171 = vld [vmem:[%s3165 + $0x28] sm:$0xff]
      %v3172 = vld [vmem:[%s3165 + $0x30] sm:$0xff]
      %v3173 = vld [vmem:[%s3165 + $0x38] sm:$0xff]
      %v3174 = vld [vmem:[%s3165 + $0x40] sm:$0xff]
      %v3175 = vld [vmem:[%s3165 + $0x48] sm:$0x7]
      %s3176 = scalar_lea.vmem %s219, 3600
      %v3177 = vld [vmem:[%s3176] sm:$0xff]
      %v3178 = vld [vmem:[%s3176 + $0x8] sm:$0xff]
      %v3179 = vld [vmem:[%s3176 + $0x10] sm:$0xff]
      %v3180 = vld [vmem:[%s3176 + $0x18] sm:$0xff]
      %v3181 = vld [vmem:[%s3176 + $0x20] sm:$0xff]
      %v3182 = vld [vmem:[%s3176 + $0x28] sm:$0xff]
      %v3183 = vld [vmem:[%s3176 + $0x30] sm:$0xff]
      %v3184 = vld [vmem:[%s3176 + $0x38] sm:$0xff]
      %v3185 = vld [vmem:[%s3176 + $0x40] sm:$0xff]
      %v3186 = vld [vmem:[%s3176 + $0x48] sm:$0x7]
      %v3188 = vsel %vm268, %v3175, 0
      %3190 = vmatpush.msra.mxu0 0.0
      %3191 = vmatpush.msra.mxu0 0.0
      %3192 = vmatpush.msra.mxu0 0.0
      %3193 = vmatpush.msra.mxu0 0.0
      %3194 = vmatpush.msra.mxu0 0.0
      %3195 = vmatpush.msra.mxu0 0.0
      %3196 = vmatpush.msra.mxu0 %v3188
      %3197 = vmatpush.msra.mxu0 %v3174
      %3198 = vmatpush.msra.mxu0 %v3173
      %3199 = vmatpush.msra.mxu0 %v3172
      %3200 = vmatpush.msra.mxu0 %v3171
      %3201 = vmatpush.msra.mxu0 %v3170
      %3202 = vmatpush.msra.mxu0 %v3169
      %3203 = vmatpush.msra.mxu0 %v3168
      %3204 = vmatpush.msra.mxu0 %v3167
      %3205 = vmatpush.msra.mxu0 %v3166
      %3206 = vmatmul.f32.gmra.mxu0 %v266
      %v3207 = vpop.f32.mrf.mxu0
      %v3208 = vadd.f32 0.0, %v3207
      %3209 = vdwg.mxu0
      %v3211 = vsel %vm268, %v3186, 0
      %3213 = vmatpush.msra.mxu0 0.0
      %3214 = vmatpush.msra.mxu0 0.0
      %3215 = vmatpush.msra.mxu0 0.0
      %3216 = vmatpush.msra.mxu0 0.0
      %3217 = vmatpush.msra.mxu0 0.0
      %3218 = vmatpush.msra.mxu0 0.0
      %3219 = vmatpush.msra.mxu0 %v3211
      %3220 = vmatpush.msra.mxu0 %v3185
      %3221 = vmatpush.msra.mxu0 %v3184
      %3222 = vmatpush.msra.mxu0 %v3183
      %3223 = vmatpush.msra.mxu0 %v3182
      %3224 = vmatpush.msra.mxu0 %v3181
      %3225 = vmatpush.msra.mxu0 %v3180
      %3226 = vmatpush.msra.mxu0 %v3179
      %3227 = vmatpush.msra.mxu0 %v3178
      %3228 = vmatpush.msra.mxu0 %v3177
      %3229 = vmatmul.f32.gmra.mxu0 %v266
      %v3230 = vpop.f32.mrf.mxu0
      %v3231 = vadd.f32 0.0, %v3230
      %3232 = vdwg.mxu0
      %v3233 = vmax.f32 %v3208, %v3231
      %v3235 = vsel %vm316, %v3233, 0
      %3237 = vmatpush.msra.mxu0 0.0
      %3238 = vmatpush.msra.mxu0 0.0
      %3239 = vmatpush.msra.mxu0 0.0
      %3240 = vmatpush.msra.mxu0 0.0
      %3241 = vmatpush.msra.mxu0 0.0
      %3242 = vmatpush.msra.mxu0 0.0
      %3243 = vmatpush.msra.mxu0 0.0
      %3244 = vmatpush.msra.mxu0 0.0
      %3245 = vmatpush.msra.mxu0 %v322
      %3246 = vmatpush.msra.mxu0 %v233
      %3247 = vmatpush.msra.mxu0 %v232
      %3248 = vmatpush.msra.mxu0 %v231
      %3249 = vmatpush.msra.mxu0 %v230
      %3250 = vmatpush.msra.mxu0 %v229
      %3251 = vmatpush.msra.mxu0 %v228
      %3252 = vmatpush.msra.mxu0 %v227
      %3253 = vmatmul.f32.gmra.mxu0 %v3235
      %v3254 = vpop.f32.mrf.mxu0
      %v3255 = vadd.f32 0.0, %v3254
      %3256 = vdwg.mxu0
      %3257 = vmatpush.msra.mxu0 0.0
      %3258 = vmatpush.msra.mxu0 0.0
      %3259 = vmatpush.msra.mxu0 0.0
      %3260 = vmatpush.msra.mxu0 0.0
      %3261 = vmatpush.msra.mxu0 0.0
      %3262 = vmatpush.msra.mxu0 0.0
      %3263 = vmatpush.msra.mxu0 0.0
      %3264 = vmatpush.msra.mxu0 0.0
      %3265 = vmatpush.msra.mxu0 %v345
      %3266 = vmatpush.msra.mxu0 %v241
      %3267 = vmatpush.msra.mxu0 %v240
      %3268 = vmatpush.msra.mxu0 %v239
      %3269 = vmatpush.msra.mxu0 %v238
      %3270 = vmatpush.msra.mxu0 %v237
      %3271 = vmatpush.msra.mxu0 %v236
      %3272 = vmatpush.msra.mxu0 %v235
      %3273 = vmatmul.f32.gmra.mxu0 %v3235
      %v3274 = vpop.f32.mrf.mxu0
      %v3275 = vadd.f32 0.0, %v3274
      %3276 = vdwg.mxu0
      %v3277 = vmax.f32 %v3255, %v3275
      %v3278 = vadd.f32 %v3277, %v371
      %v3279 = vmax.f32 %v3278, 0.0
      %v3281 = vrot.slane %v3279, 1
      %v3282 = vrot.slane %v3279, 2
      %v3283 = vrot.slane %v3279, 3
      %v3284 = vrot.slane %v3279, 4
      %v3285 = vrot.slane %v3279, 5
      %3291 = vst.msk [vmem:[%s224 + $0x16] sm:$0x1] %vm386, %v3279
      %3292 = vst.msk [vmem:[%s224 + $0x36] sm:$0x1] %vm386, %v3281
      %3293 = vst.msk [vmem:[%s224 + $0x56] sm:$0x1] %vm386, %v3282
      %3294 = vst.msk [vmem:[%s224 + $0x76] sm:$0x1] %vm386, %v3283
      %3295 = vst.msk [vmem:[%s224 + $0x96] sm:$0x1] %vm386, %v3284
      %3296 = vst.msk [vmem:[%s224 + $0xb6] sm:$0x1] %vm386, %v3285
      %s3297 = scalar_lea.vmem %s219, 3680
      %v3298 = vld [vmem:[%s3297] sm:$0xff]
      %v3299 = vld [vmem:[%s3297 + $0x8] sm:$0xff]
      %v3300 = vld [vmem:[%s3297 + $0x10] sm:$0xff]
      %v3301 = vld [vmem:[%s3297 + $0x18] sm:$0xff]
      %v3302 = vld [vmem:[%s3297 + $0x20] sm:$0xff]
      %v3303 = vld [vmem:[%s3297 + $0x28] sm:$0xff]
      %v3304 = vld [vmem:[%s3297 + $0x30] sm:$0xff]
      %v3305 = vld [vmem:[%s3297 + $0x38] sm:$0xff]
      %v3306 = vld [vmem:[%s3297 + $0x40] sm:$0xff]
      %v3307 = vld [vmem:[%s3297 + $0x48] sm:$0x7]
      %s3308 = scalar_lea.vmem %s219, 3760
      %v3309 = vld [vmem:[%s3308] sm:$0xff]
      %v3310 = vld [vmem:[%s3308 + $0x8] sm:$0xff]
      %v3311 = vld [vmem:[%s3308 + $0x10] sm:$0xff]
      %v3312 = vld [vmem:[%s3308 + $0x18] sm:$0xff]
      %v3313 = vld [vmem:[%s3308 + $0x20] sm:$0xff]
      %v3314 = vld [vmem:[%s3308 + $0x28] sm:$0xff]
      %v3315 = vld [vmem:[%s3308 + $0x30] sm:$0xff]
      %v3316 = vld [vmem:[%s3308 + $0x38] sm:$0xff]
      %v3317 = vld [vmem:[%s3308 + $0x40] sm:$0xff]
      %v3318 = vld [vmem:[%s3308 + $0x48] sm:$0x7]
      %v3320 = vsel %vm268, %v3307, 0
      %3322 = vmatpush.msra.mxu0 0.0
      %3323 = vmatpush.msra.mxu0 0.0
      %3324 = vmatpush.msra.mxu0 0.0
      %3325 = vmatpush.msra.mxu0 0.0
      %3326 = vmatpush.msra.mxu0 0.0
      %3327 = vmatpush.msra.mxu0 0.0
      %3328 = vmatpush.msra.mxu0 %v3320
      %3329 = vmatpush.msra.mxu0 %v3306
      %3330 = vmatpush.msra.mxu0 %v3305
      %3331 = vmatpush.msra.mxu0 %v3304
      %3332 = vmatpush.msra.mxu0 %v3303
      %3333 = vmatpush.msra.mxu0 %v3302
      %3334 = vmatpush.msra.mxu0 %v3301
      %3335 = vmatpush.msra.mxu0 %v3300
      %3336 = vmatpush.msra.mxu0 %v3299
      %3337 = vmatpush.msra.mxu0 %v3298
      %3338 = vmatmul.f32.gmra.mxu0 %v266
      %v3339 = vpop.f32.mrf.mxu0
      %v3340 = vadd.f32 0.0, %v3339
      %3341 = vdwg.mxu0
      %v3343 = vsel %vm268, %v3318, 0
      %3345 = vmatpush.msra.mxu0 0.0
      %3346 = vmatpush.msra.mxu0 0.0
      %3347 = vmatpush.msra.mxu0 0.0
      %3348 = vmatpush.msra.mxu0 0.0
      %3349 = vmatpush.msra.mxu0 0.0
      %3350 = vmatpush.msra.mxu0 0.0
      %3351 = vmatpush.msra.mxu0 %v3343
      %3352 = vmatpush.msra.mxu0 %v3317
      %3353 = vmatpush.msra.mxu0 %v3316
      %3354 = vmatpush.msra.mxu0 %v3315
      %3355 = vmatpush.msra.mxu0 %v3314
      %3356 = vmatpush.msra.mxu0 %v3313
      %3357 = vmatpush.msra.mxu0 %v3312
      %3358 = vmatpush.msra.mxu0 %v3311
      %3359 = vmatpush.msra.mxu0 %v3310
      %3360 = vmatpush.msra.mxu0 %v3309
      %3361 = vmatmul.f32.gmra.mxu0 %v266
      %v3362 = vpop.f32.mrf.mxu0
      %v3363 = vadd.f32 0.0, %v3362
      %3364 = vdwg.mxu0
      %v3365 = vmax.f32 %v3340, %v3363
      %v3367 = vsel %vm316, %v3365, 0
      %3369 = vmatpush.msra.mxu0 0.0
      %3370 = vmatpush.msra.mxu0 0.0
      %3371 = vmatpush.msra.mxu0 0.0
      %3372 = vmatpush.msra.mxu0 0.0
      %3373 = vmatpush.msra.mxu0 0.0
      %3374 = vmatpush.msra.mxu0 0.0
      %3375 = vmatpush.msra.mxu0 0.0
      %3376 = vmatpush.msra.mxu0 0.0
      %3377 = vmatpush.msra.mxu0 %v322
      %3378 = vmatpush.msra.mxu0 %v233
      %3379 = vmatpush.msra.mxu0 %v232
      %3380 = vmatpush.msra.mxu0 %v231
      %3381 = vmatpush.msra.mxu0 %v230
      %3382 = vmatpush.msra.mxu0 %v229
      %3383 = vmatpush.msra.mxu0 %v228
      %3384 = vmatpush.msra.mxu0 %v227
      %3385 = vmatmul.f32.gmra.mxu0 %v3367
      %v3386 = vpop.f32.mrf.mxu0
      %v3387 = vadd.f32 0.0, %v3386
      %3388 = vdwg.mxu0
      %3389 = vmatpush.msra.mxu0 0.0
      %3390 = vmatpush.msra.mxu0 0.0
      %3391 = vmatpush.msra.mxu0 0.0
      %3392 = vmatpush.msra.mxu0 0.0
      %3393 = vmatpush.msra.mxu0 0.0
      %3394 = vmatpush.msra.mxu0 0.0
      %3395 = vmatpush.msra.mxu0 0.0
      %3396 = vmatpush.msra.mxu0 0.0
      %3397 = vmatpush.msra.mxu0 %v345
      %3398 = vmatpush.msra.mxu0 %v241
      %3399 = vmatpush.msra.mxu0 %v240
      %3400 = vmatpush.msra.mxu0 %v239
      %3401 = vmatpush.msra.mxu0 %v238
      %3402 = vmatpush.msra.mxu0 %v237
      %3403 = vmatpush.msra.mxu0 %v236
      %3404 = vmatpush.msra.mxu0 %v235
      %3405 = vmatmul.f32.gmra.mxu0 %v3367
      %v3406 = vpop.f32.mrf.mxu0
      %v3407 = vadd.f32 0.0, %v3406
      %3408 = vdwg.mxu0
      %v3409 = vmax.f32 %v3387, %v3407
      %v3410 = vadd.f32 %v3409, %v371
      %v3411 = vmax.f32 %v3410, 0.0
      %v3413 = vrot.slane %v3411, 1
      %v3414 = vrot.slane %v3411, 2
      %v3415 = vrot.slane %v3411, 3
      %v3416 = vrot.slane %v3411, 4
      %v3417 = vrot.slane %v3411, 5
      %3423 = vst.msk [vmem:[%s224 + $0x17] sm:$0x1] %vm386, %v3411
      %3424 = vst.msk [vmem:[%s224 + $0x37] sm:$0x1] %vm386, %v3413
      %3425 = vst.msk [vmem:[%s224 + $0x57] sm:$0x1] %vm386, %v3414
      %3426 = vst.msk [vmem:[%s224 + $0x77] sm:$0x1] %vm386, %v3415
      %3427 = vst.msk [vmem:[%s224 + $0x97] sm:$0x1] %vm386, %v3416
      %3428 = vst.msk [vmem:[%s224 + $0xb7] sm:$0x1] %vm386, %v3417
      %s3429 = scalar_lea.vmem %s219, 3840
      %v3430 = vld [vmem:[%s3429] sm:$0xff]
      %v3431 = vld [vmem:[%s3429 + $0x8] sm:$0xff]
      %v3432 = vld [vmem:[%s3429 + $0x10] sm:$0xff]
      %v3433 = vld [vmem:[%s3429 + $0x18] sm:$0xff]
      %v3434 = vld [vmem:[%s3429 + $0x20] sm:$0xff]
      %v3435 = vld [vmem:[%s3429 + $0x28] sm:$0xff]
      %v3436 = vld [vmem:[%s3429 + $0x30] sm:$0xff]
      %v3437 = vld [vmem:[%s3429 + $0x38] sm:$0xff]
      %v3438 = vld [vmem:[%s3429 + $0x40] sm:$0xff]
      %v3439 = vld [vmem:[%s3429 + $0x48] sm:$0x7]
      %s3440 = scalar_lea.vmem %s219, 3920
      %v3441 = vld [vmem:[%s3440] sm:$0xff]
      %v3442 = vld [vmem:[%s3440 + $0x8] sm:$0xff]
      %v3443 = vld [vmem:[%s3440 + $0x10] sm:$0xff]
      %v3444 = vld [vmem:[%s3440 + $0x18] sm:$0xff]
      %v3445 = vld [vmem:[%s3440 + $0x20] sm:$0xff]
      %v3446 = vld [vmem:[%s3440 + $0x28] sm:$0xff]
      %v3447 = vld [vmem:[%s3440 + $0x30] sm:$0xff]
      %v3448 = vld [vmem:[%s3440 + $0x38] sm:$0xff]
      %v3449 = vld [vmem:[%s3440 + $0x40] sm:$0xff]
      %v3450 = vld [vmem:[%s3440 + $0x48] sm:$0x7]
      %v3452 = vsel %vm268, %v3439, 0
      %3454 = vmatpush.msra.mxu0 0.0
      %3455 = vmatpush.msra.mxu0 0.0
      %3456 = vmatpush.msra.mxu0 0.0
      %3457 = vmatpush.msra.mxu0 0.0
      %3458 = vmatpush.msra.mxu0 0.0
      %3459 = vmatpush.msra.mxu0 0.0
      %3460 = vmatpush.msra.mxu0 %v3452
      %3461 = vmatpush.msra.mxu0 %v3438
      %3462 = vmatpush.msra.mxu0 %v3437
      %3463 = vmatpush.msra.mxu0 %v3436
      %3464 = vmatpush.msra.mxu0 %v3435
      %3465 = vmatpush.msra.mxu0 %v3434
      %3466 = vmatpush.msra.mxu0 %v3433
      %3467 = vmatpush.msra.mxu0 %v3432
      %3468 = vmatpush.msra.mxu0 %v3431
      %3469 = vmatpush.msra.mxu0 %v3430
      %3470 = vmatmul.f32.gmra.mxu0 %v266
      %v3471 = vpop.f32.mrf.mxu0
      %v3472 = vadd.f32 0.0, %v3471
      %3473 = vdwg.mxu0
      %v3475 = vsel %vm268, %v3450, 0
      %3477 = vmatpush.msra.mxu0 0.0
      %3478 = vmatpush.msra.mxu0 0.0
      %3479 = vmatpush.msra.mxu0 0.0
      %3480 = vmatpush.msra.mxu0 0.0
      %3481 = vmatpush.msra.mxu0 0.0
      %3482 = vmatpush.msra.mxu0 0.0
      %3483 = vmatpush.msra.mxu0 %v3475
      %3484 = vmatpush.msra.mxu0 %v3449
      %3485 = vmatpush.msra.mxu0 %v3448
      %3486 = vmatpush.msra.mxu0 %v3447
      %3487 = vmatpush.msra.mxu0 %v3446
      %3488 = vmatpush.msra.mxu0 %v3445
      %3489 = vmatpush.msra.mxu0 %v3444
      %3490 = vmatpush.msra.mxu0 %v3443
      %3491 = vmatpush.msra.mxu0 %v3442
      %3492 = vmatpush.msra.mxu0 %v3441
      %3493 = vmatmul.f32.gmra.mxu0 %v266
      %v3494 = vpop.f32.mrf.mxu0
      %v3495 = vadd.f32 0.0, %v3494
      %3496 = vdwg.mxu0
      %v3497 = vmax.f32 %v3472, %v3495
      %v3499 = vsel %vm316, %v3497, 0
      %3501 = vmatpush.msra.mxu0 0.0
      %3502 = vmatpush.msra.mxu0 0.0
      %3503 = vmatpush.msra.mxu0 0.0
      %3504 = vmatpush.msra.mxu0 0.0
      %3505 = vmatpush.msra.mxu0 0.0
      %3506 = vmatpush.msra.mxu0 0.0
      %3507 = vmatpush.msra.mxu0 0.0
      %3508 = vmatpush.msra.mxu0 0.0
      %3509 = vmatpush.msra.mxu0 %v322
      %3510 = vmatpush.msra.mxu0 %v233
      %3511 = vmatpush.msra.mxu0 %v232
      %3512 = vmatpush.msra.mxu0 %v231
      %3513 = vmatpush.msra.mxu0 %v230
      %3514 = vmatpush.msra.mxu0 %v229
      %3515 = vmatpush.msra.mxu0 %v228
      %3516 = vmatpush.msra.mxu0 %v227
      %3517 = vmatmul.f32.gmra.mxu0 %v3499
      %v3518 = vpop.f32.mrf.mxu0
      %v3519 = vadd.f32 0.0, %v3518
      %3520 = vdwg.mxu0
      %3521 = vmatpush.msra.mxu0 0.0
      %3522 = vmatpush.msra.mxu0 0.0
      %3523 = vmatpush.msra.mxu0 0.0
      %3524 = vmatpush.msra.mxu0 0.0
      %3525 = vmatpush.msra.mxu0 0.0
      %3526 = vmatpush.msra.mxu0 0.0
      %3527 = vmatpush.msra.mxu0 0.0
      %3528 = vmatpush.msra.mxu0 0.0
      %3529 = vmatpush.msra.mxu0 %v345
      %3530 = vmatpush.msra.mxu0 %v241
      %3531 = vmatpush.msra.mxu0 %v240
      %3532 = vmatpush.msra.mxu0 %v239
      %3533 = vmatpush.msra.mxu0 %v238
      %3534 = vmatpush.msra.mxu0 %v237
      %3535 = vmatpush.msra.mxu0 %v236
      %3536 = vmatpush.msra.mxu0 %v235
      %3537 = vmatmul.f32.gmra.mxu0 %v3499
      %v3538 = vpop.f32.mrf.mxu0
      %v3539 = vadd.f32 0.0, %v3538
      %3540 = vdwg.mxu0
      %v3541 = vmax.f32 %v3519, %v3539
      %v3542 = vadd.f32 %v3541, %v371
      %v3543 = vmax.f32 %v3542, 0.0
      %v3545 = vrot.slane %v3543, 1
      %v3546 = vrot.slane %v3543, 2
      %v3547 = vrot.slane %v3543, 3
      %v3548 = vrot.slane %v3543, 4
      %v3549 = vrot.slane %v3543, 5
      %3555 = vst.msk [vmem:[%s224 + $0x18] sm:$0x1] %vm386, %v3543
      %3556 = vst.msk [vmem:[%s224 + $0x38] sm:$0x1] %vm386, %v3545
      %3557 = vst.msk [vmem:[%s224 + $0x58] sm:$0x1] %vm386, %v3546
      %3558 = vst.msk [vmem:[%s224 + $0x78] sm:$0x1] %vm386, %v3547
      %3559 = vst.msk [vmem:[%s224 + $0x98] sm:$0x1] %vm386, %v3548
      %3560 = vst.msk [vmem:[%s224 + $0xb8] sm:$0x1] %vm386, %v3549
      %s3561 = scalar_lea.vmem %s219, 4000
      %v3562 = vld [vmem:[%s3561] sm:$0xff]
      %v3563 = vld [vmem:[%s3561 + $0x8] sm:$0xff]
      %v3564 = vld [vmem:[%s3561 + $0x10] sm:$0xff]
      %v3565 = vld [vmem:[%s3561 + $0x18] sm:$0xff]
      %v3566 = vld [vmem:[%s3561 + $0x20] sm:$0xff]
      %v3567 = vld [vmem:[%s3561 + $0x28] sm:$0xff]
      %v3568 = vld [vmem:[%s3561 + $0x30] sm:$0xff]
      %v3569 = vld [vmem:[%s3561 + $0x38] sm:$0xff]
      %v3570 = vld [vmem:[%s3561 + $0x40] sm:$0xff]
      %v3571 = vld [vmem:[%s3561 + $0x48] sm:$0x7]
      %s3572 = scalar_lea.vmem %s219, 4080
      %v3573 = vld [vmem:[%s3572] sm:$0xff]
      %v3574 = vld [vmem:[%s3572 + $0x8] sm:$0xff]
      %v3575 = vld [vmem:[%s3572 + $0x10] sm:$0xff]
      %v3576 = vld [vmem:[%s3572 + $0x18] sm:$0xff]
      %v3577 = vld [vmem:[%s3572 + $0x20] sm:$0xff]
      %v3578 = vld [vmem:[%s3572 + $0x28] sm:$0xff]
      %v3579 = vld [vmem:[%s3572 + $0x30] sm:$0xff]
      %v3580 = vld [vmem:[%s3572 + $0x38] sm:$0xff]
      %v3581 = vld [vmem:[%s3572 + $0x40] sm:$0xff]
      %v3582 = vld [vmem:[%s3572 + $0x48] sm:$0x7]
      %v3584 = vsel %vm268, %v3571, 0
      %3586 = vmatpush.msra.mxu0 0.0
      %3587 = vmatpush.msra.mxu0 0.0
      %3588 = vmatpush.msra.mxu0 0.0
      %3589 = vmatpush.msra.mxu0 0.0
      %3590 = vmatpush.msra.mxu0 0.0
      %3591 = vmatpush.msra.mxu0 0.0
      %3592 = vmatpush.msra.mxu0 %v3584
      %3593 = vmatpush.msra.mxu0 %v3570
      %3594 = vmatpush.msra.mxu0 %v3569
      %3595 = vmatpush.msra.mxu0 %v3568
      %3596 = vmatpush.msra.mxu0 %v3567
      %3597 = vmatpush.msra.mxu0 %v3566
      %3598 = vmatpush.msra.mxu0 %v3565
      %3599 = vmatpush.msra.mxu0 %v3564
      %3600 = vmatpush.msra.mxu0 %v3563
      %3601 = vmatpush.msra.mxu0 %v3562
      %3602 = vmatmul.f32.gmra.mxu0 %v266
      %v3603 = vpop.f32.mrf.mxu0
      %v3604 = vadd.f32 0.0, %v3603
      %3605 = vdwg.mxu0
      %v3607 = vsel %vm268, %v3582, 0
      %3609 = vmatpush.msra.mxu0 0.0
      %3610 = vmatpush.msra.mxu0 0.0
      %3611 = vmatpush.msra.mxu0 0.0
      %3612 = vmatpush.msra.mxu0 0.0
      %3613 = vmatpush.msra.mxu0 0.0
      %3614 = vmatpush.msra.mxu0 0.0
      %3615 = vmatpush.msra.mxu0 %v3607
      %3616 = vmatpush.msra.mxu0 %v3581
      %3617 = vmatpush.msra.mxu0 %v3580
      %3618 = vmatpush.msra.mxu0 %v3579
      %3619 = vmatpush.msra.mxu0 %v3578
      %3620 = vmatpush.msra.mxu0 %v3577
      %3621 = vmatpush.msra.mxu0 %v3576
      %3622 = vmatpush.msra.mxu0 %v3575
      %3623 = vmatpush.msra.mxu0 %v3574
      %3624 = vmatpush.msra.mxu0 %v3573
      %3625 = vmatmul.f32.gmra.mxu0 %v266
      %v3626 = vpop.f32.mrf.mxu0
      %v3627 = vadd.f32 0.0, %v3626
      %3628 = vdwg.mxu0
      %v3629 = vmax.f32 %v3604, %v3627
      %v3631 = vsel %vm316, %v3629, 0
      %3633 = vmatpush.msra.mxu0 0.0
      %3634 = vmatpush.msra.mxu0 0.0
      %3635 = vmatpush.msra.mxu0 0.0
      %3636 = vmatpush.msra.mxu0 0.0
      %3637 = vmatpush.msra.mxu0 0.0
      %3638 = vmatpush.msra.mxu0 0.0
      %3639 = vmatpush.msra.mxu0 0.0
      %3640 = vmatpush.msra.mxu0 0.0
      %3641 = vmatpush.msra.mxu0 %v322
      %3642 = vmatpush.msra.mxu0 %v233
      %3643 = vmatpush.msra.mxu0 %v232
      %3644 = vmatpush.msra.mxu0 %v231
      %3645 = vmatpush.msra.mxu0 %v230
      %3646 = vmatpush.msra.mxu0 %v229
      %3647 = vmatpush.msra.mxu0 %v228
      %3648 = vmatpush.msra.mxu0 %v227
      %3649 = vmatmul.f32.gmra.mxu0 %v3631
      %v3650 = vpop.f32.mrf.mxu0
      %v3651 = vadd.f32 0.0, %v3650
      %3652 = vdwg.mxu0
      %3653 = vmatpush.msra.mxu0 0.0
      %3654 = vmatpush.msra.mxu0 0.0
      %3655 = vmatpush.msra.mxu0 0.0
      %3656 = vmatpush.msra.mxu0 0.0
      %3657 = vmatpush.msra.mxu0 0.0
      %3658 = vmatpush.msra.mxu0 0.0
      %3659 = vmatpush.msra.mxu0 0.0
      %3660 = vmatpush.msra.mxu0 0.0
      %3661 = vmatpush.msra.mxu0 %v345
      %3662 = vmatpush.msra.mxu0 %v241
      %3663 = vmatpush.msra.mxu0 %v240
      %3664 = vmatpush.msra.mxu0 %v239
      %3665 = vmatpush.msra.mxu0 %v238
      %3666 = vmatpush.msra.mxu0 %v237
      %3667 = vmatpush.msra.mxu0 %v236
      %3668 = vmatpush.msra.mxu0 %v235
      %3669 = vmatmul.f32.gmra.mxu0 %v3631
      %v3670 = vpop.f32.mrf.mxu0
      %v3671 = vadd.f32 0.0, %v3670
      %3672 = vdwg.mxu0
      %v3673 = vmax.f32 %v3651, %v3671
      %v3674 = vadd.f32 %v3673, %v371
      %v3675 = vmax.f32 %v3674, 0.0
      %v3677 = vrot.slane %v3675, 1
      %v3678 = vrot.slane %v3675, 2
      %v3679 = vrot.slane %v3675, 3
      %v3680 = vrot.slane %v3675, 4
      %v3681 = vrot.slane %v3675, 5
      %3687 = vst.msk [vmem:[%s224 + $0x19] sm:$0x1] %vm386, %v3675
      %3688 = vst.msk [vmem:[%s224 + $0x39] sm:$0x1] %vm386, %v3677
      %3689 = vst.msk [vmem:[%s224 + $0x59] sm:$0x1] %vm386, %v3678
      %3690 = vst.msk [vmem:[%s224 + $0x79] sm:$0x1] %vm386, %v3679
      %3691 = vst.msk [vmem:[%s224 + $0x99] sm:$0x1] %vm386, %v3680
      %3692 = vst.msk [vmem:[%s224 + $0xb9] sm:$0x1] %vm386, %v3681
      %s3693 = scalar_lea.vmem %s219, 4160
      %v3694 = vld [vmem:[%s3693] sm:$0xff]
      %v3695 = vld [vmem:[%s3693 + $0x8] sm:$0xff]
      %v3696 = vld [vmem:[%s3693 + $0x10] sm:$0xff]
      %v3697 = vld [vmem:[%s3693 + $0x18] sm:$0xff]
      %v3698 = vld [vmem:[%s3693 + $0x20] sm:$0xff]
      %v3699 = vld [vmem:[%s3693 + $0x28] sm:$0xff]
      %v3700 = vld [vmem:[%s3693 + $0x30] sm:$0xff]
      %v3701 = vld [vmem:[%s3693 + $0x38] sm:$0xff]
      %v3702 = vld [vmem:[%s3693 + $0x40] sm:$0xff]
      %v3703 = vld [vmem:[%s3693 + $0x48] sm:$0x7]
      %s3704 = scalar_lea.vmem %s219, 4240
      %v3705 = vld [vmem:[%s3704] sm:$0xff]
      %v3706 = vld [vmem:[%s3704 + $0x8] sm:$0xff]
      %v3707 = vld [vmem:[%s3704 + $0x10] sm:$0xff]
      %v3708 = vld [vmem:[%s3704 + $0x18] sm:$0xff]
      %v3709 = vld [vmem:[%s3704 + $0x20] sm:$0xff]
      %v3710 = vld [vmem:[%s3704 + $0x28] sm:$0xff]
      %v3711 = vld [vmem:[%s3704 + $0x30] sm:$0xff]
      %v3712 = vld [vmem:[%s3704 + $0x38] sm:$0xff]
      %v3713 = vld [vmem:[%s3704 + $0x40] sm:$0xff]
      %v3714 = vld [vmem:[%s3704 + $0x48] sm:$0x7]
      %v3716 = vsel %vm268, %v3703, 0
      %3718 = vmatpush.msra.mxu0 0.0
      %3719 = vmatpush.msra.mxu0 0.0
      %3720 = vmatpush.msra.mxu0 0.0
      %3721 = vmatpush.msra.mxu0 0.0
      %3722 = vmatpush.msra.mxu0 0.0
      %3723 = vmatpush.msra.mxu0 0.0
      %3724 = vmatpush.msra.mxu0 %v3716
      %3725 = vmatpush.msra.mxu0 %v3702
      %3726 = vmatpush.msra.mxu0 %v3701
      %3727 = vmatpush.msra.mxu0 %v3700
      %3728 = vmatpush.msra.mxu0 %v3699
      %3729 = vmatpush.msra.mxu0 %v3698
      %3730 = vmatpush.msra.mxu0 %v3697
      %3731 = vmatpush.msra.mxu0 %v3696
      %3732 = vmatpush.msra.mxu0 %v3695
      %3733 = vmatpush.msra.mxu0 %v3694
      %3734 = vmatmul.f32.gmra.mxu0 %v266
      %v3735 = vpop.f32.mrf.mxu0
      %v3736 = vadd.f32 0.0, %v3735
      %3737 = vdwg.mxu0
      %v3739 = vsel %vm268, %v3714, 0
      %3741 = vmatpush.msra.mxu0 0.0
      %3742 = vmatpush.msra.mxu0 0.0
      %3743 = vmatpush.msra.mxu0 0.0
      %3744 = vmatpush.msra.mxu0 0.0
      %3745 = vmatpush.msra.mxu0 0.0
      %3746 = vmatpush.msra.mxu0 0.0
      %3747 = vmatpush.msra.mxu0 %v3739
      %3748 = vmatpush.msra.mxu0 %v3713
      %3749 = vmatpush.msra.mxu0 %v3712
      %3750 = vmatpush.msra.mxu0 %v3711
      %3751 = vmatpush.msra.mxu0 %v3710
      %3752 = vmatpush.msra.mxu0 %v3709
      %3753 = vmatpush.msra.mxu0 %v3708
      %3754 = vmatpush.msra.mxu0 %v3707
      %3755 = vmatpush.msra.mxu0 %v3706
      %3756 = vmatpush.msra.mxu0 %v3705
      %3757 = vmatmul.f32.gmra.mxu0 %v266
      %v3758 = vpop.f32.mrf.mxu0
      %v3759 = vadd.f32 0.0, %v3758
      %3760 = vdwg.mxu0
      %v3761 = vmax.f32 %v3736, %v3759
      %v3763 = vsel %vm316, %v3761, 0
      %3765 = vmatpush.msra.mxu0 0.0
      %3766 = vmatpush.msra.mxu0 0.0
      %3767 = vmatpush.msra.mxu0 0.0
      %3768 = vmatpush.msra.mxu0 0.0
      %3769 = vmatpush.msra.mxu0 0.0
      %3770 = vmatpush.msra.mxu0 0.0
      %3771 = vmatpush.msra.mxu0 0.0
      %3772 = vmatpush.msra.mxu0 0.0
      %3773 = vmatpush.msra.mxu0 %v322
      %3774 = vmatpush.msra.mxu0 %v233
      %3775 = vmatpush.msra.mxu0 %v232
      %3776 = vmatpush.msra.mxu0 %v231
      %3777 = vmatpush.msra.mxu0 %v230
      %3778 = vmatpush.msra.mxu0 %v229
      %3779 = vmatpush.msra.mxu0 %v228
      %3780 = vmatpush.msra.mxu0 %v227
      %3781 = vmatmul.f32.gmra.mxu0 %v3763
      %v3782 = vpop.f32.mrf.mxu0
      %v3783 = vadd.f32 0.0, %v3782
      %3784 = vdwg.mxu0
      %3785 = vmatpush.msra.mxu0 0.0
      %3786 = vmatpush.msra.mxu0 0.0
      %3787 = vmatpush.msra.mxu0 0.0
      %3788 = vmatpush.msra.mxu0 0.0
      %3789 = vmatpush.msra.mxu0 0.0
      %3790 = vmatpush.msra.mxu0 0.0
      %3791 = vmatpush.msra.mxu0 0.0
      %3792 = vmatpush.msra.mxu0 0.0
      %3793 = vmatpush.msra.mxu0 %v345
      %3794 = vmatpush.msra.mxu0 %v241
      %3795 = vmatpush.msra.mxu0 %v240
      %3796 = vmatpush.msra.mxu0 %v239
      %3797 = vmatpush.msra.mxu0 %v238
      %3798 = vmatpush.msra.mxu0 %v237
      %3799 = vmatpush.msra.mxu0 %v236
      %3800 = vmatpush.msra.mxu0 %v235
      %3801 = vmatmul.f32.gmra.mxu0 %v3763
      %v3802 = vpop.f32.mrf.mxu0
      %v3803 = vadd.f32 0.0, %v3802
      %3804 = vdwg.mxu0
      %v3805 = vmax.f32 %v3783, %v3803
      %v3806 = vadd.f32 %v3805, %v371
      %v3807 = vmax.f32 %v3806, 0.0
      %v3809 = vrot.slane %v3807, 1
      %v3810 = vrot.slane %v3807, 2
      %v3811 = vrot.slane %v3807, 3
      %v3812 = vrot.slane %v3807, 4
      %v3813 = vrot.slane %v3807, 5
      %3819 = vst.msk [vmem:[%s224 + $0x1a] sm:$0x1] %vm386, %v3807
      %3820 = vst.msk [vmem:[%s224 + $0x3a] sm:$0x1] %vm386, %v3809
      %3821 = vst.msk [vmem:[%s224 + $0x5a] sm:$0x1] %vm386, %v3810
      %3822 = vst.msk [vmem:[%s224 + $0x7a] sm:$0x1] %vm386, %v3811
      %3823 = vst.msk [vmem:[%s224 + $0x9a] sm:$0x1] %vm386, %v3812
      %3824 = vst.msk [vmem:[%s224 + $0xba] sm:$0x1] %vm386, %v3813
      %s3825 = scalar_lea.vmem %s219, 4320
      %v3826 = vld [vmem:[%s3825] sm:$0xff]
      %v3827 = vld [vmem:[%s3825 + $0x8] sm:$0xff]
      %v3828 = vld [vmem:[%s3825 + $0x10] sm:$0xff]
      %v3829 = vld [vmem:[%s3825 + $0x18] sm:$0xff]
      %v3830 = vld [vmem:[%s3825 + $0x20] sm:$0xff]
      %v3831 = vld [vmem:[%s3825 + $0x28] sm:$0xff]
      %v3832 = vld [vmem:[%s3825 + $0x30] sm:$0xff]
      %v3833 = vld [vmem:[%s3825 + $0x38] sm:$0xff]
      %v3834 = vld [vmem:[%s3825 + $0x40] sm:$0xff]
      %v3835 = vld [vmem:[%s3825 + $0x48] sm:$0x7]
      %s3836 = scalar_lea.vmem %s219, 4400
      %v3837 = vld [vmem:[%s3836] sm:$0xff]
      %v3838 = vld [vmem:[%s3836 + $0x8] sm:$0xff]
      %v3839 = vld [vmem:[%s3836 + $0x10] sm:$0xff]
      %v3840 = vld [vmem:[%s3836 + $0x18] sm:$0xff]
      %v3841 = vld [vmem:[%s3836 + $0x20] sm:$0xff]
      %v3842 = vld [vmem:[%s3836 + $0x28] sm:$0xff]
      %v3843 = vld [vmem:[%s3836 + $0x30] sm:$0xff]
      %v3844 = vld [vmem:[%s3836 + $0x38] sm:$0xff]
      %v3845 = vld [vmem:[%s3836 + $0x40] sm:$0xff]
      %v3846 = vld [vmem:[%s3836 + $0x48] sm:$0x7]
      %v3848 = vsel %vm268, %v3835, 0
      %3850 = vmatpush.msra.mxu0 0.0
      %3851 = vmatpush.msra.mxu0 0.0
      %3852 = vmatpush.msra.mxu0 0.0
      %3853 = vmatpush.msra.mxu0 0.0
      %3854 = vmatpush.msra.mxu0 0.0
      %3855 = vmatpush.msra.mxu0 0.0
      %3856 = vmatpush.msra.mxu0 %v3848
      %3857 = vmatpush.msra.mxu0 %v3834
      %3858 = vmatpush.msra.mxu0 %v3833
      %3859 = vmatpush.msra.mxu0 %v3832
      %3860 = vmatpush.msra.mxu0 %v3831
      %3861 = vmatpush.msra.mxu0 %v3830
      %3862 = vmatpush.msra.mxu0 %v3829
      %3863 = vmatpush.msra.mxu0 %v3828
      %3864 = vmatpush.msra.mxu0 %v3827
      %3865 = vmatpush.msra.mxu0 %v3826
      %3866 = vmatmul.f32.gmra.mxu0 %v266
      %v3867 = vpop.f32.mrf.mxu0
      %v3868 = vadd.f32 0.0, %v3867
      %3869 = vdwg.mxu0
      %v3871 = vsel %vm268, %v3846, 0
      %3873 = vmatpush.msra.mxu0 0.0
      %3874 = vmatpush.msra.mxu0 0.0
      %3875 = vmatpush.msra.mxu0 0.0
      %3876 = vmatpush.msra.mxu0 0.0
      %3877 = vmatpush.msra.mxu0 0.0
      %3878 = vmatpush.msra.mxu0 0.0
      %3879 = vmatpush.msra.mxu0 %v3871
      %3880 = vmatpush.msra.mxu0 %v3845
      %3881 = vmatpush.msra.mxu0 %v3844
      %3882 = vmatpush.msra.mxu0 %v3843
      %3883 = vmatpush.msra.mxu0 %v3842
      %3884 = vmatpush.msra.mxu0 %v3841
      %3885 = vmatpush.msra.mxu0 %v3840
      %3886 = vmatpush.msra.mxu0 %v3839
      %3887 = vmatpush.msra.mxu0 %v3838
      %3888 = vmatpush.msra.mxu0 %v3837
      %3889 = vmatmul.f32.gmra.mxu0 %v266
      %v3890 = vpop.f32.mrf.mxu0
      %v3891 = vadd.f32 0.0, %v3890
      %3892 = vdwg.mxu0
      %v3893 = vmax.f32 %v3868, %v3891
      %v3895 = vsel %vm316, %v3893, 0
      %3897 = vmatpush.msra.mxu0 0.0
      %3898 = vmatpush.msra.mxu0 0.0
      %3899 = vmatpush.msra.mxu0 0.0
      %3900 = vmatpush.msra.mxu0 0.0
      %3901 = vmatpush.msra.mxu0 0.0
      %3902 = vmatpush.msra.mxu0 0.0
      %3903 = vmatpush.msra.mxu0 0.0
      %3904 = vmatpush.msra.mxu0 0.0
      %3905 = vmatpush.msra.mxu0 %v322
      %3906 = vmatpush.msra.mxu0 %v233
      %3907 = vmatpush.msra.mxu0 %v232
      %3908 = vmatpush.msra.mxu0 %v231
      %3909 = vmatpush.msra.mxu0 %v230
      %3910 = vmatpush.msra.mxu0 %v229
      %3911 = vmatpush.msra.mxu0 %v228
      %3912 = vmatpush.msra.mxu0 %v227
      %3913 = vmatmul.f32.gmra.mxu0 %v3895
      %v3914 = vpop.f32.mrf.mxu0
      %v3915 = vadd.f32 0.0, %v3914
      %3916 = vdwg.mxu0
      %3917 = vmatpush.msra.mxu0 0.0
      %3918 = vmatpush.msra.mxu0 0.0
      %3919 = vmatpush.msra.mxu0 0.0
      %3920 = vmatpush.msra.mxu0 0.0
      %3921 = vmatpush.msra.mxu0 0.0
      %3922 = vmatpush.msra.mxu0 0.0
      %3923 = vmatpush.msra.mxu0 0.0
      %3924 = vmatpush.msra.mxu0 0.0
      %3925 = vmatpush.msra.mxu0 %v345
      %3926 = vmatpush.msra.mxu0 %v241
      %3927 = vmatpush.msra.mxu0 %v240
      %3928 = vmatpush.msra.mxu0 %v239
      %3929 = vmatpush.msra.mxu0 %v238
      %3930 = vmatpush.msra.mxu0 %v237
      %3931 = vmatpush.msra.mxu0 %v236
      %3932 = vmatpush.msra.mxu0 %v235
      %3933 = vmatmul.f32.gmra.mxu0 %v3895
      %v3934 = vpop.f32.mrf.mxu0
      %v3935 = vadd.f32 0.0, %v3934
      %3936 = vdwg.mxu0
      %v3937 = vmax.f32 %v3915, %v3935
      %v3938 = vadd.f32 %v3937, %v371
      %v3939 = vmax.f32 %v3938, 0.0
      %v3941 = vrot.slane %v3939, 1
      %v3942 = vrot.slane %v3939, 2
      %v3943 = vrot.slane %v3939, 3
      %v3944 = vrot.slane %v3939, 4
      %v3945 = vrot.slane %v3939, 5
      %3951 = vst.msk [vmem:[%s224 + $0x1b] sm:$0x1] %vm386, %v3939
      %3952 = vst.msk [vmem:[%s224 + $0x3b] sm:$0x1] %vm386, %v3941
      %3953 = vst.msk [vmem:[%s224 + $0x5b] sm:$0x1] %vm386, %v3942
      %3954 = vst.msk [vmem:[%s224 + $0x7b] sm:$0x1] %vm386, %v3943
      %3955 = vst.msk [vmem:[%s224 + $0x9b] sm:$0x1] %vm386, %v3944
      %3956 = vst.msk [vmem:[%s224 + $0xbb] sm:$0x1] %vm386, %v3945
      %s3957 = scalar_lea.vmem %s219, 4480
      %v3958 = vld [vmem:[%s3957] sm:$0xff]
      %v3959 = vld [vmem:[%s3957 + $0x8] sm:$0xff]
      %v3960 = vld [vmem:[%s3957 + $0x10] sm:$0xff]
      %v3961 = vld [vmem:[%s3957 + $0x18] sm:$0xff]
      %v3962 = vld [vmem:[%s3957 + $0x20] sm:$0xff]
      %v3963 = vld [vmem:[%s3957 + $0x28] sm:$0xff]
      %v3964 = vld [vmem:[%s3957 + $0x30] sm:$0xff]
      %v3965 = vld [vmem:[%s3957 + $0x38] sm:$0xff]
      %v3966 = vld [vmem:[%s3957 + $0x40] sm:$0xff]
      %v3967 = vld [vmem:[%s3957 + $0x48] sm:$0x7]
      %s3968 = scalar_lea.vmem %s219, 4560
      %v3969 = vld [vmem:[%s3968] sm:$0xff]
      %v3970 = vld [vmem:[%s3968 + $0x8] sm:$0xff]
      %v3971 = vld [vmem:[%s3968 + $0x10] sm:$0xff]
      %v3972 = vld [vmem:[%s3968 + $0x18] sm:$0xff]
      %v3973 = vld [vmem:[%s3968 + $0x20] sm:$0xff]
      %v3974 = vld [vmem:[%s3968 + $0x28] sm:$0xff]
      %v3975 = vld [vmem:[%s3968 + $0x30] sm:$0xff]
      %v3976 = vld [vmem:[%s3968 + $0x38] sm:$0xff]
      %v3977 = vld [vmem:[%s3968 + $0x40] sm:$0xff]
      %v3978 = vld [vmem:[%s3968 + $0x48] sm:$0x7]
      %v3980 = vsel %vm268, %v3967, 0
      %3982 = vmatpush.msra.mxu0 0.0
      %3983 = vmatpush.msra.mxu0 0.0
      %3984 = vmatpush.msra.mxu0 0.0
      %3985 = vmatpush.msra.mxu0 0.0
      %3986 = vmatpush.msra.mxu0 0.0
      %3987 = vmatpush.msra.mxu0 0.0
      %3988 = vmatpush.msra.mxu0 %v3980
      %3989 = vmatpush.msra.mxu0 %v3966
      %3990 = vmatpush.msra.mxu0 %v3965
      %3991 = vmatpush.msra.mxu0 %v3964
      %3992 = vmatpush.msra.mxu0 %v3963
      %3993 = vmatpush.msra.mxu0 %v3962
      %3994 = vmatpush.msra.mxu0 %v3961
      %3995 = vmatpush.msra.mxu0 %v3960
      %3996 = vmatpush.msra.mxu0 %v3959
      %3997 = vmatpush.msra.mxu0 %v3958
      %3998 = vmatmul.f32.gmra.mxu0 %v266
      %v3999 = vpop.f32.mrf.mxu0
      %v4000 = vadd.f32 0.0, %v3999
      %4001 = vdwg.mxu0
      %v4003 = vsel %vm268, %v3978, 0
      %4005 = vmatpush.msra.mxu0 0.0
      %4006 = vmatpush.msra.mxu0 0.0
      %4007 = vmatpush.msra.mxu0 0.0
      %4008 = vmatpush.msra.mxu0 0.0
      %4009 = vmatpush.msra.mxu0 0.0
      %4010 = vmatpush.msra.mxu0 0.0
      %4011 = vmatpush.msra.mxu0 %v4003
      %4012 = vmatpush.msra.mxu0 %v3977
      %4013 = vmatpush.msra.mxu0 %v3976
      %4014 = vmatpush.msra.mxu0 %v3975
      %4015 = vmatpush.msra.mxu0 %v3974
      %4016 = vmatpush.msra.mxu0 %v3973
      %4017 = vmatpush.msra.mxu0 %v3972
      %4018 = vmatpush.msra.mxu0 %v3971
      %4019 = vmatpush.msra.mxu0 %v3970
      %4020 = vmatpush.msra.mxu0 %v3969
      %4021 = vmatmul.f32.gmra.mxu0 %v266
      %v4022 = vpop.f32.mrf.mxu0
      %v4023 = vadd.f32 0.0, %v4022
      %4024 = vdwg.mxu0
      %v4025 = vmax.f32 %v4000, %v4023
      %v4027 = vsel %vm316, %v4025, 0
      %4029 = vmatpush.msra.mxu0 0.0
      %4030 = vmatpush.msra.mxu0 0.0
      %4031 = vmatpush.msra.mxu0 0.0
      %4032 = vmatpush.msra.mxu0 0.0
      %4033 = vmatpush.msra.mxu0 0.0
      %4034 = vmatpush.msra.mxu0 0.0
      %4035 = vmatpush.msra.mxu0 0.0
      %4036 = vmatpush.msra.mxu0 0.0
      %4037 = vmatpush.msra.mxu0 %v322
      %4038 = vmatpush.msra.mxu0 %v233
      %4039 = vmatpush.msra.mxu0 %v232
      %4040 = vmatpush.msra.mxu0 %v231
      %4041 = vmatpush.msra.mxu0 %v230
      %4042 = vmatpush.msra.mxu0 %v229
      %4043 = vmatpush.msra.mxu0 %v228
      %4044 = vmatpush.msra.mxu0 %v227
      %4045 = vmatmul.f32.gmra.mxu0 %v4027
      %v4046 = vpop.f32.mrf.mxu0
      %v4047 = vadd.f32 0.0, %v4046
      %4048 = vdwg.mxu0
      %4049 = vmatpush.msra.mxu0 0.0
      %4050 = vmatpush.msra.mxu0 0.0
      %4051 = vmatpush.msra.mxu0 0.0
      %4052 = vmatpush.msra.mxu0 0.0
      %4053 = vmatpush.msra.mxu0 0.0
      %4054 = vmatpush.msra.mxu0 0.0
      %4055 = vmatpush.msra.mxu0 0.0
      %4056 = vmatpush.msra.mxu0 0.0
      %4057 = vmatpush.msra.mxu0 %v345
      %4058 = vmatpush.msra.mxu0 %v241
      %4059 = vmatpush.msra.mxu0 %v240
      %4060 = vmatpush.msra.mxu0 %v239
      %4061 = vmatpush.msra.mxu0 %v238
      %4062 = vmatpush.msra.mxu0 %v237
      %4063 = vmatpush.msra.mxu0 %v236
      %4064 = vmatpush.msra.mxu0 %v235
      %4065 = vmatmul.f32.gmra.mxu0 %v4027
      %v4066 = vpop.f32.mrf.mxu0
      %v4067 = vadd.f32 0.0, %v4066
      %4068 = vdwg.mxu0
      %v4069 = vmax.f32 %v4047, %v4067
      %v4070 = vadd.f32 %v4069, %v371
      %v4071 = vmax.f32 %v4070, 0.0
      %v4073 = vrot.slane %v4071, 1
      %v4074 = vrot.slane %v4071, 2
      %v4075 = vrot.slane %v4071, 3
      %v4076 = vrot.slane %v4071, 4
      %v4077 = vrot.slane %v4071, 5
      %4083 = vst.msk [vmem:[%s224 + $0x1c] sm:$0x1] %vm386, %v4071
      %4084 = vst.msk [vmem:[%s224 + $0x3c] sm:$0x1] %vm386, %v4073
      %4085 = vst.msk [vmem:[%s224 + $0x5c] sm:$0x1] %vm386, %v4074
      %4086 = vst.msk [vmem:[%s224 + $0x7c] sm:$0x1] %vm386, %v4075
      %4087 = vst.msk [vmem:[%s224 + $0x9c] sm:$0x1] %vm386, %v4076
      %4088 = vst.msk [vmem:[%s224 + $0xbc] sm:$0x1] %vm386, %v4077
      %s4089 = scalar_lea.vmem %s219, 4640
      %v4090 = vld [vmem:[%s4089] sm:$0xff]
      %v4091 = vld [vmem:[%s4089 + $0x8] sm:$0xff]
      %v4092 = vld [vmem:[%s4089 + $0x10] sm:$0xff]
      %v4093 = vld [vmem:[%s4089 + $0x18] sm:$0xff]
      %v4094 = vld [vmem:[%s4089 + $0x20] sm:$0xff]
      %v4095 = vld [vmem:[%s4089 + $0x28] sm:$0xff]
      %v4096 = vld [vmem:[%s4089 + $0x30] sm:$0xff]
      %v4097 = vld [vmem:[%s4089 + $0x38] sm:$0xff]
      %v4098 = vld [vmem:[%s4089 + $0x40] sm:$0xff]
      %v4099 = vld [vmem:[%s4089 + $0x48] sm:$0x7]
      %s4100 = scalar_lea.vmem %s219, 4720
      %v4101 = vld [vmem:[%s4100] sm:$0xff]
      %v4102 = vld [vmem:[%s4100 + $0x8] sm:$0xff]
      %v4103 = vld [vmem:[%s4100 + $0x10] sm:$0xff]
      %v4104 = vld [vmem:[%s4100 + $0x18] sm:$0xff]
      %v4105 = vld [vmem:[%s4100 + $0x20] sm:$0xff]
      %v4106 = vld [vmem:[%s4100 + $0x28] sm:$0xff]
      %v4107 = vld [vmem:[%s4100 + $0x30] sm:$0xff]
      %v4108 = vld [vmem:[%s4100 + $0x38] sm:$0xff]
      %v4109 = vld [vmem:[%s4100 + $0x40] sm:$0xff]
      %v4110 = vld [vmem:[%s4100 + $0x48] sm:$0x7]
      %v4112 = vsel %vm268, %v4099, 0
      %4114 = vmatpush.msra.mxu0 0.0
      %4115 = vmatpush.msra.mxu0 0.0
      %4116 = vmatpush.msra.mxu0 0.0
      %4117 = vmatpush.msra.mxu0 0.0
      %4118 = vmatpush.msra.mxu0 0.0
      %4119 = vmatpush.msra.mxu0 0.0
      %4120 = vmatpush.msra.mxu0 %v4112
      %4121 = vmatpush.msra.mxu0 %v4098
      %4122 = vmatpush.msra.mxu0 %v4097
      %4123 = vmatpush.msra.mxu0 %v4096
      %4124 = vmatpush.msra.mxu0 %v4095
      %4125 = vmatpush.msra.mxu0 %v4094
      %4126 = vmatpush.msra.mxu0 %v4093
      %4127 = vmatpush.msra.mxu0 %v4092
      %4128 = vmatpush.msra.mxu0 %v4091
      %4129 = vmatpush.msra.mxu0 %v4090
      %4130 = vmatmul.f32.gmra.mxu0 %v266
      %v4131 = vpop.f32.mrf.mxu0
      %v4132 = vadd.f32 0.0, %v4131
      %4133 = vdwg.mxu0
      %v4135 = vsel %vm268, %v4110, 0
      %4137 = vmatpush.msra.mxu0 0.0
      %4138 = vmatpush.msra.mxu0 0.0
      %4139 = vmatpush.msra.mxu0 0.0
      %4140 = vmatpush.msra.mxu0 0.0
      %4141 = vmatpush.msra.mxu0 0.0
      %4142 = vmatpush.msra.mxu0 0.0
      %4143 = vmatpush.msra.mxu0 %v4135
      %4144 = vmatpush.msra.mxu0 %v4109
      %4145 = vmatpush.msra.mxu0 %v4108
      %4146 = vmatpush.msra.mxu0 %v4107
      %4147 = vmatpush.msra.mxu0 %v4106
      %4148 = vmatpush.msra.mxu0 %v4105
      %4149 = vmatpush.msra.mxu0 %v4104
      %4150 = vmatpush.msra.mxu0 %v4103
      %4151 = vmatpush.msra.mxu0 %v4102
      %4152 = vmatpush.msra.mxu0 %v4101
      %4153 = vmatmul.f32.gmra.mxu0 %v266
      %v4154 = vpop.f32.mrf.mxu0
      %v4155 = vadd.f32 0.0, %v4154
      %4156 = vdwg.mxu0
      %v4157 = vmax.f32 %v4132, %v4155
      %v4159 = vsel %vm316, %v4157, 0
      %4161 = vmatpush.msra.mxu0 0.0
      %4162 = vmatpush.msra.mxu0 0.0
      %4163 = vmatpush.msra.mxu0 0.0
      %4164 = vmatpush.msra.mxu0 0.0
      %4165 = vmatpush.msra.mxu0 0.0
      %4166 = vmatpush.msra.mxu0 0.0
      %4167 = vmatpush.msra.mxu0 0.0
      %4168 = vmatpush.msra.mxu0 0.0
      %4169 = vmatpush.msra.mxu0 %v322
      %4170 = vmatpush.msra.mxu0 %v233
      %4171 = vmatpush.msra.mxu0 %v232
      %4172 = vmatpush.msra.mxu0 %v231
      %4173 = vmatpush.msra.mxu0 %v230
      %4174 = vmatpush.msra.mxu0 %v229
      %4175 = vmatpush.msra.mxu0 %v228
      %4176 = vmatpush.msra.mxu0 %v227
      %4177 = vmatmul.f32.gmra.mxu0 %v4159
      %v4178 = vpop.f32.mrf.mxu0
      %v4179 = vadd.f32 0.0, %v4178
      %4180 = vdwg.mxu0
      %4181 = vmatpush.msra.mxu0 0.0
      %4182 = vmatpush.msra.mxu0 0.0
      %4183 = vmatpush.msra.mxu0 0.0
      %4184 = vmatpush.msra.mxu0 0.0
      %4185 = vmatpush.msra.mxu0 0.0
      %4186 = vmatpush.msra.mxu0 0.0
      %4187 = vmatpush.msra.mxu0 0.0
      %4188 = vmatpush.msra.mxu0 0.0
      %4189 = vmatpush.msra.mxu0 %v345
      %4190 = vmatpush.msra.mxu0 %v241
      %4191 = vmatpush.msra.mxu0 %v240
      %4192 = vmatpush.msra.mxu0 %v239
      %4193 = vmatpush.msra.mxu0 %v238
      %4194 = vmatpush.msra.mxu0 %v237
      %4195 = vmatpush.msra.mxu0 %v236
      %4196 = vmatpush.msra.mxu0 %v235
      %4197 = vmatmul.f32.gmra.mxu0 %v4159
      %v4198 = vpop.f32.mrf.mxu0
      %v4199 = vadd.f32 0.0, %v4198
      %4200 = vdwg.mxu0
      %v4201 = vmax.f32 %v4179, %v4199
      %v4202 = vadd.f32 %v4201, %v371
      %v4203 = vmax.f32 %v4202, 0.0
      %v4205 = vrot.slane %v4203, 1
      %v4206 = vrot.slane %v4203, 2
      %v4207 = vrot.slane %v4203, 3
      %v4208 = vrot.slane %v4203, 4
      %v4209 = vrot.slane %v4203, 5
      %4215 = vst.msk [vmem:[%s224 + $0x1d] sm:$0x1] %vm386, %v4203
      %4216 = vst.msk [vmem:[%s224 + $0x3d] sm:$0x1] %vm386, %v4205
      %4217 = vst.msk [vmem:[%s224 + $0x5d] sm:$0x1] %vm386, %v4206
      %4218 = vst.msk [vmem:[%s224 + $0x7d] sm:$0x1] %vm386, %v4207
      %4219 = vst.msk [vmem:[%s224 + $0x9d] sm:$0x1] %vm386, %v4208
      %4220 = vst.msk [vmem:[%s224 + $0xbd] sm:$0x1] %vm386, %v4209
      %p4221 = scmp.lt.s32.totalorder %s16, 1
      %s4222 = scalar_select %p4221, %s16, 1
      %s4223 = smul.addr %s4222, 24
      %s4224 = smul.addr %s4223, 8
      %s4225 = scalar_lea.vmem %s5, %s4224
      // Predicated region
      $region41: #{net_forward.3} parent=39 // pred_check
        %p4226 = pneg %p144
      $region42: #{net_forward.3} parent=39 // pred_check_branch
        %4228 = sbr.rel (%p4226) target = $region44
      $region43: #{net_forward.3} parent=39 // pred_region
        _
      $region44: #{net_forward.3} parent=39 // pred_fallthru
        _
    $region40: #{net_forward.3} parent=5 // pred_fallthru
      _
    %p4229 = scmp.le.s32.totalorder 2, %s11
    // Predicated region
    $region45: #{net_forward.3} parent=5 // pred_check
      %p4230 = pneg %p4229
    $region46: #{net_forward.3} parent=5 // pred_check_branch
      %4232 = sbr.rel (%p4230) target = $region48
    $region47: #{net_forward.3} parent=5 // pred_region
      %s4233 = ssub.s32 %s11, 2
      // Predicated region
      $region49: #{net_forward.3} parent=47 // pred_check
        %p4234 = pneg %p150
      $region50: #{net_forward.3} parent=47 // pred_check_branch
        %4236 = sbr.rel (%p4234) target = $region52
      $region51: #{net_forward.3} parent=47 // pred_region
        %p4237 = scmp.lt.s32.totalorder %s17, 1
        %s4238 = scalar_select %p4237, %s17, 1
        %s4239 = smul.addr %s4238, 24
        %s4240 = smul.addr %s4239, 8
        %s4241 = scalar_lea.vmem %s5, %s4240
      $region52: #{net_forward.3} parent=47 // pred_fallthru
        _
    $region48: #{net_forward.3} parent=5 // pred_fallthru
      _
  $region6: #{net_forward.3} parent=0 // loop_footer
    %s15 = sadd.s32 1, %s11
  $region7: #{net_forward.3} parent=0 // loop_footer_branch
    %10 = sbr.rel target = $region3
  $region8: #{net_forward.3} parent=0 // loop_exit
    _

// kernel: net_forward.4
$region0: #{net_forward.4}
  #allocation0 [shape = 'u32[]', space=smem, size = 0x4, offset = 0x4, fixed_abs, tag = 'smem constant byte address 0x4 - core index']
  #allocation1 [shape = 'u32[72,128]{1,0:T(1,128)}', space=vmem, size = 0x9000, scoped, tag = 'internal scratch']
  %s0 = inlined_call_operand.vmem [shape: f32[2,26,150,26], index: 0, kind: input, shape index: {}]
  %s1 = inlined_call_operand.vmem [shape: f32[16,150], index: 1, kind: input, shape index: {}]
  %s2 = inlined_call_operand.vmem [shape: f32[16,1], index: 2, kind: input, shape index: {}]
  %s3 = inlined_call_operand.vmem [shape: f32[26,13], index: 3, kind: input, shape index: {}]
  %s4 = inlined_call_operand.vmem [shape: f32[26,13], index: 4, kind: input, shape index: {}]
  %s5 = inlined_call_operand.vmem [shape: f32[2,16,13,13], index: 5, kind: output, shape index: {}]
  %s6 = sld [smem:[#allocation0]]
  $region53: #{net_forward.4} parent=0
    _
  %s8 = ssub.s32 1, %s6
  %s9 = scalar_select 0, %s8, %s6
  loop: start=0, step=1, limit=4
  $region2: #{net_forward.4} parent=0 // loop_pre_header
    _
  $region3: #{net_forward.4} parent=0 // loop_header
    %s11 = sphi 0, %s15
    %p12 = scmp.ge.s32.totalorder %s11, 4
    %s21 = sphi 0, %s23
    %s24 = sphi 0, %s21
    %s25 = sphi 0, %s24
    %s41 = sphi 0, %s25
    %s45 = sphi 0, %s45
    %s47 = sphi 0, %s45
    %s48 = sphi 0, %s47
    %s62 = sphi 0, %s48
    %s66 = sphi 0, %s66
    %s68 = sphi 0, %s66
    %s69 = sphi 0, %s68
    %s83 = sphi 0, %s69
    %s87 = sphi 0, %s87
    %s89 = sphi 0, %s87
    %s90 = sphi 0, %s89
    %s104 = sphi 0, %s90
    %s108 = sphi 0, %s108
    %s110 = sphi 0, %s108
    %s111 = sphi 0, %s110
    %s125 = sphi 0, %s111
    %s131 = sphi 0, %s133
    %s134 = sphi 0, %s131
    %s135 = sphi 0, %s134
    %s151 = sphi 0, %s135
  $region4: #{net_forward.4} parent=0 // loop_header_branch
    %14 = sbr.rel (%p12) target = $region8
  $region5: #{net_forward.4} parent=0 // loop_body
    %s16 = ssub.s32 %s11, 1
    %s17 = ssub.s32 %s11, 2
    %s18 = sadd.s32 %s11, 1
    %s19 = ssub.s32 %s11, %s18
    %p20 = scmp.eq.s32.totalorder %s19, 0
    %s22 = sadd.s32 %s21, 1
    %s23 = scalar_select %p20, %s21, %s22
    %p26 = pneg %p20
    %p27 = scmp.eq.s32.totalorder %s11, 1
    %p28 = por %p26, %p27
    %p29 = scmp.ne.s32.totalorder %s21, %s24
    %p30 = scmp.eq.s32.totalorder %s11, 0
    %p31 = por %p29, %p30
    %p32 = scmp.ne.s32.totalorder %s21, %s24
    %p33 = scmp.eq.s32.totalorder %s16, 1
    %p34 = por %p32, %p33
    %p35 = scmp.ne.s32.totalorder %s24, %s25
    %p36 = scmp.eq.s32.totalorder %s16, 0
    %p37 = por %p35, %p36
    %p38 = scmp.ne.s32.totalorder %s24, %s25
    %p39 = scmp.eq.s32.totalorder %s17, 1
    %p40 = por %p38, %p39
    %p42 = scmp.ne.s32.totalorder %s25, %s41
    %p43 = scmp.eq.s32.totalorder %s17, 0
    %p44 = por %p42, %p43
    %s46 = sadd.s32 %s45, 1
    %p49 = scmp.eq.s32.totalorder %s11, 1
    %p50 = scmp.ne.s32.totalorder %s45, %s47
    %p51 = scmp.eq.s32.totalorder %s11, 0
    %p52 = por %p50, %p51
    %p53 = scmp.ne.s32.totalorder %s45, %s47
    %p54 = scmp.eq.s32.totalorder %s16, 1
    %p55 = por %p53, %p54
    %p56 = scmp.ne.s32.totalorder %s47, %s48
    %p57 = scmp.eq.s32.totalorder %s16, 0
    %p58 = por %p56, %p57
    %p59 = scmp.ne.s32.totalorder %s47, %s48
    %p60 = scmp.eq.s32.totalorder %s17, 1
    %p61 = por %p59, %p60
    %p63 = scmp.ne.s32.totalorder %s48, %s62
    %p64 = scmp.eq.s32.totalorder %s17, 0
    %p65 = por %p63, %p64
    %s67 = sadd.s32 %s66, 1
    %p70 = scmp.eq.s32.totalorder %s11, 1
    %p71 = scmp.ne.s32.totalorder %s66, %s68
    %p72 = scmp.eq.s32.totalorder %s11, 0
    %p73 = por %p71, %p72
    %p74 = scmp.ne.s32.totalorder %s66, %s68
    %p75 = scmp.eq.s32.totalorder %s16, 1
    %p76 = por %p74, %p75
    %p77 = scmp.ne.s32.totalorder %s68, %s69
    %p78 = scmp.eq.s32.totalorder %s16, 0
    %p79 = por %p77, %p78
    %p80 = scmp.ne.s32.totalorder %s68, %s69
    %p81 = scmp.eq.s32.totalorder %s17, 1
    %p82 = por %p80, %p81
    %p84 = scmp.ne.s32.totalorder %s69, %s83
    %p85 = scmp.eq.s32.totalorder %s17, 0
    %p86 = por %p84, %p85
    %s88 = sadd.s32 %s87, 1
    %p91 = scmp.eq.s32.totalorder %s11, 1
    %p92 = scmp.ne.s32.totalorder %s87, %s89
    %p93 = scmp.eq.s32.totalorder %s11, 0
    %p94 = por %p92, %p93
    %p95 = scmp.ne.s32.totalorder %s87, %s89
    %p96 = scmp.eq.s32.totalorder %s16, 1
    %p97 = por %p95, %p96
    %p98 = scmp.ne.s32.totalorder %s89, %s90
    %p99 = scmp.eq.s32.totalorder %s16, 0
    %p100 = por %p98, %p99
    %p101 = scmp.ne.s32.totalorder %s89, %s90
    %p102 = scmp.eq.s32.totalorder %s17, 1
    %p103 = por %p101, %p102
    %p105 = scmp.ne.s32.totalorder %s90, %s104
    %p106 = scmp.eq.s32.totalorder %s17, 0
    %p107 = por %p105, %p106
    %s109 = sadd.s32 %s108, 1
    %p112 = scmp.eq.s32.totalorder %s11, 1
    %p113 = scmp.ne.s32.totalorder %s108, %s110
    %p114 = scmp.eq.s32.totalorder %s11, 0
    %p115 = por %p113, %p114
    %p116 = scmp.ne.s32.totalorder %s108, %s110
    %p117 = scmp.eq.s32.totalorder %s16, 1
    %p118 = por %p116, %p117
    %p119 = scmp.ne.s32.totalorder %s110, %s111
    %p120 = scmp.eq.s32.totalorder %s16, 0
    %p121 = por %p119, %p120
    %p122 = scmp.ne.s32.totalorder %s110, %s111
    %p123 = scmp.eq.s32.totalorder %s17, 1
    %p124 = por %p122, %p123
    %p126 = scmp.ne.s32.totalorder %s111, %s125
    %p127 = scmp.eq.s32.totalorder %s17, 0
    %p128 = por %p126, %p127
    %s129 = ssub.s32 %s11, %s18
    %p130 = scmp.eq.s32.totalorder %s129, 0
    %s132 = sadd.s32 %s131, 1
    %s133 = scalar_select %p130, %s131, %s132
    %p136 = pneg %p130
    %p137 = scmp.eq.s32.totalorder %s11, 1
    %p138 = por %p136, %p137
    %p139 = scmp.ne.s32.totalorder %s131, %s134
    %p140 = scmp.eq.s32.totalorder %s11, 0
    %p141 = por %p139, %p140
    %p142 = scmp.ne.s32.totalorder %s131, %s134
    %p143 = scmp.eq.s32.totalorder %s16, 1
    %p144 = por %p142, %p143
    %p145 = scmp.ne.s32.totalorder %s134, %s135
    %p146 = scmp.eq.s32.totalorder %s16, 0
    %p147 = por %p145, %p146
    %p148 = scmp.ne.s32.totalorder %s134, %s135
    %p149 = scmp.eq.s32.totalorder %s17, 1
    %p150 = por %p148, %p149
    %p152 = scmp.ne.s32.totalorder %s135, %s151
    %p153 = scmp.eq.s32.totalorder %s17, 0
    %p154 = por %p152, %p153
    %p155 = scmp.le.s32.totalorder 1, %s11
    %p156 = scmp.lt.s32.totalorder %s11, 3
    %p157 = pnand %p155, %p156
    %p158 = pneg %p157
    // Predicated region
    $region9: #{net_forward.4} parent=5 // pred_check
      _
    $region10: #{net_forward.4} parent=5 // pred_check_branch
      %160 = sbr.rel (%p157) target = $region12
    $region11: #{net_forward.4} parent=5 // pred_region
      %s161 = ssub.s32 %s11, 1
      // Predicated region
      $region13: #{net_forward.4} parent=11 // pred_check
        %p162 = pneg %p58
      $region14: #{net_forward.4} parent=11 // pred_check_branch
        %164 = sbr.rel (%p162) target = $region16
      $region15: #{net_forward.4} parent=11 // pred_region
        _
      $region16: #{net_forward.4} parent=11 // pred_fallthru
        _
      // Predicated region
      $region17: #{net_forward.4} parent=11 // pred_check
        %p165 = pneg %p79
      $region18: #{net_forward.4} parent=11 // pred_check_branch
        %167 = sbr.rel (%p165) target = $region20
      $region19: #{net_forward.4} parent=11 // pred_region
        _
      $region20: #{net_forward.4} parent=11 // pred_fallthru
        _
      // Predicated region
      $region21: #{net_forward.4} parent=11 // pred_check
        %p168 = pneg %p100
      $region22: #{net_forward.4} parent=11 // pred_check_branch
        %170 = sbr.rel (%p168) target = $region24
      $region23: #{net_forward.4} parent=11 // pred_region
        _
      $region24: #{net_forward.4} parent=11 // pred_fallthru
        _
      // Predicated region
      $region25: #{net_forward.4} parent=11 // pred_check
        %p171 = pneg %p121
      $region26: #{net_forward.4} parent=11 // pred_check_branch
        %173 = sbr.rel (%p171) target = $region28
      $region27: #{net_forward.4} parent=11 // pred_region
        _
      $region28: #{net_forward.4} parent=11 // pred_fallthru
        _
    $region12: #{net_forward.4} parent=5 // pred_fallthru
      _
    %p174 = scmp.lt.s32.totalorder %s11, 2
    // Predicated region
    $region29: #{net_forward.4} parent=5 // pred_check
      %p175 = pneg %p174
    $region30: #{net_forward.4} parent=5 // pred_check_branch
      %177 = sbr.rel (%p175) target = $region32
    $region31: #{net_forward.4} parent=5 // pred_region
      // Predicated region
      $region33: #{net_forward.4} parent=31 // pred_check
        %p178 = pneg %p31
      $region34: #{net_forward.4} parent=31 // pred_check_branch
        %180 = sbr.rel (%p178) target = $region36
      $region35: #{net_forward.4} parent=31 // pred_region
        %p181 = scmp.lt.s32.totalorder %s11, 1
        %s182 = scalar_select %p181, %s11, 1
        %s183 = smul.addr %s182, 494
        %s184 = smul.addr %s183, 8
        %s185 = scalar_lea.vmem %s0, %s184
      $region36: #{net_forward.4} parent=31 // pred_fallthru
        _
    $region32: #{net_forward.4} parent=5 // pred_fallthru
      _
    %p186 = scmp.le.s32.totalorder 1, %s11
    %p187 = scmp.lt.s32.totalorder %s11, 3
    %p188 = pnand %p186, %p187
    %p189 = pneg %p188
    // Predicated region
    $region37: #{net_forward.4} parent=5 // pred_check
      _
    $region38: #{net_forward.4} parent=5 // pred_check_branch
      %191 = sbr.rel (%p188) target = $region40
    $region39: #{net_forward.4} parent=5 // pred_region
      %s192 = ssub.s32 %s11, 1
      %p193 = scmp.lt.s32.totalorder %s16, 1
      %s194 = scalar_select %p193, %s16, 1
      %s195 = smul.addr %s194, 494
      %s196 = smul.addr %s195, 8
      %s197 = scalar_lea.vmem %s0, %s196
      %p198 = pneg %p37
      %p199 = pneg %p34
      %p200 = pneg %p58
      %p201 = pneg %p55
      %p202 = pneg %p79
      %p203 = pneg %p76
      %p204 = pneg %p100
      %p205 = pneg %p97
      %p206 = pneg %p121
      %p207 = pneg %p118
      %p208 = pneg %p147
      %p209 = pneg %p144
      %p210 = scmp.lt.s32.totalorder %s16, 1
      %s211 = scalar_select %p210, %s16, 1
      %s212 = smul.addr %s211, 32
      %s213 = smul.addr %s212, 8
      %s214 = scalar_lea.vmem %s5, %s213
      %p215 = scmp.lt.s32.totalorder %s16, 1
      %s216 = scalar_select %p215, %s16, 1
      %s217 = smul.addr %s216, 494
      %s218 = smul.addr %s217, 8
      %s219 = scalar_lea.vmem %s0, %s218
      %p220 = scmp.lt.s32.totalorder %s16, 1
      %s221 = scalar_select %p220, %s16, 1
      %s222 = smul.addr %s221, 32
      %s223 = smul.addr %s222, 8
      %s224 = scalar_lea.vmem %s5, %s223
      %v225 = vld [vmem:[%s1] sm:$0xff]
      %v226 = vld [vmem:[%s1 + $0x8] sm:$0xff]
      %v227 = vld [vmem:[%s1 + $0x10] sm:$0xff]
      %v228 = vld [vmem:[%s1 + $0x18] sm:$0xff]
      %v229 = vld [vmem:[%s2] sm:$0xff]
      %v230 = vld [vmem:[%s2 + $0x8] sm:$0xff]
      %v231 = vld [vmem:[%s3] sm:$0xff]
      %v232 = vld [vmem:[%s3 + $0x8] sm:$0xff]
      %v233 = vld [vmem:[%s3 + $0x10] sm:$0xff]
      %v234 = vld [vmem:[%s3 + $0x18] sm:$0x3]
      %v235 = vld [vmem:[%s4] sm:$0xff]
      %v236 = vld [vmem:[%s4 + $0x8] sm:$0xff]
      %v237 = vld [vmem:[%s4 + $0x10] sm:$0xff]
      %v238 = vld [vmem:[%s4 + $0x18] sm:$0x3]
      %v239 = vld [vmem:[%s219] sm:$0xff]
      %v240 = vld [vmem:[%s219 + $0x8] sm:$0xff]
      %v241 = vld [vmem:[%s219 + $0x10] sm:$0xff]
      %v242 = vld [vmem:[%s219 + $0x18] sm:$0xff]
      %v243 = vld [vmem:[%s219 + $0x20] sm:$0xff]
      %v244 = vld [vmem:[%s219 + $0x28] sm:$0xff]
      %v245 = vld [vmem:[%s219 + $0x30] sm:$0xff]
      %v246 = vld [vmem:[%s219 + $0x38] sm:$0xff]
      %v247 = vld [vmem:[%s219 + $0x40] sm:$0xff]
      %v248 = vld [vmem:[%s219 + $0x48] sm:$0xff]
      %v249 = vld [vmem:[%s219 + $0x50] sm:$0xff]
      %v250 = vld [vmem:[%s219 + $0x58] sm:$0xff]
      %v251 = vld [vmem:[%s219 + $0x60] sm:$0xff]
      %v252 = vld [vmem:[%s219 + $0x68] sm:$0xff]
      %v253 = vld [vmem:[%s219 + $0x70] sm:$0xff]
      %v254 = vld [vmem:[%s219 + $0x78] sm:$0xff]
      %v255 = vld [vmem:[%s219 + $0x80] sm:$0xff]
      %v256 = vld [vmem:[%s219 + $0x88] sm:$0xff]
      %v257 = vld [vmem:[%s219 + $0x90] sm:$0x3f]
      %s258 = scalar_lea.vmem %s219, 152
      %v259 = vld [vmem:[%s258] sm:$0xff]
      %v260 = vld [vmem:[%s258 + $0x8] sm:$0xff]
      %v261 = vld [vmem:[%s258 + $0x10] sm:$0xff]
      %v262 = vld [vmem:[%s258 + $0x18] sm:$0xff]
      %v263 = vld [vmem:[%s258 + $0x20] sm:$0xff]
      %v264 = vld [vmem:[%s258 + $0x28] sm:$0xff]
      %v265 = vld [vmem:[%s258 + $0x30] sm:$0xff]
      %v266 = vld [vmem:[%s258 + $0x38] sm:$0xff]
      %v267 = vld [vmem:[%s258 + $0x40] sm:$0xff]
      %v268 = vld [vmem:[%s258 + $0x48] sm:$0xff]
      %v269 = vld [vmem:[%s258 + $0x50] sm:$0xff]
      %v270 = vld [vmem:[%s258 + $0x58] sm:$0xff]
      %v271 = vld [vmem:[%s258 + $0x60] sm:$0xff]
      %v272 = vld [vmem:[%s258 + $0x68] sm:$0xff]
      %v273 = vld [vmem:[%s258 + $0x70] sm:$0xff]
      %v274 = vld [vmem:[%s258 + $0x78] sm:$0xff]
      %v275 = vld [vmem:[%s258 + $0x80] sm:$0xff]
      %v276 = vld [vmem:[%s258 + $0x88] sm:$0xff]
      %v277 = vld [vmem:[%s258 + $0x90] sm:$0x3f]
      %vm278 = vcmask 179200
      %v280 = vsel %vm278, %v226, 0
      %v283 = vsel %vm278, %v228, 0
      %vm285 = vcmask 1045504
      %v287 = vsel %vm285, %v257, 0
      %289 = vmatpush.msra.mxu0 %v254
      %290 = vmatpush.msra.mxu0 %v253
      %291 = vmatpush.msra.mxu0 %v252
      %292 = vmatpush.msra.mxu0 %v251
      %293 = vmatpush.msra.mxu0 %v250
      %294 = vmatpush.msra.mxu0 %v249
      %295 = vmatpush.msra.mxu0 %v248
      %296 = vmatpush.msra.mxu0 %v247
      %297 = vmatpush.msra.mxu0 %v246
      %298 = vmatpush.msra.mxu0 %v245
      %299 = vmatpush.msra.mxu0 %v244
      %300 = vmatpush.msra.mxu0 %v243
      %301 = vmatpush.msra.mxu0 %v242
      %302 = vmatpush.msra.mxu0 %v241
      %303 = vmatpush.msra.mxu0 %v240
      %304 = vmatpush.msra.mxu0 %v239
      %305 = vmatmul.f32.gmra.mxu0 %v225
      %v306 = vpop.f32.mrf.mxu0
      %v307 = vadd.f32 0.0, %v306
      %308 = vmatmul.f32.gmra.mxu0 %v227
      %v309 = vpop.f32.mrf.mxu0
      %v310 = vadd.f32 0.0, %v309
      %311 = vdwg.mxu0
      %312 = vmatpush.msra.mxu0 0.0
      %313 = vmatpush.msra.mxu0 0.0
      %314 = vmatpush.msra.mxu0 0.0
      %315 = vmatpush.msra.mxu0 0.0
      %316 = vmatpush.msra.mxu0 0.0
      %317 = vmatpush.msra.mxu0 0.0
      %318 = vmatpush.msra.mxu0 0.0
      %319 = vmatpush.msra.mxu0 0.0
      %320 = vmatpush.msra.mxu0 0.0
      %321 = vmatpush.msra.mxu0 0.0
      %322 = vmatpush.msra.mxu0 0.0
      %323 = vmatpush.msra.mxu0 0.0
      %324 = vmatpush.msra.mxu0 0.0
      %325 = vmatpush.msra.mxu0 %v287
      %326 = vmatpush.msra.mxu0 %v256
      %327 = vmatpush.msra.mxu0 %v255
      %328 = vmatmul.f32.gmra.mxu0 %v280
      %v329 = vpop.f32.mrf.mxu0
      %v330 = vadd.f32 %v307, %v329
      %331 = vmatmul.f32.gmra.mxu0 %v283
      %v332 = vpop.f32.mrf.mxu0
      %v333 = vadd.f32 %v310, %v332
      %334 = vdwg.mxu0
      %v336 = vsel %vm285, %v277, 0
      %338 = vmatpush.msra.mxu0 %v274
      %339 = vmatpush.msra.mxu0 %v273
      %340 = vmatpush.msra.mxu0 %v272
      %341 = vmatpush.msra.mxu0 %v271
      %342 = vmatpush.msra.mxu0 %v270
      %343 = vmatpush.msra.mxu0 %v269
      %344 = vmatpush.msra.mxu0 %v268
      %345 = vmatpush.msra.mxu0 %v267
      %346 = vmatpush.msra.mxu0 %v266
      %347 = vmatpush.msra.mxu0 %v265
      %348 = vmatpush.msra.mxu0 %v264
      %349 = vmatpush.msra.mxu0 %v263
      %350 = vmatpush.msra.mxu0 %v262
      %351 = vmatpush.msra.mxu0 %v261
      %352 = vmatpush.msra.mxu0 %v260
      %353 = vmatpush.msra.mxu0 %v259
      %354 = vmatmul.f32.gmra.mxu0 %v225
      %v355 = vpop.f32.mrf.mxu0
      %v356 = vadd.f32 0.0, %v355
      %357 = vmatmul.f32.gmra.mxu0 %v227
      %v358 = vpop.f32.mrf.mxu0
      %v359 = vadd.f32 0.0, %v358
      %360 = vdwg.mxu0
      %361 = vmatpush.msra.mxu0 0.0
      %362 = vmatpush.msra.mxu0 0.0
      %363 = vmatpush.msra.mxu0 0.0
      %364 = vmatpush.msra.mxu0 0.0
      %365 = vmatpush.msra.mxu0 0.0
      %366 = vmatpush.msra.mxu0 0.0
      %367 = vmatpush.msra.mxu0 0.0
      %368 = vmatpush.msra.mxu0 0.0
      %369 = vmatpush.msra.mxu0 0.0
      %370 = vmatpush.msra.mxu0 0.0
      %371 = vmatpush.msra.mxu0 0.0
      %372 = vmatpush.msra.mxu0 0.0
      %373 = vmatpush.msra.mxu0 0.0
      %374 = vmatpush.msra.mxu0 %v336
      %375 = vmatpush.msra.mxu0 %v276
      %376 = vmatpush.msra.mxu0 %v275
      %377 = vmatmul.f32.gmra.mxu0 %v280
      %v378 = vpop.f32.mrf.mxu0
      %v379 = vadd.f32 %v356, %v378
      %380 = vmatmul.f32.gmra.mxu0 %v283
      %v381 = vpop.f32.mrf.mxu0
      %v382 = vadd.f32 %v359, %v381
      %383 = vdwg.mxu0
      %v384 = vmax.f32 %v330, %v379
      %v385 = vmax.f32 %v333, %v382
      %vm386 = vcmask 211968
      %v388 = vsel %vm386, %v384, 0
      %v391 = vsel %vm386, %v385, 0
      %vm393 = vcmask 1041408
      %v395 = vsel %vm393, %v234, 0
      %397 = vmatpush.msra.mxu0 0.0
      %398 = vmatpush.msra.mxu0 0.0
      %399 = vmatpush.msra.mxu0 0.0
      %400 = vmatpush.msra.mxu0 0.0
      %401 = vmatpush.msra.mxu0 0.0
      %402 = vmatpush.msra.mxu0 0.0
      %403 = vmatpush.msra.mxu0 0.0
      %404 = vmatpush.msra.mxu0 0.0
      %405 = vmatpush.msra.mxu0 0.0
      %406 = vmatpush.msra.mxu0 0.0
      %407 = vmatpush.msra.mxu0 0.0
      %408 = vmatpush.msra.mxu0 0.0
      %409 = vmatpush.msra.mxu0 %v395
      %410 = vmatpush.msra.mxu0 %v233
      %411 = vmatpush.msra.mxu0 %v232
      %412 = vmatpush.msra.mxu0 %v231
      %413 = vmatmul.f32.gmra.mxu0 %v388
      %v414 = vpop.f32.mrf.mxu0
      %v415 = vadd.f32 0.0, %v414
      %416 = vmatmul.f32.gmra.mxu0 %v391
      %v417 = vpop.f32.mrf.mxu0
      %v418 = vadd.f32 0.0, %v417
      %419 = vdwg.mxu0
      %v421 = vsel %vm393, %v238, 0
      %423 = vmatpush.msra.mxu0 0.0
      %424 = vmatpush.msra.mxu0 0.0
      %425 = vmatpush.msra.mxu0 0.0
      %426 = vmatpush.msra.mxu0 0.0
      %427 = vmatpush.msra.mxu0 0.0
      %428 = vmatpush.msra.mxu0 0.0
      %429 = vmatpush.msra.mxu0 0.0
      %430 = vmatpush.msra.mxu0 0.0
      %431 = vmatpush.msra.mxu0 0.0
      %432 = vmatpush.msra.mxu0 0.0
      %433 = vmatpush.msra.mxu0 0.0
      %434 = vmatpush.msra.mxu0 0.0
      %435 = vmatpush.msra.mxu0 %v421
      %436 = vmatpush.msra.mxu0 %v237
      %437 = vmatpush.msra.mxu0 %v236
      %438 = vmatpush.msra.mxu0 %v235
      %439 = vmatmul.f32.gmra.mxu0 %v388
      %v440 = vpop.f32.mrf.mxu0
      %v441 = vadd.f32 0.0, %v440
      %442 = vmatmul.f32.gmra.mxu0 %v391
      %v443 = vpop.f32.mrf.mxu0
      %v444 = vadd.f32 0.0, %v443
      %445 = vdwg.mxu0
      %v446 = vmax.f32 %v415, %v441
      %v447 = vmax.f32 %v418, %v444
      %449 = vset.pattern.permute.xlu0 0
      %450 = vperm.xlu0 %449, %v229
      %v451 = vpop.permute.xlu0 %450
      %454 = vset.pattern.permute.xlu0 0
      %455 = vperm.xlu0 %454, %v230
      %v456 = vpop.permute.xlu0 %455
      %v458 = vadd.f32 %v446, %v451
      %v459 = vadd.f32 %v447, %v456
      %v460 = vmax.f32 %v458, 0.0
      %v461 = vmax.f32 %v459, 0.0
      %v464 = vrot.slane %v460, 1
      %v465 = vrot.slane %v460, 2
      %v466 = vrot.slane %v460, 3
      %v467 = vrot.slane %v460, 4
      %v468 = vrot.slane %v460, 5
      %v469 = vrot.slane %v460, 6
      %v470 = vrot.slane %v460, 7
      %v471 = vrot.slane %v461, 1
      %v472 = vrot.slane %v461, 2
      %v473 = vrot.slane %v461, 3
      %v474 = vrot.slane %v461, 4
      %v475 = vrot.slane %v461, 5
      %v476 = vrot.slane %v461, 6
      %v477 = vrot.slane %v461, 7
      %vm492 = vcmask 98304
      %493 = vst.msk [vmem:[%s224] sm:$0x1] %vm492, %v460
      %494 = vst.msk [vmem:[%s224 + $0x10] sm:$0x1] %vm492, %v464
      %495 = vst.msk [vmem:[%s224 + $0x20] sm:$0x1] %vm492, %v465
      %496 = vst.msk [vmem:[%s224 + $0x30] sm:$0x1] %vm492, %v466
      %497 = vst.msk [vmem:[%s224 + $0x40] sm:$0x1] %vm492, %v467
      %498 = vst.msk [vmem:[%s224 + $0x50] sm:$0x1] %vm492, %v468
      %499 = vst.msk [vmem:[%s224 + $0x60] sm:$0x1] %vm492, %v469
      %500 = vst.msk [vmem:[%s224 + $0x70] sm:$0x1] %vm492, %v470
      %501 = vst.msk [vmem:[%s224 + $0x80] sm:$0x1] %vm492, %v461
      %502 = vst.msk [vmem:[%s224 + $0x90] sm:$0x1] %vm492, %v471
      %503 = vst.msk [vmem:[%s224 + $0xa0] sm:$0x1] %vm492, %v472
      %504 = vst.msk [vmem:[%s224 + $0xb0] sm:$0x1] %vm492, %v473
      %505 = vst.msk [vmem:[%s224 + $0xc0] sm:$0x1] %vm492, %v474
      %506 = vst.msk [vmem:[%s224 + $0xd0] sm:$0x1] %vm492, %v475
      %507 = vst.msk [vmem:[%s224 + $0xe0] sm:$0x1] %vm492, %v476
      %508 = vst.msk [vmem:[%s224 + $0xf0] sm:$0x1] %vm492, %v477
      %s509 = scalar_lea.vmem %s219, 304
      %v510 = vld [vmem:[%s509] sm:$0xff]
      %v511 = vld [vmem:[%s509 + $0x8] sm:$0xff]
      %v512 = vld [vmem:[%s509 + $0x10] sm:$0xff]
      %v513 = vld [vmem:[%s509 + $0x18] sm:$0xff]
      %v514 = vld [vmem:[%s509 + $0x20] sm:$0xff]
      %v515 = vld [vmem:[%s509 + $0x28] sm:$0xff]
      %v516 = vld [vmem:[%s509 + $0x30] sm:$0xff]
      %v517 = vld [vmem:[%s509 + $0x38] sm:$0xff]
      %v518 = vld [vmem:[%s509 + $0x40] sm:$0xff]
      %v519 = vld [vmem:[%s509 + $0x48] sm:$0xff]
      %v520 = vld [vmem:[%s509 + $0x50] sm:$0xff]
      %v521 = vld [vmem:[%s509 + $0x58] sm:$0xff]
      %v522 = vld [vmem:[%s509 + $0x60] sm:$0xff]
      %v523 = vld [vmem:[%s509 + $0x68] sm:$0xff]
      %v524 = vld [vmem:[%s509 + $0x70] sm:$0xff]
      %v525 = vld [vmem:[%s509 + $0x78] sm:$0xff]
      %v526 = vld [vmem:[%s509 + $0x80] sm:$0xff]
      %v527 = vld [vmem:[%s509 + $0x88] sm:$0xff]
      %v528 = vld [vmem:[%s509 + $0x90] sm:$0x3f]
      %s529 = scalar_lea.vmem %s219, 456
      %v530 = vld [vmem:[%s529] sm:$0xff]
      %v531 = vld [vmem:[%s529 + $0x8] sm:$0xff]
      %v532 = vld [vmem:[%s529 + $0x10] sm:$0xff]
      %v533 = vld [vmem:[%s529 + $0x18] sm:$0xff]
      %v534 = vld [vmem:[%s529 + $0x20] sm:$0xff]
      %v535 = vld [vmem:[%s529 + $0x28] sm:$0xff]
      %v536 = vld [vmem:[%s529 + $0x30] sm:$0xff]
      %v537 = vld [vmem:[%s529 + $0x38] sm:$0xff]
      %v538 = vld [vmem:[%s529 + $0x40] sm:$0xff]
      %v539 = vld [vmem:[%s529 + $0x48] sm:$0xff]
      %v540 = vld [vmem:[%s529 + $0x50] sm:$0xff]
      %v541 = vld [vmem:[%s529 + $0x58] sm:$0xff]
      %v542 = vld [vmem:[%s529 + $0x60] sm:$0xff]
      %v543 = vld [vmem:[%s529 + $0x68] sm:$0xff]
      %v544 = vld [vmem:[%s529 + $0x70] sm:$0xff]
      %v545 = vld [vmem:[%s529 + $0x78] sm:$0xff]
      %v546 = vld [vmem:[%s529 + $0x80] sm:$0xff]
      %v547 = vld [vmem:[%s529 + $0x88] sm:$0xff]
      %v548 = vld [vmem:[%s529 + $0x90] sm:$0x3f]
      %v550 = vsel %vm285, %v528, 0
      %552 = vmatpush.msra.mxu0 %v525
      %553 = vmatpush.msra.mxu0 %v524
      %554 = vmatpush.msra.mxu0 %v523
      %555 = vmatpush.msra.mxu0 %v522
      %556 = vmatpush.msra.mxu0 %v521
      %557 = vmatpush.msra.mxu0 %v520
      %558 = vmatpush.msra.mxu0 %v519
      %559 = vmatpush.msra.mxu0 %v518
      %560 = vmatpush.msra.mxu0 %v517
      %561 = vmatpush.msra.mxu0 %v516
      %562 = vmatpush.msra.mxu0 %v515
      %563 = vmatpush.msra.mxu0 %v514
      %564 = vmatpush.msra.mxu0 %v513
      %565 = vmatpush.msra.mxu0 %v512
      %566 = vmatpush.msra.mxu0 %v511
      %567 = vmatpush.msra.mxu0 %v510
      %568 = vmatmul.f32.gmra.mxu0 %v225
      %v569 = vpop.f32.mrf.mxu0
      %v570 = vadd.f32 0.0, %v569
      %571 = vmatmul.f32.gmra.mxu0 %v227
      %v572 = vpop.f32.mrf.mxu0
      %v573 = vadd.f32 0.0, %v572
      %574 = vdwg.mxu0
      %575 = vmatpush.msra.mxu0 0.0
      %576 = vmatpush.msra.mxu0 0.0
      %577 = vmatpush.msra.mxu0 0.0
      %578 = vmatpush.msra.mxu0 0.0
      %579 = vmatpush.msra.mxu0 0.0
      %580 = vmatpush.msra.mxu0 0.0
      %581 = vmatpush.msra.mxu0 0.0
      %582 = vmatpush.msra.mxu0 0.0
      %583 = vmatpush.msra.mxu0 0.0
      %584 = vmatpush.msra.mxu0 0.0
      %585 = vmatpush.msra.mxu0 0.0
      %586 = vmatpush.msra.mxu0 0.0
      %587 = vmatpush.msra.mxu0 0.0
      %588 = vmatpush.msra.mxu0 %v550
      %589 = vmatpush.msra.mxu0 %v527
      %590 = vmatpush.msra.mxu0 %v526
      %591 = vmatmul.f32.gmra.mxu0 %v280
      %v592 = vpop.f32.mrf.mxu0
      %v593 = vadd.f32 %v570, %v592
      %594 = vmatmul.f32.gmra.mxu0 %v283
      %v595 = vpop.f32.mrf.mxu0
      %v596 = vadd.f32 %v573, %v595
      %597 = vdwg.mxu0
      %v599 = vsel %vm285, %v548, 0
      %601 = vmatpush.msra.mxu0 %v545
      %602 = vmatpush.msra.mxu0 %v544
      %603 = vmatpush.msra.mxu0 %v543
      %604 = vmatpush.msra.mxu0 %v542
      %605 = vmatpush.msra.mxu0 %v541
      %606 = vmatpush.msra.mxu0 %v540
      %607 = vmatpush.msra.mxu0 %v539
      %608 = vmatpush.msra.mxu0 %v538
      %609 = vmatpush.msra.mxu0 %v537
      %610 = vmatpush.msra.mxu0 %v536
      %611 = vmatpush.msra.mxu0 %v535
      %612 = vmatpush.msra.mxu0 %v534
      %613 = vmatpush.msra.mxu0 %v533
      %614 = vmatpush.msra.mxu0 %v532
      %615 = vmatpush.msra.mxu0 %v531
      %616 = vmatpush.msra.mxu0 %v530
      %617 = vmatmul.f32.gmra.mxu0 %v225
      %v618 = vpop.f32.mrf.mxu0
      %v619 = vadd.f32 0.0, %v618
      %620 = vmatmul.f32.gmra.mxu0 %v227
      %v621 = vpop.f32.mrf.mxu0
      %v622 = vadd.f32 0.0, %v621
      %623 = vdwg.mxu0
      %624 = vmatpush.msra.mxu0 0.0
      %625 = vmatpush.msra.mxu0 0.0
      %626 = vmatpush.msra.mxu0 0.0
      %627 = vmatpush.msra.mxu0 0.0
      %628 = vmatpush.msra.mxu0 0.0
      %629 = vmatpush.msra.mxu0 0.0
      %630 = vmatpush.msra.mxu0 0.0
      %631 = vmatpush.msra.mxu0 0.0
      %632 = vmatpush.msra.mxu0 0.0
      %633 = vmatpush.msra.mxu0 0.0
      %634 = vmatpush.msra.mxu0 0.0
      %635 = vmatpush.msra.mxu0 0.0
      %636 = vmatpush.msra.mxu0 0.0
      %637 = vmatpush.msra.mxu0 %v599
      %638 = vmatpush.msra.mxu0 %v547
      %639 = vmatpush.msra.mxu0 %v546
      %640 = vmatmul.f32.gmra.mxu0 %v280
      %v641 = vpop.f32.mrf.mxu0
      %v642 = vadd.f32 %v619, %v641
      %643 = vmatmul.f32.gmra.mxu0 %v283
      %v644 = vpop.f32.mrf.mxu0
      %v645 = vadd.f32 %v622, %v644
      %646 = vdwg.mxu0
      %v647 = vmax.f32 %v593, %v642
      %v648 = vmax.f32 %v596, %v645
      %v650 = vsel %vm386, %v647, 0
      %v653 = vsel %vm386, %v648, 0
      %655 = vmatpush.msra.mxu0 0.0
      %656 = vmatpush.msra.mxu0 0.0
      %657 = vmatpush.msra.mxu0 0.0
      %658 = vmatpush.msra.mxu0 0.0
      %659 = vmatpush.msra.mxu0 0.0
      %660 = vmatpush.msra.mxu0 0.0
      %661 = vmatpush.msra.mxu0 0.0
      %662 = vmatpush.msra.mxu0 0.0
      %663 = vmatpush.msra.mxu0 0.0
      %664 = vmatpush.msra.mxu0 0.0
      %665 = vmatpush.msra.mxu0 0.0
      %666 = vmatpush.msra.mxu0 0.0
      %667 = vmatpush.msra.mxu0 %v395
      %668 = vmatpush.msra.mxu0 %v233
      %669 = vmatpush.msra.mxu0 %v232
      %670 = vmatpush.msra.mxu0 %v231
      %671 = vmatmul.f32.gmra.mxu0 %v650
      %v672 = vpop.f32.mrf.mxu0
      %v673 = vadd.f32 0.0, %v672
      %674 = vmatmul.f32.gmra.mxu0 %v653
      %v675 = vpop.f32.mrf.mxu0
      %v676 = vadd.f32 0.0, %v675
      %677 = vdwg.mxu0
      %678 = vmatpush.msra.mxu0 0.0
      %679 = vmatpush.msra.mxu0 0.0
      %680 = vmatpush.msra.mxu0 0.0
      %681 = vmatpush.msra.mxu0 0.0
      %682 = vmatpush.msra.mxu0 0.0
      %683 = vmatpush.msra.mxu0 0.0
      %684 = vmatpush.msra.mxu0 0.0
      %685 = vmatpush.msra.mxu0 0.0
      %686 = vmatpush.msra.mxu0 0.0
      %687 = vmatpush.msra.mxu0 0.0
      %688 = vmatpush.msra.mxu0 0.0
      %689 = vmatpush.msra.mxu0 0.0
      %690 = vmatpush.msra.mxu0 %v421
      %691 = vmatpush.msra.mxu0 %v237
      %692 = vmatpush.msra.mxu0 %v236
      %693 = vmatpush.msra.mxu0 %v235
      %694 = vmatmul.f32.gmra.mxu0 %v650
      %v695 = vpop.f32.mrf.mxu0
      %v696 = vadd.f32 0.0, %v695
      %697 = vmatmul.f32.gmra.mxu0 %v653
      %v698 = vpop.f32.mrf.mxu0
      %v699 = vadd.f32 0.0, %v698
      %700 = vdwg.mxu0
      %v701 = vmax.f32 %v673, %v696
      %v702 = vmax.f32 %v676, %v699
      %v703 = vadd.f32 %v701, %v451
      %v704 = vadd.f32 %v702, %v456
      %v705 = vmax.f32 %v703, 0.0
      %v706 = vmax.f32 %v704, 0.0
      %v709 = vrot.slane %v705, 1
      %v710 = vrot.slane %v705, 2
      %v711 = vrot.slane %v705, 3
      %v712 = vrot.slane %v705, 4
      %v713 = vrot.slane %v705, 5
      %v714 = vrot.slane %v705, 6
      %v715 = vrot.slane %v705, 7
      %v716 = vrot.slane %v706, 1
      %v717 = vrot.slane %v706, 2
      %v718 = vrot.slane %v706, 3
      %v719 = vrot.slane %v706, 4
      %v720 = vrot.slane %v706, 5
      %v721 = vrot.slane %v706, 6
      %v722 = vrot.slane %v706, 7
      %737 = vst.msk [vmem:[%s224 + $0x1] sm:$0x1] %vm492, %v705
      %738 = vst.msk [vmem:[%s224 + $0x11] sm:$0x1] %vm492, %v709
      %739 = vst.msk [vmem:[%s224 + $0x21] sm:$0x1] %vm492, %v710
      %740 = vst.msk [vmem:[%s224 + $0x31] sm:$0x1] %vm492, %v711
      %741 = vst.msk [vmem:[%s224 + $0x41] sm:$0x1] %vm492, %v712
      %742 = vst.msk [vmem:[%s224 + $0x51] sm:$0x1] %vm492, %v713
      %743 = vst.msk [vmem:[%s224 + $0x61] sm:$0x1] %vm492, %v714
      %744 = vst.msk [vmem:[%s224 + $0x71] sm:$0x1] %vm492, %v715
      %745 = vst.msk [vmem:[%s224 + $0x81] sm:$0x1] %vm492, %v706
      %746 = vst.msk [vmem:[%s224 + $0x91] sm:$0x1] %vm492, %v716
      %747 = vst.msk [vmem:[%s224 + $0xa1] sm:$0x1] %vm492, %v717
      %748 = vst.msk [vmem:[%s224 + $0xb1] sm:$0x1] %vm492, %v718
      %749 = vst.msk [vmem:[%s224 + $0xc1] sm:$0x1] %vm492, %v719
      %750 = vst.msk [vmem:[%s224 + $0xd1] sm:$0x1] %vm492, %v720
      %751 = vst.msk [vmem:[%s224 + $0xe1] sm:$0x1] %vm492, %v721
      %752 = vst.msk [vmem:[%s224 + $0xf1] sm:$0x1] %vm492, %v722
      %s753 = scalar_lea.vmem %s219, 608
      %v754 = vld [vmem:[%s753] sm:$0xff]
      %v755 = vld [vmem:[%s753 + $0x8] sm:$0xff]
      %v756 = vld [vmem:[%s753 + $0x10] sm:$0xff]
      %v757 = vld [vmem:[%s753 + $0x18] sm:$0xff]
      %v758 = vld [vmem:[%s753 + $0x20] sm:$0xff]
      %v759 = vld [vmem:[%s753 + $0x28] sm:$0xff]
      %v760 = vld [vmem:[%s753 + $0x30] sm:$0xff]
      %v761 = vld [vmem:[%s753 + $0x38] sm:$0xff]
      %v762 = vld [vmem:[%s753 + $0x40] sm:$0xff]
      %v763 = vld [vmem:[%s753 + $0x48] sm:$0xff]
      %v764 = vld [vmem:[%s753 + $0x50] sm:$0xff]
      %v765 = vld [vmem:[%s753 + $0x58] sm:$0xff]
      %v766 = vld [vmem:[%s753 + $0x60] sm:$0xff]
      %v767 = vld [vmem:[%s753 + $0x68] sm:$0xff]
      %v768 = vld [vmem:[%s753 + $0x70] sm:$0xff]
      %v769 = vld [vmem:[%s753 + $0x78] sm:$0xff]
      %v770 = vld [vmem:[%s753 + $0x80] sm:$0xff]
      %v771 = vld [vmem:[%s753 + $0x88] sm:$0xff]
      %v772 = vld [vmem:[%s753 + $0x90] sm:$0x3f]
      %s773 = scalar_lea.vmem %s219, 760
      %v774 = vld [vmem:[%s773] sm:$0xff]
      %v775 = vld [vmem:[%s773 + $0x8] sm:$0xff]
      %v776 = vld [vmem:[%s773 + $0x10] sm:$0xff]
      %v777 = vld [vmem:[%s773 + $0x18] sm:$0xff]
      %v778 = vld [vmem:[%s773 + $0x20] sm:$0xff]
      %v779 = vld [vmem:[%s773 + $0x28] sm:$0xff]
      %v780 = vld [vmem:[%s773 + $0x30] sm:$0xff]
      %v781 = vld [vmem:[%s773 + $0x38] sm:$0xff]
      %v782 = vld [vmem:[%s773 + $0x40] sm:$0xff]
      %v783 = vld [vmem:[%s773 + $0x48] sm:$0xff]
      %v784 = vld [vmem:[%s773 + $0x50] sm:$0xff]
      %v785 = vld [vmem:[%s773 + $0x58] sm:$0xff]
      %v786 = vld [vmem:[%s773 + $0x60] sm:$0xff]
      %v787 = vld [vmem:[%s773 + $0x68] sm:$0xff]
      %v788 = vld [vmem:[%s773 + $0x70] sm:$0xff]
      %v789 = vld [vmem:[%s773 + $0x78] sm:$0xff]
      %v790 = vld [vmem:[%s773 + $0x80] sm:$0xff]
      %v791 = vld [vmem:[%s773 + $0x88] sm:$0xff]
      %v792 = vld [vmem:[%s773 + $0x90] sm:$0x3f]
      %v794 = vsel %vm285, %v772, 0
      %796 = vmatpush.msra.mxu0 %v769
      %797 = vmatpush.msra.mxu0 %v768
      %798 = vmatpush.msra.mxu0 %v767
      %799 = vmatpush.msra.mxu0 %v766
      %800 = vmatpush.msra.mxu0 %v765
      %801 = vmatpush.msra.mxu0 %v764
      %802 = vmatpush.msra.mxu0 %v763
      %803 = vmatpush.msra.mxu0 %v762
      %804 = vmatpush.msra.mxu0 %v761
      %805 = vmatpush.msra.mxu0 %v760
      %806 = vmatpush.msra.mxu0 %v759
      %807 = vmatpush.msra.mxu0 %v758
      %808 = vmatpush.msra.mxu0 %v757
      %809 = vmatpush.msra.mxu0 %v756
      %810 = vmatpush.msra.mxu0 %v755
      %811 = vmatpush.msra.mxu0 %v754
      %812 = vmatmul.f32.gmra.mxu0 %v225
      %v813 = vpop.f32.mrf.mxu0
      %v814 = vadd.f32 0.0, %v813
      %815 = vmatmul.f32.gmra.mxu0 %v227
      %v816 = vpop.f32.mrf.mxu0
      %v817 = vadd.f32 0.0, %v816
      %818 = vdwg.mxu0
      %819 = vmatpush.msra.mxu0 0.0
      %820 = vmatpush.msra.mxu0 0.0
      %821 = vmatpush.msra.mxu0 0.0
      %822 = vmatpush.msra.mxu0 0.0
      %823 = vmatpush.msra.mxu0 0.0
      %824 = vmatpush.msra.mxu0 0.0
      %825 = vmatpush.msra.mxu0 0.0
      %826 = vmatpush.msra.mxu0 0.0
      %827 = vmatpush.msra.mxu0 0.0
      %828 = vmatpush.msra.mxu0 0.0
      %829 = vmatpush.msra.mxu0 0.0
      %830 = vmatpush.msra.mxu0 0.0
      %831 = vmatpush.msra.mxu0 0.0
      %832 = vmatpush.msra.mxu0 %v794
      %833 = vmatpush.msra.mxu0 %v771
      %834 = vmatpush.msra.mxu0 %v770
      %835 = vmatmul.f32.gmra.mxu0 %v280
      %v836 = vpop.f32.mrf.mxu0
      %v837 = vadd.f32 %v814, %v836
      %838 = vmatmul.f32.gmra.mxu0 %v283
      %v839 = vpop.f32.mrf.mxu0
      %v840 = vadd.f32 %v817, %v839
      %841 = vdwg.mxu0
      %v843 = vsel %vm285, %v792, 0
      %845 = vmatpush.msra.mxu0 %v789
      %846 = vmatpush.msra.mxu0 %v788
      %847 = vmatpush.msra.mxu0 %v787
      %848 = vmatpush.msra.mxu0 %v786
      %849 = vmatpush.msra.mxu0 %v785
      %850 = vmatpush.msra.mxu0 %v784
      %851 = vmatpush.msra.mxu0 %v783
      %852 = vmatpush.msra.mxu0 %v782
      %853 = vmatpush.msra.mxu0 %v781
      %854 = vmatpush.msra.mxu0 %v780
      %855 = vmatpush.msra.mxu0 %v779
      %856 = vmatpush.msra.mxu0 %v778
      %857 = vmatpush.msra.mxu0 %v777
      %858 = vmatpush.msra.mxu0 %v776
      %859 = vmatpush.msra.mxu0 %v775
      %860 = vmatpush.msra.mxu0 %v774
      %861 = vmatmul.f32.gmra.mxu0 %v225
      %v862 = vpop.f32.mrf.mxu0
      %v863 = vadd.f32 0.0, %v862
      %864 = vmatmul.f32.gmra.mxu0 %v227
      %v865 = vpop.f32.mrf.mxu0
      %v866 = vadd.f32 0.0, %v865
      %867 = vdwg.mxu0
      %868 = vmatpush.msra.mxu0 0.0
      %869 = vmatpush.msra.mxu0 0.0
      %870 = vmatpush.msra.mxu0 0.0
      %871 = vmatpush.msra.mxu0 0.0
      %872 = vmatpush.msra.mxu0 0.0
      %873 = vmatpush.msra.mxu0 0.0
      %874 = vmatpush.msra.mxu0 0.0
      %875 = vmatpush.msra.mxu0 0.0
      %876 = vmatpush.msra.mxu0 0.0
      %877 = vmatpush.msra.mxu0 0.0
      %878 = vmatpush.msra.mxu0 0.0
      %879 = vmatpush.msra.mxu0 0.0
      %880 = vmatpush.msra.mxu0 0.0
      %881 = vmatpush.msra.mxu0 %v843
      %882 = vmatpush.msra.mxu0 %v791
      %883 = vmatpush.msra.mxu0 %v790
      %884 = vmatmul.f32.gmra.mxu0 %v280
      %v885 = vpop.f32.mrf.mxu0
      %v886 = vadd.f32 %v863, %v885
      %887 = vmatmul.f32.gmra.mxu0 %v283
      %v888 = vpop.f32.mrf.mxu0
      %v889 = vadd.f32 %v866, %v888
      %890 = vdwg.mxu0
      %v891 = vmax.f32 %v837, %v886
      %v892 = vmax.f32 %v840, %v889
      %v894 = vsel %vm386, %v891, 0
      %v897 = vsel %vm386, %v892, 0
      %899 = vmatpush.msra.mxu0 0.0
      %900 = vmatpush.msra.mxu0 0.0
      %901 = vmatpush.msra.mxu0 0.0
      %902 = vmatpush.msra.mxu0 0.0
      %903 = vmatpush.msra.mxu0 0.0
      %904 = vmatpush.msra.mxu0 0.0
      %905 = vmatpush.msra.mxu0 0.0
      %906 = vmatpush.msra.mxu0 0.0
      %907 = vmatpush.msra.mxu0 0.0
      %908 = vmatpush.msra.mxu0 0.0
      %909 = vmatpush.msra.mxu0 0.0
      %910 = vmatpush.msra.mxu0 0.0
      %911 = vmatpush.msra.mxu0 %v395
      %912 = vmatpush.msra.mxu0 %v233
      %913 = vmatpush.msra.mxu0 %v232
      %914 = vmatpush.msra.mxu0 %v231
      %915 = vmatmul.f32.gmra.mxu0 %v894
      %v916 = vpop.f32.mrf.mxu0
      %v917 = vadd.f32 0.0, %v916
      %918 = vmatmul.f32.gmra.mxu0 %v897
      %v919 = vpop.f32.mrf.mxu0
      %v920 = vadd.f32 0.0, %v919
      %921 = vdwg.mxu0
      %922 = vmatpush.msra.mxu0 0.0
      %923 = vmatpush.msra.mxu0 0.0
      %924 = vmatpush.msra.mxu0 0.0
      %925 = vmatpush.msra.mxu0 0.0
      %926 = vmatpush.msra.mxu0 0.0
      %927 = vmatpush.msra.mxu0 0.0
      %928 = vmatpush.msra.mxu0 0.0
      %929 = vmatpush.msra.mxu0 0.0
      %930 = vmatpush.msra.mxu0 0.0
      %931 = vmatpush.msra.mxu0 0.0
      %932 = vmatpush.msra.mxu0 0.0
      %933 = vmatpush.msra.mxu0 0.0
      %934 = vmatpush.msra.mxu0 %v421
      %935 = vmatpush.msra.mxu0 %v237
      %936 = vmatpush.msra.mxu0 %v236
      %937 = vmatpush.msra.mxu0 %v235
      %938 = vmatmul.f32.gmra.mxu0 %v894
      %v939 = vpop.f32.mrf.mxu0
      %v940 = vadd.f32 0.0, %v939
      %941 = vmatmul.f32.gmra.mxu0 %v897
      %v942 = vpop.f32.mrf.mxu0
      %v943 = vadd.f32 0.0, %v942
      %944 = vdwg.mxu0
      %v945 = vmax.f32 %v917, %v940
      %v946 = vmax.f32 %v920, %v943
      %v947 = vadd.f32 %v945, %v451
      %v948 = vadd.f32 %v946, %v456
      %v949 = vmax.f32 %v947, 0.0
      %v950 = vmax.f32 %v948, 0.0
      %v953 = vrot.slane %v949, 1
      %v954 = vrot.slane %v949, 2
      %v955 = vrot.slane %v949, 3
      %v956 = vrot.slane %v949, 4
      %v957 = vrot.slane %v949, 5
      %v958 = vrot.slane %v949, 6
      %v959 = vrot.slane %v949, 7
      %v960 = vrot.slane %v950, 1
      %v961 = vrot.slane %v950, 2
      %v962 = vrot.slane %v950, 3
      %v963 = vrot.slane %v950, 4
      %v964 = vrot.slane %v950, 5
      %v965 = vrot.slane %v950, 6
      %v966 = vrot.slane %v950, 7
      %981 = vst.msk [vmem:[%s224 + $0x2] sm:$0x1] %vm492, %v949
      %982 = vst.msk [vmem:[%s224 + $0x12] sm:$0x1] %vm492, %v953
      %983 = vst.msk [vmem:[%s224 + $0x22] sm:$0x1] %vm492, %v954
      %984 = vst.msk [vmem:[%s224 + $0x32] sm:$0x1] %vm492, %v955
      %985 = vst.msk [vmem:[%s224 + $0x42] sm:$0x1] %vm492, %v956
      %986 = vst.msk [vmem:[%s224 + $0x52] sm:$0x1] %vm492, %v957
      %987 = vst.msk [vmem:[%s224 + $0x62] sm:$0x1] %vm492, %v958
      %988 = vst.msk [vmem:[%s224 + $0x72] sm:$0x1] %vm492, %v959
      %989 = vst.msk [vmem:[%s224 + $0x82] sm:$0x1] %vm492, %v950
      %990 = vst.msk [vmem:[%s224 + $0x92] sm:$0x1] %vm492, %v960
      %991 = vst.msk [vmem:[%s224 + $0xa2] sm:$0x1] %vm492, %v961
      %992 = vst.msk [vmem:[%s224 + $0xb2] sm:$0x1] %vm492, %v962
      %993 = vst.msk [vmem:[%s224 + $0xc2] sm:$0x1] %vm492, %v963
      %994 = vst.msk [vmem:[%s224 + $0xd2] sm:$0x1] %vm492, %v964
      %995 = vst.msk [vmem:[%s224 + $0xe2] sm:$0x1] %vm492, %v965
      %996 = vst.msk [vmem:[%s224 + $0xf2] sm:$0x1] %vm492, %v966
      %s997 = scalar_lea.vmem %s219, 912
      %v998 = vld [vmem:[%s997] sm:$0xff]
      %v999 = vld [vmem:[%s997 + $0x8] sm:$0xff]
      %v1000 = vld [vmem:[%s997 + $0x10] sm:$0xff]
      %v1001 = vld [vmem:[%s997 + $0x18] sm:$0xff]
      %v1002 = vld [vmem:[%s997 + $0x20] sm:$0xff]
      %v1003 = vld [vmem:[%s997 + $0x28] sm:$0xff]
      %v1004 = vld [vmem:[%s997 + $0x30] sm:$0xff]
      %v1005 = vld [vmem:[%s997 + $0x38] sm:$0xff]
      %v1006 = vld [vmem:[%s997 + $0x40] sm:$0xff]
      %v1007 = vld [vmem:[%s997 + $0x48] sm:$0xff]
      %v1008 = vld [vmem:[%s997 + $0x50] sm:$0xff]
      %v1009 = vld [vmem:[%s997 + $0x58] sm:$0xff]
      %v1010 = vld [vmem:[%s997 + $0x60] sm:$0xff]
      %v1011 = vld [vmem:[%s997 + $0x68] sm:$0xff]
      %v1012 = vld [vmem:[%s997 + $0x70] sm:$0xff]
      %v1013 = vld [vmem:[%s997 + $0x78] sm:$0xff]
      %v1014 = vld [vmem:[%s997 + $0x80] sm:$0xff]
      %v1015 = vld [vmem:[%s997 + $0x88] sm:$0xff]
      %v1016 = vld [vmem:[%s997 + $0x90] sm:$0x3f]
      %s1017 = scalar_lea.vmem %s219, 1064
      %v1018 = vld [vmem:[%s1017] sm:$0xff]
      %v1019 = vld [vmem:[%s1017 + $0x8] sm:$0xff]
      %v1020 = vld [vmem:[%s1017 + $0x10] sm:$0xff]
      %v1021 = vld [vmem:[%s1017 + $0x18] sm:$0xff]
      %v1022 = vld [vmem:[%s1017 + $0x20] sm:$0xff]
      %v1023 = vld [vmem:[%s1017 + $0x28] sm:$0xff]
      %v1024 = vld [vmem:[%s1017 + $0x30] sm:$0xff]
      %v1025 = vld [vmem:[%s1017 + $0x38] sm:$0xff]
      %v1026 = vld [vmem:[%s1017 + $0x40] sm:$0xff]
      %v1027 = vld [vmem:[%s1017 + $0x48] sm:$0xff]
      %v1028 = vld [vmem:[%s1017 + $0x50] sm:$0xff]
      %v1029 = vld [vmem:[%s1017 + $0x58] sm:$0xff]
      %v1030 = vld [vmem:[%s1017 + $0x60] sm:$0xff]
      %v1031 = vld [vmem:[%s1017 + $0x68] sm:$0xff]
      %v1032 = vld [vmem:[%s1017 + $0x70] sm:$0xff]
      %v1033 = vld [vmem:[%s1017 + $0x78] sm:$0xff]
      %v1034 = vld [vmem:[%s1017 + $0x80] sm:$0xff]
      %v1035 = vld [vmem:[%s1017 + $0x88] sm:$0xff]
      %v1036 = vld [vmem:[%s1017 + $0x90] sm:$0x3f]
      %v1038 = vsel %vm285, %v1016, 0
      %1040 = vmatpush.msra.mxu0 %v1013
      %1041 = vmatpush.msra.mxu0 %v1012
      %1042 = vmatpush.msra.mxu0 %v1011
      %1043 = vmatpush.msra.mxu0 %v1010
      %1044 = vmatpush.msra.mxu0 %v1009
      %1045 = vmatpush.msra.mxu0 %v1008
      %1046 = vmatpush.msra.mxu0 %v1007
      %1047 = vmatpush.msra.mxu0 %v1006
      %1048 = vmatpush.msra.mxu0 %v1005
      %1049 = vmatpush.msra.mxu0 %v1004
      %1050 = vmatpush.msra.mxu0 %v1003
      %1051 = vmatpush.msra.mxu0 %v1002
      %1052 = vmatpush.msra.mxu0 %v1001
      %1053 = vmatpush.msra.mxu0 %v1000
      %1054 = vmatpush.msra.mxu0 %v999
      %1055 = vmatpush.msra.mxu0 %v998
      %1056 = vmatmul.f32.gmra.mxu0 %v225
      %v1057 = vpop.f32.mrf.mxu0
      %v1058 = vadd.f32 0.0, %v1057
      %1059 = vmatmul.f32.gmra.mxu0 %v227
      %v1060 = vpop.f32.mrf.mxu0
      %v1061 = vadd.f32 0.0, %v1060
      %1062 = vdwg.mxu0
      %1063 = vmatpush.msra.mxu0 0.0
      %1064 = vmatpush.msra.mxu0 0.0
      %1065 = vmatpush.msra.mxu0 0.0
      %1066 = vmatpush.msra.mxu0 0.0
      %1067 = vmatpush.msra.mxu0 0.0
      %1068 = vmatpush.msra.mxu0 0.0
      %1069 = vmatpush.msra.mxu0 0.0
      %1070 = vmatpush.msra.mxu0 0.0
      %1071 = vmatpush.msra.mxu0 0.0
      %1072 = vmatpush.msra.mxu0 0.0
      %1073 = vmatpush.msra.mxu0 0.0
      %1074 = vmatpush.msra.mxu0 0.0
      %1075 = vmatpush.msra.mxu0 0.0
      %1076 = vmatpush.msra.mxu0 %v1038
      %1077 = vmatpush.msra.mxu0 %v1015
      %1078 = vmatpush.msra.mxu0 %v1014
      %1079 = vmatmul.f32.gmra.mxu0 %v280
      %v1080 = vpop.f32.mrf.mxu0
      %v1081 = vadd.f32 %v1058, %v1080
      %1082 = vmatmul.f32.gmra.mxu0 %v283
      %v1083 = vpop.f32.mrf.mxu0
      %v1084 = vadd.f32 %v1061, %v1083
      %1085 = vdwg.mxu0
      %v1087 = vsel %vm285, %v1036, 0
      %1089 = vmatpush.msra.mxu0 %v1033
      %1090 = vmatpush.msra.mxu0 %v1032
      %1091 = vmatpush.msra.mxu0 %v1031
      %1092 = vmatpush.msra.mxu0 %v1030
      %1093 = vmatpush.msra.mxu0 %v1029
      %1094 = vmatpush.msra.mxu0 %v1028
      %1095 = vmatpush.msra.mxu0 %v1027
      %1096 = vmatpush.msra.mxu0 %v1026
      %1097 = vmatpush.msra.mxu0 %v1025
      %1098 = vmatpush.msra.mxu0 %v1024
      %1099 = vmatpush.msra.mxu0 %v1023
      %1100 = vmatpush.msra.mxu0 %v1022
      %1101 = vmatpush.msra.mxu0 %v1021
      %1102 = vmatpush.msra.mxu0 %v1020
      %1103 = vmatpush.msra.mxu0 %v1019
      %1104 = vmatpush.msra.mxu0 %v1018
      %1105 = vmatmul.f32.gmra.mxu0 %v225
      %v1106 = vpop.f32.mrf.mxu0
      %v1107 = vadd.f32 0.0, %v1106
      %1108 = vmatmul.f32.gmra.mxu0 %v227
      %v1109 = vpop.f32.mrf.mxu0
      %v1110 = vadd.f32 0.0, %v1109
      %1111 = vdwg.mxu0
      %1112 = vmatpush.msra.mxu0 0.0
      %1113 = vmatpush.msra.mxu0 0.0
      %1114 = vmatpush.msra.mxu0 0.0
      %1115 = vmatpush.msra.mxu0 0.0
      %1116 = vmatpush.msra.mxu0 0.0
      %1117 = vmatpush.msra.mxu0 0.0
      %1118 = vmatpush.msra.mxu0 0.0
      %1119 = vmatpush.msra.mxu0 0.0
      %1120 = vmatpush.msra.mxu0 0.0
      %1121 = vmatpush.msra.mxu0 0.0
      %1122 = vmatpush.msra.mxu0 0.0
      %1123 = vmatpush.msra.mxu0 0.0
      %1124 = vmatpush.msra.mxu0 0.0
      %1125 = vmatpush.msra.mxu0 %v1087
      %1126 = vmatpush.msra.mxu0 %v1035
      %1127 = vmatpush.msra.mxu0 %v1034
      %1128 = vmatmul.f32.gmra.mxu0 %v280
      %v1129 = vpop.f32.mrf.mxu0
      %v1130 = vadd.f32 %v1107, %v1129
      %1131 = vmatmul.f32.gmra.mxu0 %v283
      %v1132 = vpop.f32.mrf.mxu0
      %v1133 = vadd.f32 %v1110, %v1132
      %1134 = vdwg.mxu0
      %v1135 = vmax.f32 %v1081, %v1130
      %v1136 = vmax.f32 %v1084, %v1133
      %v1138 = vsel %vm386, %v1135, 0
      %v1141 = vsel %vm386, %v1136, 0
      %1143 = vmatpush.msra.mxu0 0.0
      %1144 = vmatpush.msra.mxu0 0.0
      %1145 = vmatpush.msra.mxu0 0.0
      %1146 = vmatpush.msra.mxu0 0.0
      %1147 = vmatpush.msra.mxu0 0.0
      %1148 = vmatpush.msra.mxu0 0.0
      %1149 = vmatpush.msra.mxu0 0.0
      %1150 = vmatpush.msra.mxu0 0.0
      %1151 = vmatpush.msra.mxu0 0.0
      %1152 = vmatpush.msra.mxu0 0.0
      %1153 = vmatpush.msra.mxu0 0.0
      %1154 = vmatpush.msra.mxu0 0.0
      %1155 = vmatpush.msra.mxu0 %v395
      %1156 = vmatpush.msra.mxu0 %v233
      %1157 = vmatpush.msra.mxu0 %v232
      %1158 = vmatpush.msra.mxu0 %v231
      %1159 = vmatmul.f32.gmra.mxu0 %v1138
      %v1160 = vpop.f32.mrf.mxu0
      %v1161 = vadd.f32 0.0, %v1160
      %1162 = vmatmul.f32.gmra.mxu0 %v1141
      %v1163 = vpop.f32.mrf.mxu0
      %v1164 = vadd.f32 0.0, %v1163
      %1165 = vdwg.mxu0
      %1166 = vmatpush.msra.mxu0 0.0
      %1167 = vmatpush.msra.mxu0 0.0
      %1168 = vmatpush.msra.mxu0 0.0
      %1169 = vmatpush.msra.mxu0 0.0
      %1170 = vmatpush.msra.mxu0 0.0
      %1171 = vmatpush.msra.mxu0 0.0
      %1172 = vmatpush.msra.mxu0 0.0
      %1173 = vmatpush.msra.mxu0 0.0
      %1174 = vmatpush.msra.mxu0 0.0
      %1175 = vmatpush.msra.mxu0 0.0
      %1176 = vmatpush.msra.mxu0 0.0
      %1177 = vmatpush.msra.mxu0 0.0
      %1178 = vmatpush.msra.mxu0 %v421
      %1179 = vmatpush.msra.mxu0 %v237
      %1180 = vmatpush.msra.mxu0 %v236
      %1181 = vmatpush.msra.mxu0 %v235
      %1182 = vmatmul.f32.gmra.mxu0 %v1138
      %v1183 = vpop.f32.mrf.mxu0
      %v1184 = vadd.f32 0.0, %v1183
      %1185 = vmatmul.f32.gmra.mxu0 %v1141
      %v1186 = vpop.f32.mrf.mxu0
      %v1187 = vadd.f32 0.0, %v1186
      %1188 = vdwg.mxu0
      %v1189 = vmax.f32 %v1161, %v1184
      %v1190 = vmax.f32 %v1164, %v1187
      %v1191 = vadd.f32 %v1189, %v451
      %v1192 = vadd.f32 %v1190, %v456
      %v1193 = vmax.f32 %v1191, 0.0
      %v1194 = vmax.f32 %v1192, 0.0
      %v1197 = vrot.slane %v1193, 1
      %v1198 = vrot.slane %v1193, 2
      %v1199 = vrot.slane %v1193, 3
      %v1200 = vrot.slane %v1193, 4
      %v1201 = vrot.slane %v1193, 5
      %v1202 = vrot.slane %v1193, 6
      %v1203 = vrot.slane %v1193, 7
      %v1204 = vrot.slane %v1194, 1
      %v1205 = vrot.slane %v1194, 2
      %v1206 = vrot.slane %v1194, 3
      %v1207 = vrot.slane %v1194, 4
      %v1208 = vrot.slane %v1194, 5
      %v1209 = vrot.slane %v1194, 6
      %v1210 = vrot.slane %v1194, 7
      %1225 = vst.msk [vmem:[%s224 + $0x3] sm:$0x1] %vm492, %v1193
      %1226 = vst.msk [vmem:[%s224 + $0x13] sm:$0x1] %vm492, %v1197
      %1227 = vst.msk [vmem:[%s224 + $0x23] sm:$0x1] %vm492, %v1198
      %1228 = vst.msk [vmem:[%s224 + $0x33] sm:$0x1] %vm492, %v1199
      %1229 = vst.msk [vmem:[%s224 + $0x43] sm:$0x1] %vm492, %v1200
      %1230 = vst.msk [vmem:[%s224 + $0x53] sm:$0x1] %vm492, %v1201
      %1231 = vst.msk [vmem:[%s224 + $0x63] sm:$0x1] %vm492, %v1202
      %1232 = vst.msk [vmem:[%s224 + $0x73] sm:$0x1] %vm492, %v1203
      %1233 = vst.msk [vmem:[%s224 + $0x83] sm:$0x1] %vm492, %v1194
      %1234 = vst.msk [vmem:[%s224 + $0x93] sm:$0x1] %vm492, %v1204
      %1235 = vst.msk [vmem:[%s224 + $0xa3] sm:$0x1] %vm492, %v1205
      %1236 = vst.msk [vmem:[%s224 + $0xb3] sm:$0x1] %vm492, %v1206
      %1237 = vst.msk [vmem:[%s224 + $0xc3] sm:$0x1] %vm492, %v1207
      %1238 = vst.msk [vmem:[%s224 + $0xd3] sm:$0x1] %vm492, %v1208
      %1239 = vst.msk [vmem:[%s224 + $0xe3] sm:$0x1] %vm492, %v1209
      %1240 = vst.msk [vmem:[%s224 + $0xf3] sm:$0x1] %vm492, %v1210
      %s1241 = scalar_lea.vmem %s219, 1216
      %v1242 = vld [vmem:[%s1241] sm:$0xff]
      %v1243 = vld [vmem:[%s1241 + $0x8] sm:$0xff]
      %v1244 = vld [vmem:[%s1241 + $0x10] sm:$0xff]
      %v1245 = vld [vmem:[%s1241 + $0x18] sm:$0xff]
      %v1246 = vld [vmem:[%s1241 + $0x20] sm:$0xff]
      %v1247 = vld [vmem:[%s1241 + $0x28] sm:$0xff]
      %v1248 = vld [vmem:[%s1241 + $0x30] sm:$0xff]
      %v1249 = vld [vmem:[%s1241 + $0x38] sm:$0xff]
      %v1250 = vld [vmem:[%s1241 + $0x40] sm:$0xff]
      %v1251 = vld [vmem:[%s1241 + $0x48] sm:$0xff]
      %v1252 = vld [vmem:[%s1241 + $0x50] sm:$0xff]
      %v1253 = vld [vmem:[%s1241 + $0x58] sm:$0xff]
      %v1254 = vld [vmem:[%s1241 + $0x60] sm:$0xff]
      %v1255 = vld [vmem:[%s1241 + $0x68] sm:$0xff]
      %v1256 = vld [vmem:[%s1241 + $0x70] sm:$0xff]
      %v1257 = vld [vmem:[%s1241 + $0x78] sm:$0xff]
      %v1258 = vld [vmem:[%s1241 + $0x80] sm:$0xff]
      %v1259 = vld [vmem:[%s1241 + $0x88] sm:$0xff]
      %v1260 = vld [vmem:[%s1241 + $0x90] sm:$0x3f]
      %s1261 = scalar_lea.vmem %s219, 1368
      %v1262 = vld [vmem:[%s1261] sm:$0xff]
      %v1263 = vld [vmem:[%s1261 + $0x8] sm:$0xff]
      %v1264 = vld [vmem:[%s1261 + $0x10] sm:$0xff]
      %v1265 = vld [vmem:[%s1261 + $0x18] sm:$0xff]
      %v1266 = vld [vmem:[%s1261 + $0x20] sm:$0xff]
      %v1267 = vld [vmem:[%s1261 + $0x28] sm:$0xff]
      %v1268 = vld [vmem:[%s1261 + $0x30] sm:$0xff]
      %v1269 = vld [vmem:[%s1261 + $0x38] sm:$0xff]
      %v1270 = vld [vmem:[%s1261 + $0x40] sm:$0xff]
      %v1271 = vld [vmem:[%s1261 + $0x48] sm:$0xff]
      %v1272 = vld [vmem:[%s1261 + $0x50] sm:$0xff]
      %v1273 = vld [vmem:[%s1261 + $0x58] sm:$0xff]
      %v1274 = vld [vmem:[%s1261 + $0x60] sm:$0xff]
      %v1275 = vld [vmem:[%s1261 + $0x68] sm:$0xff]
      %v1276 = vld [vmem:[%s1261 + $0x70] sm:$0xff]
      %v1277 = vld [vmem:[%s1261 + $0x78] sm:$0xff]
      %v1278 = vld [vmem:[%s1261 + $0x80] sm:$0xff]
      %v1279 = vld [vmem:[%s1261 + $0x88] sm:$0xff]
      %v1280 = vld [vmem:[%s1261 + $0x90] sm:$0x3f]
      %v1282 = vsel %vm285, %v1260, 0
      %1284 = vmatpush.msra.mxu0 %v1257
      %1285 = vmatpush.msra.mxu0 %v1256
      %1286 = vmatpush.msra.mxu0 %v1255
      %1287 = vmatpush.msra.mxu0 %v1254
      %1288 = vmatpush.msra.mxu0 %v1253
      %1289 = vmatpush.msra.mxu0 %v1252
      %1290 = vmatpush.msra.mxu0 %v1251
      %1291 = vmatpush.msra.mxu0 %v1250
      %1292 = vmatpush.msra.mxu0 %v1249
      %1293 = vmatpush.msra.mxu0 %v1248
      %1294 = vmatpush.msra.mxu0 %v1247
      %1295 = vmatpush.msra.mxu0 %v1246
      %1296 = vmatpush.msra.mxu0 %v1245
      %1297 = vmatpush.msra.mxu0 %v1244
      %1298 = vmatpush.msra.mxu0 %v1243
      %1299 = vmatpush.msra.mxu0 %v1242
      %1300 = vmatmul.f32.gmra.mxu0 %v225
      %v1301 = vpop.f32.mrf.mxu0
      %v1302 = vadd.f32 0.0, %v1301
      %1303 = vmatmul.f32.gmra.mxu0 %v227
      %v1304 = vpop.f32.mrf.mxu0
      %v1305 = vadd.f32 0.0, %v1304
      %1306 = vdwg.mxu0
      %1307 = vmatpush.msra.mxu0 0.0
      %1308 = vmatpush.msra.mxu0 0.0
      %1309 = vmatpush.msra.mxu0 0.0
      %1310 = vmatpush.msra.mxu0 0.0
      %1311 = vmatpush.msra.mxu0 0.0
      %1312 = vmatpush.msra.mxu0 0.0
      %1313 = vmatpush.msra.mxu0 0.0
      %1314 = vmatpush.msra.mxu0 0.0
      %1315 = vmatpush.msra.mxu0 0.0
      %1316 = vmatpush.msra.mxu0 0.0
      %1317 = vmatpush.msra.mxu0 0.0
      %1318 = vmatpush.msra.mxu0 0.0
      %1319 = vmatpush.msra.mxu0 0.0
      %1320 = vmatpush.msra.mxu0 %v1282
      %1321 = vmatpush.msra.mxu0 %v1259
      %1322 = vmatpush.msra.mxu0 %v1258
      %1323 = vmatmul.f32.gmra.mxu0 %v280
      %v1324 = vpop.f32.mrf.mxu0
      %v1325 = vadd.f32 %v1302, %v1324
      %1326 = vmatmul.f32.gmra.mxu0 %v283
      %v1327 = vpop.f32.mrf.mxu0
      %v1328 = vadd.f32 %v1305, %v1327
      %1329 = vdwg.mxu0
      %v1331 = vsel %vm285, %v1280, 0
      %1333 = vmatpush.msra.mxu0 %v1277
      %1334 = vmatpush.msra.mxu0 %v1276
      %1335 = vmatpush.msra.mxu0 %v1275
      %1336 = vmatpush.msra.mxu0 %v1274
      %1337 = vmatpush.msra.mxu0 %v1273
      %1338 = vmatpush.msra.mxu0 %v1272
      %1339 = vmatpush.msra.mxu0 %v1271
      %1340 = vmatpush.msra.mxu0 %v1270
      %1341 = vmatpush.msra.mxu0 %v1269
      %1342 = vmatpush.msra.mxu0 %v1268
      %1343 = vmatpush.msra.mxu0 %v1267
      %1344 = vmatpush.msra.mxu0 %v1266
      %1345 = vmatpush.msra.mxu0 %v1265
      %1346 = vmatpush.msra.mxu0 %v1264
      %1347 = vmatpush.msra.mxu0 %v1263
      %1348 = vmatpush.msra.mxu0 %v1262
      %1349 = vmatmul.f32.gmra.mxu0 %v225
      %v1350 = vpop.f32.mrf.mxu0
      %v1351 = vadd.f32 0.0, %v1350
      %1352 = vmatmul.f32.gmra.mxu0 %v227
      %v1353 = vpop.f32.mrf.mxu0
      %v1354 = vadd.f32 0.0, %v1353
      %1355 = vdwg.mxu0
      %1356 = vmatpush.msra.mxu0 0.0
      %1357 = vmatpush.msra.mxu0 0.0
      %1358 = vmatpush.msra.mxu0 0.0
      %1359 = vmatpush.msra.mxu0 0.0
      %1360 = vmatpush.msra.mxu0 0.0
      %1361 = vmatpush.msra.mxu0 0.0
      %1362 = vmatpush.msra.mxu0 0.0
      %1363 = vmatpush.msra.mxu0 0.0
      %1364 = vmatpush.msra.mxu0 0.0
      %1365 = vmatpush.msra.mxu0 0.0
      %1366 = vmatpush.msra.mxu0 0.0
      %1367 = vmatpush.msra.mxu0 0.0
      %1368 = vmatpush.msra.mxu0 0.0
      %1369 = vmatpush.msra.mxu0 %v1331
      %1370 = vmatpush.msra.mxu0 %v1279
      %1371 = vmatpush.msra.mxu0 %v1278
      %1372 = vmatmul.f32.gmra.mxu0 %v280
      %v1373 = vpop.f32.mrf.mxu0
      %v1374 = vadd.f32 %v1351, %v1373
      %1375 = vmatmul.f32.gmra.mxu0 %v283
      %v1376 = vpop.f32.mrf.mxu0
      %v1377 = vadd.f32 %v1354, %v1376
      %1378 = vdwg.mxu0
      %v1379 = vmax.f32 %v1325, %v1374
      %v1380 = vmax.f32 %v1328, %v1377
      %v1382 = vsel %vm386, %v1379, 0
      %v1385 = vsel %vm386, %v1380, 0
      %1387 = vmatpush.msra.mxu0 0.0
      %1388 = vmatpush.msra.mxu0 0.0
      %1389 = vmatpush.msra.mxu0 0.0
      %1390 = vmatpush.msra.mxu0 0.0
      %1391 = vmatpush.msra.mxu0 0.0
      %1392 = vmatpush.msra.mxu0 0.0
      %1393 = vmatpush.msra.mxu0 0.0
      %1394 = vmatpush.msra.mxu0 0.0
      %1395 = vmatpush.msra.mxu0 0.0
      %1396 = vmatpush.msra.mxu0 0.0
      %1397 = vmatpush.msra.mxu0 0.0
      %1398 = vmatpush.msra.mxu0 0.0
      %1399 = vmatpush.msra.mxu0 %v395
      %1400 = vmatpush.msra.mxu0 %v233
      %1401 = vmatpush.msra.mxu0 %v232
      %1402 = vmatpush.msra.mxu0 %v231
      %1403 = vmatmul.f32.gmra.mxu0 %v1382
      %v1404 = vpop.f32.mrf.mxu0
      %v1405 = vadd.f32 0.0, %v1404
      %1406 = vmatmul.f32.gmra.mxu0 %v1385
      %v1407 = vpop.f32.mrf.mxu0
      %v1408 = vadd.f32 0.0, %v1407
      %1409 = vdwg.mxu0
      %1410 = vmatpush.msra.mxu0 0.0
      %1411 = vmatpush.msra.mxu0 0.0
      %1412 = vmatpush.msra.mxu0 0.0
      %1413 = vmatpush.msra.mxu0 0.0
      %1414 = vmatpush.msra.mxu0 0.0
      %1415 = vmatpush.msra.mxu0 0.0
      %1416 = vmatpush.msra.mxu0 0.0
      %1417 = vmatpush.msra.mxu0 0.0
      %1418 = vmatpush.msra.mxu0 0.0
      %1419 = vmatpush.msra.mxu0 0.0
      %1420 = vmatpush.msra.mxu0 0.0
      %1421 = vmatpush.msra.mxu0 0.0
      %1422 = vmatpush.msra.mxu0 %v421
      %1423 = vmatpush.msra.mxu0 %v237
      %1424 = vmatpush.msra.mxu0 %v236
      %1425 = vmatpush.msra.mxu0 %v235
      %1426 = vmatmul.f32.gmra.mxu0 %v1382
      %v1427 = vpop.f32.mrf.mxu0
      %v1428 = vadd.f32 0.0, %v1427
      %1429 = vmatmul.f32.gmra.mxu0 %v1385
      %v1430 = vpop.f32.mrf.mxu0
      %v1431 = vadd.f32 0.0, %v1430
      %1432 = vdwg.mxu0
      %v1433 = vmax.f32 %v1405, %v1428
      %v1434 = vmax.f32 %v1408, %v1431
      %v1435 = vadd.f32 %v1433, %v451
      %v1436 = vadd.f32 %v1434, %v456
      %v1437 = vmax.f32 %v1435, 0.0
      %v1438 = vmax.f32 %v1436, 0.0
      %v1441 = vrot.slane %v1437, 1
      %v1442 = vrot.slane %v1437, 2
      %v1443 = vrot.slane %v1437, 3
      %v1444 = vrot.slane %v1437, 4
      %v1445 = vrot.slane %v1437, 5
      %v1446 = vrot.slane %v1437, 6
      %v1447 = vrot.slane %v1437, 7
      %v1448 = vrot.slane %v1438, 1
      %v1449 = vrot.slane %v1438, 2
      %v1450 = vrot.slane %v1438, 3
      %v1451 = vrot.slane %v1438, 4
      %v1452 = vrot.slane %v1438, 5
      %v1453 = vrot.slane %v1438, 6
      %v1454 = vrot.slane %v1438, 7
      %1469 = vst.msk [vmem:[%s224 + $0x4] sm:$0x1] %vm492, %v1437
      %1470 = vst.msk [vmem:[%s224 + $0x14] sm:$0x1] %vm492, %v1441
      %1471 = vst.msk [vmem:[%s224 + $0x24] sm:$0x1] %vm492, %v1442
      %1472 = vst.msk [vmem:[%s224 + $0x34] sm:$0x1] %vm492, %v1443
      %1473 = vst.msk [vmem:[%s224 + $0x44] sm:$0x1] %vm492, %v1444
      %1474 = vst.msk [vmem:[%s224 + $0x54] sm:$0x1] %vm492, %v1445
      %1475 = vst.msk [vmem:[%s224 + $0x64] sm:$0x1] %vm492, %v1446
      %1476 = vst.msk [vmem:[%s224 + $0x74] sm:$0x1] %vm492, %v1447
      %1477 = vst.msk [vmem:[%s224 + $0x84] sm:$0x1] %vm492, %v1438
      %1478 = vst.msk [vmem:[%s224 + $0x94] sm:$0x1] %vm492, %v1448
      %1479 = vst.msk [vmem:[%s224 + $0xa4] sm:$0x1] %vm492, %v1449
      %1480 = vst.msk [vmem:[%s224 + $0xb4] sm:$0x1] %vm492, %v1450
      %1481 = vst.msk [vmem:[%s224 + $0xc4] sm:$0x1] %vm492, %v1451
      %1482 = vst.msk [vmem:[%s224 + $0xd4] sm:$0x1] %vm492, %v1452
      %1483 = vst.msk [vmem:[%s224 + $0xe4] sm:$0x1] %vm492, %v1453
      %1484 = vst.msk [vmem:[%s224 + $0xf4] sm:$0x1] %vm492, %v1454
      %s1485 = scalar_lea.vmem %s219, 1520
      %v1486 = vld [vmem:[%s1485] sm:$0xff]
      %v1487 = vld [vmem:[%s1485 + $0x8] sm:$0xff]
      %v1488 = vld [vmem:[%s1485 + $0x10] sm:$0xff]
      %v1489 = vld [vmem:[%s1485 + $0x18] sm:$0xff]
      %v1490 = vld [vmem:[%s1485 + $0x20] sm:$0xff]
      %v1491 = vld [vmem:[%s1485 + $0x28] sm:$0xff]
      %v1492 = vld [vmem:[%s1485 + $0x30] sm:$0xff]
      %v1493 = vld [vmem:[%s1485 + $0x38] sm:$0xff]
      %v1494 = vld [vmem:[%s1485 + $0x40] sm:$0xff]
      %v1495 = vld [vmem:[%s1485 + $0x48] sm:$0xff]
      %v1496 = vld [vmem:[%s1485 + $0x50] sm:$0xff]
      %v1497 = vld [vmem:[%s1485 + $0x58] sm:$0xff]
      %v1498 = vld [vmem:[%s1485 + $0x60] sm:$0xff]
      %v1499 = vld [vmem:[%s1485 + $0x68] sm:$0xff]
      %v1500 = vld [vmem:[%s1485 + $0x70] sm:$0xff]
      %v1501 = vld [vmem:[%s1485 + $0x78] sm:$0xff]
      %v1502 = vld [vmem:[%s1485 + $0x80] sm:$0xff]
      %v1503 = vld [vmem:[%s1485 + $0x88] sm:$0xff]
      %v1504 = vld [vmem:[%s1485 + $0x90] sm:$0x3f]
      %s1505 = scalar_lea.vmem %s219, 1672
      %v1506 = vld [vmem:[%s1505] sm:$0xff]
      %v1507 = vld [vmem:[%s1505 + $0x8] sm:$0xff]
      %v1508 = vld [vmem:[%s1505 + $0x10] sm:$0xff]
      %v1509 = vld [vmem:[%s1505 + $0x18] sm:$0xff]
      %v1510 = vld [vmem:[%s1505 + $0x20] sm:$0xff]
      %v1511 = vld [vmem:[%s1505 + $0x28] sm:$0xff]
      %v1512 = vld [vmem:[%s1505 + $0x30] sm:$0xff]
      %v1513 = vld [vmem:[%s1505 + $0x38] sm:$0xff]
      %v1514 = vld [vmem:[%s1505 + $0x40] sm:$0xff]
      %v1515 = vld [vmem:[%s1505 + $0x48] sm:$0xff]
      %v1516 = vld [vmem:[%s1505 + $0x50] sm:$0xff]
      %v1517 = vld [vmem:[%s1505 + $0x58] sm:$0xff]
      %v1518 = vld [vmem:[%s1505 + $0x60] sm:$0xff]
      %v1519 = vld [vmem:[%s1505 + $0x68] sm:$0xff]
      %v1520 = vld [vmem:[%s1505 + $0x70] sm:$0xff]
      %v1521 = vld [vmem:[%s1505 + $0x78] sm:$0xff]
      %v1522 = vld [vmem:[%s1505 + $0x80] sm:$0xff]
      %v1523 = vld [vmem:[%s1505 + $0x88] sm:$0xff]
      %v1524 = vld [vmem:[%s1505 + $0x90] sm:$0x3f]
      %v1526 = vsel %vm285, %v1504, 0
      %1528 = vmatpush.msra.mxu0 %v1501
      %1529 = vmatpush.msra.mxu0 %v1500
      %1530 = vmatpush.msra.mxu0 %v1499
      %1531 = vmatpush.msra.mxu0 %v1498
      %1532 = vmatpush.msra.mxu0 %v1497
      %1533 = vmatpush.msra.mxu0 %v1496
      %1534 = vmatpush.msra.mxu0 %v1495
      %1535 = vmatpush.msra.mxu0 %v1494
      %1536 = vmatpush.msra.mxu0 %v1493
      %1537 = vmatpush.msra.mxu0 %v1492
      %1538 = vmatpush.msra.mxu0 %v1491
      %1539 = vmatpush.msra.mxu0 %v1490
      %1540 = vmatpush.msra.mxu0 %v1489
      %1541 = vmatpush.msra.mxu0 %v1488
      %1542 = vmatpush.msra.mxu0 %v1487
      %1543 = vmatpush.msra.mxu0 %v1486
      %1544 = vmatmul.f32.gmra.mxu0 %v225
      %v1545 = vpop.f32.mrf.mxu0
      %v1546 = vadd.f32 0.0, %v1545
      %1547 = vmatmul.f32.gmra.mxu0 %v227
      %v1548 = vpop.f32.mrf.mxu0
      %v1549 = vadd.f32 0.0, %v1548
      %1550 = vdwg.mxu0
      %1551 = vmatpush.msra.mxu0 0.0
      %1552 = vmatpush.msra.mxu0 0.0
      %1553 = vmatpush.msra.mxu0 0.0
      %1554 = vmatpush.msra.mxu0 0.0
      %1555 = vmatpush.msra.mxu0 0.0
      %1556 = vmatpush.msra.mxu0 0.0
      %1557 = vmatpush.msra.mxu0 0.0
      %1558 = vmatpush.msra.mxu0 0.0
      %1559 = vmatpush.msra.mxu0 0.0
      %1560 = vmatpush.msra.mxu0 0.0
      %1561 = vmatpush.msra.mxu0 0.0
      %1562 = vmatpush.msra.mxu0 0.0
      %1563 = vmatpush.msra.mxu0 0.0
      %1564 = vmatpush.msra.mxu0 %v1526
      %1565 = vmatpush.msra.mxu0 %v1503
      %1566 = vmatpush.msra.mxu0 %v1502
      %1567 = vmatmul.f32.gmra.mxu0 %v280
      %v1568 = vpop.f32.mrf.mxu0
      %v1569 = vadd.f32 %v1546, %v1568
      %1570 = vmatmul.f32.gmra.mxu0 %v283
      %v1571 = vpop.f32.mrf.mxu0
      %v1572 = vadd.f32 %v1549, %v1571
      %1573 = vdwg.mxu0
      %v1575 = vsel %vm285, %v1524, 0
      %1577 = vmatpush.msra.mxu0 %v1521
      %1578 = vmatpush.msra.mxu0 %v1520
      %1579 = vmatpush.msra.mxu0 %v1519
      %1580 = vmatpush.msra.mxu0 %v1518
      %1581 = vmatpush.msra.mxu0 %v1517
      %1582 = vmatpush.msra.mxu0 %v1516
      %1583 = vmatpush.msra.mxu0 %v1515
      %1584 = vmatpush.msra.mxu0 %v1514
      %1585 = vmatpush.msra.mxu0 %v1513
      %1586 = vmatpush.msra.mxu0 %v1512
      %1587 = vmatpush.msra.mxu0 %v1511
      %1588 = vmatpush.msra.mxu0 %v1510
      %1589 = vmatpush.msra.mxu0 %v1509
      %1590 = vmatpush.msra.mxu0 %v1508
      %1591 = vmatpush.msra.mxu0 %v1507
      %1592 = vmatpush.msra.mxu0 %v1506
      %1593 = vmatmul.f32.gmra.mxu0 %v225
      %v1594 = vpop.f32.mrf.mxu0
      %v1595 = vadd.f32 0.0, %v1594
      %1596 = vmatmul.f32.gmra.mxu0 %v227
      %v1597 = vpop.f32.mrf.mxu0
      %v1598 = vadd.f32 0.0, %v1597
      %1599 = vdwg.mxu0
      %1600 = vmatpush.msra.mxu0 0.0
      %1601 = vmatpush.msra.mxu0 0.0
      %1602 = vmatpush.msra.mxu0 0.0
      %1603 = vmatpush.msra.mxu0 0.0
      %1604 = vmatpush.msra.mxu0 0.0
      %1605 = vmatpush.msra.mxu0 0.0
      %1606 = vmatpush.msra.mxu0 0.0
      %1607 = vmatpush.msra.mxu0 0.0
      %1608 = vmatpush.msra.mxu0 0.0
      %1609 = vmatpush.msra.mxu0 0.0
      %1610 = vmatpush.msra.mxu0 0.0
      %1611 = vmatpush.msra.mxu0 0.0
      %1612 = vmatpush.msra.mxu0 0.0
      %1613 = vmatpush.msra.mxu0 %v1575
      %1614 = vmatpush.msra.mxu0 %v1523
      %1615 = vmatpush.msra.mxu0 %v1522
      %1616 = vmatmul.f32.gmra.mxu0 %v280
      %v1617 = vpop.f32.mrf.mxu0
      %v1618 = vadd.f32 %v1595, %v1617
      %1619 = vmatmul.f32.gmra.mxu0 %v283
      %v1620 = vpop.f32.mrf.mxu0
      %v1621 = vadd.f32 %v1598, %v1620
      %1622 = vdwg.mxu0
      %v1623 = vmax.f32 %v1569, %v1618
      %v1624 = vmax.f32 %v1572, %v1621
      %v1626 = vsel %vm386, %v1623, 0
      %v1629 = vsel %vm386, %v1624, 0
      %1631 = vmatpush.msra.mxu0 0.0
      %1632 = vmatpush.msra.mxu0 0.0
      %1633 = vmatpush.msra.mxu0 0.0
      %1634 = vmatpush.msra.mxu0 0.0
      %1635 = vmatpush.msra.mxu0 0.0
      %1636 = vmatpush.msra.mxu0 0.0
      %1637 = vmatpush.msra.mxu0 0.0
      %1638 = vmatpush.msra.mxu0 0.0
      %1639 = vmatpush.msra.mxu0 0.0
      %1640 = vmatpush.msra.mxu0 0.0
      %1641 = vmatpush.msra.mxu0 0.0
      %1642 = vmatpush.msra.mxu0 0.0
      %1643 = vmatpush.msra.mxu0 %v395
      %1644 = vmatpush.msra.mxu0 %v233
      %1645 = vmatpush.msra.mxu0 %v232
      %1646 = vmatpush.msra.mxu0 %v231
      %1647 = vmatmul.f32.gmra.mxu0 %v1626
      %v1648 = vpop.f32.mrf.mxu0
      %v1649 = vadd.f32 0.0, %v1648
      %1650 = vmatmul.f32.gmra.mxu0 %v1629
      %v1651 = vpop.f32.mrf.mxu0
      %v1652 = vadd.f32 0.0, %v1651
      %1653 = vdwg.mxu0
      %1654 = vmatpush.msra.mxu0 0.0
      %1655 = vmatpush.msra.mxu0 0.0
      %1656 = vmatpush.msra.mxu0 0.0
      %1657 = vmatpush.msra.mxu0 0.0
      %1658 = vmatpush.msra.mxu0 0.0
      %1659 = vmatpush.msra.mxu0 0.0
      %1660 = vmatpush.msra.mxu0 0.0
      %1661 = vmatpush.msra.mxu0 0.0
      %1662 = vmatpush.msra.mxu0 0.0
      %1663 = vmatpush.msra.mxu0 0.0
      %1664 = vmatpush.msra.mxu0 0.0
      %1665 = vmatpush.msra.mxu0 0.0
      %1666 = vmatpush.msra.mxu0 %v421
      %1667 = vmatpush.msra.mxu0 %v237
      %1668 = vmatpush.msra.mxu0 %v236
      %1669 = vmatpush.msra.mxu0 %v235
      %1670 = vmatmul.f32.gmra.mxu0 %v1626
      %v1671 = vpop.f32.mrf.mxu0
      %v1672 = vadd.f32 0.0, %v1671
      %1673 = vmatmul.f32.gmra.mxu0 %v1629
      %v1674 = vpop.f32.mrf.mxu0
      %v1675 = vadd.f32 0.0, %v1674
      %1676 = vdwg.mxu0
      %v1677 = vmax.f32 %v1649, %v1672
      %v1678 = vmax.f32 %v1652, %v1675
      %v1679 = vadd.f32 %v1677, %v451
      %v1680 = vadd.f32 %v1678, %v456
      %v1681 = vmax.f32 %v1679, 0.0
      %v1682 = vmax.f32 %v1680, 0.0
      %v1685 = vrot.slane %v1681, 1
      %v1686 = vrot.slane %v1681, 2
      %v1687 = vrot.slane %v1681, 3
      %v1688 = vrot.slane %v1681, 4
      %v1689 = vrot.slane %v1681, 5
      %v1690 = vrot.slane %v1681, 6
      %v1691 = vrot.slane %v1681, 7
      %v1692 = vrot.slane %v1682, 1
      %v1693 = vrot.slane %v1682, 2
      %v1694 = vrot.slane %v1682, 3
      %v1695 = vrot.slane %v1682, 4
      %v1696 = vrot.slane %v1682, 5
      %v1697 = vrot.slane %v1682, 6
      %v1698 = vrot.slane %v1682, 7
      %1713 = vst.msk [vmem:[%s224 + $0x5] sm:$0x1] %vm492, %v1681
      %1714 = vst.msk [vmem:[%s224 + $0x15] sm:$0x1] %vm492, %v1685
      %1715 = vst.msk [vmem:[%s224 + $0x25] sm:$0x1] %vm492, %v1686
      %1716 = vst.msk [vmem:[%s224 + $0x35] sm:$0x1] %vm492, %v1687
      %1717 = vst.msk [vmem:[%s224 + $0x45] sm:$0x1] %vm492, %v1688
      %1718 = vst.msk [vmem:[%s224 + $0x55] sm:$0x1] %vm492, %v1689
      %1719 = vst.msk [vmem:[%s224 + $0x65] sm:$0x1] %vm492, %v1690
      %1720 = vst.msk [vmem:[%s224 + $0x75] sm:$0x1] %vm492, %v1691
      %1721 = vst.msk [vmem:[%s224 + $0x85] sm:$0x1] %vm492, %v1682
      %1722 = vst.msk [vmem:[%s224 + $0x95] sm:$0x1] %vm492, %v1692
      %1723 = vst.msk [vmem:[%s224 + $0xa5] sm:$0x1] %vm492, %v1693
      %1724 = vst.msk [vmem:[%s224 + $0xb5] sm:$0x1] %vm492, %v1694
      %1725 = vst.msk [vmem:[%s224 + $0xc5] sm:$0x1] %vm492, %v1695
      %1726 = vst.msk [vmem:[%s224 + $0xd5] sm:$0x1] %vm492, %v1696
      %1727 = vst.msk [vmem:[%s224 + $0xe5] sm:$0x1] %vm492, %v1697
      %1728 = vst.msk [vmem:[%s224 + $0xf5] sm:$0x1] %vm492, %v1698
      %s1729 = scalar_lea.vmem %s219, 1824
      %v1730 = vld [vmem:[%s1729] sm:$0xff]
      %v1731 = vld [vmem:[%s1729 + $0x8] sm:$0xff]
      %v1732 = vld [vmem:[%s1729 + $0x10] sm:$0xff]
      %v1733 = vld [vmem:[%s1729 + $0x18] sm:$0xff]
      %v1734 = vld [vmem:[%s1729 + $0x20] sm:$0xff]
      %v1735 = vld [vmem:[%s1729 + $0x28] sm:$0xff]
      %v1736 = vld [vmem:[%s1729 + $0x30] sm:$0xff]
      %v1737 = vld [vmem:[%s1729 + $0x38] sm:$0xff]
      %v1738 = vld [vmem:[%s1729 + $0x40] sm:$0xff]
      %v1739 = vld [vmem:[%s1729 + $0x48] sm:$0xff]
      %v1740 = vld [vmem:[%s1729 + $0x50] sm:$0xff]
      %v1741 = vld [vmem:[%s1729 + $0x58] sm:$0xff]
      %v1742 = vld [vmem:[%s1729 + $0x60] sm:$0xff]
      %v1743 = vld [vmem:[%s1729 + $0x68] sm:$0xff]
      %v1744 = vld [vmem:[%s1729 + $0x70] sm:$0xff]
      %v1745 = vld [vmem:[%s1729 + $0x78] sm:$0xff]
      %v1746 = vld [vmem:[%s1729 + $0x80] sm:$0xff]
      %v1747 = vld [vmem:[%s1729 + $0x88] sm:$0xff]
      %v1748 = vld [vmem:[%s1729 + $0x90] sm:$0x3f]
      %s1749 = scalar_lea.vmem %s219, 1976
      %v1750 = vld [vmem:[%s1749] sm:$0xff]
      %v1751 = vld [vmem:[%s1749 + $0x8] sm:$0xff]
      %v1752 = vld [vmem:[%s1749 + $0x10] sm:$0xff]
      %v1753 = vld [vmem:[%s1749 + $0x18] sm:$0xff]
      %v1754 = vld [vmem:[%s1749 + $0x20] sm:$0xff]
      %v1755 = vld [vmem:[%s1749 + $0x28] sm:$0xff]
      %v1756 = vld [vmem:[%s1749 + $0x30] sm:$0xff]
      %v1757 = vld [vmem:[%s1749 + $0x38] sm:$0xff]
      %v1758 = vld [vmem:[%s1749 + $0x40] sm:$0xff]
      %v1759 = vld [vmem:[%s1749 + $0x48] sm:$0xff]
      %v1760 = vld [vmem:[%s1749 + $0x50] sm:$0xff]
      %v1761 = vld [vmem:[%s1749 + $0x58] sm:$0xff]
      %v1762 = vld [vmem:[%s1749 + $0x60] sm:$0xff]
      %v1763 = vld [vmem:[%s1749 + $0x68] sm:$0xff]
      %v1764 = vld [vmem:[%s1749 + $0x70] sm:$0xff]
      %v1765 = vld [vmem:[%s1749 + $0x78] sm:$0xff]
      %v1766 = vld [vmem:[%s1749 + $0x80] sm:$0xff]
      %v1767 = vld [vmem:[%s1749 + $0x88] sm:$0xff]
      %v1768 = vld [vmem:[%s1749 + $0x90] sm:$0x3f]
      %v1770 = vsel %vm285, %v1748, 0
      %1772 = vmatpush.msra.mxu0 %v1745
      %1773 = vmatpush.msra.mxu0 %v1744
      %1774 = vmatpush.msra.mxu0 %v1743
      %1775 = vmatpush.msra.mxu0 %v1742
      %1776 = vmatpush.msra.mxu0 %v1741
      %1777 = vmatpush.msra.mxu0 %v1740
      %1778 = vmatpush.msra.mxu0 %v1739
      %1779 = vmatpush.msra.mxu0 %v1738
      %1780 = vmatpush.msra.mxu0 %v1737
      %1781 = vmatpush.msra.mxu0 %v1736
      %1782 = vmatpush.msra.mxu0 %v1735
      %1783 = vmatpush.msra.mxu0 %v1734
      %1784 = vmatpush.msra.mxu0 %v1733
      %1785 = vmatpush.msra.mxu0 %v1732
      %1786 = vmatpush.msra.mxu0 %v1731
      %1787 = vmatpush.msra.mxu0 %v1730
      %1788 = vmatmul.f32.gmra.mxu0 %v225
      %v1789 = vpop.f32.mrf.mxu0
      %v1790 = vadd.f32 0.0, %v1789
      %1791 = vmatmul.f32.gmra.mxu0 %v227
      %v1792 = vpop.f32.mrf.mxu0
      %v1793 = vadd.f32 0.0, %v1792
      %1794 = vdwg.mxu0
      %1795 = vmatpush.msra.mxu0 0.0
      %1796 = vmatpush.msra.mxu0 0.0
      %1797 = vmatpush.msra.mxu0 0.0
      %1798 = vmatpush.msra.mxu0 0.0
      %1799 = vmatpush.msra.mxu0 0.0
      %1800 = vmatpush.msra.mxu0 0.0
      %1801 = vmatpush.msra.mxu0 0.0
      %1802 = vmatpush.msra.mxu0 0.0
      %1803 = vmatpush.msra.mxu0 0.0
      %1804 = vmatpush.msra.mxu0 0.0
      %1805 = vmatpush.msra.mxu0 0.0
      %1806 = vmatpush.msra.mxu0 0.0
      %1807 = vmatpush.msra.mxu0 0.0
      %1808 = vmatpush.msra.mxu0 %v1770
      %1809 = vmatpush.msra.mxu0 %v1747
      %1810 = vmatpush.msra.mxu0 %v1746
      %1811 = vmatmul.f32.gmra.mxu0 %v280
      %v1812 = vpop.f32.mrf.mxu0
      %v1813 = vadd.f32 %v1790, %v1812
      %1814 = vmatmul.f32.gmra.mxu0 %v283
      %v1815 = vpop.f32.mrf.mxu0
      %v1816 = vadd.f32 %v1793, %v1815
      %1817 = vdwg.mxu0
      %v1819 = vsel %vm285, %v1768, 0
      %1821 = vmatpush.msra.mxu0 %v1765
      %1822 = vmatpush.msra.mxu0 %v1764
      %1823 = vmatpush.msra.mxu0 %v1763
      %1824 = vmatpush.msra.mxu0 %v1762
      %1825 = vmatpush.msra.mxu0 %v1761
      %1826 = vmatpush.msra.mxu0 %v1760
      %1827 = vmatpush.msra.mxu0 %v1759
      %1828 = vmatpush.msra.mxu0 %v1758
      %1829 = vmatpush.msra.mxu0 %v1757
      %1830 = vmatpush.msra.mxu0 %v1756
      %1831 = vmatpush.msra.mxu0 %v1755
      %1832 = vmatpush.msra.mxu0 %v1754
      %1833 = vmatpush.msra.mxu0 %v1753
      %1834 = vmatpush.msra.mxu0 %v1752
      %1835 = vmatpush.msra.mxu0 %v1751
      %1836 = vmatpush.msra.mxu0 %v1750
      %1837 = vmatmul.f32.gmra.mxu0 %v225
      %v1838 = vpop.f32.mrf.mxu0
      %v1839 = vadd.f32 0.0, %v1838
      %1840 = vmatmul.f32.gmra.mxu0 %v227
      %v1841 = vpop.f32.mrf.mxu0
      %v1842 = vadd.f32 0.0, %v1841
      %1843 = vdwg.mxu0
      %1844 = vmatpush.msra.mxu0 0.0
      %1845 = vmatpush.msra.mxu0 0.0
      %1846 = vmatpush.msra.mxu0 0.0
      %1847 = vmatpush.msra.mxu0 0.0
      %1848 = vmatpush.msra.mxu0 0.0
      %1849 = vmatpush.msra.mxu0 0.0
      %1850 = vmatpush.msra.mxu0 0.0
      %1851 = vmatpush.msra.mxu0 0.0
      %1852 = vmatpush.msra.mxu0 0.0
      %1853 = vmatpush.msra.mxu0 0.0
      %1854 = vmatpush.msra.mxu0 0.0
      %1855 = vmatpush.msra.mxu0 0.0
      %1856 = vmatpush.msra.mxu0 0.0
      %1857 = vmatpush.msra.mxu0 %v1819
      %1858 = vmatpush.msra.mxu0 %v1767
      %1859 = vmatpush.msra.mxu0 %v1766
      %1860 = vmatmul.f32.gmra.mxu0 %v280
      %v1861 = vpop.f32.mrf.mxu0
      %v1862 = vadd.f32 %v1839, %v1861
      %1863 = vmatmul.f32.gmra.mxu0 %v283
      %v1864 = vpop.f32.mrf.mxu0
      %v1865 = vadd.f32 %v1842, %v1864
      %1866 = vdwg.mxu0
      %v1867 = vmax.f32 %v1813, %v1862
      %v1868 = vmax.f32 %v1816, %v1865
      %v1870 = vsel %vm386, %v1867, 0
      %v1873 = vsel %vm386, %v1868, 0
      %1875 = vmatpush.msra.mxu0 0.0
      %1876 = vmatpush.msra.mxu0 0.0
      %1877 = vmatpush.msra.mxu0 0.0
      %1878 = vmatpush.msra.mxu0 0.0
      %1879 = vmatpush.msra.mxu0 0.0
      %1880 = vmatpush.msra.mxu0 0.0
      %1881 = vmatpush.msra.mxu0 0.0
      %1882 = vmatpush.msra.mxu0 0.0
      %1883 = vmatpush.msra.mxu0 0.0
      %1884 = vmatpush.msra.mxu0 0.0
      %1885 = vmatpush.msra.mxu0 0.0
      %1886 = vmatpush.msra.mxu0 0.0
      %1887 = vmatpush.msra.mxu0 %v395
      %1888 = vmatpush.msra.mxu0 %v233
      %1889 = vmatpush.msra.mxu0 %v232
      %1890 = vmatpush.msra.mxu0 %v231
      %1891 = vmatmul.f32.gmra.mxu0 %v1870
      %v1892 = vpop.f32.mrf.mxu0
      %v1893 = vadd.f32 0.0, %v1892
      %1894 = vmatmul.f32.gmra.mxu0 %v1873
      %v1895 = vpop.f32.mrf.mxu0
      %v1896 = vadd.f32 0.0, %v1895
      %1897 = vdwg.mxu0
      %1898 = vmatpush.msra.mxu0 0.0
      %1899 = vmatpush.msra.mxu0 0.0
      %1900 = vmatpush.msra.mxu0 0.0
      %1901 = vmatpush.msra.mxu0 0.0
      %1902 = vmatpush.msra.mxu0 0.0
      %1903 = vmatpush.msra.mxu0 0.0
      %1904 = vmatpush.msra.mxu0 0.0
      %1905 = vmatpush.msra.mxu0 0.0
      %1906 = vmatpush.msra.mxu0 0.0
      %1907 = vmatpush.msra.mxu0 0.0
      %1908 = vmatpush.msra.mxu0 0.0
      %1909 = vmatpush.msra.mxu0 0.0
      %1910 = vmatpush.msra.mxu0 %v421
      %1911 = vmatpush.msra.mxu0 %v237
      %1912 = vmatpush.msra.mxu0 %v236
      %1913 = vmatpush.msra.mxu0 %v235
      %1914 = vmatmul.f32.gmra.mxu0 %v1870
      %v1915 = vpop.f32.mrf.mxu0
      %v1916 = vadd.f32 0.0, %v1915
      %1917 = vmatmul.f32.gmra.mxu0 %v1873
      %v1918 = vpop.f32.mrf.mxu0
      %v1919 = vadd.f32 0.0, %v1918
      %1920 = vdwg.mxu0
      %v1921 = vmax.f32 %v1893, %v1916
      %v1922 = vmax.f32 %v1896, %v1919
      %v1923 = vadd.f32 %v1921, %v451
      %v1924 = vadd.f32 %v1922, %v456
      %v1925 = vmax.f32 %v1923, 0.0
      %v1926 = vmax.f32 %v1924, 0.0
      %v1929 = vrot.slane %v1925, 1
      %v1930 = vrot.slane %v1925, 2
      %v1931 = vrot.slane %v1925, 3
      %v1932 = vrot.slane %v1925, 4
      %v1933 = vrot.slane %v1925, 5
      %v1934 = vrot.slane %v1925, 6
      %v1935 = vrot.slane %v1925, 7
      %v1936 = vrot.slane %v1926, 1
      %v1937 = vrot.slane %v1926, 2
      %v1938 = vrot.slane %v1926, 3
      %v1939 = vrot.slane %v1926, 4
      %v1940 = vrot.slane %v1926, 5
      %v1941 = vrot.slane %v1926, 6
      %v1942 = vrot.slane %v1926, 7
      %1957 = vst.msk [vmem:[%s224 + $0x6] sm:$0x1] %vm492, %v1925
      %1958 = vst.msk [vmem:[%s224 + $0x16] sm:$0x1] %vm492, %v1929
      %1959 = vst.msk [vmem:[%s224 + $0x26] sm:$0x1] %vm492, %v1930
      %1960 = vst.msk [vmem:[%s224 + $0x36] sm:$0x1] %vm492, %v1931
      %1961 = vst.msk [vmem:[%s224 + $0x46] sm:$0x1] %vm492, %v1932
      %1962 = vst.msk [vmem:[%s224 + $0x56] sm:$0x1] %vm492, %v1933
      %1963 = vst.msk [vmem:[%s224 + $0x66] sm:$0x1] %vm492, %v1934
      %1964 = vst.msk [vmem:[%s224 + $0x76] sm:$0x1] %vm492, %v1935
      %1965 = vst.msk [vmem:[%s224 + $0x86] sm:$0x1] %vm492, %v1926
      %1966 = vst.msk [vmem:[%s224 + $0x96] sm:$0x1] %vm492, %v1936
      %1967 = vst.msk [vmem:[%s224 + $0xa6] sm:$0x1] %vm492, %v1937
      %1968 = vst.msk [vmem:[%s224 + $0xb6] sm:$0x1] %vm492, %v1938
      %1969 = vst.msk [vmem:[%s224 + $0xc6] sm:$0x1] %vm492, %v1939
      %1970 = vst.msk [vmem:[%s224 + $0xd6] sm:$0x1] %vm492, %v1940
      %1971 = vst.msk [vmem:[%s224 + $0xe6] sm:$0x1] %vm492, %v1941
      %1972 = vst.msk [vmem:[%s224 + $0xf6] sm:$0x1] %vm492, %v1942
      %s1973 = scalar_lea.vmem %s219, 2128
      %v1974 = vld [vmem:[%s1973] sm:$0xff]
      %v1975 = vld [vmem:[%s1973 + $0x8] sm:$0xff]
      %v1976 = vld [vmem:[%s1973 + $0x10] sm:$0xff]
      %v1977 = vld [vmem:[%s1973 + $0x18] sm:$0xff]
      %v1978 = vld [vmem:[%s1973 + $0x20] sm:$0xff]
      %v1979 = vld [vmem:[%s1973 + $0x28] sm:$0xff]
      %v1980 = vld [vmem:[%s1973 + $0x30] sm:$0xff]
      %v1981 = vld [vmem:[%s1973 + $0x38] sm:$0xff]
      %v1982 = vld [vmem:[%s1973 + $0x40] sm:$0xff]
      %v1983 = vld [vmem:[%s1973 + $0x48] sm:$0xff]
      %v1984 = vld [vmem:[%s1973 + $0x50] sm:$0xff]
      %v1985 = vld [vmem:[%s1973 + $0x58] sm:$0xff]
      %v1986 = vld [vmem:[%s1973 + $0x60] sm:$0xff]
      %v1987 = vld [vmem:[%s1973 + $0x68] sm:$0xff]
      %v1988 = vld [vmem:[%s1973 + $0x70] sm:$0xff]
      %v1989 = vld [vmem:[%s1973 + $0x78] sm:$0xff]
      %v1990 = vld [vmem:[%s1973 + $0x80] sm:$0xff]
      %v1991 = vld [vmem:[%s1973 + $0x88] sm:$0xff]
      %v1992 = vld [vmem:[%s1973 + $0x90] sm:$0x3f]
      %s1993 = scalar_lea.vmem %s219, 2280
      %v1994 = vld [vmem:[%s1993] sm:$0xff]
      %v1995 = vld [vmem:[%s1993 + $0x8] sm:$0xff]
      %v1996 = vld [vmem:[%s1993 + $0x10] sm:$0xff]
      %v1997 = vld [vmem:[%s1993 + $0x18] sm:$0xff]
      %v1998 = vld [vmem:[%s1993 + $0x20] sm:$0xff]
      %v1999 = vld [vmem:[%s1993 + $0x28] sm:$0xff]
      %v2000 = vld [vmem:[%s1993 + $0x30] sm:$0xff]
      %v2001 = vld [vmem:[%s1993 + $0x38] sm:$0xff]
      %v2002 = vld [vmem:[%s1993 + $0x40] sm:$0xff]
      %v2003 = vld [vmem:[%s1993 + $0x48] sm:$0xff]
      %v2004 = vld [vmem:[%s1993 + $0x50] sm:$0xff]
      %v2005 = vld [vmem:[%s1993 + $0x58] sm:$0xff]
      %v2006 = vld [vmem:[%s1993 + $0x60] sm:$0xff]
      %v2007 = vld [vmem:[%s1993 + $0x68] sm:$0xff]
      %v2008 = vld [vmem:[%s1993 + $0x70] sm:$0xff]
      %v2009 = vld [vmem:[%s1993 + $0x78] sm:$0xff]
      %v2010 = vld [vmem:[%s1993 + $0x80] sm:$0xff]
      %v2011 = vld [vmem:[%s1993 + $0x88] sm:$0xff]
      %v2012 = vld [vmem:[%s1993 + $0x90] sm:$0x3f]
      %v2014 = vsel %vm285, %v1992, 0
      %2016 = vmatpush.msra.mxu0 %v1989
      %2017 = vmatpush.msra.mxu0 %v1988
      %2018 = vmatpush.msra.mxu0 %v1987
      %2019 = vmatpush.msra.mxu0 %v1986
      %2020 = vmatpush.msra.mxu0 %v1985
      %2021 = vmatpush.msra.mxu0 %v1984
      %2022 = vmatpush.msra.mxu0 %v1983
      %2023 = vmatpush.msra.mxu0 %v1982
      %2024 = vmatpush.msra.mxu0 %v1981
      %2025 = vmatpush.msra.mxu0 %v1980
      %2026 = vmatpush.msra.mxu0 %v1979
      %2027 = vmatpush.msra.mxu0 %v1978
      %2028 = vmatpush.msra.mxu0 %v1977
      %2029 = vmatpush.msra.mxu0 %v1976
      %2030 = vmatpush.msra.mxu0 %v1975
      %2031 = vmatpush.msra.mxu0 %v1974
      %2032 = vmatmul.f32.gmra.mxu0 %v225
      %v2033 = vpop.f32.mrf.mxu0
      %v2034 = vadd.f32 0.0, %v2033
      %2035 = vmatmul.f32.gmra.mxu0 %v227
      %v2036 = vpop.f32.mrf.mxu0
      %v2037 = vadd.f32 0.0, %v2036
      %2038 = vdwg.mxu0
      %2039 = vmatpush.msra.mxu0 0.0
      %2040 = vmatpush.msra.mxu0 0.0
      %2041 = vmatpush.msra.mxu0 0.0
      %2042 = vmatpush.msra.mxu0 0.0
      %2043 = vmatpush.msra.mxu0 0.0
      %2044 = vmatpush.msra.mxu0 0.0
      %2045 = vmatpush.msra.mxu0 0.0
      %2046 = vmatpush.msra.mxu0 0.0
      %2047 = vmatpush.msra.mxu0 0.0
      %2048 = vmatpush.msra.mxu0 0.0
      %2049 = vmatpush.msra.mxu0 0.0
      %2050 = vmatpush.msra.mxu0 0.0
      %2051 = vmatpush.msra.mxu0 0.0
      %2052 = vmatpush.msra.mxu0 %v2014
      %2053 = vmatpush.msra.mxu0 %v1991
      %2054 = vmatpush.msra.mxu0 %v1990
      %2055 = vmatmul.f32.gmra.mxu0 %v280
      %v2056 = vpop.f32.mrf.mxu0
      %v2057 = vadd.f32 %v2034, %v2056
      %2058 = vmatmul.f32.gmra.mxu0 %v283
      %v2059 = vpop.f32.mrf.mxu0
      %v2060 = vadd.f32 %v2037, %v2059
      %2061 = vdwg.mxu0
      %v2063 = vsel %vm285, %v2012, 0
      %2065 = vmatpush.msra.mxu0 %v2009
      %2066 = vmatpush.msra.mxu0 %v2008
      %2067 = vmatpush.msra.mxu0 %v2007
      %2068 = vmatpush.msra.mxu0 %v2006
      %2069 = vmatpush.msra.mxu0 %v2005
      %2070 = vmatpush.msra.mxu0 %v2004
      %2071 = vmatpush.msra.mxu0 %v2003
      %2072 = vmatpush.msra.mxu0 %v2002
      %2073 = vmatpush.msra.mxu0 %v2001
      %2074 = vmatpush.msra.mxu0 %v2000
      %2075 = vmatpush.msra.mxu0 %v1999
      %2076 = vmatpush.msra.mxu0 %v1998
      %2077 = vmatpush.msra.mxu0 %v1997
      %2078 = vmatpush.msra.mxu0 %v1996
      %2079 = vmatpush.msra.mxu0 %v1995
      %2080 = vmatpush.msra.mxu0 %v1994
      %2081 = vmatmul.f32.gmra.mxu0 %v225
      %v2082 = vpop.f32.mrf.mxu0
      %v2083 = vadd.f32 0.0, %v2082
      %2084 = vmatmul.f32.gmra.mxu0 %v227
      %v2085 = vpop.f32.mrf.mxu0
      %v2086 = vadd.f32 0.0, %v2085
      %2087 = vdwg.mxu0
      %2088 = vmatpush.msra.mxu0 0.0
      %2089 = vmatpush.msra.mxu0 0.0
      %2090 = vmatpush.msra.mxu0 0.0
      %2091 = vmatpush.msra.mxu0 0.0
      %2092 = vmatpush.msra.mxu0 0.0
      %2093 = vmatpush.msra.mxu0 0.0
      %2094 = vmatpush.msra.mxu0 0.0
      %2095 = vmatpush.msra.mxu0 0.0
      %2096 = vmatpush.msra.mxu0 0.0
      %2097 = vmatpush.msra.mxu0 0.0
      %2098 = vmatpush.msra.mxu0 0.0
      %2099 = vmatpush.msra.mxu0 0.0
      %2100 = vmatpush.msra.mxu0 0.0
      %2101 = vmatpush.msra.mxu0 %v2063
      %2102 = vmatpush.msra.mxu0 %v2011
      %2103 = vmatpush.msra.mxu0 %v2010
      %2104 = vmatmul.f32.gmra.mxu0 %v280
      %v2105 = vpop.f32.mrf.mxu0
      %v2106 = vadd.f32 %v2083, %v2105
      %2107 = vmatmul.f32.gmra.mxu0 %v283
      %v2108 = vpop.f32.mrf.mxu0
      %v2109 = vadd.f32 %v2086, %v2108
      %2110 = vdwg.mxu0
      %v2111 = vmax.f32 %v2057, %v2106
      %v2112 = vmax.f32 %v2060, %v2109
      %v2114 = vsel %vm386, %v2111, 0
      %v2117 = vsel %vm386, %v2112, 0
      %2119 = vmatpush.msra.mxu0 0.0
      %2120 = vmatpush.msra.mxu0 0.0
      %2121 = vmatpush.msra.mxu0 0.0
      %2122 = vmatpush.msra.mxu0 0.0
      %2123 = vmatpush.msra.mxu0 0.0
      %2124 = vmatpush.msra.mxu0 0.0
      %2125 = vmatpush.msra.mxu0 0.0
      %2126 = vmatpush.msra.mxu0 0.0
      %2127 = vmatpush.msra.mxu0 0.0
      %2128 = vmatpush.msra.mxu0 0.0
      %2129 = vmatpush.msra.mxu0 0.0
      %2130 = vmatpush.msra.mxu0 0.0
      %2131 = vmatpush.msra.mxu0 %v395
      %2132 = vmatpush.msra.mxu0 %v233
      %2133 = vmatpush.msra.mxu0 %v232
      %2134 = vmatpush.msra.mxu0 %v231
      %2135 = vmatmul.f32.gmra.mxu0 %v2114
      %v2136 = vpop.f32.mrf.mxu0
      %v2137 = vadd.f32 0.0, %v2136
      %2138 = vmatmul.f32.gmra.mxu0 %v2117
      %v2139 = vpop.f32.mrf.mxu0
      %v2140 = vadd.f32 0.0, %v2139
      %2141 = vdwg.mxu0
      %2142 = vmatpush.msra.mxu0 0.0
      %2143 = vmatpush.msra.mxu0 0.0
      %2144 = vmatpush.msra.mxu0 0.0
      %2145 = vmatpush.msra.mxu0 0.0
      %2146 = vmatpush.msra.mxu0 0.0
      %2147 = vmatpush.msra.mxu0 0.0
      %2148 = vmatpush.msra.mxu0 0.0
      %2149 = vmatpush.msra.mxu0 0.0
      %2150 = vmatpush.msra.mxu0 0.0
      %2151 = vmatpush.msra.mxu0 0.0
      %2152 = vmatpush.msra.mxu0 0.0
      %2153 = vmatpush.msra.mxu0 0.0
      %2154 = vmatpush.msra.mxu0 %v421
      %2155 = vmatpush.msra.mxu0 %v237
      %2156 = vmatpush.msra.mxu0 %v236
      %2157 = vmatpush.msra.mxu0 %v235
      %2158 = vmatmul.f32.gmra.mxu0 %v2114
      %v2159 = vpop.f32.mrf.mxu0
      %v2160 = vadd.f32 0.0, %v2159
      %2161 = vmatmul.f32.gmra.mxu0 %v2117
      %v2162 = vpop.f32.mrf.mxu0
      %v2163 = vadd.f32 0.0, %v2162
      %2164 = vdwg.mxu0
      %v2165 = vmax.f32 %v2137, %v2160
      %v2166 = vmax.f32 %v2140, %v2163
      %v2167 = vadd.f32 %v2165, %v451
      %v2168 = vadd.f32 %v2166, %v456
      %v2169 = vmax.f32 %v2167, 0.0
      %v2170 = vmax.f32 %v2168, 0.0
      %v2173 = vrot.slane %v2169, 1
      %v2174 = vrot.slane %v2169, 2
      %v2175 = vrot.slane %v2169, 3
      %v2176 = vrot.slane %v2169, 4
      %v2177 = vrot.slane %v2169, 5
      %v2178 = vrot.slane %v2169, 6
      %v2179 = vrot.slane %v2169, 7
      %v2180 = vrot.slane %v2170, 1
      %v2181 = vrot.slane %v2170, 2
      %v2182 = vrot.slane %v2170, 3
      %v2183 = vrot.slane %v2170, 4
      %v2184 = vrot.slane %v2170, 5
      %v2185 = vrot.slane %v2170, 6
      %v2186 = vrot.slane %v2170, 7
      %2201 = vst.msk [vmem:[%s224 + $0x7] sm:$0x1] %vm492, %v2169
      %2202 = vst.msk [vmem:[%s224 + $0x17] sm:$0x1] %vm492, %v2173
      %2203 = vst.msk [vmem:[%s224 + $0x27] sm:$0x1] %vm492, %v2174
      %2204 = vst.msk [vmem:[%s224 + $0x37] sm:$0x1] %vm492, %v2175
      %2205 = vst.msk [vmem:[%s224 + $0x47] sm:$0x1] %vm492, %v2176
      %2206 = vst.msk [vmem:[%s224 + $0x57] sm:$0x1] %vm492, %v2177
      %2207 = vst.msk [vmem:[%s224 + $0x67] sm:$0x1] %vm492, %v2178
      %2208 = vst.msk [vmem:[%s224 + $0x77] sm:$0x1] %vm492, %v2179
      %2209 = vst.msk [vmem:[%s224 + $0x87] sm:$0x1] %vm492, %v2170
      %2210 = vst.msk [vmem:[%s224 + $0x97] sm:$0x1] %vm492, %v2180
      %2211 = vst.msk [vmem:[%s224 + $0xa7] sm:$0x1] %vm492, %v2181
      %2212 = vst.msk [vmem:[%s224 + $0xb7] sm:$0x1] %vm492, %v2182
      %2213 = vst.msk [vmem:[%s224 + $0xc7] sm:$0x1] %vm492, %v2183
      %2214 = vst.msk [vmem:[%s224 + $0xd7] sm:$0x1] %vm492, %v2184
      %2215 = vst.msk [vmem:[%s224 + $0xe7] sm:$0x1] %vm492, %v2185
      %2216 = vst.msk [vmem:[%s224 + $0xf7] sm:$0x1] %vm492, %v2186
      %s2217 = scalar_lea.vmem %s219, 2432
      %v2218 = vld [vmem:[%s2217] sm:$0xff]
      %v2219 = vld [vmem:[%s2217 + $0x8] sm:$0xff]
      %v2220 = vld [vmem:[%s2217 + $0x10] sm:$0xff]
      %v2221 = vld [vmem:[%s2217 + $0x18] sm:$0xff]
      %v2222 = vld [vmem:[%s2217 + $0x20] sm:$0xff]
      %v2223 = vld [vmem:[%s2217 + $0x28] sm:$0xff]
      %v2224 = vld [vmem:[%s2217 + $0x30] sm:$0xff]
      %v2225 = vld [vmem:[%s2217 + $0x38] sm:$0xff]
      %v2226 = vld [vmem:[%s2217 + $0x40] sm:$0xff]
      %v2227 = vld [vmem:[%s2217 + $0x48] sm:$0xff]
      %v2228 = vld [vmem:[%s2217 + $0x50] sm:$0xff]
      %v2229 = vld [vmem:[%s2217 + $0x58] sm:$0xff]
      %v2230 = vld [vmem:[%s2217 + $0x60] sm:$0xff]
      %v2231 = vld [vmem:[%s2217 + $0x68] sm:$0xff]
      %v2232 = vld [vmem:[%s2217 + $0x70] sm:$0xff]
      %v2233 = vld [vmem:[%s2217 + $0x78] sm:$0xff]
      %v2234 = vld [vmem:[%s2217 + $0x80] sm:$0xff]
      %v2235 = vld [vmem:[%s2217 + $0x88] sm:$0xff]
      %v2236 = vld [vmem:[%s2217 + $0x90] sm:$0x3f]
      %s2237 = scalar_lea.vmem %s219, 2584
      %v2238 = vld [vmem:[%s2237] sm:$0xff]
      %v2239 = vld [vmem:[%s2237 + $0x8] sm:$0xff]
      %v2240 = vld [vmem:[%s2237 + $0x10] sm:$0xff]
      %v2241 = vld [vmem:[%s2237 + $0x18] sm:$0xff]
      %v2242 = vld [vmem:[%s2237 + $0x20] sm:$0xff]
      %v2243 = vld [vmem:[%s2237 + $0x28] sm:$0xff]
      %v2244 = vld [vmem:[%s2237 + $0x30] sm:$0xff]
      %v2245 = vld [vmem:[%s2237 + $0x38] sm:$0xff]
      %v2246 = vld [vmem:[%s2237 + $0x40] sm:$0xff]
      %v2247 = vld [vmem:[%s2237 + $0x48] sm:$0xff]
      %v2248 = vld [vmem:[%s2237 + $0x50] sm:$0xff]
      %v2249 = vld [vmem:[%s2237 + $0x58] sm:$0xff]
      %v2250 = vld [vmem:[%s2237 + $0x60] sm:$0xff]
      %v2251 = vld [vmem:[%s2237 + $0x68] sm:$0xff]
      %v2252 = vld [vmem:[%s2237 + $0x70] sm:$0xff]
      %v2253 = vld [vmem:[%s2237 + $0x78] sm:$0xff]
      %v2254 = vld [vmem:[%s2237 + $0x80] sm:$0xff]
      %v2255 = vld [vmem:[%s2237 + $0x88] sm:$0xff]
      %v2256 = vld [vmem:[%s2237 + $0x90] sm:$0x3f]
      %v2258 = vsel %vm285, %v2236, 0
      %2260 = vmatpush.msra.mxu0 %v2233
      %2261 = vmatpush.msra.mxu0 %v2232
      %2262 = vmatpush.msra.mxu0 %v2231
      %2263 = vmatpush.msra.mxu0 %v2230
      %2264 = vmatpush.msra.mxu0 %v2229
      %2265 = vmatpush.msra.mxu0 %v2228
      %2266 = vmatpush.msra.mxu0 %v2227
      %2267 = vmatpush.msra.mxu0 %v2226
      %2268 = vmatpush.msra.mxu0 %v2225
      %2269 = vmatpush.msra.mxu0 %v2224
      %2270 = vmatpush.msra.mxu0 %v2223
      %2271 = vmatpush.msra.mxu0 %v2222
      %2272 = vmatpush.msra.mxu0 %v2221
      %2273 = vmatpush.msra.mxu0 %v2220
      %2274 = vmatpush.msra.mxu0 %v2219
      %2275 = vmatpush.msra.mxu0 %v2218
      %2276 = vmatmul.f32.gmra.mxu0 %v225
      %v2277 = vpop.f32.mrf.mxu0
      %v2278 = vadd.f32 0.0, %v2277
      %2279 = vmatmul.f32.gmra.mxu0 %v227
      %v2280 = vpop.f32.mrf.mxu0
      %v2281 = vadd.f32 0.0, %v2280
      %2282 = vdwg.mxu0
      %2283 = vmatpush.msra.mxu0 0.0
      %2284 = vmatpush.msra.mxu0 0.0
      %2285 = vmatpush.msra.mxu0 0.0
      %2286 = vmatpush.msra.mxu0 0.0
      %2287 = vmatpush.msra.mxu0 0.0
      %2288 = vmatpush.msra.mxu0 0.0
      %2289 = vmatpush.msra.mxu0 0.0
      %2290 = vmatpush.msra.mxu0 0.0
      %2291 = vmatpush.msra.mxu0 0.0
      %2292 = vmatpush.msra.mxu0 0.0
      %2293 = vmatpush.msra.mxu0 0.0
      %2294 = vmatpush.msra.mxu0 0.0
      %2295 = vmatpush.msra.mxu0 0.0
      %2296 = vmatpush.msra.mxu0 %v2258
      %2297 = vmatpush.msra.mxu0 %v2235
      %2298 = vmatpush.msra.mxu0 %v2234
      %2299 = vmatmul.f32.gmra.mxu0 %v280
      %v2300 = vpop.f32.mrf.mxu0
      %v2301 = vadd.f32 %v2278, %v2300
      %2302 = vmatmul.f32.gmra.mxu0 %v283
      %v2303 = vpop.f32.mrf.mxu0
      %v2304 = vadd.f32 %v2281, %v2303
      %2305 = vdwg.mxu0
      %v2307 = vsel %vm285, %v2256, 0
      %2309 = vmatpush.msra.mxu0 %v2253
      %2310 = vmatpush.msra.mxu0 %v2252
      %2311 = vmatpush.msra.mxu0 %v2251
      %2312 = vmatpush.msra.mxu0 %v2250
      %2313 = vmatpush.msra.mxu0 %v2249
      %2314 = vmatpush.msra.mxu0 %v2248
      %2315 = vmatpush.msra.mxu0 %v2247
      %2316 = vmatpush.msra.mxu0 %v2246
      %2317 = vmatpush.msra.mxu0 %v2245
      %2318 = vmatpush.msra.mxu0 %v2244
      %2319 = vmatpush.msra.mxu0 %v2243
      %2320 = vmatpush.msra.mxu0 %v2242
      %2321 = vmatpush.msra.mxu0 %v2241
      %2322 = vmatpush.msra.mxu0 %v2240
      %2323 = vmatpush.msra.mxu0 %v2239
      %2324 = vmatpush.msra.mxu0 %v2238
      %2325 = vmatmul.f32.gmra.mxu0 %v225
      %v2326 = vpop.f32.mrf.mxu0
      %v2327 = vadd.f32 0.0, %v2326
      %2328 = vmatmul.f32.gmra.mxu0 %v227
      %v2329 = vpop.f32.mrf.mxu0
      %v2330 = vadd.f32 0.0, %v2329
      %2331 = vdwg.mxu0
      %2332 = vmatpush.msra.mxu0 0.0
      %2333 = vmatpush.msra.mxu0 0.0
      %2334 = vmatpush.msra.mxu0 0.0
      %2335 = vmatpush.msra.mxu0 0.0
      %2336 = vmatpush.msra.mxu0 0.0
      %2337 = vmatpush.msra.mxu0 0.0
      %2338 = vmatpush.msra.mxu0 0.0
      %2339 = vmatpush.msra.mxu0 0.0
      %2340 = vmatpush.msra.mxu0 0.0
      %2341 = vmatpush.msra.mxu0 0.0
      %2342 = vmatpush.msra.mxu0 0.0
      %2343 = vmatpush.msra.mxu0 0.0
      %2344 = vmatpush.msra.mxu0 0.0
      %2345 = vmatpush.msra.mxu0 %v2307
      %2346 = vmatpush.msra.mxu0 %v2255
      %2347 = vmatpush.msra.mxu0 %v2254
      %2348 = vmatmul.f32.gmra.mxu0 %v280
      %v2349 = vpop.f32.mrf.mxu0
      %v2350 = vadd.f32 %v2327, %v2349
      %2351 = vmatmul.f32.gmra.mxu0 %v283
      %v2352 = vpop.f32.mrf.mxu0
      %v2353 = vadd.f32 %v2330, %v2352
      %2354 = vdwg.mxu0
      %v2355 = vmax.f32 %v2301, %v2350
      %v2356 = vmax.f32 %v2304, %v2353
      %v2358 = vsel %vm386, %v2355, 0
      %v2361 = vsel %vm386, %v2356, 0
      %2363 = vmatpush.msra.mxu0 0.0
      %2364 = vmatpush.msra.mxu0 0.0
      %2365 = vmatpush.msra.mxu0 0.0
      %2366 = vmatpush.msra.mxu0 0.0
      %2367 = vmatpush.msra.mxu0 0.0
      %2368 = vmatpush.msra.mxu0 0.0
      %2369 = vmatpush.msra.mxu0 0.0
      %2370 = vmatpush.msra.mxu0 0.0
      %2371 = vmatpush.msra.mxu0 0.0
      %2372 = vmatpush.msra.mxu0 0.0
      %2373 = vmatpush.msra.mxu0 0.0
      %2374 = vmatpush.msra.mxu0 0.0
      %2375 = vmatpush.msra.mxu0 %v395
      %2376 = vmatpush.msra.mxu0 %v233
      %2377 = vmatpush.msra.mxu0 %v232
      %2378 = vmatpush.msra.mxu0 %v231
      %2379 = vmatmul.f32.gmra.mxu0 %v2358
      %v2380 = vpop.f32.mrf.mxu0
      %v2381 = vadd.f32 0.0, %v2380
      %2382 = vmatmul.f32.gmra.mxu0 %v2361
      %v2383 = vpop.f32.mrf.mxu0
      %v2384 = vadd.f32 0.0, %v2383
      %2385 = vdwg.mxu0
      %2386 = vmatpush.msra.mxu0 0.0
      %2387 = vmatpush.msra.mxu0 0.0
      %2388 = vmatpush.msra.mxu0 0.0
      %2389 = vmatpush.msra.mxu0 0.0
      %2390 = vmatpush.msra.mxu0 0.0
      %2391 = vmatpush.msra.mxu0 0.0
      %2392 = vmatpush.msra.mxu0 0.0
      %2393 = vmatpush.msra.mxu0 0.0
      %2394 = vmatpush.msra.mxu0 0.0
      %2395 = vmatpush.msra.mxu0 0.0
      %2396 = vmatpush.msra.mxu0 0.0
      %2397 = vmatpush.msra.mxu0 0.0
      %2398 = vmatpush.msra.mxu0 %v421
      %2399 = vmatpush.msra.mxu0 %v237
      %2400 = vmatpush.msra.mxu0 %v236
      %2401 = vmatpush.msra.mxu0 %v235
      %2402 = vmatmul.f32.gmra.mxu0 %v2358
      %v2403 = vpop.f32.mrf.mxu0
      %v2404 = vadd.f32 0.0, %v2403
      %2405 = vmatmul.f32.gmra.mxu0 %v2361
      %v2406 = vpop.f32.mrf.mxu0
      %v2407 = vadd.f32 0.0, %v2406
      %2408 = vdwg.mxu0
      %v2409 = vmax.f32 %v2381, %v2404
      %v2410 = vmax.f32 %v2384, %v2407
      %v2411 = vadd.f32 %v2409, %v451
      %v2412 = vadd.f32 %v2410, %v456
      %v2413 = vmax.f32 %v2411, 0.0
      %v2414 = vmax.f32 %v2412, 0.0
      %v2417 = vrot.slane %v2413, 1
      %v2418 = vrot.slane %v2413, 2
      %v2419 = vrot.slane %v2413, 3
      %v2420 = vrot.slane %v2413, 4
      %v2421 = vrot.slane %v2413, 5
      %v2422 = vrot.slane %v2413, 6
      %v2423 = vrot.slane %v2413, 7
      %v2424 = vrot.slane %v2414, 1
      %v2425 = vrot.slane %v2414, 2
      %v2426 = vrot.slane %v2414, 3
      %v2427 = vrot.slane %v2414, 4
      %v2428 = vrot.slane %v2414, 5
      %v2429 = vrot.slane %v2414, 6
      %v2430 = vrot.slane %v2414, 7
      %2445 = vst.msk [vmem:[%s224 + $0x8] sm:$0x1] %vm492, %v2413
      %2446 = vst.msk [vmem:[%s224 + $0x18] sm:$0x1] %vm492, %v2417
      %2447 = vst.msk [vmem:[%s224 + $0x28] sm:$0x1] %vm492, %v2418
      %2448 = vst.msk [vmem:[%s224 + $0x38] sm:$0x1] %vm492, %v2419
      %2449 = vst.msk [vmem:[%s224 + $0x48] sm:$0x1] %vm492, %v2420
      %2450 = vst.msk [vmem:[%s224 + $0x58] sm:$0x1] %vm492, %v2421
      %2451 = vst.msk [vmem:[%s224 + $0x68] sm:$0x1] %vm492, %v2422
      %2452 = vst.msk [vmem:[%s224 + $0x78] sm:$0x1] %vm492, %v2423
      %2453 = vst.msk [vmem:[%s224 + $0x88] sm:$0x1] %vm492, %v2414
      %2454 = vst.msk [vmem:[%s224 + $0x98] sm:$0x1] %vm492, %v2424
      %2455 = vst.msk [vmem:[%s224 + $0xa8] sm:$0x1] %vm492, %v2425
      %2456 = vst.msk [vmem:[%s224 + $0xb8] sm:$0x1] %vm492, %v2426
      %2457 = vst.msk [vmem:[%s224 + $0xc8] sm:$0x1] %vm492, %v2427
      %2458 = vst.msk [vmem:[%s224 + $0xd8] sm:$0x1] %vm492, %v2428
      %2459 = vst.msk [vmem:[%s224 + $0xe8] sm:$0x1] %vm492, %v2429
      %2460 = vst.msk [vmem:[%s224 + $0xf8] sm:$0x1] %vm492, %v2430
      %s2461 = scalar_lea.vmem %s219, 2736
      %v2462 = vld [vmem:[%s2461] sm:$0xff]
      %v2463 = vld [vmem:[%s2461 + $0x8] sm:$0xff]
      %v2464 = vld [vmem:[%s2461 + $0x10] sm:$0xff]
      %v2465 = vld [vmem:[%s2461 + $0x18] sm:$0xff]
      %v2466 = vld [vmem:[%s2461 + $0x20] sm:$0xff]
      %v2467 = vld [vmem:[%s2461 + $0x28] sm:$0xff]
      %v2468 = vld [vmem:[%s2461 + $0x30] sm:$0xff]
      %v2469 = vld [vmem:[%s2461 + $0x38] sm:$0xff]
      %v2470 = vld [vmem:[%s2461 + $0x40] sm:$0xff]
      %v2471 = vld [vmem:[%s2461 + $0x48] sm:$0xff]
      %v2472 = vld [vmem:[%s2461 + $0x50] sm:$0xff]
      %v2473 = vld [vmem:[%s2461 + $0x58] sm:$0xff]
      %v2474 = vld [vmem:[%s2461 + $0x60] sm:$0xff]
      %v2475 = vld [vmem:[%s2461 + $0x68] sm:$0xff]
      %v2476 = vld [vmem:[%s2461 + $0x70] sm:$0xff]
      %v2477 = vld [vmem:[%s2461 + $0x78] sm:$0xff]
      %v2478 = vld [vmem:[%s2461 + $0x80] sm:$0xff]
      %v2479 = vld [vmem:[%s2461 + $0x88] sm:$0xff]
      %v2480 = vld [vmem:[%s2461 + $0x90] sm:$0x3f]
      %s2481 = scalar_lea.vmem %s219, 2888
      %v2482 = vld [vmem:[%s2481] sm:$0xff]
      %v2483 = vld [vmem:[%s2481 + $0x8] sm:$0xff]
      %v2484 = vld [vmem:[%s2481 + $0x10] sm:$0xff]
      %v2485 = vld [vmem:[%s2481 + $0x18] sm:$0xff]
      %v2486 = vld [vmem:[%s2481 + $0x20] sm:$0xff]
      %v2487 = vld [vmem:[%s2481 + $0x28] sm:$0xff]
      %v2488 = vld [vmem:[%s2481 + $0x30] sm:$0xff]
      %v2489 = vld [vmem:[%s2481 + $0x38] sm:$0xff]
      %v2490 = vld [vmem:[%s2481 + $0x40] sm:$0xff]
      %v2491 = vld [vmem:[%s2481 + $0x48] sm:$0xff]
      %v2492 = vld [vmem:[%s2481 + $0x50] sm:$0xff]
      %v2493 = vld [vmem:[%s2481 + $0x58] sm:$0xff]
      %v2494 = vld [vmem:[%s2481 + $0x60] sm:$0xff]
      %v2495 = vld [vmem:[%s2481 + $0x68] sm:$0xff]
      %v2496 = vld [vmem:[%s2481 + $0x70] sm:$0xff]
      %v2497 = vld [vmem:[%s2481 + $0x78] sm:$0xff]
      %v2498 = vld [vmem:[%s2481 + $0x80] sm:$0xff]
      %v2499 = vld [vmem:[%s2481 + $0x88] sm:$0xff]
      %v2500 = vld [vmem:[%s2481 + $0x90] sm:$0x3f]
      %v2502 = vsel %vm285, %v2480, 0
      %2504 = vmatpush.msra.mxu0 %v2477
      %2505 = vmatpush.msra.mxu0 %v2476
      %2506 = vmatpush.msra.mxu0 %v2475
      %2507 = vmatpush.msra.mxu0 %v2474
      %2508 = vmatpush.msra.mxu0 %v2473
      %2509 = vmatpush.msra.mxu0 %v2472
      %2510 = vmatpush.msra.mxu0 %v2471
      %2511 = vmatpush.msra.mxu0 %v2470
      %2512 = vmatpush.msra.mxu0 %v2469
      %2513 = vmatpush.msra.mxu0 %v2468
      %2514 = vmatpush.msra.mxu0 %v2467
      %2515 = vmatpush.msra.mxu0 %v2466
      %2516 = vmatpush.msra.mxu0 %v2465
      %2517 = vmatpush.msra.mxu0 %v2464
      %2518 = vmatpush.msra.mxu0 %v2463
      %2519 = vmatpush.msra.mxu0 %v2462
      %2520 = vmatmul.f32.gmra.mxu0 %v225
      %v2521 = vpop.f32.mrf.mxu0
      %v2522 = vadd.f32 0.0, %v2521
      %2523 = vmatmul.f32.gmra.mxu0 %v227
      %v2524 = vpop.f32.mrf.mxu0
      %v2525 = vadd.f32 0.0, %v2524
      %2526 = vdwg.mxu0
      %2527 = vmatpush.msra.mxu0 0.0
      %2528 = vmatpush.msra.mxu0 0.0
      %2529 = vmatpush.msra.mxu0 0.0
      %2530 = vmatpush.msra.mxu0 0.0
      %2531 = vmatpush.msra.mxu0 0.0
      %2532 = vmatpush.msra.mxu0 0.0
      %2533 = vmatpush.msra.mxu0 0.0
      %2534 = vmatpush.msra.mxu0 0.0
      %2535 = vmatpush.msra.mxu0 0.0
      %2536 = vmatpush.msra.mxu0 0.0
      %2537 = vmatpush.msra.mxu0 0.0
      %2538 = vmatpush.msra.mxu0 0.0
      %2539 = vmatpush.msra.mxu0 0.0
      %2540 = vmatpush.msra.mxu0 %v2502
      %2541 = vmatpush.msra.mxu0 %v2479
      %2542 = vmatpush.msra.mxu0 %v2478
      %2543 = vmatmul.f32.gmra.mxu0 %v280
      %v2544 = vpop.f32.mrf.mxu0
      %v2545 = vadd.f32 %v2522, %v2544
      %2546 = vmatmul.f32.gmra.mxu0 %v283
      %v2547 = vpop.f32.mrf.mxu0
      %v2548 = vadd.f32 %v2525, %v2547
      %2549 = vdwg.mxu0
      %v2551 = vsel %vm285, %v2500, 0
      %2553 = vmatpush.msra.mxu0 %v2497
      %2554 = vmatpush.msra.mxu0 %v2496
      %2555 = vmatpush.msra.mxu0 %v2495
      %2556 = vmatpush.msra.mxu0 %v2494
      %2557 = vmatpush.msra.mxu0 %v2493
      %2558 = vmatpush.msra.mxu0 %v2492
      %2559 = vmatpush.msra.mxu0 %v2491
      %2560 = vmatpush.msra.mxu0 %v2490
      %2561 = vmatpush.msra.mxu0 %v2489
      %2562 = vmatpush.msra.mxu0 %v2488
      %2563 = vmatpush.msra.mxu0 %v2487
      %2564 = vmatpush.msra.mxu0 %v2486
      %2565 = vmatpush.msra.mxu0 %v2485
      %2566 = vmatpush.msra.mxu0 %v2484
      %2567 = vmatpush.msra.mxu0 %v2483
      %2568 = vmatpush.msra.mxu0 %v2482
      %2569 = vmatmul.f32.gmra.mxu0 %v225
      %v2570 = vpop.f32.mrf.mxu0
      %v2571 = vadd.f32 0.0, %v2570
      %2572 = vmatmul.f32.gmra.mxu0 %v227
      %v2573 = vpop.f32.mrf.mxu0
      %v2574 = vadd.f32 0.0, %v2573
      %2575 = vdwg.mxu0
      %2576 = vmatpush.msra.mxu0 0.0
      %2577 = vmatpush.msra.mxu0 0.0
      %2578 = vmatpush.msra.mxu0 0.0
      %2579 = vmatpush.msra.mxu0 0.0
      %2580 = vmatpush.msra.mxu0 0.0
      %2581 = vmatpush.msra.mxu0 0.0
      %2582 = vmatpush.msra.mxu0 0.0
      %2583 = vmatpush.msra.mxu0 0.0
      %2584 = vmatpush.msra.mxu0 0.0
      %2585 = vmatpush.msra.mxu0 0.0
      %2586 = vmatpush.msra.mxu0 0.0
      %2587 = vmatpush.msra.mxu0 0.0
      %2588 = vmatpush.msra.mxu0 0.0
      %2589 = vmatpush.msra.mxu0 %v2551
      %2590 = vmatpush.msra.mxu0 %v2499
      %2591 = vmatpush.msra.mxu0 %v2498
      %2592 = vmatmul.f32.gmra.mxu0 %v280
      %v2593 = vpop.f32.mrf.mxu0
      %v2594 = vadd.f32 %v2571, %v2593
      %2595 = vmatmul.f32.gmra.mxu0 %v283
      %v2596 = vpop.f32.mrf.mxu0
      %v2597 = vadd.f32 %v2574, %v2596
      %2598 = vdwg.mxu0
      %v2599 = vmax.f32 %v2545, %v2594
      %v2600 = vmax.f32 %v2548, %v2597
      %v2602 = vsel %vm386, %v2599, 0
      %v2605 = vsel %vm386, %v2600, 0
      %2607 = vmatpush.msra.mxu0 0.0
      %2608 = vmatpush.msra.mxu0 0.0
      %2609 = vmatpush.msra.mxu0 0.0
      %2610 = vmatpush.msra.mxu0 0.0
      %2611 = vmatpush.msra.mxu0 0.0
      %2612 = vmatpush.msra.mxu0 0.0
      %2613 = vmatpush.msra.mxu0 0.0
      %2614 = vmatpush.msra.mxu0 0.0
      %2615 = vmatpush.msra.mxu0 0.0
      %2616 = vmatpush.msra.mxu0 0.0
      %2617 = vmatpush.msra.mxu0 0.0
      %2618 = vmatpush.msra.mxu0 0.0
      %2619 = vmatpush.msra.mxu0 %v395
      %2620 = vmatpush.msra.mxu0 %v233
      %2621 = vmatpush.msra.mxu0 %v232
      %2622 = vmatpush.msra.mxu0 %v231
      %2623 = vmatmul.f32.gmra.mxu0 %v2602
      %v2624 = vpop.f32.mrf.mxu0
      %v2625 = vadd.f32 0.0, %v2624
      %2626 = vmatmul.f32.gmra.mxu0 %v2605
      %v2627 = vpop.f32.mrf.mxu0
      %v2628 = vadd.f32 0.0, %v2627
      %2629 = vdwg.mxu0
      %2630 = vmatpush.msra.mxu0 0.0
      %2631 = vmatpush.msra.mxu0 0.0
      %2632 = vmatpush.msra.mxu0 0.0
      %2633 = vmatpush.msra.mxu0 0.0
      %2634 = vmatpush.msra.mxu0 0.0
      %2635 = vmatpush.msra.mxu0 0.0
      %2636 = vmatpush.msra.mxu0 0.0
      %2637 = vmatpush.msra.mxu0 0.0
      %2638 = vmatpush.msra.mxu0 0.0
      %2639 = vmatpush.msra.mxu0 0.0
      %2640 = vmatpush.msra.mxu0 0.0
      %2641 = vmatpush.msra.mxu0 0.0
      %2642 = vmatpush.msra.mxu0 %v421
      %2643 = vmatpush.msra.mxu0 %v237
      %2644 = vmatpush.msra.mxu0 %v236
      %2645 = vmatpush.msra.mxu0 %v235
      %2646 = vmatmul.f32.gmra.mxu0 %v2602
      %v2647 = vpop.f32.mrf.mxu0
      %v2648 = vadd.f32 0.0, %v2647
      %2649 = vmatmul.f32.gmra.mxu0 %v2605
      %v2650 = vpop.f32.mrf.mxu0
      %v2651 = vadd.f32 0.0, %v2650
      %2652 = vdwg.mxu0
      %v2653 = vmax.f32 %v2625, %v2648
      %v2654 = vmax.f32 %v2628, %v2651
      %v2655 = vadd.f32 %v2653, %v451
      %v2656 = vadd.f32 %v2654, %v456
      %v2657 = vmax.f32 %v2655, 0.0
      %v2658 = vmax.f32 %v2656, 0.0
      %v2661 = vrot.slane %v2657, 1
      %v2662 = vrot.slane %v2657, 2
      %v2663 = vrot.slane %v2657, 3
      %v2664 = vrot.slane %v2657, 4
      %v2665 = vrot.slane %v2657, 5
      %v2666 = vrot.slane %v2657, 6
      %v2667 = vrot.slane %v2657, 7
      %v2668 = vrot.slane %v2658, 1
      %v2669 = vrot.slane %v2658, 2
      %v2670 = vrot.slane %v2658, 3
      %v2671 = vrot.slane %v2658, 4
      %v2672 = vrot.slane %v2658, 5
      %v2673 = vrot.slane %v2658, 6
      %v2674 = vrot.slane %v2658, 7
      %2689 = vst.msk [vmem:[%s224 + $0x9] sm:$0x1] %vm492, %v2657
      %2690 = vst.msk [vmem:[%s224 + $0x19] sm:$0x1] %vm492, %v2661
      %2691 = vst.msk [vmem:[%s224 + $0x29] sm:$0x1] %vm492, %v2662
      %2692 = vst.msk [vmem:[%s224 + $0x39] sm:$0x1] %vm492, %v2663
      %2693 = vst.msk [vmem:[%s224 + $0x49] sm:$0x1] %vm492, %v2664
      %2694 = vst.msk [vmem:[%s224 + $0x59] sm:$0x1] %vm492, %v2665
      %2695 = vst.msk [vmem:[%s224 + $0x69] sm:$0x1] %vm492, %v2666
      %2696 = vst.msk [vmem:[%s224 + $0x79] sm:$0x1] %vm492, %v2667
      %2697 = vst.msk [vmem:[%s224 + $0x89] sm:$0x1] %vm492, %v2658
      %2698 = vst.msk [vmem:[%s224 + $0x99] sm:$0x1] %vm492, %v2668
      %2699 = vst.msk [vmem:[%s224 + $0xa9] sm:$0x1] %vm492, %v2669
      %2700 = vst.msk [vmem:[%s224 + $0xb9] sm:$0x1] %vm492, %v2670
      %2701 = vst.msk [vmem:[%s224 + $0xc9] sm:$0x1] %vm492, %v2671
      %2702 = vst.msk [vmem:[%s224 + $0xd9] sm:$0x1] %vm492, %v2672
      %2703 = vst.msk [vmem:[%s224 + $0xe9] sm:$0x1] %vm492, %v2673
      %2704 = vst.msk [vmem:[%s224 + $0xf9] sm:$0x1] %vm492, %v2674
      %s2705 = scalar_lea.vmem %s219, 3040
      %v2706 = vld [vmem:[%s2705] sm:$0xff]
      %v2707 = vld [vmem:[%s2705 + $0x8] sm:$0xff]
      %v2708 = vld [vmem:[%s2705 + $0x10] sm:$0xff]
      %v2709 = vld [vmem:[%s2705 + $0x18] sm:$0xff]
      %v2710 = vld [vmem:[%s2705 + $0x20] sm:$0xff]
      %v2711 = vld [vmem:[%s2705 + $0x28] sm:$0xff]
      %v2712 = vld [vmem:[%s2705 + $0x30] sm:$0xff]
      %v2713 = vld [vmem:[%s2705 + $0x38] sm:$0xff]
      %v2714 = vld [vmem:[%s2705 + $0x40] sm:$0xff]
      %v2715 = vld [vmem:[%s2705 + $0x48] sm:$0xff]
      %v2716 = vld [vmem:[%s2705 + $0x50] sm:$0xff]
      %v2717 = vld [vmem:[%s2705 + $0x58] sm:$0xff]
      %v2718 = vld [vmem:[%s2705 + $0x60] sm:$0xff]
      %v2719 = vld [vmem:[%s2705 + $0x68] sm:$0xff]
      %v2720 = vld [vmem:[%s2705 + $0x70] sm:$0xff]
      %v2721 = vld [vmem:[%s2705 + $0x78] sm:$0xff]
      %v2722 = vld [vmem:[%s2705 + $0x80] sm:$0xff]
      %v2723 = vld [vmem:[%s2705 + $0x88] sm:$0xff]
      %v2724 = vld [vmem:[%s2705 + $0x90] sm:$0x3f]
      %s2725 = scalar_lea.vmem %s219, 3192
      %v2726 = vld [vmem:[%s2725] sm:$0xff]
      %v2727 = vld [vmem:[%s2725 + $0x8] sm:$0xff]
      %v2728 = vld [vmem:[%s2725 + $0x10] sm:$0xff]
      %v2729 = vld [vmem:[%s2725 + $0x18] sm:$0xff]
      %v2730 = vld [vmem:[%s2725 + $0x20] sm:$0xff]
      %v2731 = vld [vmem:[%s2725 + $0x28] sm:$0xff]
      %v2732 = vld [vmem:[%s2725 + $0x30] sm:$0xff]
      %v2733 = vld [vmem:[%s2725 + $0x38] sm:$0xff]
      %v2734 = vld [vmem:[%s2725 + $0x40] sm:$0xff]
      %v2735 = vld [vmem:[%s2725 + $0x48] sm:$0xff]
      %v2736 = vld [vmem:[%s2725 + $0x50] sm:$0xff]
      %v2737 = vld [vmem:[%s2725 + $0x58] sm:$0xff]
      %v2738 = vld [vmem:[%s2725 + $0x60] sm:$0xff]
      %v2739 = vld [vmem:[%s2725 + $0x68] sm:$0xff]
      %v2740 = vld [vmem:[%s2725 + $0x70] sm:$0xff]
      %v2741 = vld [vmem:[%s2725 + $0x78] sm:$0xff]
      %v2742 = vld [vmem:[%s2725 + $0x80] sm:$0xff]
      %v2743 = vld [vmem:[%s2725 + $0x88] sm:$0xff]
      %v2744 = vld [vmem:[%s2725 + $0x90] sm:$0x3f]
      %v2746 = vsel %vm285, %v2724, 0
      %2748 = vmatpush.msra.mxu0 %v2721
      %2749 = vmatpush.msra.mxu0 %v2720
      %2750 = vmatpush.msra.mxu0 %v2719
      %2751 = vmatpush.msra.mxu0 %v2718
      %2752 = vmatpush.msra.mxu0 %v2717
      %2753 = vmatpush.msra.mxu0 %v2716
      %2754 = vmatpush.msra.mxu0 %v2715
      %2755 = vmatpush.msra.mxu0 %v2714
      %2756 = vmatpush.msra.mxu0 %v2713
      %2757 = vmatpush.msra.mxu0 %v2712
      %2758 = vmatpush.msra.mxu0 %v2711
      %2759 = vmatpush.msra.mxu0 %v2710
      %2760 = vmatpush.msra.mxu0 %v2709
      %2761 = vmatpush.msra.mxu0 %v2708
      %2762 = vmatpush.msra.mxu0 %v2707
      %2763 = vmatpush.msra.mxu0 %v2706
      %2764 = vmatmul.f32.gmra.mxu0 %v225
      %v2765 = vpop.f32.mrf.mxu0
      %v2766 = vadd.f32 0.0, %v2765
      %2767 = vmatmul.f32.gmra.mxu0 %v227
      %v2768 = vpop.f32.mrf.mxu0
      %v2769 = vadd.f32 0.0, %v2768
      %2770 = vdwg.mxu0
      %2771 = vmatpush.msra.mxu0 0.0
      %2772 = vmatpush.msra.mxu0 0.0
      %2773 = vmatpush.msra.mxu0 0.0
      %2774 = vmatpush.msra.mxu0 0.0
      %2775 = vmatpush.msra.mxu0 0.0
      %2776 = vmatpush.msra.mxu0 0.0
      %2777 = vmatpush.msra.mxu0 0.0
      %2778 = vmatpush.msra.mxu0 0.0
      %2779 = vmatpush.msra.mxu0 0.0
      %2780 = vmatpush.msra.mxu0 0.0
      %2781 = vmatpush.msra.mxu0 0.0
      %2782 = vmatpush.msra.mxu0 0.0
      %2783 = vmatpush.msra.mxu0 0.0
      %2784 = vmatpush.msra.mxu0 %v2746
      %2785 = vmatpush.msra.mxu0 %v2723
      %2786 = vmatpush.msra.mxu0 %v2722
      %2787 = vmatmul.f32.gmra.mxu0 %v280
      %v2788 = vpop.f32.mrf.mxu0
      %v2789 = vadd.f32 %v2766, %v2788
      %2790 = vmatmul.f32.gmra.mxu0 %v283
      %v2791 = vpop.f32.mrf.mxu0
      %v2792 = vadd.f32 %v2769, %v2791
      %2793 = vdwg.mxu0
      %v2795 = vsel %vm285, %v2744, 0
      %2797 = vmatpush.msra.mxu0 %v2741
      %2798 = vmatpush.msra.mxu0 %v2740
      %2799 = vmatpush.msra.mxu0 %v2739
      %2800 = vmatpush.msra.mxu0 %v2738
      %2801 = vmatpush.msra.mxu0 %v2737
      %2802 = vmatpush.msra.mxu0 %v2736
      %2803 = vmatpush.msra.mxu0 %v2735
      %2804 = vmatpush.msra.mxu0 %v2734
      %2805 = vmatpush.msra.mxu0 %v2733
      %2806 = vmatpush.msra.mxu0 %v2732
      %2807 = vmatpush.msra.mxu0 %v2731
      %2808 = vmatpush.msra.mxu0 %v2730
      %2809 = vmatpush.msra.mxu0 %v2729
      %2810 = vmatpush.msra.mxu0 %v2728
      %2811 = vmatpush.msra.mxu0 %v2727
      %2812 = vmatpush.msra.mxu0 %v2726
      %2813 = vmatmul.f32.gmra.mxu0 %v225
      %v2814 = vpop.f32.mrf.mxu0
      %v2815 = vadd.f32 0.0, %v2814
      %2816 = vmatmul.f32.gmra.mxu0 %v227
      %v2817 = vpop.f32.mrf.mxu0
      %v2818 = vadd.f32 0.0, %v2817
      %2819 = vdwg.mxu0
      %2820 = vmatpush.msra.mxu0 0.0
      %2821 = vmatpush.msra.mxu0 0.0
      %2822 = vmatpush.msra.mxu0 0.0
      %2823 = vmatpush.msra.mxu0 0.0
      %2824 = vmatpush.msra.mxu0 0.0
      %2825 = vmatpush.msra.mxu0 0.0
      %2826 = vmatpush.msra.mxu0 0.0
      %2827 = vmatpush.msra.mxu0 0.0
      %2828 = vmatpush.msra.mxu0 0.0
      %2829 = vmatpush.msra.mxu0 0.0
      %2830 = vmatpush.msra.mxu0 0.0
      %2831 = vmatpush.msra.mxu0 0.0
      %2832 = vmatpush.msra.mxu0 0.0
      %2833 = vmatpush.msra.mxu0 %v2795
      %2834 = vmatpush.msra.mxu0 %v2743
      %2835 = vmatpush.msra.mxu0 %v2742
      %2836 = vmatmul.f32.gmra.mxu0 %v280
      %v2837 = vpop.f32.mrf.mxu0
      %v2838 = vadd.f32 %v2815, %v2837
      %2839 = vmatmul.f32.gmra.mxu0 %v283
      %v2840 = vpop.f32.mrf.mxu0
      %v2841 = vadd.f32 %v2818, %v2840
      %2842 = vdwg.mxu0
      %v2843 = vmax.f32 %v2789, %v2838
      %v2844 = vmax.f32 %v2792, %v2841
      %v2846 = vsel %vm386, %v2843, 0
      %v2849 = vsel %vm386, %v2844, 0
      %2851 = vmatpush.msra.mxu0 0.0
      %2852 = vmatpush.msra.mxu0 0.0
      %2853 = vmatpush.msra.mxu0 0.0
      %2854 = vmatpush.msra.mxu0 0.0
      %2855 = vmatpush.msra.mxu0 0.0
      %2856 = vmatpush.msra.mxu0 0.0
      %2857 = vmatpush.msra.mxu0 0.0
      %2858 = vmatpush.msra.mxu0 0.0
      %2859 = vmatpush.msra.mxu0 0.0
      %2860 = vmatpush.msra.mxu0 0.0
      %2861 = vmatpush.msra.mxu0 0.0
      %2862 = vmatpush.msra.mxu0 0.0
      %2863 = vmatpush.msra.mxu0 %v395
      %2864 = vmatpush.msra.mxu0 %v233
      %2865 = vmatpush.msra.mxu0 %v232
      %2866 = vmatpush.msra.mxu0 %v231
      %2867 = vmatmul.f32.gmra.mxu0 %v2846
      %v2868 = vpop.f32.mrf.mxu0
      %v2869 = vadd.f32 0.0, %v2868
      %2870 = vmatmul.f32.gmra.mxu0 %v2849
      %v2871 = vpop.f32.mrf.mxu0
      %v2872 = vadd.f32 0.0, %v2871
      %2873 = vdwg.mxu0
      %2874 = vmatpush.msra.mxu0 0.0
      %2875 = vmatpush.msra.mxu0 0.0
      %2876 = vmatpush.msra.mxu0 0.0
      %2877 = vmatpush.msra.mxu0 0.0
      %2878 = vmatpush.msra.mxu0 0.0
      %2879 = vmatpush.msra.mxu0 0.0
      %2880 = vmatpush.msra.mxu0 0.0
      %2881 = vmatpush.msra.mxu0 0.0
      %2882 = vmatpush.msra.mxu0 0.0
      %2883 = vmatpush.msra.mxu0 0.0
      %2884 = vmatpush.msra.mxu0 0.0
      %2885 = vmatpush.msra.mxu0 0.0
      %2886 = vmatpush.msra.mxu0 %v421
      %2887 = vmatpush.msra.mxu0 %v237
      %2888 = vmatpush.msra.mxu0 %v236
      %2889 = vmatpush.msra.mxu0 %v235
      %2890 = vmatmul.f32.gmra.mxu0 %v2846
      %v2891 = vpop.f32.mrf.mxu0
      %v2892 = vadd.f32 0.0, %v2891
      %2893 = vmatmul.f32.gmra.mxu0 %v2849
      %v2894 = vpop.f32.mrf.mxu0
      %v2895 = vadd.f32 0.0, %v2894
      %2896 = vdwg.mxu0
      %v2897 = vmax.f32 %v2869, %v2892
      %v2898 = vmax.f32 %v2872, %v2895
      %v2899 = vadd.f32 %v2897, %v451
      %v2900 = vadd.f32 %v2898, %v456
      %v2901 = vmax.f32 %v2899, 0.0
      %v2902 = vmax.f32 %v2900, 0.0
      %v2905 = vrot.slane %v2901, 1
      %v2906 = vrot.slane %v2901, 2
      %v2907 = vrot.slane %v2901, 3
      %v2908 = vrot.slane %v2901, 4
      %v2909 = vrot.slane %v2901, 5
      %v2910 = vrot.slane %v2901, 6
      %v2911 = vrot.slane %v2901, 7
      %v2912 = vrot.slane %v2902, 1
      %v2913 = vrot.slane %v2902, 2
      %v2914 = vrot.slane %v2902, 3
      %v2915 = vrot.slane %v2902, 4
      %v2916 = vrot.slane %v2902, 5
      %v2917 = vrot.slane %v2902, 6
      %v2918 = vrot.slane %v2902, 7
      %2933 = vst.msk [vmem:[%s224 + $0xa] sm:$0x1] %vm492, %v2901
      %2934 = vst.msk [vmem:[%s224 + $0x1a] sm:$0x1] %vm492, %v2905
      %2935 = vst.msk [vmem:[%s224 + $0x2a] sm:$0x1] %vm492, %v2906
      %2936 = vst.msk [vmem:[%s224 + $0x3a] sm:$0x1] %vm492, %v2907
      %2937 = vst.msk [vmem:[%s224 + $0x4a] sm:$0x1] %vm492, %v2908
      %2938 = vst.msk [vmem:[%s224 + $0x5a] sm:$0x1] %vm492, %v2909
      %2939 = vst.msk [vmem:[%s224 + $0x6a] sm:$0x1] %vm492, %v2910
      %2940 = vst.msk [vmem:[%s224 + $0x7a] sm:$0x1] %vm492, %v2911
      %2941 = vst.msk [vmem:[%s224 + $0x8a] sm:$0x1] %vm492, %v2902
      %2942 = vst.msk [vmem:[%s224 + $0x9a] sm:$0x1] %vm492, %v2912
      %2943 = vst.msk [vmem:[%s224 + $0xaa] sm:$0x1] %vm492, %v2913
      %2944 = vst.msk [vmem:[%s224 + $0xba] sm:$0x1] %vm492, %v2914
      %2945 = vst.msk [vmem:[%s224 + $0xca] sm:$0x1] %vm492, %v2915
      %2946 = vst.msk [vmem:[%s224 + $0xda] sm:$0x1] %vm492, %v2916
      %2947 = vst.msk [vmem:[%s224 + $0xea] sm:$0x1] %vm492, %v2917
      %2948 = vst.msk [vmem:[%s224 + $0xfa] sm:$0x1] %vm492, %v2918
      %s2949 = scalar_lea.vmem %s219, 3344
      %v2950 = vld [vmem:[%s2949] sm:$0xff]
      %v2951 = vld [vmem:[%s2949 + $0x8] sm:$0xff]
      %v2952 = vld [vmem:[%s2949 + $0x10] sm:$0xff]
      %v2953 = vld [vmem:[%s2949 + $0x18] sm:$0xff]
      %v2954 = vld [vmem:[%s2949 + $0x20] sm:$0xff]
      %v2955 = vld [vmem:[%s2949 + $0x28] sm:$0xff]
      %v2956 = vld [vmem:[%s2949 + $0x30] sm:$0xff]
      %v2957 = vld [vmem:[%s2949 + $0x38] sm:$0xff]
      %v2958 = vld [vmem:[%s2949 + $0x40] sm:$0xff]
      %v2959 = vld [vmem:[%s2949 + $0x48] sm:$0xff]
      %v2960 = vld [vmem:[%s2949 + $0x50] sm:$0xff]
      %v2961 = vld [vmem:[%s2949 + $0x58] sm:$0xff]
      %v2962 = vld [vmem:[%s2949 + $0x60] sm:$0xff]
      %v2963 = vld [vmem:[%s2949 + $0x68] sm:$0xff]
      %v2964 = vld [vmem:[%s2949 + $0x70] sm:$0xff]
      %v2965 = vld [vmem:[%s2949 + $0x78] sm:$0xff]
      %v2966 = vld [vmem:[%s2949 + $0x80] sm:$0xff]
      %v2967 = vld [vmem:[%s2949 + $0x88] sm:$0xff]
      %v2968 = vld [vmem:[%s2949 + $0x90] sm:$0x3f]
      %s2969 = scalar_lea.vmem %s219, 3496
      %v2970 = vld [vmem:[%s2969] sm:$0xff]
      %v2971 = vld [vmem:[%s2969 + $0x8] sm:$0xff]
      %v2972 = vld [vmem:[%s2969 + $0x10] sm:$0xff]
      %v2973 = vld [vmem:[%s2969 + $0x18] sm:$0xff]
      %v2974 = vld [vmem:[%s2969 + $0x20] sm:$0xff]
      %v2975 = vld [vmem:[%s2969 + $0x28] sm:$0xff]
      %v2976 = vld [vmem:[%s2969 + $0x30] sm:$0xff]
      %v2977 = vld [vmem:[%s2969 + $0x38] sm:$0xff]
      %v2978 = vld [vmem:[%s2969 + $0x40] sm:$0xff]
      %v2979 = vld [vmem:[%s2969 + $0x48] sm:$0xff]
      %v2980 = vld [vmem:[%s2969 + $0x50] sm:$0xff]
      %v2981 = vld [vmem:[%s2969 + $0x58] sm:$0xff]
      %v2982 = vld [vmem:[%s2969 + $0x60] sm:$0xff]
      %v2983 = vld [vmem:[%s2969 + $0x68] sm:$0xff]
      %v2984 = vld [vmem:[%s2969 + $0x70] sm:$0xff]
      %v2985 = vld [vmem:[%s2969 + $0x78] sm:$0xff]
      %v2986 = vld [vmem:[%s2969 + $0x80] sm:$0xff]
      %v2987 = vld [vmem:[%s2969 + $0x88] sm:$0xff]
      %v2988 = vld [vmem:[%s2969 + $0x90] sm:$0x3f]
      %v2990 = vsel %vm285, %v2968, 0
      %2992 = vmatpush.msra.mxu0 %v2965
      %2993 = vmatpush.msra.mxu0 %v2964
      %2994 = vmatpush.msra.mxu0 %v2963
      %2995 = vmatpush.msra.mxu0 %v2962
      %2996 = vmatpush.msra.mxu0 %v2961
      %2997 = vmatpush.msra.mxu0 %v2960
      %2998 = vmatpush.msra.mxu0 %v2959
      %2999 = vmatpush.msra.mxu0 %v2958
      %3000 = vmatpush.msra.mxu0 %v2957
      %3001 = vmatpush.msra.mxu0 %v2956
      %3002 = vmatpush.msra.mxu0 %v2955
      %3003 = vmatpush.msra.mxu0 %v2954
      %3004 = vmatpush.msra.mxu0 %v2953
      %3005 = vmatpush.msra.mxu0 %v2952
      %3006 = vmatpush.msra.mxu0 %v2951
      %3007 = vmatpush.msra.mxu0 %v2950
      %3008 = vmatmul.f32.gmra.mxu0 %v225
      %v3009 = vpop.f32.mrf.mxu0
      %v3010 = vadd.f32 0.0, %v3009
      %3011 = vmatmul.f32.gmra.mxu0 %v227
      %v3012 = vpop.f32.mrf.mxu0
      %v3013 = vadd.f32 0.0, %v3012
      %3014 = vdwg.mxu0
      %3015 = vmatpush.msra.mxu0 0.0
      %3016 = vmatpush.msra.mxu0 0.0
      %3017 = vmatpush.msra.mxu0 0.0
      %3018 = vmatpush.msra.mxu0 0.0
      %3019 = vmatpush.msra.mxu0 0.0
      %3020 = vmatpush.msra.mxu0 0.0
      %3021 = vmatpush.msra.mxu0 0.0
      %3022 = vmatpush.msra.mxu0 0.0
      %3023 = vmatpush.msra.mxu0 0.0
      %3024 = vmatpush.msra.mxu0 0.0
      %3025 = vmatpush.msra.mxu0 0.0
      %3026 = vmatpush.msra.mxu0 0.0
      %3027 = vmatpush.msra.mxu0 0.0
      %3028 = vmatpush.msra.mxu0 %v2990
      %3029 = vmatpush.msra.mxu0 %v2967
      %3030 = vmatpush.msra.mxu0 %v2966
      %3031 = vmatmul.f32.gmra.mxu0 %v280
      %v3032 = vpop.f32.mrf.mxu0
      %v3033 = vadd.f32 %v3010, %v3032
      %3034 = vmatmul.f32.gmra.mxu0 %v283
      %v3035 = vpop.f32.mrf.mxu0
      %v3036 = vadd.f32 %v3013, %v3035
      %3037 = vdwg.mxu0
      %v3039 = vsel %vm285, %v2988, 0
      %3041 = vmatpush.msra.mxu0 %v2985
      %3042 = vmatpush.msra.mxu0 %v2984
      %3043 = vmatpush.msra.mxu0 %v2983
      %3044 = vmatpush.msra.mxu0 %v2982
      %3045 = vmatpush.msra.mxu0 %v2981
      %3046 = vmatpush.msra.mxu0 %v2980
      %3047 = vmatpush.msra.mxu0 %v2979
      %3048 = vmatpush.msra.mxu0 %v2978
      %3049 = vmatpush.msra.mxu0 %v2977
      %3050 = vmatpush.msra.mxu0 %v2976
      %3051 = vmatpush.msra.mxu0 %v2975
      %3052 = vmatpush.msra.mxu0 %v2974
      %3053 = vmatpush.msra.mxu0 %v2973
      %3054 = vmatpush.msra.mxu0 %v2972
      %3055 = vmatpush.msra.mxu0 %v2971
      %3056 = vmatpush.msra.mxu0 %v2970
      %3057 = vmatmul.f32.gmra.mxu0 %v225
      %v3058 = vpop.f32.mrf.mxu0
      %v3059 = vadd.f32 0.0, %v3058
      %3060 = vmatmul.f32.gmra.mxu0 %v227
      %v3061 = vpop.f32.mrf.mxu0
      %v3062 = vadd.f32 0.0, %v3061
      %3063 = vdwg.mxu0
      %3064 = vmatpush.msra.mxu0 0.0
      %3065 = vmatpush.msra.mxu0 0.0
      %3066 = vmatpush.msra.mxu0 0.0
      %3067 = vmatpush.msra.mxu0 0.0
      %3068 = vmatpush.msra.mxu0 0.0
      %3069 = vmatpush.msra.mxu0 0.0
      %3070 = vmatpush.msra.mxu0 0.0
      %3071 = vmatpush.msra.mxu0 0.0
      %3072 = vmatpush.msra.mxu0 0.0
      %3073 = vmatpush.msra.mxu0 0.0
      %3074 = vmatpush.msra.mxu0 0.0
      %3075 = vmatpush.msra.mxu0 0.0
      %3076 = vmatpush.msra.mxu0 0.0
      %3077 = vmatpush.msra.mxu0 %v3039
      %3078 = vmatpush.msra.mxu0 %v2987
      %3079 = vmatpush.msra.mxu0 %v2986
      %3080 = vmatmul.f32.gmra.mxu0 %v280
      %v3081 = vpop.f32.mrf.mxu0
      %v3082 = vadd.f32 %v3059, %v3081
      %3083 = vmatmul.f32.gmra.mxu0 %v283
      %v3084 = vpop.f32.mrf.mxu0
      %v3085 = vadd.f32 %v3062, %v3084
      %3086 = vdwg.mxu0
      %v3087 = vmax.f32 %v3033, %v3082
      %v3088 = vmax.f32 %v3036, %v3085
      %v3090 = vsel %vm386, %v3087, 0
      %v3093 = vsel %vm386, %v3088, 0
      %3095 = vmatpush.msra.mxu0 0.0
      %3096 = vmatpush.msra.mxu0 0.0
      %3097 = vmatpush.msra.mxu0 0.0
      %3098 = vmatpush.msra.mxu0 0.0
      %3099 = vmatpush.msra.mxu0 0.0
      %3100 = vmatpush.msra.mxu0 0.0
      %3101 = vmatpush.msra.mxu0 0.0
      %3102 = vmatpush.msra.mxu0 0.0
      %3103 = vmatpush.msra.mxu0 0.0
      %3104 = vmatpush.msra.mxu0 0.0
      %3105 = vmatpush.msra.mxu0 0.0
      %3106 = vmatpush.msra.mxu0 0.0
      %3107 = vmatpush.msra.mxu0 %v395
      %3108 = vmatpush.msra.mxu0 %v233
      %3109 = vmatpush.msra.mxu0 %v232
      %3110 = vmatpush.msra.mxu0 %v231
      %3111 = vmatmul.f32.gmra.mxu0 %v3090
      %v3112 = vpop.f32.mrf.mxu0
      %v3113 = vadd.f32 0.0, %v3112
      %3114 = vmatmul.f32.gmra.mxu0 %v3093
      %v3115 = vpop.f32.mrf.mxu0
      %v3116 = vadd.f32 0.0, %v3115
      %3117 = vdwg.mxu0
      %3118 = vmatpush.msra.mxu0 0.0
      %3119 = vmatpush.msra.mxu0 0.0
      %3120 = vmatpush.msra.mxu0 0.0
      %3121 = vmatpush.msra.mxu0 0.0
      %3122 = vmatpush.msra.mxu0 0.0
      %3123 = vmatpush.msra.mxu0 0.0
      %3124 = vmatpush.msra.mxu0 0.0
      %3125 = vmatpush.msra.mxu0 0.0
      %3126 = vmatpush.msra.mxu0 0.0
      %3127 = vmatpush.msra.mxu0 0.0
      %3128 = vmatpush.msra.mxu0 0.0
      %3129 = vmatpush.msra.mxu0 0.0
      %3130 = vmatpush.msra.mxu0 %v421
      %3131 = vmatpush.msra.mxu0 %v237
      %3132 = vmatpush.msra.mxu0 %v236
      %3133 = vmatpush.msra.mxu0 %v235
      %3134 = vmatmul.f32.gmra.mxu0 %v3090
      %v3135 = vpop.f32.mrf.mxu0
      %v3136 = vadd.f32 0.0, %v3135
      %3137 = vmatmul.f32.gmra.mxu0 %v3093
      %v3138 = vpop.f32.mrf.mxu0
      %v3139 = vadd.f32 0.0, %v3138
      %3140 = vdwg.mxu0
      %v3141 = vmax.f32 %v3113, %v3136
      %v3142 = vmax.f32 %v3116, %v3139
      %v3143 = vadd.f32 %v3141, %v451
      %v3144 = vadd.f32 %v3142, %v456
      %v3145 = vmax.f32 %v3143, 0.0
      %v3146 = vmax.f32 %v3144, 0.0
      %v3149 = vrot.slane %v3145, 1
      %v3150 = vrot.slane %v3145, 2
      %v3151 = vrot.slane %v3145, 3
      %v3152 = vrot.slane %v3145, 4
      %v3153 = vrot.slane %v3145, 5
      %v3154 = vrot.slane %v3145, 6
      %v3155 = vrot.slane %v3145, 7
      %v3156 = vrot.slane %v3146, 1
      %v3157 = vrot.slane %v3146, 2
      %v3158 = vrot.slane %v3146, 3
      %v3159 = vrot.slane %v3146, 4
      %v3160 = vrot.slane %v3146, 5
      %v3161 = vrot.slane %v3146, 6
      %v3162 = vrot.slane %v3146, 7
      %3177 = vst.msk [vmem:[%s224 + $0xb] sm:$0x1] %vm492, %v3145
      %3178 = vst.msk [vmem:[%s224 + $0x1b] sm:$0x1] %vm492, %v3149
      %3179 = vst.msk [vmem:[%s224 + $0x2b] sm:$0x1] %vm492, %v3150
      %3180 = vst.msk [vmem:[%s224 + $0x3b] sm:$0x1] %vm492, %v3151
      %3181 = vst.msk [vmem:[%s224 + $0x4b] sm:$0x1] %vm492, %v3152
      %3182 = vst.msk [vmem:[%s224 + $0x5b] sm:$0x1] %vm492, %v3153
      %3183 = vst.msk [vmem:[%s224 + $0x6b] sm:$0x1] %vm492, %v3154
      %3184 = vst.msk [vmem:[%s224 + $0x7b] sm:$0x1] %vm492, %v3155
      %3185 = vst.msk [vmem:[%s224 + $0x8b] sm:$0x1] %vm492, %v3146
      %3186 = vst.msk [vmem:[%s224 + $0x9b] sm:$0x1] %vm492, %v3156
      %3187 = vst.msk [vmem:[%s224 + $0xab] sm:$0x1] %vm492, %v3157
      %3188 = vst.msk [vmem:[%s224 + $0xbb] sm:$0x1] %vm492, %v3158
      %3189 = vst.msk [vmem:[%s224 + $0xcb] sm:$0x1] %vm492, %v3159
      %3190 = vst.msk [vmem:[%s224 + $0xdb] sm:$0x1] %vm492, %v3160
      %3191 = vst.msk [vmem:[%s224 + $0xeb] sm:$0x1] %vm492, %v3161
      %3192 = vst.msk [vmem:[%s224 + $0xfb] sm:$0x1] %vm492, %v3162
      %s3193 = scalar_lea.vmem %s219, 3648
      %v3194 = vld [vmem:[%s3193] sm:$0xff]
      %v3195 = vld [vmem:[%s3193 + $0x8] sm:$0xff]
      %v3196 = vld [vmem:[%s3193 + $0x10] sm:$0xff]
      %v3197 = vld [vmem:[%s3193 + $0x18] sm:$0xff]
      %v3198 = vld [vmem:[%s3193 + $0x20] sm:$0xff]
      %v3199 = vld [vmem:[%s3193 + $0x28] sm:$0xff]
      %v3200 = vld [vmem:[%s3193 + $0x30] sm:$0xff]
      %v3201 = vld [vmem:[%s3193 + $0x38] sm:$0xff]
      %v3202 = vld [vmem:[%s3193 + $0x40] sm:$0xff]
      %v3203 = vld [vmem:[%s3193 + $0x48] sm:$0xff]
      %v3204 = vld [vmem:[%s3193 + $0x50] sm:$0xff]
      %v3205 = vld [vmem:[%s3193 + $0x58] sm:$0xff]
      %v3206 = vld [vmem:[%s3193 + $0x60] sm:$0xff]
      %v3207 = vld [vmem:[%s3193 + $0x68] sm:$0xff]
      %v3208 = vld [vmem:[%s3193 + $0x70] sm:$0xff]
      %v3209 = vld [vmem:[%s3193 + $0x78] sm:$0xff]
      %v3210 = vld [vmem:[%s3193 + $0x80] sm:$0xff]
      %v3211 = vld [vmem:[%s3193 + $0x88] sm:$0xff]
      %v3212 = vld [vmem:[%s3193 + $0x90] sm:$0x3f]
      %s3213 = scalar_lea.vmem %s219, 3800
      %v3214 = vld [vmem:[%s3213] sm:$0xff]
      %v3215 = vld [vmem:[%s3213 + $0x8] sm:$0xff]
      %v3216 = vld [vmem:[%s3213 + $0x10] sm:$0xff]
      %v3217 = vld [vmem:[%s3213 + $0x18] sm:$0xff]
      %v3218 = vld [vmem:[%s3213 + $0x20] sm:$0xff]
      %v3219 = vld [vmem:[%s3213 + $0x28] sm:$0xff]
      %v3220 = vld [vmem:[%s3213 + $0x30] sm:$0xff]
      %v3221 = vld [vmem:[%s3213 + $0x38] sm:$0xff]
      %v3222 = vld [vmem:[%s3213 + $0x40] sm:$0xff]
      %v3223 = vld [vmem:[%s3213 + $0x48] sm:$0xff]
      %v3224 = vld [vmem:[%s3213 + $0x50] sm:$0xff]
      %v3225 = vld [vmem:[%s3213 + $0x58] sm:$0xff]
      %v3226 = vld [vmem:[%s3213 + $0x60] sm:$0xff]
      %v3227 = vld [vmem:[%s3213 + $0x68] sm:$0xff]
      %v3228 = vld [vmem:[%s3213 + $0x70] sm:$0xff]
      %v3229 = vld [vmem:[%s3213 + $0x78] sm:$0xff]
      %v3230 = vld [vmem:[%s3213 + $0x80] sm:$0xff]
      %v3231 = vld [vmem:[%s3213 + $0x88] sm:$0xff]
      %v3232 = vld [vmem:[%s3213 + $0x90] sm:$0x3f]
      %v3234 = vsel %vm285, %v3212, 0
      %3236 = vmatpush.msra.mxu0 %v3209
      %3237 = vmatpush.msra.mxu0 %v3208
      %3238 = vmatpush.msra.mxu0 %v3207
      %3239 = vmatpush.msra.mxu0 %v3206
      %3240 = vmatpush.msra.mxu0 %v3205
      %3241 = vmatpush.msra.mxu0 %v3204
      %3242 = vmatpush.msra.mxu0 %v3203
      %3243 = vmatpush.msra.mxu0 %v3202
      %3244 = vmatpush.msra.mxu0 %v3201
      %3245 = vmatpush.msra.mxu0 %v3200
      %3246 = vmatpush.msra.mxu0 %v3199
      %3247 = vmatpush.msra.mxu0 %v3198
      %3248 = vmatpush.msra.mxu0 %v3197
      %3249 = vmatpush.msra.mxu0 %v3196
      %3250 = vmatpush.msra.mxu0 %v3195
      %3251 = vmatpush.msra.mxu0 %v3194
      %3252 = vmatmul.f32.gmra.mxu0 %v225
      %v3253 = vpop.f32.mrf.mxu0
      %v3254 = vadd.f32 0.0, %v3253
      %3255 = vmatmul.f32.gmra.mxu0 %v227
      %v3256 = vpop.f32.mrf.mxu0
      %v3257 = vadd.f32 0.0, %v3256
      %3258 = vdwg.mxu0
      %3259 = vmatpush.msra.mxu0 0.0
      %3260 = vmatpush.msra.mxu0 0.0
      %3261 = vmatpush.msra.mxu0 0.0
      %3262 = vmatpush.msra.mxu0 0.0
      %3263 = vmatpush.msra.mxu0 0.0
      %3264 = vmatpush.msra.mxu0 0.0
      %3265 = vmatpush.msra.mxu0 0.0
      %3266 = vmatpush.msra.mxu0 0.0
      %3267 = vmatpush.msra.mxu0 0.0
      %3268 = vmatpush.msra.mxu0 0.0
      %3269 = vmatpush.msra.mxu0 0.0
      %3270 = vmatpush.msra.mxu0 0.0
      %3271 = vmatpush.msra.mxu0 0.0
      %3272 = vmatpush.msra.mxu0 %v3234
      %3273 = vmatpush.msra.mxu0 %v3211
      %3274 = vmatpush.msra.mxu0 %v3210
      %3275 = vmatmul.f32.gmra.mxu0 %v280
      %v3276 = vpop.f32.mrf.mxu0
      %v3277 = vadd.f32 %v3254, %v3276
      %3278 = vmatmul.f32.gmra.mxu0 %v283
      %v3279 = vpop.f32.mrf.mxu0
      %v3280 = vadd.f32 %v3257, %v3279
      %3281 = vdwg.mxu0
      %v3283 = vsel %vm285, %v3232, 0
      %3285 = vmatpush.msra.mxu0 %v3229
      %3286 = vmatpush.msra.mxu0 %v3228
      %3287 = vmatpush.msra.mxu0 %v3227
      %3288 = vmatpush.msra.mxu0 %v3226
      %3289 = vmatpush.msra.mxu0 %v3225
      %3290 = vmatpush.msra.mxu0 %v3224
      %3291 = vmatpush.msra.mxu0 %v3223
      %3292 = vmatpush.msra.mxu0 %v3222
      %3293 = vmatpush.msra.mxu0 %v3221
      %3294 = vmatpush.msra.mxu0 %v3220
      %3295 = vmatpush.msra.mxu0 %v3219
      %3296 = vmatpush.msra.mxu0 %v3218
      %3297 = vmatpush.msra.mxu0 %v3217
      %3298 = vmatpush.msra.mxu0 %v3216
      %3299 = vmatpush.msra.mxu0 %v3215
      %3300 = vmatpush.msra.mxu0 %v3214
      %3301 = vmatmul.f32.gmra.mxu0 %v225
      %v3302 = vpop.f32.mrf.mxu0
      %v3303 = vadd.f32 0.0, %v3302
      %3304 = vmatmul.f32.gmra.mxu0 %v227
      %v3305 = vpop.f32.mrf.mxu0
      %v3306 = vadd.f32 0.0, %v3305
      %3307 = vdwg.mxu0
      %3308 = vmatpush.msra.mxu0 0.0
      %3309 = vmatpush.msra.mxu0 0.0
      %3310 = vmatpush.msra.mxu0 0.0
      %3311 = vmatpush.msra.mxu0 0.0
      %3312 = vmatpush.msra.mxu0 0.0
      %3313 = vmatpush.msra.mxu0 0.0
      %3314 = vmatpush.msra.mxu0 0.0
      %3315 = vmatpush.msra.mxu0 0.0
      %3316 = vmatpush.msra.mxu0 0.0
      %3317 = vmatpush.msra.mxu0 0.0
      %3318 = vmatpush.msra.mxu0 0.0
      %3319 = vmatpush.msra.mxu0 0.0
      %3320 = vmatpush.msra.mxu0 0.0
      %3321 = vmatpush.msra.mxu0 %v3283
      %3322 = vmatpush.msra.mxu0 %v3231
      %3323 = vmatpush.msra.mxu0 %v3230
      %3324 = vmatmul.f32.gmra.mxu0 %v280
      %v3325 = vpop.f32.mrf.mxu0
      %v3326 = vadd.f32 %v3303, %v3325
      %3327 = vmatmul.f32.gmra.mxu0 %v283
      %v3328 = vpop.f32.mrf.mxu0
      %v3329 = vadd.f32 %v3306, %v3328
      %3330 = vdwg.mxu0
      %v3331 = vmax.f32 %v3277, %v3326
      %v3332 = vmax.f32 %v3280, %v3329
      %v3334 = vsel %vm386, %v3331, 0
      %v3337 = vsel %vm386, %v3332, 0
      %3339 = vmatpush.msra.mxu0 0.0
      %3340 = vmatpush.msra.mxu0 0.0
      %3341 = vmatpush.msra.mxu0 0.0
      %3342 = vmatpush.msra.mxu0 0.0
      %3343 = vmatpush.msra.mxu0 0.0
      %3344 = vmatpush.msra.mxu0 0.0
      %3345 = vmatpush.msra.mxu0 0.0
      %3346 = vmatpush.msra.mxu0 0.0
      %3347 = vmatpush.msra.mxu0 0.0
      %3348 = vmatpush.msra.mxu0 0.0
      %3349 = vmatpush.msra.mxu0 0.0
      %3350 = vmatpush.msra.mxu0 0.0
      %3351 = vmatpush.msra.mxu0 %v395
      %3352 = vmatpush.msra.mxu0 %v233
      %3353 = vmatpush.msra.mxu0 %v232
      %3354 = vmatpush.msra.mxu0 %v231
      %3355 = vmatmul.f32.gmra.mxu0 %v3334
      %v3356 = vpop.f32.mrf.mxu0
      %v3357 = vadd.f32 0.0, %v3356
      %3358 = vmatmul.f32.gmra.mxu0 %v3337
      %v3359 = vpop.f32.mrf.mxu0
      %v3360 = vadd.f32 0.0, %v3359
      %3361 = vdwg.mxu0
      %3362 = vmatpush.msra.mxu0 0.0
      %3363 = vmatpush.msra.mxu0 0.0
      %3364 = vmatpush.msra.mxu0 0.0
      %3365 = vmatpush.msra.mxu0 0.0
      %3366 = vmatpush.msra.mxu0 0.0
      %3367 = vmatpush.msra.mxu0 0.0
      %3368 = vmatpush.msra.mxu0 0.0
      %3369 = vmatpush.msra.mxu0 0.0
      %3370 = vmatpush.msra.mxu0 0.0
      %3371 = vmatpush.msra.mxu0 0.0
      %3372 = vmatpush.msra.mxu0 0.0
      %3373 = vmatpush.msra.mxu0 0.0
      %3374 = vmatpush.msra.mxu0 %v421
      %3375 = vmatpush.msra.mxu0 %v237
      %3376 = vmatpush.msra.mxu0 %v236
      %3377 = vmatpush.msra.mxu0 %v235
      %3378 = vmatmul.f32.gmra.mxu0 %v3334
      %v3379 = vpop.f32.mrf.mxu0
      %v3380 = vadd.f32 0.0, %v3379
      %3381 = vmatmul.f32.gmra.mxu0 %v3337
      %v3382 = vpop.f32.mrf.mxu0
      %v3383 = vadd.f32 0.0, %v3382
      %3384 = vdwg.mxu0
      %v3385 = vmax.f32 %v3357, %v3380
      %v3386 = vmax.f32 %v3360, %v3383
      %v3387 = vadd.f32 %v3385, %v451
      %v3388 = vadd.f32 %v3386, %v456
      %v3389 = vmax.f32 %v3387, 0.0
      %v3390 = vmax.f32 %v3388, 0.0
      %v3393 = vrot.slane %v3389, 1
      %v3394 = vrot.slane %v3389, 2
      %v3395 = vrot.slane %v3389, 3
      %v3396 = vrot.slane %v3389, 4
      %v3397 = vrot.slane %v3389, 5
      %v3398 = vrot.slane %v3389, 6
      %v3399 = vrot.slane %v3389, 7
      %v3400 = vrot.slane %v3390, 1
      %v3401 = vrot.slane %v3390, 2
      %v3402 = vrot.slane %v3390, 3
      %v3403 = vrot.slane %v3390, 4
      %v3404 = vrot.slane %v3390, 5
      %v3405 = vrot.slane %v3390, 6
      %v3406 = vrot.slane %v3390, 7
      %3421 = vst.msk [vmem:[%s224 + $0xc] sm:$0x1] %vm492, %v3389
      %3422 = vst.msk [vmem:[%s224 + $0x1c] sm:$0x1] %vm492, %v3393
      %3423 = vst.msk [vmem:[%s224 + $0x2c] sm:$0x1] %vm492, %v3394
      %3424 = vst.msk [vmem:[%s224 + $0x3c] sm:$0x1] %vm492, %v3395
      %3425 = vst.msk [vmem:[%s224 + $0x4c] sm:$0x1] %vm492, %v3396
      %3426 = vst.msk [vmem:[%s224 + $0x5c] sm:$0x1] %vm492, %v3397
      %3427 = vst.msk [vmem:[%s224 + $0x6c] sm:$0x1] %vm492, %v3398
      %3428 = vst.msk [vmem:[%s224 + $0x7c] sm:$0x1] %vm492, %v3399
      %3429 = vst.msk [vmem:[%s224 + $0x8c] sm:$0x1] %vm492, %v3390
      %3430 = vst.msk [vmem:[%s224 + $0x9c] sm:$0x1] %vm492, %v3400
      %3431 = vst.msk [vmem:[%s224 + $0xac] sm:$0x1] %vm492, %v3401
      %3432 = vst.msk [vmem:[%s224 + $0xbc] sm:$0x1] %vm492, %v3402
      %3433 = vst.msk [vmem:[%s224 + $0xcc] sm:$0x1] %vm492, %v3403
      %3434 = vst.msk [vmem:[%s224 + $0xdc] sm:$0x1] %vm492, %v3404
      %3435 = vst.msk [vmem:[%s224 + $0xec] sm:$0x1] %vm492, %v3405
      %3436 = vst.msk [vmem:[%s224 + $0xfc] sm:$0x1] %vm492, %v3406
      %p3437 = scmp.lt.s32.totalorder %s16, 1
      %s3438 = scalar_select %p3437, %s16, 1
      %s3439 = smul.addr %s3438, 32
      %s3440 = smul.addr %s3439, 8
      %s3441 = scalar_lea.vmem %s5, %s3440
      // Predicated region
      $region41: #{net_forward.4} parent=39 // pred_check
        %p3442 = pneg %p144
      $region42: #{net_forward.4} parent=39 // pred_check_branch
        %3444 = sbr.rel (%p3442) target = $region44
      $region43: #{net_forward.4} parent=39 // pred_region
        _
      $region44: #{net_forward.4} parent=39 // pred_fallthru
        _
    $region40: #{net_forward.4} parent=5 // pred_fallthru
      _
    %p3445 = scmp.le.s32.totalorder 2, %s11
    // Predicated region
    $region45: #{net_forward.4} parent=5 // pred_check
      %p3446 = pneg %p3445
    $region46: #{net_forward.4} parent=5 // pred_check_branch
      %3448 = sbr.rel (%p3446) target = $region48
    $region47: #{net_forward.4} parent=5 // pred_region
      %s3449 = ssub.s32 %s11, 2
      // Predicated region
      $region49: #{net_forward.4} parent=47 // pred_check
        %p3450 = pneg %p150
      $region50: #{net_forward.4} parent=47 // pred_check_branch
        %3452 = sbr.rel (%p3450) target = $region52
      $region51: #{net_forward.4} parent=47 // pred_region
        %p3453 = scmp.lt.s32.totalorder %s17, 1
        %s3454 = scalar_select %p3453, %s17, 1
        %s3455 = smul.addr %s3454, 32
        %s3456 = smul.addr %s3455, 8
        %s3457 = scalar_lea.vmem %s5, %s3456
      $region52: #{net_forward.4} parent=47 // pred_fallthru
        _
    $region48: #{net_forward.4} parent=5 // pred_fallthru
      _
  $region6: #{net_forward.4} parent=0 // loop_footer
    %s15 = sadd.s32 1, %s11
  $region7: #{net_forward.4} parent=0 // loop_footer_branch
    %10 = sbr.rel target = $region3
  $region8: #{net_forward.4} parent=0 // loop_exit
    _

// kernel: net_forward.5
$region0: #{net_forward.5}
  #allocation0 [shape = 'u32[]', space=smem, size = 0x4, offset = 0x4, fixed_abs, tag = 'smem constant byte address 0x4 - core index']
  #allocation1 [shape = 'u32[72,128]{1,0:T(1,128)}', space=vmem, size = 0x9000, scoped, tag = 'internal scratch']
  %s0 = inlined_call_operand.vmem [shape: f32[2,2704], index: 0, kind: input, shape index: {}]
  %s1 = inlined_call_operand.vmem [shape: f32[2704,120], index: 1, kind: input, shape index: {}]
  %s2 = inlined_call_operand.vmem [shape: f32[1,120], index: 2, kind: input, shape index: {}]
  %s3 = inlined_call_operand.vmem [shape: f32[120,84], index: 3, kind: input, shape index: {}]
  %s4 = inlined_call_operand.vmem [shape: f32[1,84], index: 4, kind: input, shape index: {}]
  %s5 = inlined_call_operand.vmem [shape: f32[84,10], index: 5, kind: input, shape index: {}]
  %s6 = inlined_call_operand.vmem [shape: f32[1,10], index: 6, kind: input, shape index: {}]
  %s7 = inlined_call_operand.hbm [shape: f32[2,10], index: 7, kind: output, shape index: {}]
  %s8 = sld [smem:[#allocation0]]
  $region38: #{net_forward.5} parent=0
    _
  %s10 = ssub.s32 1, %s8
  %s11 = scalar_select 0, %s10, %s8
  $region1: #{net_forward.5} parent=0
    #allocation2 [shape = 'u8[1024]{0}', space=vmem, size = 0x400, scoped, tag = 'output window, operand 0, single buffered']
    #allocation3 [shape = 's32[1]{0}', space=sflag, size = 0x4, scoped, tag = 'scoped memory for net_forward.5']
    %12 = vsyncpa [#allocation3], 0
    // Predicated region
    $region2: #{net_forward.5} parent=1 // pred_check
      _
    $region3: #{net_forward.5} parent=1 // pred_check_branch
      %14 = sbr.rel (0) target = $region5
    $region4: #{net_forward.5} parent=1 // pred_region
      _
    $region5: #{net_forward.5} parent=1 // pred_fallthru
      _
    // Predicated region
    $region6: #{net_forward.5} parent=1 // pred_check
      _
    $region7: #{net_forward.5} parent=1 // pred_check_branch
      %16 = sbr.rel (0) target = $region9
    $region8: #{net_forward.5} parent=1 // pred_region
      _
    $region9: #{net_forward.5} parent=1 // pred_fallthru
      _
    // Predicated region
    $region10: #{net_forward.5} parent=1 // pred_check
      _
    $region11: #{net_forward.5} parent=1 // pred_check_branch
      %18 = sbr.rel (0) target = $region13
    $region12: #{net_forward.5} parent=1 // pred_region
      _
    $region13: #{net_forward.5} parent=1 // pred_fallthru
      _
    // Predicated region
    $region14: #{net_forward.5} parent=1 // pred_check
      _
    $region15: #{net_forward.5} parent=1 // pred_check_branch
      %20 = sbr.rel (0) target = $region17
    $region16: #{net_forward.5} parent=1 // pred_region
      _
    $region17: #{net_forward.5} parent=1 // pred_fallthru
      _
    // Predicated region
    $region18: #{net_forward.5} parent=1 // pred_check
      _
    $region19: #{net_forward.5} parent=1 // pred_check_branch
      %22 = sbr.rel (0) target = $region21
    $region20: #{net_forward.5} parent=1 // pred_region
      _
    $region21: #{net_forward.5} parent=1 // pred_fallthru
      _
    // Predicated region
    $region22: #{net_forward.5} parent=1 // pred_check
      _
    $region23: #{net_forward.5} parent=1 // pred_check_branch
      %24 = sbr.rel (0) target = $region25
    $region24: #{net_forward.5} parent=1 // pred_region
      _
    $region25: #{net_forward.5} parent=1 // pred_fallthru
      _
    // Predicated region
    $region26: #{net_forward.5} parent=1 // pred_check
      _
    $region27: #{net_forward.5} parent=1 // pred_check_branch
      %26 = sbr.rel (0) target = $region29
    $region28: #{net_forward.5} parent=1 // pred_region
      _
    $region29: #{net_forward.5} parent=1 // pred_fallthru
      _
    %v27 = vld [vmem:[%s0] sm:$0xff]
    %v28 = vld [vmem:[%s0 + $0x8] sm:$0xff]
    %v29 = vld [vmem:[%s0 + $0x10] sm:$0xff]
    %v30 = vld [vmem:[%s0 + $0x18] sm:$0xff]
    %v31 = vld [vmem:[%s0 + $0x20] sm:$0xff]
    %v32 = vld [vmem:[%s0 + $0x28] sm:$0xf]
    %v33 = vld [vmem:[%s1] sm:$0xff]
    %v34 = vld [vmem:[%s1 + $0x8] sm:$0xff]
    %v35 = vld [vmem:[%s1 + $0x10] sm:$0xff]
    %v36 = vld [vmem:[%s1 + $0x18] sm:$0xff]
    %v37 = vld [vmem:[%s1 + $0x20] sm:$0xff]
    %v38 = vld [vmem:[%s1 + $0x28] sm:$0xff]
    %v39 = vld [vmem:[%s1 + $0x30] sm:$0xff]
    %v40 = vld [vmem:[%s1 + $0x38] sm:$0xff]
    %v41 = vld [vmem:[%s1 + $0x40] sm:$0xff]
    %v42 = vld [vmem:[%s1 + $0x48] sm:$0xff]
    %v43 = vld [vmem:[%s1 + $0x50] sm:$0xff]
    %v44 = vld [vmem:[%s1 + $0x58] sm:$0xff]
    %v45 = vld [vmem:[%s1 + $0x60] sm:$0xff]
    %v46 = vld [vmem:[%s1 + $0x68] sm:$0xff]
    %v47 = vld [vmem:[%s1 + $0x70] sm:$0xff]
    %v48 = vld [vmem:[%s1 + $0x78] sm:$0xff]
    %v49 = vld [vmem:[%s1 + $0x80] sm:$0xff]
    %v50 = vld [vmem:[%s1 + $0x88] sm:$0xff]
    %v51 = vld [vmem:[%s1 + $0x90] sm:$0xff]
    %v52 = vld [vmem:[%s1 + $0x98] sm:$0xff]
    %v53 = vld [vmem:[%s1 + $0xa0] sm:$0xff]
    %v54 = vld [vmem:[%s1 + $0xa8] sm:$0xff]
    %v55 = vld [vmem:[%s1 + $0xb0] sm:$0xff]
    %v56 = vld [vmem:[%s1 + $0xb8] sm:$0xff]
    %v57 = vld [vmem:[%s1 + $0xc0] sm:$0xff]
    %v58 = vld [vmem:[%s1 + $0xc8] sm:$0xff]
    %v59 = vld [vmem:[%s1 + $0xd0] sm:$0xff]
    %v60 = vld [vmem:[%s1 + $0xd8] sm:$0xff]
    %v61 = vld [vmem:[%s1 + $0xe0] sm:$0xff]
    %v62 = vld [vmem:[%s1 + $0xe8] sm:$0xff]
    %v63 = vld [vmem:[%s1 + $0xf0] sm:$0xff]
    %v64 = vld [vmem:[%s1 + $0xf8] sm:$0xff]
    %v65 = vld [vmem:[%s1 + $0x100] sm:$0xff]
    %v66 = vld [vmem:[%s1 + $0x108] sm:$0xff]
    %v67 = vld [vmem:[%s1 + $0x110] sm:$0xff]
    %v68 = vld [vmem:[%s1 + $0x118] sm:$0xff]
    %v69 = vld [vmem:[%s1 + $0x120] sm:$0xff]
    %v70 = vld [vmem:[%s1 + $0x128] sm:$0xff]
    %v71 = vld [vmem:[%s1 + $0x130] sm:$0xff]
    %v72 = vld [vmem:[%s1 + $0x138] sm:$0xff]
    %v73 = vld [vmem:[%s1 + $0x140] sm:$0xff]
    %v74 = vld [vmem:[%s1 + $0x148] sm:$0xff]
    %v75 = vld [vmem:[%s1 + $0x150] sm:$0xff]
    %v76 = vld [vmem:[%s1 + $0x158] sm:$0xff]
    %v77 = vld [vmem:[%s1 + $0x160] sm:$0xff]
    %v78 = vld [vmem:[%s1 + $0x168] sm:$0xff]
    %v79 = vld [vmem:[%s1 + $0x170] sm:$0xff]
    %v80 = vld [vmem:[%s1 + $0x178] sm:$0xff]
    %v81 = vld [vmem:[%s1 + $0x180] sm:$0xff]
    %v82 = vld [vmem:[%s1 + $0x188] sm:$0xff]
    %v83 = vld [vmem:[%s1 + $0x190] sm:$0xff]
    %v84 = vld [vmem:[%s1 + $0x198] sm:$0xff]
    %v85 = vld [vmem:[%s1 + $0x1a0] sm:$0xff]
    %v86 = vld [vmem:[%s1 + $0x1a8] sm:$0xff]
    %v87 = vld [vmem:[%s1 + $0x1b0] sm:$0xff]
    %v88 = vld [vmem:[%s1 + $0x1b8] sm:$0xff]
    %v89 = vld [vmem:[%s1 + $0x1c0] sm:$0xff]
    %v90 = vld [vmem:[%s1 + $0x1c8] sm:$0xff]
    %v91 = vld [vmem:[%s1 + $0x1d0] sm:$0xff]
    %v92 = vld [vmem:[%s1 + $0x1d8] sm:$0xff]
    %v93 = vld [vmem:[%s1 + $0x1e0] sm:$0xff]
    %v94 = vld [vmem:[%s1 + $0x1e8] sm:$0xff]
    %v95 = vld [vmem:[%s1 + $0x1f0] sm:$0xff]
    %v96 = vld [vmem:[%s1 + $0x1f8] sm:$0xff]
    %v97 = vld [vmem:[%s1 + $0x200] sm:$0xff]
    %v98 = vld [vmem:[%s1 + $0x208] sm:$0xff]
    %v99 = vld [vmem:[%s1 + $0x210] sm:$0xff]
    %v100 = vld [vmem:[%s1 + $0x218] sm:$0xff]
    %v101 = vld [vmem:[%s1 + $0x220] sm:$0xff]
    %v102 = vld [vmem:[%s1 + $0x228] sm:$0xff]
    %v103 = vld [vmem:[%s1 + $0x230] sm:$0xff]
    %v104 = vld [vmem:[%s1 + $0x238] sm:$0xff]
    %v105 = vld [vmem:[%s1 + $0x240] sm:$0xff]
    %v106 = vld [vmem:[%s1 + $0x248] sm:$0xff]
    %v107 = vld [vmem:[%s1 + $0x250] sm:$0xff]
    %v108 = vld [vmem:[%s1 + $0x258] sm:$0xff]
    %v109 = vld [vmem:[%s1 + $0x260] sm:$0xff]
    %v110 = vld [vmem:[%s1 + $0x268] sm:$0xff]
    %v111 = vld [vmem:[%s1 + $0x270] sm:$0xff]
    %v112 = vld [vmem:[%s1 + $0x278] sm:$0xff]
    %v113 = vld [vmem:[%s1 + $0x280] sm:$0xff]
    %v114 = vld [vmem:[%s1 + $0x288] sm:$0xff]
    %v115 = vld [vmem:[%s1 + $0x290] sm:$0xff]
    %v116 = vld [vmem:[%s1 + $0x298] sm:$0xff]
    %v117 = vld [vmem:[%s1 + $0x2a0] sm:$0xff]
    %v118 = vld [vmem:[%s1 + $0x2a8] sm:$0xff]
    %v119 = vld [vmem:[%s1 + $0x2b0] sm:$0xff]
    %v120 = vld [vmem:[%s1 + $0x2b8] sm:$0xff]
    %v121 = vld [vmem:[%s1 + $0x2c0] sm:$0xff]
    %v122 = vld [vmem:[%s1 + $0x2c8] sm:$0xff]
    %v123 = vld [vmem:[%s1 + $0x2d0] sm:$0xff]
    %v124 = vld [vmem:[%s1 + $0x2d8] sm:$0xff]
    %v125 = vld [vmem:[%s1 + $0x2e0] sm:$0xff]
    %v126 = vld [vmem:[%s1 + $0x2e8] sm:$0xff]
    %v127 = vld [vmem:[%s1 + $0x2f0] sm:$0xff]
    %v128 = vld [vmem:[%s1 + $0x2f8] sm:$0xff]
    %v129 = vld [vmem:[%s1 + $0x300] sm:$0xff]
    %v130 = vld [vmem:[%s1 + $0x308] sm:$0xff]
    %v131 = vld [vmem:[%s1 + $0x310] sm:$0xff]
    %v132 = vld [vmem:[%s1 + $0x318] sm:$0xff]
    %v133 = vld [vmem:[%s1 + $0x320] sm:$0xff]
    %v134 = vld [vmem:[%s1 + $0x328] sm:$0xff]
    %v135 = vld [vmem:[%s1 + $0x330] sm:$0xff]
    %v136 = vld [vmem:[%s1 + $0x338] sm:$0xff]
    %v137 = vld [vmem:[%s1 + $0x340] sm:$0xff]
    %v138 = vld [vmem:[%s1 + $0x348] sm:$0xff]
    %v139 = vld [vmem:[%s1 + $0x350] sm:$0xff]
    %v140 = vld [vmem:[%s1 + $0x358] sm:$0xff]
    %v141 = vld [vmem:[%s1 + $0x360] sm:$0xff]
    %v142 = vld [vmem:[%s1 + $0x368] sm:$0xff]
    %v143 = vld [vmem:[%s1 + $0x370] sm:$0xff]
    %v144 = vld [vmem:[%s1 + $0x378] sm:$0xff]
    %v145 = vld [vmem:[%s1 + $0x380] sm:$0xff]
    %v146 = vld [vmem:[%s1 + $0x388] sm:$0xff]
    %v147 = vld [vmem:[%s1 + $0x390] sm:$0xff]
    %v148 = vld [vmem:[%s1 + $0x398] sm:$0xff]
    %v149 = vld [vmem:[%s1 + $0x3a0] sm:$0xff]
    %v150 = vld [vmem:[%s1 + $0x3a8] sm:$0xff]
    %v151 = vld [vmem:[%s1 + $0x3b0] sm:$0xff]
    %v152 = vld [vmem:[%s1 + $0x3b8] sm:$0xff]
    %v153 = vld [vmem:[%s1 + $0x3c0] sm:$0xff]
    %v154 = vld [vmem:[%s1 + $0x3c8] sm:$0xff]
    %v155 = vld [vmem:[%s1 + $0x3d0] sm:$0xff]
    %v156 = vld [vmem:[%s1 + $0x3d8] sm:$0xff]
    %v157 = vld [vmem:[%s1 + $0x3e0] sm:$0xff]
    %v158 = vld [vmem:[%s1 + $0x3e8] sm:$0xff]
    %v159 = vld [vmem:[%s1 + $0x3f0] sm:$0xff]
    %v160 = vld [vmem:[%s1 + $0x3f8] sm:$0xff]
    %v161 = vld [vmem:[%s1 + $0x400] sm:$0xff]
    %v162 = vld [vmem:[%s1 + $0x408] sm:$0xff]
    %v163 = vld [vmem:[%s1 + $0x410] sm:$0xff]
    %v164 = vld [vmem:[%s1 + $0x418] sm:$0xff]
    %v165 = vld [vmem:[%s1 + $0x420] sm:$0xff]
    %v166 = vld [vmem:[%s1 + $0x428] sm:$0xff]
    %v167 = vld [vmem:[%s1 + $0x430] sm:$0xff]
    %v168 = vld [vmem:[%s1 + $0x438] sm:$0xff]
    %v169 = vld [vmem:[%s1 + $0x440] sm:$0xff]
    %v170 = vld [vmem:[%s1 + $0x448] sm:$0xff]
    %v171 = vld [vmem:[%s1 + $0x450] sm:$0xff]
    %v172 = vld [vmem:[%s1 + $0x458] sm:$0xff]
    %v173 = vld [vmem:[%s1 + $0x460] sm:$0xff]
    %v174 = vld [vmem:[%s1 + $0x468] sm:$0xff]
    %v175 = vld [vmem:[%s1 + $0x470] sm:$0xff]
    %v176 = vld [vmem:[%s1 + $0x478] sm:$0xff]
    %v177 = vld [vmem:[%s1 + $0x480] sm:$0xff]
    %v178 = vld [vmem:[%s1 + $0x488] sm:$0xff]
    %v179 = vld [vmem:[%s1 + $0x490] sm:$0xff]
    %v180 = vld [vmem:[%s1 + $0x498] sm:$0xff]
    %v181 = vld [vmem:[%s1 + $0x4a0] sm:$0xff]
    %v182 = vld [vmem:[%s1 + $0x4a8] sm:$0xff]
    %v183 = vld [vmem:[%s1 + $0x4b0] sm:$0xff]
    %v184 = vld [vmem:[%s1 + $0x4b8] sm:$0xff]
    %v185 = vld [vmem:[%s1 + $0x4c0] sm:$0xff]
    %v186 = vld [vmem:[%s1 + $0x4c8] sm:$0xff]
    %v187 = vld [vmem:[%s1 + $0x4d0] sm:$0xff]
    %v188 = vld [vmem:[%s1 + $0x4d8] sm:$0xff]
    %v189 = vld [vmem:[%s1 + $0x4e0] sm:$0xff]
    %v190 = vld [vmem:[%s1 + $0x4e8] sm:$0xff]
    %v191 = vld [vmem:[%s1 + $0x4f0] sm:$0xff]
    %v192 = vld [vmem:[%s1 + $0x4f8] sm:$0xff]
    %v193 = vld [vmem:[%s1 + $0x500] sm:$0xff]
    %v194 = vld [vmem:[%s1 + $0x508] sm:$0xff]
    %v195 = vld [vmem:[%s1 + $0x510] sm:$0xff]
    %v196 = vld [vmem:[%s1 + $0x518] sm:$0xff]
    %v197 = vld [vmem:[%s1 + $0x520] sm:$0xff]
    %v198 = vld [vmem:[%s1 + $0x528] sm:$0xff]
    %v199 = vld [vmem:[%s1 + $0x530] sm:$0xff]
    %v200 = vld [vmem:[%s1 + $0x538] sm:$0xff]
    %v201 = vld [vmem:[%s1 + $0x540] sm:$0xff]
    %v202 = vld [vmem:[%s1 + $0x548] sm:$0xff]
    %v203 = vld [vmem:[%s1 + $0x550] sm:$0xff]
    %v204 = vld [vmem:[%s1 + $0x558] sm:$0xff]
    %v205 = vld [vmem:[%s1 + $0x560] sm:$0xff]
    %v206 = vld [vmem:[%s1 + $0x568] sm:$0xff]
    %v207 = vld [vmem:[%s1 + $0x570] sm:$0xff]
    %v208 = vld [vmem:[%s1 + $0x578] sm:$0xff]
    %v209 = vld [vmem:[%s1 + $0x580] sm:$0xff]
    %v210 = vld [vmem:[%s1 + $0x588] sm:$0xff]
    %v211 = vld [vmem:[%s1 + $0x590] sm:$0xff]
    %v212 = vld [vmem:[%s1 + $0x598] sm:$0xff]
    %v213 = vld [vmem:[%s1 + $0x5a0] sm:$0xff]
    %v214 = vld [vmem:[%s1 + $0x5a8] sm:$0xff]
    %v215 = vld [vmem:[%s1 + $0x5b0] sm:$0xff]
    %v216 = vld [vmem:[%s1 + $0x5b8] sm:$0xff]
    %v217 = vld [vmem:[%s1 + $0x5c0] sm:$0xff]
    %v218 = vld [vmem:[%s1 + $0x5c8] sm:$0xff]
    %v219 = vld [vmem:[%s1 + $0x5d0] sm:$0xff]
    %v220 = vld [vmem:[%s1 + $0x5d8] sm:$0xff]
    %v221 = vld [vmem:[%s1 + $0x5e0] sm:$0xff]
    %v222 = vld [vmem:[%s1 + $0x5e8] sm:$0xff]
    %v223 = vld [vmem:[%s1 + $0x5f0] sm:$0xff]
    %v224 = vld [vmem:[%s1 + $0x5f8] sm:$0xff]
    %v225 = vld [vmem:[%s1 + $0x600] sm:$0xff]
    %v226 = vld [vmem:[%s1 + $0x608] sm:$0xff]
    %v227 = vld [vmem:[%s1 + $0x610] sm:$0xff]
    %v228 = vld [vmem:[%s1 + $0x618] sm:$0xff]
    %v229 = vld [vmem:[%s1 + $0x620] sm:$0xff]
    %v230 = vld [vmem:[%s1 + $0x628] sm:$0xff]
    %v231 = vld [vmem:[%s1 + $0x630] sm:$0xff]
    %v232 = vld [vmem:[%s1 + $0x638] sm:$0xff]
    %v233 = vld [vmem:[%s1 + $0x640] sm:$0xff]
    %v234 = vld [vmem:[%s1 + $0x648] sm:$0xff]
    %v235 = vld [vmem:[%s1 + $0x650] sm:$0xff]
    %v236 = vld [vmem:[%s1 + $0x658] sm:$0xff]
    %v237 = vld [vmem:[%s1 + $0x660] sm:$0xff]
    %v238 = vld [vmem:[%s1 + $0x668] sm:$0xff]
    %v239 = vld [vmem:[%s1 + $0x670] sm:$0xff]
    %v240 = vld [vmem:[%s1 + $0x678] sm:$0xff]
    %v241 = vld [vmem:[%s1 + $0x680] sm:$0xff]
    %v242 = vld [vmem:[%s1 + $0x688] sm:$0xff]
    %v243 = vld [vmem:[%s1 + $0x690] sm:$0xff]
    %v244 = vld [vmem:[%s1 + $0x698] sm:$0xff]
    %v245 = vld [vmem:[%s1 + $0x6a0] sm:$0xff]
    %v246 = vld [vmem:[%s1 + $0x6a8] sm:$0xff]
    %v247 = vld [vmem:[%s1 + $0x6b0] sm:$0xff]
    %v248 = vld [vmem:[%s1 + $0x6b8] sm:$0xff]
    %v249 = vld [vmem:[%s1 + $0x6c0] sm:$0xff]
    %v250 = vld [vmem:[%s1 + $0x6c8] sm:$0xff]
    %v251 = vld [vmem:[%s1 + $0x6d0] sm:$0xff]
    %v252 = vld [vmem:[%s1 + $0x6d8] sm:$0xff]
    %v253 = vld [vmem:[%s1 + $0x6e0] sm:$0xff]
    %v254 = vld [vmem:[%s1 + $0x6e8] sm:$0xff]
    %v255 = vld [vmem:[%s1 + $0x6f0] sm:$0xff]
    %v256 = vld [vmem:[%s1 + $0x6f8] sm:$0xff]
    %v257 = vld [vmem:[%s1 + $0x700] sm:$0xff]
    %v258 = vld [vmem:[%s1 + $0x708] sm:$0xff]
    %v259 = vld [vmem:[%s1 + $0x710] sm:$0xff]
    %v260 = vld [vmem:[%s1 + $0x718] sm:$0xff]
    %v261 = vld [vmem:[%s1 + $0x720] sm:$0xff]
    %v262 = vld [vmem:[%s1 + $0x728] sm:$0xff]
    %v263 = vld [vmem:[%s1 + $0x730] sm:$0xff]
    %v264 = vld [vmem:[%s1 + $0x738] sm:$0xff]
    %v265 = vld [vmem:[%s1 + $0x740] sm:$0xff]
    %v266 = vld [vmem:[%s1 + $0x748] sm:$0xff]
    %v267 = vld [vmem:[%s1 + $0x750] sm:$0xff]
    %v268 = vld [vmem:[%s1 + $0x758] sm:$0xff]
    %v269 = vld [vmem:[%s1 + $0x760] sm:$0xff]
    %v270 = vld [vmem:[%s1 + $0x768] sm:$0xff]
    %v271 = vld [vmem:[%s1 + $0x770] sm:$0xff]
    %v272 = vld [vmem:[%s1 + $0x778] sm:$0xff]
    %v273 = vld [vmem:[%s1 + $0x780] sm:$0xff]
    %v274 = vld [vmem:[%s1 + $0x788] sm:$0xff]
    %v275 = vld [vmem:[%s1 + $0x790] sm:$0xff]
    %v276 = vld [vmem:[%s1 + $0x798] sm:$0xff]
    %v277 = vld [vmem:[%s1 + $0x7a0] sm:$0xff]
    %v278 = vld [vmem:[%s1 + $0x7a8] sm:$0xff]
    %v279 = vld [vmem:[%s1 + $0x7b0] sm:$0xff]
    %v280 = vld [vmem:[%s1 + $0x7b8] sm:$0xff]
    %v281 = vld [vmem:[%s1 + $0x7c0] sm:$0xff]
    %v282 = vld [vmem:[%s1 + $0x7c8] sm:$0xff]
    %v283 = vld [vmem:[%s1 + $0x7d0] sm:$0xff]
    %v284 = vld [vmem:[%s1 + $0x7d8] sm:$0xff]
    %v285 = vld [vmem:[%s1 + $0x7e0] sm:$0xff]
    %v286 = vld [vmem:[%s1 + $0x7e8] sm:$0xff]
    %v287 = vld [vmem:[%s1 + $0x7f0] sm:$0xff]
    %v288 = vld [vmem:[%s1 + $0x7f8] sm:$0xff]
    %v289 = vld [vmem:[%s1 + $0x800] sm:$0xff]
    %v290 = vld [vmem:[%s1 + $0x808] sm:$0xff]
    %v291 = vld [vmem:[%s1 + $0x810] sm:$0xff]
    %v292 = vld [vmem:[%s1 + $0x818] sm:$0xff]
    %v293 = vld [vmem:[%s1 + $0x820] sm:$0xff]
    %v294 = vld [vmem:[%s1 + $0x828] sm:$0xff]
    %v295 = vld [vmem:[%s1 + $0x830] sm:$0xff]
    %v296 = vld [vmem:[%s1 + $0x838] sm:$0xff]
    %v297 = vld [vmem:[%s1 + $0x840] sm:$0xff]
    %v298 = vld [vmem:[%s1 + $0x848] sm:$0xff]
    %v299 = vld [vmem:[%s1 + $0x850] sm:$0xff]
    %v300 = vld [vmem:[%s1 + $0x858] sm:$0xff]
    %v301 = vld [vmem:[%s1 + $0x860] sm:$0xff]
    %v302 = vld [vmem:[%s1 + $0x868] sm:$0xff]
    %v303 = vld [vmem:[%s1 + $0x870] sm:$0xff]
    %v304 = vld [vmem:[%s1 + $0x878] sm:$0xff]
    %v305 = vld [vmem:[%s1 + $0x880] sm:$0xff]
    %v306 = vld [vmem:[%s1 + $0x888] sm:$0xff]
    %v307 = vld [vmem:[%s1 + $0x890] sm:$0xff]
    %v308 = vld [vmem:[%s1 + $0x898] sm:$0xff]
    %v309 = vld [vmem:[%s1 + $0x8a0] sm:$0xff]
    %v310 = vld [vmem:[%s1 + $0x8a8] sm:$0xff]
    %v311 = vld [vmem:[%s1 + $0x8b0] sm:$0xff]
    %v312 = vld [vmem:[%s1 + $0x8b8] sm:$0xff]
    %v313 = vld [vmem:[%s1 + $0x8c0] sm:$0xff]
    %v314 = vld [vmem:[%s1 + $0x8c8] sm:$0xff]
    %v315 = vld [vmem:[%s1 + $0x8d0] sm:$0xff]
    %v316 = vld [vmem:[%s1 + $0x8d8] sm:$0xff]
    %v317 = vld [vmem:[%s1 + $0x8e0] sm:$0xff]
    %v318 = vld [vmem:[%s1 + $0x8e8] sm:$0xff]
    %v319 = vld [vmem:[%s1 + $0x8f0] sm:$0xff]
    %v320 = vld [vmem:[%s1 + $0x8f8] sm:$0xff]
    %v321 = vld [vmem:[%s1 + $0x900] sm:$0xff]
    %v322 = vld [vmem:[%s1 + $0x908] sm:$0xff]
    %v323 = vld [vmem:[%s1 + $0x910] sm:$0xff]
    %v324 = vld [vmem:[%s1 + $0x918] sm:$0xff]
    %v325 = vld [vmem:[%s1 + $0x920] sm:$0xff]
    %v326 = vld [vmem:[%s1 + $0x928] sm:$0xff]
    %v327 = vld [vmem:[%s1 + $0x930] sm:$0xff]
    %v328 = vld [vmem:[%s1 + $0x938] sm:$0xff]
    %v329 = vld [vmem:[%s1 + $0x940] sm:$0xff]
    %v330 = vld [vmem:[%s1 + $0x948] sm:$0xff]
    %v331 = vld [vmem:[%s1 + $0x950] sm:$0xff]
    %v332 = vld [vmem:[%s1 + $0x958] sm:$0xff]
    %v333 = vld [vmem:[%s1 + $0x960] sm:$0xff]
    %v334 = vld [vmem:[%s1 + $0x968] sm:$0xff]
    %v335 = vld [vmem:[%s1 + $0x970] sm:$0xff]
    %v336 = vld [vmem:[%s1 + $0x978] sm:$0xff]
    %v337 = vld [vmem:[%s1 + $0x980] sm:$0xff]
    %v338 = vld [vmem:[%s1 + $0x988] sm:$0xff]
    %v339 = vld [vmem:[%s1 + $0x990] sm:$0xff]
    %v340 = vld [vmem:[%s1 + $0x998] sm:$0xff]
    %v341 = vld [vmem:[%s1 + $0x9a0] sm:$0xff]
    %v342 = vld [vmem:[%s1 + $0x9a8] sm:$0xff]
    %v343 = vld [vmem:[%s1 + $0x9b0] sm:$0xff]
    %v344 = vld [vmem:[%s1 + $0x9b8] sm:$0xff]
    %v345 = vld [vmem:[%s1 + $0x9c0] sm:$0xff]
    %v346 = vld [vmem:[%s1 + $0x9c8] sm:$0xff]
    %v347 = vld [vmem:[%s1 + $0x9d0] sm:$0xff]
    %v348 = vld [vmem:[%s1 + $0x9d8] sm:$0xff]
    %v349 = vld [vmem:[%s1 + $0x9e0] sm:$0xff]
    %v350 = vld [vmem:[%s1 + $0x9e8] sm:$0xff]
    %v351 = vld [vmem:[%s1 + $0x9f0] sm:$0xff]
    %v352 = vld [vmem:[%s1 + $0x9f8] sm:$0xff]
    %v353 = vld [vmem:[%s1 + $0xa00] sm:$0xff]
    %v354 = vld [vmem:[%s1 + $0xa08] sm:$0xff]
    %v355 = vld [vmem:[%s1 + $0xa10] sm:$0xff]
    %v356 = vld [vmem:[%s1 + $0xa18] sm:$0xff]
    %v357 = vld [vmem:[%s1 + $0xa20] sm:$0xff]
    %v358 = vld [vmem:[%s1 + $0xa28] sm:$0xff]
    %v359 = vld [vmem:[%s1 + $0xa30] sm:$0xff]
    %v360 = vld [vmem:[%s1 + $0xa38] sm:$0xff]
    %v361 = vld [vmem:[%s1 + $0xa40] sm:$0xff]
    %v362 = vld [vmem:[%s1 + $0xa48] sm:$0xff]
    %v363 = vld [vmem:[%s1 + $0xa50] sm:$0xff]
    %v364 = vld [vmem:[%s1 + $0xa58] sm:$0xff]
    %v365 = vld [vmem:[%s1 + $0xa60] sm:$0xff]
    %v366 = vld [vmem:[%s1 + $0xa68] sm:$0xff]
    %v367 = vld [vmem:[%s1 + $0xa70] sm:$0xff]
    %v368 = vld [vmem:[%s1 + $0xa78] sm:$0xff]
    %v369 = vld [vmem:[%s1 + $0xa80] sm:$0xff]
    %v370 = vld [vmem:[%s1 + $0xa88] sm:$0xff]
    %v371 = vld [vmem:[%s2] sm:$0x1]
    %v373 = vperm.slane %v371, 0
    %381 = vst [vmem:[#allocation1] ss:$4 sm:$0xff] %v27
    %s382 = scalar_lea.vmem [#allocation1], 32
    %383 = vst [vmem:[%s382] ss:$4 sm:$0xff] %v28
    %v384 = vld.sshfl [vmem:[#allocation1] sm:$0xff pattern:$0x73625140]
    %v385 = vld.sshfl [vmem:[#allocation1 + $0x8] sm:$0xff pattern:$0x73625140]
    %v386 = vld.sshfl [vmem:[#allocation1 + $0x10] sm:$0xff pattern:$0x73625140]
    %v387 = vld.sshfl [vmem:[#allocation1 + $0x18] sm:$0xff pattern:$0x73625140]
    %v388 = vld.sshfl [vmem:[#allocation1 + $0x20] sm:$0xff pattern:$0x73625140]
    %v389 = vld.sshfl [vmem:[#allocation1 + $0x28] sm:$0xff pattern:$0x73625140]
    %v390 = vld.sshfl [vmem:[#allocation1 + $0x30] sm:$0xff pattern:$0x73625140]
    %v391 = vld.sshfl [vmem:[#allocation1 + $0x38] sm:$0xff pattern:$0x73625140]
    %392 = vst [vmem:[#allocation1] ss:$4 sm:$0xff] %v29
    %393 = vst [vmem:[%s382] ss:$4 sm:$0xff] %v30
    %v394 = vld.sshfl [vmem:[#allocation1] sm:$0xff pattern:$0x73625140]
    %v395 = vld.sshfl [vmem:[#allocation1 + $0x8] sm:$0xff pattern:$0x73625140]
    %v396 = vld.sshfl [vmem:[#allocation1 + $0x10] sm:$0xff pattern:$0x73625140]
    %v397 = vld.sshfl [vmem:[#allocation1 + $0x18] sm:$0xff pattern:$0x73625140]
    %v398 = vld.sshfl [vmem:[#allocation1 + $0x20] sm:$0xff pattern:$0x73625140]
    %v399 = vld.sshfl [vmem:[#allocation1 + $0x28] sm:$0xff pattern:$0x73625140]
    %v400 = vld.sshfl [vmem:[#allocation1 + $0x30] sm:$0xff pattern:$0x73625140]
    %v401 = vld.sshfl [vmem:[#allocation1 + $0x38] sm:$0xff pattern:$0x73625140]
    %402 = vst [vmem:[#allocation1] ss:$4 sm:$0xff] %v31
    %403 = vst [vmem:[%s382] ss:$4 sm:$0xff] %v32
    %v404 = vld.sshfl [vmem:[#allocation1] sm:$0xff pattern:$0x73625140]
    %v405 = vld.sshfl [vmem:[#allocation1 + $0x8] sm:$0xff pattern:$0x73625140]
    %v406 = vld.sshfl [vmem:[#allocation1 + $0x10] sm:$0xff pattern:$0x73625140]
    %v407 = vld.sshfl [vmem:[#allocation1 + $0x18] sm:$0xff pattern:$0x73625140]
    %v408 = vld.sshfl [vmem:[#allocation1 + $0x20] sm:$0xff pattern:$0x73625140]
    %v409 = vld.sshfl [vmem:[#allocation1 + $0x28] sm:$0xff pattern:$0x73625140]
    %vm431 = vcmask 130048
    %v432 = vsel %vm431, %v409, 0
    %434 = vmatpush.msra.mxu0 %v48
    %435 = vmatpush.msra.mxu0 %v47
    %436 = vmatpush.msra.mxu0 %v46
    %437 = vmatpush.msra.mxu0 %v45
    %438 = vmatpush.msra.mxu0 %v44
    %439 = vmatpush.msra.mxu0 %v43
    %440 = vmatpush.msra.mxu0 %v42
    %441 = vmatpush.msra.mxu0 %v41
    %442 = vmatpush.msra.mxu0 %v40
    %443 = vmatpush.msra.mxu0 %v39
    %444 = vmatpush.msra.mxu0 %v38
    %445 = vmatpush.msra.mxu0 %v37
    %446 = vmatpush.msra.mxu0 %v36
    %447 = vmatpush.msra.mxu0 %v35
    %448 = vmatpush.msra.mxu0 %v34
    %449 = vmatpush.msra.mxu0 %v33
    %450 = vmatmul.f32.gmra.mxu0 %v384
    %v451 = vpop.f32.mrf.mxu0
    %v452 = vadd.f32 %v373, %v451
    %453 = vdwg.mxu0
    %454 = vmatpush.msra.mxu0 %v64
    %455 = vmatpush.msra.mxu0 %v63
    %456 = vmatpush.msra.mxu0 %v62
    %457 = vmatpush.msra.mxu0 %v61
    %458 = vmatpush.msra.mxu0 %v60
    %459 = vmatpush.msra.mxu0 %v59
    %460 = vmatpush.msra.mxu0 %v58
    %461 = vmatpush.msra.mxu0 %v57
    %462 = vmatpush.msra.mxu0 %v56
    %463 = vmatpush.msra.mxu0 %v55
    %464 = vmatpush.msra.mxu0 %v54
    %465 = vmatpush.msra.mxu0 %v53
    %466 = vmatpush.msra.mxu0 %v52
    %467 = vmatpush.msra.mxu0 %v51
    %468 = vmatpush.msra.mxu0 %v50
    %469 = vmatpush.msra.mxu0 %v49
    %470 = vmatmul.f32.gmra.mxu0 %v385
    %v471 = vpop.f32.mrf.mxu0
    %v472 = vadd.f32 %v452, %v471
    %473 = vdwg.mxu0
    %474 = vmatpush.msra.mxu0 %v80
    %475 = vmatpush.msra.mxu0 %v79
    %476 = vmatpush.msra.mxu0 %v78
    %477 = vmatpush.msra.mxu0 %v77
    %478 = vmatpush.msra.mxu0 %v76
    %479 = vmatpush.msra.mxu0 %v75
    %480 = vmatpush.msra.mxu0 %v74
    %481 = vmatpush.msra.mxu0 %v73
    %482 = vmatpush.msra.mxu0 %v72
    %483 = vmatpush.msra.mxu0 %v71
    %484 = vmatpush.msra.mxu0 %v70
    %485 = vmatpush.msra.mxu0 %v69
    %486 = vmatpush.msra.mxu0 %v68
    %487 = vmatpush.msra.mxu0 %v67
    %488 = vmatpush.msra.mxu0 %v66
    %489 = vmatpush.msra.mxu0 %v65
    %490 = vmatmul.f32.gmra.mxu0 %v386
    %v491 = vpop.f32.mrf.mxu0
    %v492 = vadd.f32 %v472, %v491
    %493 = vdwg.mxu0
    %494 = vmatpush.msra.mxu0 %v96
    %495 = vmatpush.msra.mxu0 %v95
    %496 = vmatpush.msra.mxu0 %v94
    %497 = vmatpush.msra.mxu0 %v93
    %498 = vmatpush.msra.mxu0 %v92
    %499 = vmatpush.msra.mxu0 %v91
    %500 = vmatpush.msra.mxu0 %v90
    %501 = vmatpush.msra.mxu0 %v89
    %502 = vmatpush.msra.mxu0 %v88
    %503 = vmatpush.msra.mxu0 %v87
    %504 = vmatpush.msra.mxu0 %v86
    %505 = vmatpush.msra.mxu0 %v85
    %506 = vmatpush.msra.mxu0 %v84
    %507 = vmatpush.msra.mxu0 %v83
    %508 = vmatpush.msra.mxu0 %v82
    %509 = vmatpush.msra.mxu0 %v81
    %510 = vmatmul.f32.gmra.mxu0 %v387
    %v511 = vpop.f32.mrf.mxu0
    %v512 = vadd.f32 %v492, %v511
    %513 = vdwg.mxu0
    %514 = vmatpush.msra.mxu0 %v112
    %515 = vmatpush.msra.mxu0 %v111
    %516 = vmatpush.msra.mxu0 %v110
    %517 = vmatpush.msra.mxu0 %v109
    %518 = vmatpush.msra.mxu0 %v108
    %519 = vmatpush.msra.mxu0 %v107
    %520 = vmatpush.msra.mxu0 %v106
    %521 = vmatpush.msra.mxu0 %v105
    %522 = vmatpush.msra.mxu0 %v104
    %523 = vmatpush.msra.mxu0 %v103
    %524 = vmatpush.msra.mxu0 %v102
    %525 = vmatpush.msra.mxu0 %v101
    %526 = vmatpush.msra.mxu0 %v100
    %527 = vmatpush.msra.mxu0 %v99
    %528 = vmatpush.msra.mxu0 %v98
    %529 = vmatpush.msra.mxu0 %v97
    %530 = vmatmul.f32.gmra.mxu0 %v388
    %v531 = vpop.f32.mrf.mxu0
    %v532 = vadd.f32 %v512, %v531
    %533 = vdwg.mxu0
    %534 = vmatpush.msra.mxu0 %v128
    %535 = vmatpush.msra.mxu0 %v127
    %536 = vmatpush.msra.mxu0 %v126
    %537 = vmatpush.msra.mxu0 %v125
    %538 = vmatpush.msra.mxu0 %v124
    %539 = vmatpush.msra.mxu0 %v123
    %540 = vmatpush.msra.mxu0 %v122
    %541 = vmatpush.msra.mxu0 %v121
    %542 = vmatpush.msra.mxu0 %v120
    %543 = vmatpush.msra.mxu0 %v119
    %544 = vmatpush.msra.mxu0 %v118
    %545 = vmatpush.msra.mxu0 %v117
    %546 = vmatpush.msra.mxu0 %v116
    %547 = vmatpush.msra.mxu0 %v115
    %548 = vmatpush.msra.mxu0 %v114
    %549 = vmatpush.msra.mxu0 %v113
    %550 = vmatmul.f32.gmra.mxu0 %v389
    %v551 = vpop.f32.mrf.mxu0
    %v552 = vadd.f32 %v532, %v551
    %553 = vdwg.mxu0
    %554 = vmatpush.msra.mxu0 %v144
    %555 = vmatpush.msra.mxu0 %v143
    %556 = vmatpush.msra.mxu0 %v142
    %557 = vmatpush.msra.mxu0 %v141
    %558 = vmatpush.msra.mxu0 %v140
    %559 = vmatpush.msra.mxu0 %v139
    %560 = vmatpush.msra.mxu0 %v138
    %561 = vmatpush.msra.mxu0 %v137
    %562 = vmatpush.msra.mxu0 %v136
    %563 = vmatpush.msra.mxu0 %v135
    %564 = vmatpush.msra.mxu0 %v134
    %565 = vmatpush.msra.mxu0 %v133
    %566 = vmatpush.msra.mxu0 %v132
    %567 = vmatpush.msra.mxu0 %v131
    %568 = vmatpush.msra.mxu0 %v130
    %569 = vmatpush.msra.mxu0 %v129
    %570 = vmatmul.f32.gmra.mxu0 %v390
    %v571 = vpop.f32.mrf.mxu0
    %v572 = vadd.f32 %v552, %v571
    %573 = vdwg.mxu0
    %574 = vmatpush.msra.mxu0 %v160
    %575 = vmatpush.msra.mxu0 %v159
    %576 = vmatpush.msra.mxu0 %v158
    %577 = vmatpush.msra.mxu0 %v157
    %578 = vmatpush.msra.mxu0 %v156
    %579 = vmatpush.msra.mxu0 %v155
    %580 = vmatpush.msra.mxu0 %v154
    %581 = vmatpush.msra.mxu0 %v153
    %582 = vmatpush.msra.mxu0 %v152
    %583 = vmatpush.msra.mxu0 %v151
    %584 = vmatpush.msra.mxu0 %v150
    %585 = vmatpush.msra.mxu0 %v149
    %586 = vmatpush.msra.mxu0 %v148
    %587 = vmatpush.msra.mxu0 %v147
    %588 = vmatpush.msra.mxu0 %v146
    %589 = vmatpush.msra.mxu0 %v145
    %590 = vmatmul.f32.gmra.mxu0 %v391
    %v591 = vpop.f32.mrf.mxu0
    %v592 = vadd.f32 %v572, %v591
    %593 = vdwg.mxu0
    %594 = vmatpush.msra.mxu0 %v176
    %595 = vmatpush.msra.mxu0 %v175
    %596 = vmatpush.msra.mxu0 %v174
    %597 = vmatpush.msra.mxu0 %v173
    %598 = vmatpush.msra.mxu0 %v172
    %599 = vmatpush.msra.mxu0 %v171
    %600 = vmatpush.msra.mxu0 %v170
    %601 = vmatpush.msra.mxu0 %v169
    %602 = vmatpush.msra.mxu0 %v168
    %603 = vmatpush.msra.mxu0 %v167
    %604 = vmatpush.msra.mxu0 %v166
    %605 = vmatpush.msra.mxu0 %v165
    %606 = vmatpush.msra.mxu0 %v164
    %607 = vmatpush.msra.mxu0 %v163
    %608 = vmatpush.msra.mxu0 %v162
    %609 = vmatpush.msra.mxu0 %v161
    %610 = vmatmul.f32.gmra.mxu0 %v394
    %v611 = vpop.f32.mrf.mxu0
    %v612 = vadd.f32 %v592, %v611
    %613 = vdwg.mxu0
    %614 = vmatpush.msra.mxu0 %v192
    %615 = vmatpush.msra.mxu0 %v191
    %616 = vmatpush.msra.mxu0 %v190
    %617 = vmatpush.msra.mxu0 %v189
    %618 = vmatpush.msra.mxu0 %v188
    %619 = vmatpush.msra.mxu0 %v187
    %620 = vmatpush.msra.mxu0 %v186
    %621 = vmatpush.msra.mxu0 %v185
    %622 = vmatpush.msra.mxu0 %v184
    %623 = vmatpush.msra.mxu0 %v183
    %624 = vmatpush.msra.mxu0 %v182
    %625 = vmatpush.msra.mxu0 %v181
    %626 = vmatpush.msra.mxu0 %v180
    %627 = vmatpush.msra.mxu0 %v179
    %628 = vmatpush.msra.mxu0 %v178
    %629 = vmatpush.msra.mxu0 %v177
    %630 = vmatmul.f32.gmra.mxu0 %v395
    %v631 = vpop.f32.mrf.mxu0
    %v632 = vadd.f32 %v612, %v631
    %633 = vdwg.mxu0
    %634 = vmatpush.msra.mxu0 %v208
    %635 = vmatpush.msra.mxu0 %v207
    %636 = vmatpush.msra.mxu0 %v206
    %637 = vmatpush.msra.mxu0 %v205
    %638 = vmatpush.msra.mxu0 %v204
    %639 = vmatpush.msra.mxu0 %v203
    %640 = vmatpush.msra.mxu0 %v202
    %641 = vmatpush.msra.mxu0 %v201
    %642 = vmatpush.msra.mxu0 %v200
    %643 = vmatpush.msra.mxu0 %v199
    %644 = vmatpush.msra.mxu0 %v198
    %645 = vmatpush.msra.mxu0 %v197
    %646 = vmatpush.msra.mxu0 %v196
    %647 = vmatpush.msra.mxu0 %v195
    %648 = vmatpush.msra.mxu0 %v194
    %649 = vmatpush.msra.mxu0 %v193
    %650 = vmatmul.f32.gmra.mxu0 %v396
    %v651 = vpop.f32.mrf.mxu0
    %v652 = vadd.f32 %v632, %v651
    %653 = vdwg.mxu0
    %654 = vmatpush.msra.mxu0 %v224
    %655 = vmatpush.msra.mxu0 %v223
    %656 = vmatpush.msra.mxu0 %v222
    %657 = vmatpush.msra.mxu0 %v221
    %658 = vmatpush.msra.mxu0 %v220
    %659 = vmatpush.msra.mxu0 %v219
    %660 = vmatpush.msra.mxu0 %v218
    %661 = vmatpush.msra.mxu0 %v217
    %662 = vmatpush.msra.mxu0 %v216
    %663 = vmatpush.msra.mxu0 %v215
    %664 = vmatpush.msra.mxu0 %v214
    %665 = vmatpush.msra.mxu0 %v213
    %666 = vmatpush.msra.mxu0 %v212
    %667 = vmatpush.msra.mxu0 %v211
    %668 = vmatpush.msra.mxu0 %v210
    %669 = vmatpush.msra.mxu0 %v209
    %670 = vmatmul.f32.gmra.mxu0 %v397
    %v671 = vpop.f32.mrf.mxu0
    %v672 = vadd.f32 %v652, %v671
    %673 = vdwg.mxu0
    %674 = vmatpush.msra.mxu0 %v240
    %675 = vmatpush.msra.mxu0 %v239
    %676 = vmatpush.msra.mxu0 %v238
    %677 = vmatpush.msra.mxu0 %v237
    %678 = vmatpush.msra.mxu0 %v236
    %679 = vmatpush.msra.mxu0 %v235
    %680 = vmatpush.msra.mxu0 %v234
    %681 = vmatpush.msra.mxu0 %v233
    %682 = vmatpush.msra.mxu0 %v232
    %683 = vmatpush.msra.mxu0 %v231
    %684 = vmatpush.msra.mxu0 %v230
    %685 = vmatpush.msra.mxu0 %v229
    %686 = vmatpush.msra.mxu0 %v228
    %687 = vmatpush.msra.mxu0 %v227
    %688 = vmatpush.msra.mxu0 %v226
    %689 = vmatpush.msra.mxu0 %v225
    %690 = vmatmul.f32.gmra.mxu0 %v398
    %v691 = vpop.f32.mrf.mxu0
    %v692 = vadd.f32 %v672, %v691
    %693 = vdwg.mxu0
    %694 = vmatpush.msra.mxu0 %v256
    %695 = vmatpush.msra.mxu0 %v255
    %696 = vmatpush.msra.mxu0 %v254
    %697 = vmatpush.msra.mxu0 %v253
    %698 = vmatpush.msra.mxu0 %v252
    %699 = vmatpush.msra.mxu0 %v251
    %700 = vmatpush.msra.mxu0 %v250
    %701 = vmatpush.msra.mxu0 %v249
    %702 = vmatpush.msra.mxu0 %v248
    %703 = vmatpush.msra.mxu0 %v247
    %704 = vmatpush.msra.mxu0 %v246
    %705 = vmatpush.msra.mxu0 %v245
    %706 = vmatpush.msra.mxu0 %v244
    %707 = vmatpush.msra.mxu0 %v243
    %708 = vmatpush.msra.mxu0 %v242
    %709 = vmatpush.msra.mxu0 %v241
    %710 = vmatmul.f32.gmra.mxu0 %v399
    %v711 = vpop.f32.mrf.mxu0
    %v712 = vadd.f32 %v692, %v711
    %713 = vdwg.mxu0
    %714 = vmatpush.msra.mxu0 %v272
    %715 = vmatpush.msra.mxu0 %v271
    %716 = vmatpush.msra.mxu0 %v270
    %717 = vmatpush.msra.mxu0 %v269
    %718 = vmatpush.msra.mxu0 %v268
    %719 = vmatpush.msra.mxu0 %v267
    %720 = vmatpush.msra.mxu0 %v266
    %721 = vmatpush.msra.mxu0 %v265
    %722 = vmatpush.msra.mxu0 %v264
    %723 = vmatpush.msra.mxu0 %v263
    %724 = vmatpush.msra.mxu0 %v262
    %725 = vmatpush.msra.mxu0 %v261
    %726 = vmatpush.msra.mxu0 %v260
    %727 = vmatpush.msra.mxu0 %v259
    %728 = vmatpush.msra.mxu0 %v258
    %729 = vmatpush.msra.mxu0 %v257
    %730 = vmatmul.f32.gmra.mxu0 %v400
    %v731 = vpop.f32.mrf.mxu0
    %v732 = vadd.f32 %v712, %v731
    %733 = vdwg.mxu0
    %734 = vmatpush.msra.mxu0 %v288
    %735 = vmatpush.msra.mxu0 %v287
    %736 = vmatpush.msra.mxu0 %v286
    %737 = vmatpush.msra.mxu0 %v285
    %738 = vmatpush.msra.mxu0 %v284
    %739 = vmatpush.msra.mxu0 %v283
    %740 = vmatpush.msra.mxu0 %v282
    %741 = vmatpush.msra.mxu0 %v281
    %742 = vmatpush.msra.mxu0 %v280
    %743 = vmatpush.msra.mxu0 %v279
    %744 = vmatpush.msra.mxu0 %v278
    %745 = vmatpush.msra.mxu0 %v277
    %746 = vmatpush.msra.mxu0 %v276
    %747 = vmatpush.msra.mxu0 %v275
    %748 = vmatpush.msra.mxu0 %v274
    %749 = vmatpush.msra.mxu0 %v273
    %750 = vmatmul.f32.gmra.mxu0 %v401
    %v751 = vpop.f32.mrf.mxu0
    %v752 = vadd.f32 %v732, %v751
    %753 = vdwg.mxu0
    %754 = vmatpush.msra.mxu0 %v304
    %755 = vmatpush.msra.mxu0 %v303
    %756 = vmatpush.msra.mxu0 %v302
    %757 = vmatpush.msra.mxu0 %v301
    %758 = vmatpush.msra.mxu0 %v300
    %759 = vmatpush.msra.mxu0 %v299
    %760 = vmatpush.msra.mxu0 %v298
    %761 = vmatpush.msra.mxu0 %v297
    %762 = vmatpush.msra.mxu0 %v296
    %763 = vmatpush.msra.mxu0 %v295
    %764 = vmatpush.msra.mxu0 %v294
    %765 = vmatpush.msra.mxu0 %v293
    %766 = vmatpush.msra.mxu0 %v292
    %767 = vmatpush.msra.mxu0 %v291
    %768 = vmatpush.msra.mxu0 %v290
    %769 = vmatpush.msra.mxu0 %v289
    %770 = vmatmul.f32.gmra.mxu0 %v404
    %v771 = vpop.f32.mrf.mxu0
    %v772 = vadd.f32 %v752, %v771
    %773 = vdwg.mxu0
    %774 = vmatpush.msra.mxu0 %v320
    %775 = vmatpush.msra.mxu0 %v319
    %776 = vmatpush.msra.mxu0 %v318
    %777 = vmatpush.msra.mxu0 %v317
    %778 = vmatpush.msra.mxu0 %v316
    %779 = vmatpush.msra.mxu0 %v315
    %780 = vmatpush.msra.mxu0 %v314
    %781 = vmatpush.msra.mxu0 %v313
    %782 = vmatpush.msra.mxu0 %v312
    %783 = vmatpush.msra.mxu0 %v311
    %784 = vmatpush.msra.mxu0 %v310
    %785 = vmatpush.msra.mxu0 %v309
    %786 = vmatpush.msra.mxu0 %v308
    %787 = vmatpush.msra.mxu0 %v307
    %788 = vmatpush.msra.mxu0 %v306
    %789 = vmatpush.msra.mxu0 %v305
    %790 = vmatmul.f32.gmra.mxu0 %v405
    %v791 = vpop.f32.mrf.mxu0
    %v792 = vadd.f32 %v772, %v791
    %793 = vdwg.mxu0
    %794 = vmatpush.msra.mxu0 %v336
    %795 = vmatpush.msra.mxu0 %v335
    %796 = vmatpush.msra.mxu0 %v334
    %797 = vmatpush.msra.mxu0 %v333
    %798 = vmatpush.msra.mxu0 %v332
    %799 = vmatpush.msra.mxu0 %v331
    %800 = vmatpush.msra.mxu0 %v330
    %801 = vmatpush.msra.mxu0 %v329
    %802 = vmatpush.msra.mxu0 %v328
    %803 = vmatpush.msra.mxu0 %v327
    %804 = vmatpush.msra.mxu0 %v326
    %805 = vmatpush.msra.mxu0 %v325
    %806 = vmatpush.msra.mxu0 %v324
    %807 = vmatpush.msra.mxu0 %v323
    %808 = vmatpush.msra.mxu0 %v322
    %809 = vmatpush.msra.mxu0 %v321
    %810 = vmatmul.f32.gmra.mxu0 %v406
    %v811 = vpop.f32.mrf.mxu0
    %v812 = vadd.f32 %v792, %v811
    %813 = vdwg.mxu0
    %814 = vmatpush.msra.mxu0 %v352
    %815 = vmatpush.msra.mxu0 %v351
    %816 = vmatpush.msra.mxu0 %v350
    %817 = vmatpush.msra.mxu0 %v349
    %818 = vmatpush.msra.mxu0 %v348
    %819 = vmatpush.msra.mxu0 %v347
    %820 = vmatpush.msra.mxu0 %v346
    %821 = vmatpush.msra.mxu0 %v345
    %822 = vmatpush.msra.mxu0 %v344
    %823 = vmatpush.msra.mxu0 %v343
    %824 = vmatpush.msra.mxu0 %v342
    %825 = vmatpush.msra.mxu0 %v341
    %826 = vmatpush.msra.mxu0 %v340
    %827 = vmatpush.msra.mxu0 %v339
    %828 = vmatpush.msra.mxu0 %v338
    %829 = vmatpush.msra.mxu0 %v337
    %830 = vmatmul.f32.gmra.mxu0 %v407
    %v831 = vpop.f32.mrf.mxu0
    %v832 = vadd.f32 %v812, %v831
    %833 = vdwg.mxu0
    %834 = vmatpush.msra.mxu0 %v368
    %835 = vmatpush.msra.mxu0 %v367
    %836 = vmatpush.msra.mxu0 %v366
    %837 = vmatpush.msra.mxu0 %v365
    %838 = vmatpush.msra.mxu0 %v364
    %839 = vmatpush.msra.mxu0 %v363
    %840 = vmatpush.msra.mxu0 %v362
    %841 = vmatpush.msra.mxu0 %v361
    %842 = vmatpush.msra.mxu0 %v360
    %843 = vmatpush.msra.mxu0 %v359
    %844 = vmatpush.msra.mxu0 %v358
    %845 = vmatpush.msra.mxu0 %v357
    %846 = vmatpush.msra.mxu0 %v356
    %847 = vmatpush.msra.mxu0 %v355
    %848 = vmatpush.msra.mxu0 %v354
    %849 = vmatpush.msra.mxu0 %v353
    %850 = vmatmul.f32.gmra.mxu0 %v408
    %v851 = vpop.f32.mrf.mxu0
    %v852 = vadd.f32 %v832, %v851
    %853 = vdwg.mxu0
    %854 = vmatpush.msra.mxu0 0.0
    %855 = vmatpush.msra.mxu0 0.0
    %856 = vmatpush.msra.mxu0 0.0
    %857 = vmatpush.msra.mxu0 0.0
    %858 = vmatpush.msra.mxu0 0.0
    %859 = vmatpush.msra.mxu0 0.0
    %860 = vmatpush.msra.mxu0 0.0
    %861 = vmatpush.msra.mxu0 0.0
    %862 = vmatpush.msra.mxu0 0.0
    %863 = vmatpush.msra.mxu0 0.0
    %864 = vmatpush.msra.mxu0 0.0
    %865 = vmatpush.msra.mxu0 0.0
    %866 = vmatpush.msra.mxu0 0.0
    %867 = vmatpush.msra.mxu0 0.0
    %868 = vmatpush.msra.mxu0 %v370
    %869 = vmatpush.msra.mxu0 %v369
    %870 = vmatmul.f32.gmra.mxu0 %v432
    %v871 = vpop.f32.mrf.mxu0
    %v872 = vadd.f32 %v852, %v871
    %873 = vdwg.mxu0
    %v874 = vmax.f32 %v872, 0.0
    %v875 = vld [vmem:[%s3] sm:$0xff]
    %v876 = vld [vmem:[%s3 + $0x8] sm:$0xff]
    %v877 = vld [vmem:[%s3 + $0x10] sm:$0xff]
    %v878 = vld [vmem:[%s3 + $0x18] sm:$0xff]
    %v879 = vld [vmem:[%s3 + $0x20] sm:$0xff]
    %v880 = vld [vmem:[%s3 + $0x28] sm:$0xff]
    %v881 = vld [vmem:[%s3 + $0x30] sm:$0xff]
    %v882 = vld [vmem:[%s3 + $0x38] sm:$0xff]
    %v883 = vld [vmem:[%s3 + $0x40] sm:$0xff]
    %v884 = vld [vmem:[%s3 + $0x48] sm:$0xff]
    %v885 = vld [vmem:[%s3 + $0x50] sm:$0xff]
    %v886 = vld [vmem:[%s3 + $0x58] sm:$0xff]
    %v887 = vld [vmem:[%s3 + $0x60] sm:$0xff]
    %v888 = vld [vmem:[%s3 + $0x68] sm:$0xff]
    %v889 = vld [vmem:[%s3 + $0x70] sm:$0xff]
    %v890 = vld [vmem:[%s4] sm:$0x1]
    %v892 = vperm.slane %v890, 0
    %vm894 = vcmask 982016
    %v896 = vsel %vm894, %v874, 0
    %898 = vmatpush.msra.mxu0 0.0
    %899 = vmatpush.msra.mxu0 %v889
    %900 = vmatpush.msra.mxu0 %v888
    %901 = vmatpush.msra.mxu0 %v887
    %902 = vmatpush.msra.mxu0 %v886
    %903 = vmatpush.msra.mxu0 %v885
    %904 = vmatpush.msra.mxu0 %v884
    %905 = vmatpush.msra.mxu0 %v883
    %906 = vmatpush.msra.mxu0 %v882
    %907 = vmatpush.msra.mxu0 %v881
    %908 = vmatpush.msra.mxu0 %v880
    %909 = vmatpush.msra.mxu0 %v879
    %910 = vmatpush.msra.mxu0 %v878
    %911 = vmatpush.msra.mxu0 %v877
    %912 = vmatpush.msra.mxu0 %v876
    %913 = vmatpush.msra.mxu0 %v875
    %914 = vmatmul.f32.gmra.mxu0 %v896
    %v915 = vpop.f32.mrf.mxu0
    %v916 = vadd.f32 %v892, %v915
    %917 = vdwg.mxu0
    %v918 = vmax.f32 %v916, 0.0
    %v919 = vld [vmem:[%s5] sm:$0xff]
    %v920 = vld [vmem:[%s5 + $0x8] sm:$0xff]
    %v921 = vld [vmem:[%s5 + $0x10] sm:$0xff]
    %v922 = vld [vmem:[%s5 + $0x18] sm:$0xff]
    %v923 = vld [vmem:[%s5 + $0x20] sm:$0xff]
    %v924 = vld [vmem:[%s5 + $0x28] sm:$0xff]
    %v925 = vld [vmem:[%s5 + $0x30] sm:$0xff]
    %v926 = vld [vmem:[%s5 + $0x38] sm:$0xff]
    %v927 = vld [vmem:[%s5 + $0x40] sm:$0xff]
    %v928 = vld [vmem:[%s5 + $0x48] sm:$0xff]
    %v929 = vld [vmem:[%s5 + $0x50] sm:$0xf]
    %v930 = vld [vmem:[%s6] sm:$0x1]
    %v932 = vperm.slane %v930, 0
    %vm934 = vcmask 687104
    %v936 = vsel %vm934, %v918, 0
    %vm938 = vcmask 1043456
    %v940 = vsel %vm938, %v929, 0
    %942 = vmatpush.msra.mxu0 0.0
    %943 = vmatpush.msra.mxu0 0.0
    %944 = vmatpush.msra.mxu0 0.0
    %945 = vmatpush.msra.mxu0 0.0
    %946 = vmatpush.msra.mxu0 0.0
    %947 = vmatpush.msra.mxu0 %v940
    %948 = vmatpush.msra.mxu0 %v928
    %949 = vmatpush.msra.mxu0 %v927
    %950 = vmatpush.msra.mxu0 %v926
    %951 = vmatpush.msra.mxu0 %v925
    %952 = vmatpush.msra.mxu0 %v924
    %953 = vmatpush.msra.mxu0 %v923
    %954 = vmatpush.msra.mxu0 %v922
    %955 = vmatpush.msra.mxu0 %v921
    %956 = vmatpush.msra.mxu0 %v920
    %957 = vmatpush.msra.mxu0 %v919
    %958 = vmatmul.f32.gmra.mxu0 %v936
    %v959 = vpop.f32.mrf.mxu0
    %v960 = vadd.f32 %v932, %v959
    %961 = vdwg.mxu0
    %vm962 = vcmask 74752
    %963 = vst.msk [vmem:[#allocation2] sm:$0x3] %vm962, %v960
    // Predicated region
    $region30: #{net_forward.5} parent=1 // pred_check
      _
    $region31: #{net_forward.5} parent=1 // pred_check_branch
      %965 = sbr.rel (0) target = $region33
    $region32: #{net_forward.5} parent=1 // pred_region
      %967 = vsyncadd [#allocation3], 0
      %s969 = sshll.u32 [#allocation2], 4
      %s970 = int_to_ptr.vmem [resolvable:$true] %s969
      %s971 = sshll.u32 %s7, 4
      %s972 = int_to_ptr.hbm [resolvable:$true] %s971
      %974 = dma.vmem_to_hbm [thread:$0]  %s970, 32, %s972, [#allocation3]
    $region33: #{net_forward.5} parent=1 // pred_fallthru
      _
    // Predicated region
    $region34: #{net_forward.5} parent=1 // pred_check
      _
    $region35: #{net_forward.5} parent=1 // pred_check_branch
      %976 = sbr.rel (0) target = $region37
    $region36: #{net_forward.5} parent=1 // pred_region
      %978 = dma.done [#allocation3], 32
    $region37: #{net_forward.5} parent=1 // pred_fallthru
      _
    %979 = vsyncpa [#allocation3], 1

</llo_original>
